<compile_context>
chip_gen: v5e
topology: v5e:2x2
jax: 0.10.0
libtpu: 0.0.40
codegen_flags: <defaults>
</compile_context>

<pallas_src>
import jax
import jax.numpy as jnp
import numpy as np
from jax import lax
from jax.experimental import pallas as pl
from jax.experimental.pallas import tpu as pltpu

LEAKY = 0.2
KQ = 25        # conv2 taps (kh2, kw2) == number of duplicated conv1 row-groups
P = 25         # conv2 output pixels (oh2, ow2)
P_PAD = 32     # p rows padded to a sublane multiple
K1 = 75        # conv1 patch size 5*5*3
K1_PAD = 128   # lane-dense padding
C1 = 64        # conv1 out channels
C1_PAD = 128   # lane-dense padding
C2 = 128       # conv2 out channels
K2 = KQ * C1_PAD  # 3200 — stacked conv2 contraction dim


# --------------------------------------------------------------------------- #
# Fused Pallas kernel: conv1 + LeakyReLU + conv2 + LeakyReLU + Linear reduction
# --------------------------------------------------------------------------- #
def _fused_disc_kernel(cols_ref, w1_ref, w2_ref, wl_ref, inter_ref, lpart_ref, y1_scr):
    # cols_ref : (BT, 25, 32, 128) bf16  (sample, (kh2,kw2), (oh2,ow2) pad, conv1 patch pad)
    # w1_ref   : (128, 128)       bf16   conv1 weight: (patch, cout), zero padded
    # w2_ref   : (3200, 128)      bf16   conv2 weight K-stacked: row = q*128 + cin
    # wl_ref   : (32, 128)        f32    Linear weight rearranged to (p padded, cout)
    # inter_ref: (BT, 32, 128)    f32    LeakyReLU(conv2), rows p = oh2*5+ow2 (pad rows 0)
    # lpart_ref: (BT, 1, 128)     f32    per-lane partial sums of the final Linear
    # y1_scr   : (BT*32, 3200)    bf16   VMEM scratch holding K-stacked LeakyReLU(conv1)
    bt = inter_ref.shape[0]
    rows = bt * P_PAD

    # conv1, one (BT*32,128)@(128,128) matmul per tap; results K-stacked along lanes.
    # Static unroll: no carried accumulator (results go straight to VMEM scratch).
    for q in range(KQ):
        x_q = cols_ref[:, q].reshape(rows, K1_PAD)                       # (BT*32,128) bf16
        y1 = jnp.dot(x_q, w1_ref[...], preferred_element_type=jnp.float32)
        y1 = jnp.maximum(y1, LEAKY * y1)                                 # LeakyReLU(0.2)
        y1_scr[:, q * C1_PAD:(q + 1) * C1_PAD] = y1.astype(jnp.bfloat16)

    # conv2 as a single big-K matmul: accumulation stays inside the MXU.
    y2 = jnp.dot(y1_scr[...], w2_ref[...], preferred_element_type=jnp.float32)
    y2 = jnp.maximum(y2, LEAKY * y2).reshape(bt, P_PAD, C2)              # pad rows stay 0
    inter_ref[...] = y2.astype(inter_ref.dtype)

    # Linear(3200, 1) as a VPU multiply + sublane reduction (no lane-sparse N=1 matmul).
    part = jnp.sum(y2 * wl_ref[...][None, :, :], axis=1, keepdims=True)  # (BT,1,128)
    lpart_ref[...] = part.astype(lpart_ref.dtype)


def _pick_bt(n, max_bt=8):
    """Largest divisor of n that is <= max_bt while leaving >= 2 grid steps (v7x)."""
    best = 1
    for bt in range(1, min(max_bt, n) + 1):
        if n % bt == 0 and n // bt >= 2:
            best = bt
    return best


def _fused_forward(cols, w1p, w2p, wlp, bt):
    n = cols.shape[0]
    return pl.pallas_call(
        _fused_disc_kernel,
        out_shape=(
            jax.ShapeDtypeStruct((n, P_PAD, C2), jnp.float32),
            jax.ShapeDtypeStruct((n, 1, C2), jnp.float32),
        ),
        grid=(n // bt,),
        in_specs=[
            pl.BlockSpec((bt, KQ, P_PAD, K1_PAD), lambda b: (b, 0, 0, 0)),
            pl.BlockSpec((K1_PAD, C1_PAD), lambda b: (0, 0)),
            pl.BlockSpec((K2, C2), lambda b: (0, 0)),
            pl.BlockSpec((P_PAD, C2), lambda b: (0, 0)),
        ],
        out_specs=(
            pl.BlockSpec((bt, P_PAD, C2), lambda b: (b, 0, 0)),
            pl.BlockSpec((bt, 1, C2), lambda b: (b, 0, 0)),
        ),
        scratch_shapes=[pltpu.VMEM((bt * P_PAD, K2), jnp.bfloat16)],
        compiler_params=pltpu.CompilerParams(
            dimension_semantics=("parallel",),     # shard batch steps across TCs on v7x
            vmem_limit_bytes=32 * 1024 * 1024,     # ~7 MiB actually used at BT=8
        ),
    )(cols, w1p, w2p, wlp)


# --------------------------------------------------------------------------- #
# Wrapper-side layout work (all static slices; fused by XLA)
# --------------------------------------------------------------------------- #
def _conv2_ready_cols(x_nhwc):
    """(N, 25, 32, 128) bf16: [n, q=(kh2,kw2), p=(oh2,ow2), :] is the zero-padded conv1
    patch (kh1, kw1, c) feeding conv1-output pixel (2*oh2+kh2, 2*ow2+kw2)."""
    n = x_nhwc.shape[0]
    # conv1 im2col: patches[n, h1, w1, kh1*15 + kw1*3 + c]
    taps = []
    for kh1 in range(5):
        for kw1 in range(5):
            taps.append(x_nhwc[:, kh1:kh1 + 28:2, kw1:kw1 + 28:2, :])        # (n,14,14,3)
    patches = jnp.stack(taps, axis=3).reshape(n, 14, 14, K1)
    # duplicate / reorder conv1-output positions for conv2's stride-2 receptive field
    groups = []
    for kh2 in range(5):
        for kw2 in range(5):
            groups.append(
                patches[:, kh2:kh2 + 10:2, kw2:kw2 + 10:2, :].reshape(n, P, K1))
    cols = jnp.stack(groups, axis=1)                                         # (n,25,25,75)
    cols = jnp.pad(cols, ((0, 0), (0, 0), (0, P_PAD - P), (0, K1_PAD - K1)))
    return cols.astype(jnp.bfloat16)                                         # bf16 MXU LHS


def spectral_norm(w2d, key, n_iter=1):
    # TODO(synk): PyTorch SpectralNorm keeps a persistent `u` updated every forward;
    # one power iteration at init approximates it (fine for random init, not checkpoints).
    out_dim, _ = w2d.shape
    u = jax.random.normal(key, (out_dim,), jnp.float32)
    u = u / (jnp.linalg.norm(u) + 1e-12)
    v = None
    for _ in range(n_iter):
        v = w2d.T @ u
        v = v / (jnp.linalg.norm(v) + 1e-12)
        u = w2d @ v
        u = u / (jnp.linalg.norm(u) + 1e-12)
    sigma = u @ (w2d @ v)
    return w2d / sigma


def init_params(key):
    k1, k2, k3, ku1, ku2, ku3 = jax.random.split(key, 6)
    w_conv1 = jax.random.normal(k1, (C1, 3, 5, 5), jnp.float32) * 0.05
    w_conv2 = jax.random.normal(k2, (C2, C1, 5, 5), jnp.float32) * 0.05
    w_lin = jax.random.normal(k3, (1, 3200), jnp.float32) * 0.02
    b_lin = jnp.zeros((), jnp.float32)
    w_conv1 = spectral_norm(w_conv1.reshape(C1, -1), ku1).reshape(C1, 3, 5, 5)
    w_conv2 = spectral_norm(w_conv2.reshape(C2, -1), ku2).reshape(C2, C1, 5, 5)
    w_lin = spectral_norm(w_lin, ku3)
    return w_conv1, w_conv2, w_lin, b_lin


def prepare_params(raw):
    """Hoisted out of the forward pass: weights pre-packed in kernel-ready layouts."""
    w_conv1, w_conv2, w_lin, b_lin = raw
    # conv1 (64,3,5,5) -> rows (kh1,kw1,c) x cols cout, zero-padded to (128,128), bf16
    w1 = jnp.transpose(w_conv1, (2, 3, 1, 0)).reshape(K1, C1)
    w1 = jnp.pad(w1, ((0, K1_PAD - K1), (0, C1_PAD - C1))).astype(jnp.bfloat16)
    # conv2 (128,64,5,5) -> K-stacked (3200, 128): row = (kh2*5+kw2)*128 + cin, bf16
    w2 = jnp.transpose(w_conv2, (2, 3, 1, 0)).reshape(KQ, C1, C2)
    w2 = jnp.pad(w2, ((0, 0), (0, C1_PAD - C1), (0, 0)))
    w2 = w2.reshape(K2, C2).astype(jnp.bfloat16)
    # Linear (1,3200) over the NCHW flatten (c,oh,ow) -> (p=(oh,ow), c), rows padded to 32
    wl = jnp.transpose(w_lin.reshape(C2, 5, 5), (1, 2, 0)).reshape(P, C2)
    wl = jnp.pad(wl, ((0, P_PAD - P), (0, 0)))
    return w1, w2, wl, b_lin


# --------------------------------------------------------------------------- #
# Forward pass (matches Discriminator_xx_CIFAR10.forward)
# --------------------------------------------------------------------------- #
def discriminator_xx_forward(x, x_prime, params):
    w1p, w2p, wlp, b_lin = params
    xx = jnp.concatenate([x, x_prime], axis=0)                    # (2B, 3, 32, 32)
    n = xx.shape[0]
    bt = _pick_bt(n)
    cols = _conv2_ready_cols(jnp.transpose(xx, (0, 2, 3, 1)))     # (2B, 25, 32, 128) bf16
    inter_pad, lpart = _fused_forward(cols, w1p, w2p, wlp, bt)
    logit = jnp.sum(lpart[:, 0, :], axis=-1) + b_lin               # (2B,)
    # slice off padded rows + tiny NCHW transpose only for the returned intermediate
    inter_nchw = jnp.transpose(inter_pad[:, :P, :].reshape(n, 5, 5, C2),
                               (0, 3, 1, 2))                      # (2B, 128, 5, 5)
    return logit, inter_nchw


# --------------------------------------------------------------------------- #
# Pure-JAX reference (for correctness verification)
# --------------------------------------------------------------------------- #
def reference_forward(x, x_prime, raw):
    w_conv1, w_conv2, w_lin, b_lin = raw
    xx = jnp.concatenate([x, x_prime], axis=0)
    dn = ("NCHW", "OIHW", "NCHW")
    y = lax.conv_general_dilated(xx, w_conv1, (2, 2), "VALID", dimension_numbers=dn,
                                 precision=lax.Precision.HIGHEST)
    y = jnp.maximum(y, LEAKY * y)
    y = lax.conv_general_dilated(y, w_conv2, (2, 2), "VALID", dimension_numbers=dn,
                                 precision=lax.Precision.HIGHEST)
    y = jnp.maximum(y, LEAKY * y)                                  # (2B, 128, 5, 5)
    flat = y.reshape(y.shape[0], -1)
    logit = jnp.dot(flat, w_lin[0], precision=lax.Precision.HIGHEST) + b_lin
    return logit, y


if __name__ == "__main__":
    key = jax.random.PRNGKey(0)
    kx, kxp, kp = jax.random.split(key, 3)

    B = 2  # CIFAR10 geometry (3, 32, 32) is required by Linear(3200, 1)
    x = jax.random.normal(kx, (B, 3, 32, 32), jnp.float32)
    x_prime = jax.random.normal(kxp, (B, 3, 32, 32), jnp.float32)

    raw = init_params(kp)
    params = prepare_params(raw)

    fwd = jax.jit(discriminator_xx_forward)
    logit, inter = fwd(x, x_prime, params)
    jax.block_until_ready((logit, inter))

    assert logit.shape == (2 * B,)
    assert inter.shape == (2 * B, 128, 5, 5)

    # Correctness vs. pure-JAX f32 reference (bf16 MXU inputs -> looser tolerance)
    ref_logit, ref_inter = reference_forward(x, x_prime, raw)
    np.testing.assert_allclose(np.asarray(inter), np.asarray(ref_inter),
                               rtol=3e-2, atol=3e-2)
    np.testing.assert_allclose(np.asarray(logit), np.asarray(ref_logit),
                               rtol=3e-2, atol=3e-2)
    print("KERNEL_OK")
</pallas_src>

<mosaic_0001>
module attributes {stable_mosaic.version = 11 : i64} {
  func.func @_fused_disc_kernel(%arg0: i32, %arg1: memref<2x25x32x128xbf16, #tpu.memory_space<vmem>>, %arg2: memref<128x128xbf16, #tpu.memory_space<vmem>>, %arg3: memref<3200x128xbf16, #tpu.memory_space<vmem>>, %arg4: memref<32x128xf32, #tpu.memory_space<vmem>>, %arg5: memref<2x32x128xf32, #tpu.memory_space<vmem>>, %arg6: memref<2x1x128xf32, #tpu.memory_space<vmem>>, %arg7: memref<64x3200xbf16, #tpu.memory_space<vmem>>) attributes {dimension_semantics = [#tpu.dimension_semantics<parallel>], iteration_bounds = array<i64: 2>, scalar_prefetch = 0 : i64, scratch_operands = 1 : i64, tpu.core_type = #tpu.core_type<tc>, window_params = [{transform_indices = @transform_0, window_bounds = array<i64: 2, 25, 32, 128>}, {pipeline_mode = #tpu.pipeline_mode<synchronous>, transform_indices = @transform_1, window_bounds = array<i64: 128, 128>}, {pipeline_mode = #tpu.pipeline_mode<synchronous>, transform_indices = @transform_2, window_bounds = array<i64: 3200, 128>}, {pipeline_mode = #tpu.pipeline_mode<synchronous>, transform_indices = @transform_3, window_bounds = array<i64: 32, 128>}, {transform_indices = @transform_4, window_bounds = array<i64: 2, 32, 128>}, {transform_indices = @transform_5, window_bounds = array<i64: 2, 1, 128>}]} {
    %c0 = arith.constant 0 : index
    %c0_0 = arith.constant 0 : index
    %c0_1 = arith.constant 0 : index
    %c0_2 = arith.constant 0 : index
    %0 = vector.load %arg1[%c0, %c0_0, %c0_1, %c0_2] : memref<2x25x32x128xbf16, #tpu.memory_space<vmem>>, vector<2x1x32x128xbf16>
    %1 = vector.shape_cast %0 : vector<2x1x32x128xbf16> to vector<2x32x128xbf16>
    %2 = vector.shape_cast %1 : vector<2x32x128xbf16> to vector<64x128xbf16>
    %c0_3 = arith.constant 0 : index
    %c0_4 = arith.constant 0 : index
    %3 = vector.load %arg2[%c0_3, %c0_4] : memref<128x128xbf16, #tpu.memory_space<vmem>>, vector<128x128xbf16>
    %cst = arith.constant dense<0.000000e+00> : vector<64x128xf32>
    %4 = tpu.matmul %2, %3, %cst {dimension_numbers = #tpu.dot_dimension_numbers<[1], [0], [0], [1], [0, 0, 1, 1], [], []>} : vector<64x128xbf16>, vector<128x128xbf16>, vector<64x128xf32> -> vector<64x128xf32>
    %cst_5 = arith.constant 2.000000e-01 : f32
    %5 = vector.broadcast %cst_5 : f32 to vector<64x128xf32>
    %6 = arith.mulf %5, %4 : vector<64x128xf32>
    %7 = arith.maximumf %4, %6 : vector<64x128xf32>
    %8 = arith.truncf %7 : vector<64x128xf32> to vector<64x128xbf16>
    %c0_6 = arith.constant 0 : index
    %c0_7 = arith.constant 0 : index
    %9 = vector.load %arg7[%c0_6, %c0_7] : memref<64x3200xbf16, #tpu.memory_space<vmem>>, vector<64x128xbf16>
    tpu.vector_store %arg7[%c0_6, %c0_7], %8 {strides = array<i32>} : memref<64x3200xbf16, #tpu.memory_space<vmem>>, vector<64x128xbf16>,
    %c0_8 = arith.constant 0 : index
    %c1 = arith.constant 1 : index
    %c0_9 = arith.constant 0 : index
    %c0_10 = arith.constant 0 : index
    %10 = vector.load %arg1[%c0_8, %c1, %c0_9, %c0_10] : memref<2x25x32x128xbf16, #tpu.memory_space<vmem>>, vector<2x1x32x128xbf16>
    %11 = vector.shape_cast %10 : vector<2x1x32x128xbf16> to vector<2x32x128xbf16>
    %12 = vector.shape_cast %11 : vector<2x32x128xbf16> to vector<64x128xbf16>
    %c0_11 = arith.constant 0 : index
    %c0_12 = arith.constant 0 : index
    %13 = vector.load %arg2[%c0_11, %c0_12] : memref<128x128xbf16, #tpu.memory_space<vmem>>, vector<128x128xbf16>
    %cst_13 = arith.constant dense<0.000000e+00> : vector<64x128xf32>
    %14 = tpu.matmul %12, %13, %cst_13 {dimension_numbers = #tpu.dot_dimension_numbers<[1], [0], [0], [1], [0, 0, 1, 1], [], []>} : vector<64x128xbf16>, vector<128x128xbf16>, vector<64x128xf32> -> vector<64x128xf32>
    %cst_14 = arith.constant 2.000000e-01 : f32
    %15 = vector.broadcast %cst_14 : f32 to vector<64x128xf32>
    %16 = arith.mulf %15, %14 : vector<64x128xf32>
    %17 = arith.maximumf %14, %16 : vector<64x128xf32>
    %18 = arith.truncf %17 : vector<64x128xf32> to vector<64x128xbf16>
    %c0_15 = arith.constant 0 : index
    %c128 = arith.constant 128 : index
    %19 = vector.load %arg7[%c0_15, %c128] : memref<64x3200xbf16, #tpu.memory_space<vmem>>, vector<64x128xbf16>
    tpu.vector_store %arg7[%c0_15, %c128], %18 {strides = array<i32>} : memref<64x3200xbf16, #tpu.memory_space<vmem>>, vector<64x128xbf16>,
    %c0_16 = arith.constant 0 : index
    %c2 = arith.constant 2 : index
    %c0_17 = arith.constant 0 : index
    %c0_18 = arith.constant 0 : index
    %20 = vector.load %arg1[%c0_16, %c2, %c0_17, %c0_18] : memref<2x25x32x128xbf16, #tpu.memory_space<vmem>>, vector<2x1x32x128xbf16>
    %21 = vector.shape_cast %20 : vector<2x1x32x128xbf16> to vector<2x32x128xbf16>
    %22 = vector.shape_cast %21 : vector<2x32x128xbf16> to vector<64x128xbf16>
    %c0_19 = arith.constant 0 : index
    %c0_20 = arith.constant 0 : index
    %23 = vector.load %arg2[%c0_19, %c0_20] : memref<128x128xbf16, #tpu.memory_space<vmem>>, vector<128x128xbf16>
    %cst_21 = arith.constant dense<0.000000e+00> : vector<64x128xf32>
    %24 = tpu.matmul %22, %23, %cst_21 {dimension_numbers = #tpu.dot_dimension_numbers<[1], [0], [0], [1], [0, 0, 1, 1], [], []>} : vector<64x128xbf16>, vector<128x128xbf16>, vector<64x128xf32> -> vector<64x128xf32>
    %cst_22 = arith.constant 2.000000e-01 : f32
    %25 = vector.broadcast %cst_22 : f32 to vector<64x128xf32>
    %26 = arith.mulf %25, %24 : vector<64x128xf32>
    %27 = arith.maximumf %24, %26 : vector<64x128xf32>
    %28 = arith.truncf %27 : vector<64x128xf32> to vector<64x128xbf16>
    %c0_23 = arith.constant 0 : index
    %c256 = arith.constant 256 : index
    %29 = vector.load %arg7[%c0_23, %c256] : memref<64x3200xbf16, #tpu.memory_space<vmem>>, vector<64x128xbf16>
    tpu.vector_store %arg7[%c0_23, %c256], %28 {strides = array<i32>} : memref<64x3200xbf16, #tpu.memory_space<vmem>>, vector<64x128xbf16>,
    %c0_24 = arith.constant 0 : index
    %c3 = arith.constant 3 : index
    %c0_25 = arith.constant 0 : index
    %c0_26 = arith.constant 0 : index
    %30 = vector.load %arg1[%c0_24, %c3, %c0_25, %c0_26] : memref<2x25x32x128xbf16, #tpu.memory_space<vmem>>, vector<2x1x32x128xbf16>
    %31 = vector.shape_cast %30 : vector<2x1x32x128xbf16> to vector<2x32x128xbf16>
    %32 = vector.shape_cast %31 : vector<2x32x128xbf16> to vector<64x128xbf16>
    %c0_27 = arith.constant 0 : index
    %c0_28 = arith.constant 0 : index
    %33 = vector.load %arg2[%c0_27, %c0_28] : memref<128x128xbf16, #tpu.memory_space<vmem>>, vector<128x128xbf16>
    %cst_29 = arith.constant dense<0.000000e+00> : vector<64x128xf32>
    %34 = tpu.matmul %32, %33, %cst_29 {dimension_numbers = #tpu.dot_dimension_numbers<[1], [0], [0], [1], [0, 0, 1, 1], [], []>} : vector<64x128xbf16>, vector<128x128xbf16>, vector<64x128xf32> -> vector<64x128xf32>
    %cst_30 = arith.constant 2.000000e-01 : f32
    %35 = vector.broadcast %cst_30 : f32 to vector<64x128xf32>
    %36 = arith.mulf %35, %34 : vector<64x128xf32>
    %37 = arith.maximumf %34, %36 : vector<64x128xf32>
    %38 = arith.truncf %37 : vector<64x128xf32> to vector<64x128xbf16>
    %c0_31 = arith.constant 0 : index
    %c384 = arith.constant 384 : index
    %39 = vector.load %arg7[%c0_31, %c384] : memref<64x3200xbf16, #tpu.memory_space<vmem>>, vector<64x128xbf16>
    tpu.vector_store %arg7[%c0_31, %c384], %38 {strides = array<i32>} : memref<64x3200xbf16, #tpu.memory_space<vmem>>, vector<64x128xbf16>,
    %c0_32 = arith.constant 0 : index
    %c4 = arith.constant 4 : index
    %c0_33 = arith.constant 0 : index
    %c0_34 = arith.constant 0 : index
    %40 = vector.load %arg1[%c0_32, %c4, %c0_33, %c0_34] : memref<2x25x32x128xbf16, #tpu.memory_space<vmem>>, vector<2x1x32x128xbf16>
    %41 = vector.shape_cast %40 : vector<2x1x32x128xbf16> to vector<2x32x128xbf16>
    %42 = vector.shape_cast %41 : vector<2x32x128xbf16> to vector<64x128xbf16>
    %c0_35 = arith.constant 0 : index
    %c0_36 = arith.constant 0 : index
    %43 = vector.load %arg2[%c0_35, %c0_36] : memref<128x128xbf16, #tpu.memory_space<vmem>>, vector<128x128xbf16>
    %cst_37 = arith.constant dense<0.000000e+00> : vector<64x128xf32>
    %44 = tpu.matmul %42, %43, %cst_37 {dimension_numbers = #tpu.dot_dimension_numbers<[1], [0], [0], [1], [0, 0, 1, 1], [], []>} : vector<64x128xbf16>, vector<128x128xbf16>, vector<64x128xf32> -> vector<64x128xf32>
    %cst_38 = arith.constant 2.000000e-01 : f32
    %45 = vector.broadcast %cst_38 : f32 to vector<64x128xf32>
    %46 = arith.mulf %45, %44 : vector<64x128xf32>
    %47 = arith.maximumf %44, %46 : vector<64x128xf32>
    %48 = arith.truncf %47 : vector<64x128xf32> to vector<64x128xbf16>
    %c0_39 = arith.constant 0 : index
    %c512 = arith.constant 512 : index
    %49 = vector.load %arg7[%c0_39, %c512] : memref<64x3200xbf16, #tpu.memory_space<vmem>>, vector<64x128xbf16>
    tpu.vector_store %arg7[%c0_39, %c512], %48 {strides = array<i32>} : memref<64x3200xbf16, #tpu.memory_space<vmem>>, vector<64x128xbf16>,
    %c0_40 = arith.constant 0 : index
    %c5 = arith.constant 5 : index
    %c0_41 = arith.constant 0 : index
    %c0_42 = arith.constant 0 : index
    %50 = vector.load %arg1[%c0_40, %c5, %c0_41, %c0_42] : memref<2x25x32x128xbf16, #tpu.memory_space<vmem>>, vector<2x1x32x128xbf16>
    %51 = vector.shape_cast %50 : vector<2x1x32x128xbf16> to vector<2x32x128xbf16>
    %52 = vector.shape_cast %51 : vector<2x32x128xbf16> to vector<64x128xbf16>
    %c0_43 = arith.constant 0 : index
    %c0_44 = arith.constant 0 : index
    %53 = vector.load %arg2[%c0_43, %c0_44] : memref<128x128xbf16, #tpu.memory_space<vmem>>, vector<128x128xbf16>
    %cst_45 = arith.constant dense<0.000000e+00> : vector<64x128xf32>
    %54 = tpu.matmul %52, %53, %cst_45 {dimension_numbers = #tpu.dot_dimension_numbers<[1], [0], [0], [1], [0, 0, 1, 1], [], []>} : vector<64x128xbf16>, vector<128x128xbf16>, vector<64x128xf32> -> vector<64x128xf32>
    %cst_46 = arith.constant 2.000000e-01 : f32
    %55 = vector.broadcast %cst_46 : f32 to vector<64x128xf32>
    %56 = arith.mulf %55, %54 : vector<64x128xf32>
    %57 = arith.maximumf %54, %56 : vector<64x128xf32>
    %58 = arith.truncf %57 : vector<64x128xf32> to vector<64x128xbf16>
    %c0_47 = arith.constant 0 : index
    %c640 = arith.constant 640 : index
    %59 = vector.load %arg7[%c0_47, %c640] : memref<64x3200xbf16, #tpu.memory_space<vmem>>, vector<64x128xbf16>
    tpu.vector_store %arg7[%c0_47, %c640], %58 {strides = array<i32>} : memref<64x3200xbf16, #tpu.memory_space<vmem>>, vector<64x128xbf16>,
    %c0_48 = arith.constant 0 : index
    %c6 = arith.constant 6 : index
    %c0_49 = arith.constant 0 : index
    %c0_50 = arith.constant 0 : index
    %60 = vector.load %arg1[%c0_48, %c6, %c0_49, %c0_50] : memref<2x25x32x128xbf16, #tpu.memory_space<vmem>>, vector<2x1x32x128xbf16>
    %61 = vector.shape_cast %60 : vector<2x1x32x128xbf16> to vector<2x32x128xbf16>
    %62 = vector.shape_cast %61 : vector<2x32x128xbf16> to vector<64x128xbf16>
    %c0_51 = arith.constant 0 : index
    %c0_52 = arith.constant 0 : index
    %63 = vector.load %arg2[%c0_51, %c0_52] : memref<128x128xbf16, #tpu.memory_space<vmem>>, vector<128x128xbf16>
    %cst_53 = arith.constant dense<0.000000e+00> : vector<64x128xf32>
    %64 = tpu.matmul %62, %63, %cst_53 {dimension_numbers = #tpu.dot_dimension_numbers<[1], [0], [0], [1], [0, 0, 1, 1], [], []>} : vector<64x128xbf16>, vector<128x128xbf16>, vector<64x128xf32> -> vector<64x128xf32>
    %cst_54 = arith.constant 2.000000e-01 : f32
    %65 = vector.broadcast %cst_54 : f32 to vector<64x128xf32>
    %66 = arith.mulf %65, %64 : vector<64x128xf32>
    %67 = arith.maximumf %64, %66 : vector<64x128xf32>
    %68 = arith.truncf %67 : vector<64x128xf32> to vector<64x128xbf16>
    %c0_55 = arith.constant 0 : index
    %c768 = arith.constant 768 : index
    %69 = vector.load %arg7[%c0_55, %c768] : memref<64x3200xbf16, #tpu.memory_space<vmem>>, vector<64x128xbf16>
    tpu.vector_store %arg7[%c0_55, %c768], %68 {strides = array<i32>} : memref<64x3200xbf16, #tpu.memory_space<vmem>>, vector<64x128xbf16>,
    %c0_56 = arith.constant 0 : index
    %c7 = arith.constant 7 : index
    %c0_57 = arith.constant 0 : index
    %c0_58 = arith.constant 0 : index
    %70 = vector.load %arg1[%c0_56, %c7, %c0_57, %c0_58] : memref<2x25x32x128xbf16, #tpu.memory_space<vmem>>, vector<2x1x32x128xbf16>
    %71 = vector.shape_cast %70 : vector<2x1x32x128xbf16> to vector<2x32x128xbf16>
    %72 = vector.shape_cast %71 : vector<2x32x128xbf16> to vector<64x128xbf16>
    %c0_59 = arith.constant 0 : index
    %c0_60 = arith.constant 0 : index
    %73 = vector.load %arg2[%c0_59, %c0_60] : memref<128x128xbf16, #tpu.memory_space<vmem>>, vector<128x128xbf16>
    %cst_61 = arith.constant dense<0.000000e+00> : vector<64x128xf32>
    %74 = tpu.matmul %72, %73, %cst_61 {dimension_numbers = #tpu.dot_dimension_numbers<[1], [0], [0], [1], [0, 0, 1, 1], [], []>} : vector<64x128xbf16>, vector<128x128xbf16>, vector<64x128xf32> -> vector<64x128xf32>
    %cst_62 = arith.constant 2.000000e-01 : f32
    %75 = vector.broadcast %cst_62 : f32 to vector<64x128xf32>
    %76 = arith.mulf %75, %74 : vector<64x128xf32>
    %77 = arith.maximumf %74, %76 : vector<64x128xf32>
    %78 = arith.truncf %77 : vector<64x128xf32> to vector<64x128xbf16>
    %c0_63 = arith.constant 0 : index
    %c896 = arith.constant 896 : index
    %79 = vector.load %arg7[%c0_63, %c896] : memref<64x3200xbf16, #tpu.memory_space<vmem>>, vector<64x128xbf16>
    tpu.vector_store %arg7[%c0_63, %c896], %78 {strides = array<i32>} : memref<64x3200xbf16, #tpu.memory_space<vmem>>, vector<64x128xbf16>,
    %c0_64 = arith.constant 0 : index
    %c8 = arith.constant 8 : index
    %c0_65 = arith.constant 0 : index
    %c0_66 = arith.constant 0 : index
    %80 = vector.load %arg1[%c0_64, %c8, %c0_65, %c0_66] : memref<2x25x32x128xbf16, #tpu.memory_space<vmem>>, vector<2x1x32x128xbf16>
    %81 = vector.shape_cast %80 : vector<2x1x32x128xbf16> to vector<2x32x128xbf16>
    %82 = vector.shape_cast %81 : vector<2x32x128xbf16> to vector<64x128xbf16>
    %c0_67 = arith.constant 0 : index
    %c0_68 = arith.constant 0 : index
    %83 = vector.load %arg2[%c0_67, %c0_68] : memref<128x128xbf16, #tpu.memory_space<vmem>>, vector<128x128xbf16>
    %cst_69 = arith.constant dense<0.000000e+00> : vector<64x128xf32>
    %84 = tpu.matmul %82, %83, %cst_69 {dimension_numbers = #tpu.dot_dimension_numbers<[1], [0], [0], [1], [0, 0, 1, 1], [], []>} : vector<64x128xbf16>, vector<128x128xbf16>, vector<64x128xf32> -> vector<64x128xf32>
    %cst_70 = arith.constant 2.000000e-01 : f32
    %85 = vector.broadcast %cst_70 : f32 to vector<64x128xf32>
    %86 = arith.mulf %85, %84 : vector<64x128xf32>
    %87 = arith.maximumf %84, %86 : vector<64x128xf32>
    %88 = arith.truncf %87 : vector<64x128xf32> to vector<64x128xbf16>
    %c0_71 = arith.constant 0 : index
    %c1024 = arith.constant 1024 : index
    %89 = vector.load %arg7[%c0_71, %c1024] : memref<64x3200xbf16, #tpu.memory_space<vmem>>, vector<64x128xbf16>
    tpu.vector_store %arg7[%c0_71, %c1024], %88 {strides = array<i32>} : memref<64x3200xbf16, #tpu.memory_space<vmem>>, vector<64x128xbf16>,
    %c0_72 = arith.constant 0 : index
    %c9 = arith.constant 9 : index
    %c0_73 = arith.constant 0 : index
    %c0_74 = arith.constant 0 : index
    %90 = vector.load %arg1[%c0_72, %c9, %c0_73, %c0_74] : memref<2x25x32x128xbf16, #tpu.memory_space<vmem>>, vector<2x1x32x128xbf16>
    %91 = vector.shape_cast %90 : vector<2x1x32x128xbf16> to vector<2x32x128xbf16>
    %92 = vector.shape_cast %91 : vector<2x32x128xbf16> to vector<64x128xbf16>
    %c0_75 = arith.constant 0 : index
    %c0_76 = arith.constant 0 : index
    %93 = vector.load %arg2[%c0_75, %c0_76] : memref<128x128xbf16, #tpu.memory_space<vmem>>, vector<128x128xbf16>
    %cst_77 = arith.constant dense<0.000000e+00> : vector<64x128xf32>
    %94 = tpu.matmul %92, %93, %cst_77 {dimension_numbers = #tpu.dot_dimension_numbers<[1], [0], [0], [1], [0, 0, 1, 1], [], []>} : vector<64x128xbf16>, vector<128x128xbf16>, vector<64x128xf32> -> vector<64x128xf32>
    %cst_78 = arith.constant 2.000000e-01 : f32
    %95 = vector.broadcast %cst_78 : f32 to vector<64x128xf32>
    %96 = arith.mulf %95, %94 : vector<64x128xf32>
    %97 = arith.maximumf %94, %96 : vector<64x128xf32>
    %98 = arith.truncf %97 : vector<64x128xf32> to vector<64x128xbf16>
    %c0_79 = arith.constant 0 : index
    %c1152 = arith.constant 1152 : index
    %99 = vector.load %arg7[%c0_79, %c1152] : memref<64x3200xbf16, #tpu.memory_space<vmem>>, vector<64x128xbf16>
    tpu.vector_store %arg7[%c0_79, %c1152], %98 {strides = array<i32>} : memref<64x3200xbf16, #tpu.memory_space<vmem>>, vector<64x128xbf16>,
    %c0_80 = arith.constant 0 : index
    %c10 = arith.constant 10 : index
    %c0_81 = arith.constant 0 : index
    %c0_82 = arith.constant 0 : index
    %100 = vector.load %arg1[%c0_80, %c10, %c0_81, %c0_82] : memref<2x25x32x128xbf16, #tpu.memory_space<vmem>>, vector<2x1x32x128xbf16>
    %101 = vector.shape_cast %100 : vector<2x1x32x128xbf16> to vector<2x32x128xbf16>
    %102 = vector.shape_cast %101 : vector<2x32x128xbf16> to vector<64x128xbf16>
    %c0_83 = arith.constant 0 : index
    %c0_84 = arith.constant 0 : index
    %103 = vector.load %arg2[%c0_83, %c0_84] : memref<128x128xbf16, #tpu.memory_space<vmem>>, vector<128x128xbf16>
    %cst_85 = arith.constant dense<0.000000e+00> : vector<64x128xf32>
    %104 = tpu.matmul %102, %103, %cst_85 {dimension_numbers = #tpu.dot_dimension_numbers<[1], [0], [0], [1], [0, 0, 1, 1], [], []>} : vector<64x128xbf16>, vector<128x128xbf16>, vector<64x128xf32> -> vector<64x128xf32>
    %cst_86 = arith.constant 2.000000e-01 : f32
    %105 = vector.broadcast %cst_86 : f32 to vector<64x128xf32>
    %106 = arith.mulf %105, %104 : vector<64x128xf32>
    %107 = arith.maximumf %104, %106 : vector<64x128xf32>
    %108 = arith.truncf %107 : vector<64x128xf32> to vector<64x128xbf16>
    %c0_87 = arith.constant 0 : index
    %c1280 = arith.constant 1280 : index
    %109 = vector.load %arg7[%c0_87, %c1280] : memref<64x3200xbf16, #tpu.memory_space<vmem>>, vector<64x128xbf16>
    tpu.vector_store %arg7[%c0_87, %c1280], %108 {strides = array<i32>} : memref<64x3200xbf16, #tpu.memory_space<vmem>>, vector<64x128xbf16>,
    %c0_88 = arith.constant 0 : index
    %c11 = arith.constant 11 : index
    %c0_89 = arith.constant 0 : index
    %c0_90 = arith.constant 0 : index
    %110 = vector.load %arg1[%c0_88, %c11, %c0_89, %c0_90] : memref<2x25x32x128xbf16, #tpu.memory_space<vmem>>, vector<2x1x32x128xbf16>
    %111 = vector.shape_cast %110 : vector<2x1x32x128xbf16> to vector<2x32x128xbf16>
    %112 = vector.shape_cast %111 : vector<2x32x128xbf16> to vector<64x128xbf16>
    %c0_91 = arith.constant 0 : index
    %c0_92 = arith.constant 0 : index
    %113 = vector.load %arg2[%c0_91, %c0_92] : memref<128x128xbf16, #tpu.memory_space<vmem>>, vector<128x128xbf16>
    %cst_93 = arith.constant dense<0.000000e+00> : vector<64x128xf32>
    %114 = tpu.matmul %112, %113, %cst_93 {dimension_numbers = #tpu.dot_dimension_numbers<[1], [0], [0], [1], [0, 0, 1, 1], [], []>} : vector<64x128xbf16>, vector<128x128xbf16>, vector<64x128xf32> -> vector<64x128xf32>
    %cst_94 = arith.constant 2.000000e-01 : f32
    %115 = vector.broadcast %cst_94 : f32 to vector<64x128xf32>
    %116 = arith.mulf %115, %114 : vector<64x128xf32>
    %117 = arith.maximumf %114, %116 : vector<64x128xf32>
    %118 = arith.truncf %117 : vector<64x128xf32> to vector<64x128xbf16>
    %c0_95 = arith.constant 0 : index
    %c1408 = arith.constant 1408 : index
    %119 = vector.load %arg7[%c0_95, %c1408] : memref<64x3200xbf16, #tpu.memory_space<vmem>>, vector<64x128xbf16>
    tpu.vector_store %arg7[%c0_95, %c1408], %118 {strides = array<i32>} : memref<64x3200xbf16, #tpu.memory_space<vmem>>, vector<64x128xbf16>,
    %c0_96 = arith.constant 0 : index
    %c12 = arith.constant 12 : index
    %c0_97 = arith.constant 0 : index
    %c0_98 = arith.constant 0 : index
    %120 = vector.load %arg1[%c0_96, %c12, %c0_97, %c0_98] : memref<2x25x32x128xbf16, #tpu.memory_space<vmem>>, vector<2x1x32x128xbf16>
    %121 = vector.shape_cast %120 : vector<2x1x32x128xbf16> to vector<2x32x128xbf16>
    %122 = vector.shape_cast %121 : vector<2x32x128xbf16> to vector<64x128xbf16>
    %c0_99 = arith.constant 0 : index
    %c0_100 = arith.constant 0 : index
    %123 = vector.load %arg2[%c0_99, %c0_100] : memref<128x128xbf16, #tpu.memory_space<vmem>>, vector<128x128xbf16>
    %cst_101 = arith.constant dense<0.000000e+00> : vector<64x128xf32>
    %124 = tpu.matmul %122, %123, %cst_101 {dimension_numbers = #tpu.dot_dimension_numbers<[1], [0], [0], [1], [0, 0, 1, 1], [], []>} : vector<64x128xbf16>, vector<128x128xbf16>, vector<64x128xf32> -> vector<64x128xf32>
    %cst_102 = arith.constant 2.000000e-01 : f32
    %125 = vector.broadcast %cst_102 : f32 to vector<64x128xf32>
    %126 = arith.mulf %125, %124 : vector<64x128xf32>
    %127 = arith.maximumf %124, %126 : vector<64x128xf32>
    %128 = arith.truncf %127 : vector<64x128xf32> to vector<64x128xbf16>
    %c0_103 = arith.constant 0 : index
    %c1536 = arith.constant 1536 : index
    %129 = vector.load %arg7[%c0_103, %c1536] : memref<64x3200xbf16, #tpu.memory_space<vmem>>, vector<64x128xbf16>
    tpu.vector_store %arg7[%c0_103, %c1536], %128 {strides = array<i32>} : memref<64x3200xbf16, #tpu.memory_space<vmem>>, vector<64x128xbf16>,
    %c0_104 = arith.constant 0 : index
    %c13 = arith.constant 13 : index
    %c0_105 = arith.constant 0 : index
    %c0_106 = arith.constant 0 : index
    %130 = vector.load %arg1[%c0_104, %c13, %c0_105, %c0_106] : memref<2x25x32x128xbf16, #tpu.memory_space<vmem>>, vector<2x1x32x128xbf16>
    %131 = vector.shape_cast %130 : vector<2x1x32x128xbf16> to vector<2x32x128xbf16>
    %132 = vector.shape_cast %131 : vector<2x32x128xbf16> to vector<64x128xbf16>
    %c0_107 = arith.constant 0 : index
    %c0_108 = arith.constant 0 : index
    %133 = vector.load %arg2[%c0_107, %c0_108] : memref<128x128xbf16, #tpu.memory_space<vmem>>, vector<128x128xbf16>
    %cst_109 = arith.constant dense<0.000000e+00> : vector<64x128xf32>
    %134 = tpu.matmul %132, %133, %cst_109 {dimension_numbers = #tpu.dot_dimension_numbers<[1], [0], [0], [1], [0, 0, 1, 1], [], []>} : vector<64x128xbf16>, vector<128x128xbf16>, vector<64x128xf32> -> vector<64x128xf32>
    %cst_110 = arith.constant 2.000000e-01 : f32
    %135 = vector.broadcast %cst_110 : f32 to vector<64x128xf32>
    %136 = arith.mulf %135, %134 : vector<64x128xf32>
    %137 = arith.maximumf %134, %136 : vector<64x128xf32>
    %138 = arith.truncf %137 : vector<64x128xf32> to vector<64x128xbf16>
    %c0_111 = arith.constant 0 : index
    %c1664 = arith.constant 1664 : index
    %139 = vector.load %arg7[%c0_111, %c1664] : memref<64x3200xbf16, #tpu.memory_space<vmem>>, vector<64x128xbf16>
    tpu.vector_store %arg7[%c0_111, %c1664], %138 {strides = array<i32>} : memref<64x3200xbf16, #tpu.memory_space<vmem>>, vector<64x128xbf16>,
    %c0_112 = arith.constant 0 : index
    %c14 = arith.constant 14 : index
    %c0_113 = arith.constant 0 : index
    %c0_114 = arith.constant 0 : index
    %140 = vector.load %arg1[%c0_112, %c14, %c0_113, %c0_114] : memref<2x25x32x128xbf16, #tpu.memory_space<vmem>>, vector<2x1x32x128xbf16>
    %141 = vector.shape_cast %140 : vector<2x1x32x128xbf16> to vector<2x32x128xbf16>
    %142 = vector.shape_cast %141 : vector<2x32x128xbf16> to vector<64x128xbf16>
    %c0_115 = arith.constant 0 : index
    %c0_116 = arith.constant 0 : index
    %143 = vector.load %arg2[%c0_115, %c0_116] : memref<128x128xbf16, #tpu.memory_space<vmem>>, vector<128x128xbf16>
    %cst_117 = arith.constant dense<0.000000e+00> : vector<64x128xf32>
    %144 = tpu.matmul %142, %143, %cst_117 {dimension_numbers = #tpu.dot_dimension_numbers<[1], [0], [0], [1], [0, 0, 1, 1], [], []>} : vector<64x128xbf16>, vector<128x128xbf16>, vector<64x128xf32> -> vector<64x128xf32>
    %cst_118 = arith.constant 2.000000e-01 : f32
    %145 = vector.broadcast %cst_118 : f32 to vector<64x128xf32>
    %146 = arith.mulf %145, %144 : vector<64x128xf32>
    %147 = arith.maximumf %144, %146 : vector<64x128xf32>
    %148 = arith.truncf %147 : vector<64x128xf32> to vector<64x128xbf16>
    %c0_119 = arith.constant 0 : index
    %c1792 = arith.constant 1792 : index
    %149 = vector.load %arg7[%c0_119, %c1792] : memref<64x3200xbf16, #tpu.memory_space<vmem>>, vector<64x128xbf16>
    tpu.vector_store %arg7[%c0_119, %c1792], %148 {strides = array<i32>} : memref<64x3200xbf16, #tpu.memory_space<vmem>>, vector<64x128xbf16>,
    %c0_120 = arith.constant 0 : index
    %c15 = arith.constant 15 : index
    %c0_121 = arith.constant 0 : index
    %c0_122 = arith.constant 0 : index
    %150 = vector.load %arg1[%c0_120, %c15, %c0_121, %c0_122] : memref<2x25x32x128xbf16, #tpu.memory_space<vmem>>, vector<2x1x32x128xbf16>
    %151 = vector.shape_cast %150 : vector<2x1x32x128xbf16> to vector<2x32x128xbf16>
    %152 = vector.shape_cast %151 : vector<2x32x128xbf16> to vector<64x128xbf16>
    %c0_123 = arith.constant 0 : index
    %c0_124 = arith.constant 0 : index
    %153 = vector.load %arg2[%c0_123, %c0_124] : memref<128x128xbf16, #tpu.memory_space<vmem>>, vector<128x128xbf16>
    %cst_125 = arith.constant dense<0.000000e+00> : vector<64x128xf32>
    %154 = tpu.matmul %152, %153, %cst_125 {dimension_numbers = #tpu.dot_dimension_numbers<[1], [0], [0], [1], [0, 0, 1, 1], [], []>} : vector<64x128xbf16>, vector<128x128xbf16>, vector<64x128xf32> -> vector<64x128xf32>
    %cst_126 = arith.constant 2.000000e-01 : f32
    %155 = vector.broadcast %cst_126 : f32 to vector<64x128xf32>
    %156 = arith.mulf %155, %154 : vector<64x128xf32>
    %157 = arith.maximumf %154, %156 : vector<64x128xf32>
    %158 = arith.truncf %157 : vector<64x128xf32> to vector<64x128xbf16>
    %c0_127 = arith.constant 0 : index
    %c1920 = arith.constant 1920 : index
    %159 = vector.load %arg7[%c0_127, %c1920] : memref<64x3200xbf16, #tpu.memory_space<vmem>>, vector<64x128xbf16>
    tpu.vector_store %arg7[%c0_127, %c1920], %158 {strides = array<i32>} : memref<64x3200xbf16, #tpu.memory_space<vmem>>, vector<64x128xbf16>,
    %c0_128 = arith.constant 0 : index
    %c16 = arith.constant 16 : index
    %c0_129 = arith.constant 0 : index
    %c0_130 = arith.constant 0 : index
    %160 = vector.load %arg1[%c0_128, %c16, %c0_129, %c0_130] : memref<2x25x32x128xbf16, #tpu.memory_space<vmem>>, vector<2x1x32x128xbf16>
    %161 = vector.shape_cast %160 : vector<2x1x32x128xbf16> to vector<2x32x128xbf16>
    %162 = vector.shape_cast %161 : vector<2x32x128xbf16> to vector<64x128xbf16>
    %c0_131 = arith.constant 0 : index
    %c0_132 = arith.constant 0 : index
    %163 = vector.load %arg2[%c0_131, %c0_132] : memref<128x128xbf16, #tpu.memory_space<vmem>>, vector<128x128xbf16>
    %cst_133 = arith.constant dense<0.000000e+00> : vector<64x128xf32>
    %164 = tpu.matmul %162, %163, %cst_133 {dimension_numbers = #tpu.dot_dimension_numbers<[1], [0], [0], [1], [0, 0, 1, 1], [], []>} : vector<64x128xbf16>, vector<128x128xbf16>, vector<64x128xf32> -> vector<64x128xf32>
    %cst_134 = arith.constant 2.000000e-01 : f32
    %165 = vector.broadcast %cst_134 : f32 to vector<64x128xf32>
    %166 = arith.mulf %165, %164 : vector<64x128xf32>
    %167 = arith.maximumf %164, %166 : vector<64x128xf32>
    %168 = arith.truncf %167 : vector<64x128xf32> to vector<64x128xbf16>
    %c0_135 = arith.constant 0 : index
    %c2048 = arith.constant 2048 : index
    %169 = vector.load %arg7[%c0_135, %c2048] : memref<64x3200xbf16, #tpu.memory_space<vmem>>, vector<64x128xbf16>
    tpu.vector_store %arg7[%c0_135, %c2048], %168 {strides = array<i32>} : memref<64x3200xbf16, #tpu.memory_space<vmem>>, vector<64x128xbf16>,
    %c0_136 = arith.constant 0 : index
    %c17 = arith.constant 17 : index
    %c0_137 = arith.constant 0 : index
    %c0_138 = arith.constant 0 : index
    %170 = vector.load %arg1[%c0_136, %c17, %c0_137, %c0_138] : memref<2x25x32x128xbf16, #tpu.memory_space<vmem>>, vector<2x1x32x128xbf16>
    %171 = vector.shape_cast %170 : vector<2x1x32x128xbf16> to vector<2x32x128xbf16>
    %172 = vector.shape_cast %171 : vector<2x32x128xbf16> to vector<64x128xbf16>
    %c0_139 = arith.constant 0 : index
    %c0_140 = arith.constant 0 : index
    %173 = vector.load %arg2[%c0_139, %c0_140] : memref<128x128xbf16, #tpu.memory_space<vmem>>, vector<128x128xbf16>
    %cst_141 = arith.constant dense<0.000000e+00> : vector<64x128xf32>
    %174 = tpu.matmul %172, %173, %cst_141 {dimension_numbers = #tpu.dot_dimension_numbers<[1], [0], [0], [1], [0, 0, 1, 1], [], []>} : vector<64x128xbf16>, vector<128x128xbf16>, vector<64x128xf32> -> vector<64x128xf32>
    %cst_142 = arith.constant 2.000000e-01 : f32
    %175 = vector.broadcast %cst_142 : f32 to vector<64x128xf32>
    %176 = arith.mulf %175, %174 : vector<64x128xf32>
    %177 = arith.maximumf %174, %176 : vector<64x128xf32>
    %178 = arith.truncf %177 : vector<64x128xf32> to vector<64x128xbf16>
    %c0_143 = arith.constant 0 : index
    %c2176 = arith.constant 2176 : index
    %179 = vector.load %arg7[%c0_143, %c2176] : memref<64x3200xbf16, #tpu.memory_space<vmem>>, vector<64x128xbf16>
    tpu.vector_store %arg7[%c0_143, %c2176], %178 {strides = array<i32>} : memref<64x3200xbf16, #tpu.memory_space<vmem>>, vector<64x128xbf16>,
    %c0_144 = arith.constant 0 : index
    %c18 = arith.constant 18 : index
    %c0_145 = arith.constant 0 : index
    %c0_146 = arith.constant 0 : index
    %180 = vector.load %arg1[%c0_144, %c18, %c0_145, %c0_146] : memref<2x25x32x128xbf16, #tpu.memory_space<vmem>>, vector<2x1x32x128xbf16>
    %181 = vector.shape_cast %180 : vector<2x1x32x128xbf16> to vector<2x32x128xbf16>
    %182 = vector.shape_cast %181 : vector<2x32x128xbf16> to vector<64x128xbf16>
    %c0_147 = arith.constant 0 : index
    %c0_148 = arith.constant 0 : index
    %183 = vector.load %arg2[%c0_147, %c0_148] : memref<128x128xbf16, #tpu.memory_space<vmem>>, vector<128x128xbf16>
    %cst_149 = arith.constant dense<0.000000e+00> : vector<64x128xf32>
    %184 = tpu.matmul %182, %183, %cst_149 {dimension_numbers = #tpu.dot_dimension_numbers<[1], [0], [0], [1], [0, 0, 1, 1], [], []>} : vector<64x128xbf16>, vector<128x128xbf16>, vector<64x128xf32> -> vector<64x128xf32>
    %cst_150 = arith.constant 2.000000e-01 : f32
    %185 = vector.broadcast %cst_150 : f32 to vector<64x128xf32>
    %186 = arith.mulf %185, %184 : vector<64x128xf32>
    %187 = arith.maximumf %184, %186 : vector<64x128xf32>
    %188 = arith.truncf %187 : vector<64x128xf32> to vector<64x128xbf16>
    %c0_151 = arith.constant 0 : index
    %c2304 = arith.constant 2304 : index
    %189 = vector.load %arg7[%c0_151, %c2304] : memref<64x3200xbf16, #tpu.memory_space<vmem>>, vector<64x128xbf16>
    tpu.vector_store %arg7[%c0_151, %c2304], %188 {strides = array<i32>} : memref<64x3200xbf16, #tpu.memory_space<vmem>>, vector<64x128xbf16>,
    %c0_152 = arith.constant 0 : index
    %c19 = arith.constant 19 : index
    %c0_153 = arith.constant 0 : index
    %c0_154 = arith.constant 0 : index
    %190 = vector.load %arg1[%c0_152, %c19, %c0_153, %c0_154] : memref<2x25x32x128xbf16, #tpu.memory_space<vmem>>, vector<2x1x32x128xbf16>
    %191 = vector.shape_cast %190 : vector<2x1x32x128xbf16> to vector<2x32x128xbf16>
    %192 = vector.shape_cast %191 : vector<2x32x128xbf16> to vector<64x128xbf16>
    %c0_155 = arith.constant 0 : index
    %c0_156 = arith.constant 0 : index
    %193 = vector.load %arg2[%c0_155, %c0_156] : memref<128x128xbf16, #tpu.memory_space<vmem>>, vector<128x128xbf16>
    %cst_157 = arith.constant dense<0.000000e+00> : vector<64x128xf32>
    %194 = tpu.matmul %192, %193, %cst_157 {dimension_numbers = #tpu.dot_dimension_numbers<[1], [0], [0], [1], [0, 0, 1, 1], [], []>} : vector<64x128xbf16>, vector<128x128xbf16>, vector<64x128xf32> -> vector<64x128xf32>
    %cst_158 = arith.constant 2.000000e-01 : f32
    %195 = vector.broadcast %cst_158 : f32 to vector<64x128xf32>
    %196 = arith.mulf %195, %194 : vector<64x128xf32>
    %197 = arith.maximumf %194, %196 : vector<64x128xf32>
    %198 = arith.truncf %197 : vector<64x128xf32> to vector<64x128xbf16>
    %c0_159 = arith.constant 0 : index
    %c2432 = arith.constant 2432 : index
    %199 = vector.load %arg7[%c0_159, %c2432] : memref<64x3200xbf16, #tpu.memory_space<vmem>>, vector<64x128xbf16>
    tpu.vector_store %arg7[%c0_159, %c2432], %198 {strides = array<i32>} : memref<64x3200xbf16, #tpu.memory_space<vmem>>, vector<64x128xbf16>,
    %c0_160 = arith.constant 0 : index
    %c20 = arith.constant 20 : index
    %c0_161 = arith.constant 0 : index
    %c0_162 = arith.constant 0 : index
    %200 = vector.load %arg1[%c0_160, %c20, %c0_161, %c0_162] : memref<2x25x32x128xbf16, #tpu.memory_space<vmem>>, vector<2x1x32x128xbf16>
    %201 = vector.shape_cast %200 : vector<2x1x32x128xbf16> to vector<2x32x128xbf16>
    %202 = vector.shape_cast %201 : vector<2x32x128xbf16> to vector<64x128xbf16>
    %c0_163 = arith.constant 0 : index
    %c0_164 = arith.constant 0 : index
    %203 = vector.load %arg2[%c0_163, %c0_164] : memref<128x128xbf16, #tpu.memory_space<vmem>>, vector<128x128xbf16>
    %cst_165 = arith.constant dense<0.000000e+00> : vector<64x128xf32>
    %204 = tpu.matmul %202, %203, %cst_165 {dimension_numbers = #tpu.dot_dimension_numbers<[1], [0], [0], [1], [0, 0, 1, 1], [], []>} : vector<64x128xbf16>, vector<128x128xbf16>, vector<64x128xf32> -> vector<64x128xf32>
    %cst_166 = arith.constant 2.000000e-01 : f32
    %205 = vector.broadcast %cst_166 : f32 to vector<64x128xf32>
    %206 = arith.mulf %205, %204 : vector<64x128xf32>
    %207 = arith.maximumf %204, %206 : vector<64x128xf32>
    %208 = arith.truncf %207 : vector<64x128xf32> to vector<64x128xbf16>
    %c0_167 = arith.constant 0 : index
    %c2560 = arith.constant 2560 : index
    %209 = vector.load %arg7[%c0_167, %c2560] : memref<64x3200xbf16, #tpu.memory_space<vmem>>, vector<64x128xbf16>
    tpu.vector_store %arg7[%c0_167, %c2560], %208 {strides = array<i32>} : memref<64x3200xbf16, #tpu.memory_space<vmem>>, vector<64x128xbf16>,
    %c0_168 = arith.constant 0 : index
    %c21 = arith.constant 21 : index
    %c0_169 = arith.constant 0 : index
    %c0_170 = arith.constant 0 : index
    %210 = vector.load %arg1[%c0_168, %c21, %c0_169, %c0_170] : memref<2x25x32x128xbf16, #tpu.memory_space<vmem>>, vector<2x1x32x128xbf16>
    %211 = vector.shape_cast %210 : vector<2x1x32x128xbf16> to vector<2x32x128xbf16>
    %212 = vector.shape_cast %211 : vector<2x32x128xbf16> to vector<64x128xbf16>
    %c0_171 = arith.constant 0 : index
    %c0_172 = arith.constant 0 : index
    %213 = vector.load %arg2[%c0_171, %c0_172] : memref<128x128xbf16, #tpu.memory_space<vmem>>, vector<128x128xbf16>
    %cst_173 = arith.constant dense<0.000000e+00> : vector<64x128xf32>
    %214 = tpu.matmul %212, %213, %cst_173 {dimension_numbers = #tpu.dot_dimension_numbers<[1], [0], [0], [1], [0, 0, 1, 1], [], []>} : vector<64x128xbf16>, vector<128x128xbf16>, vector<64x128xf32> -> vector<64x128xf32>
    %cst_174 = arith.constant 2.000000e-01 : f32
    %215 = vector.broadcast %cst_174 : f32 to vector<64x128xf32>
    %216 = arith.mulf %215, %214 : vector<64x128xf32>
    %217 = arith.maximumf %214, %216 : vector<64x128xf32>
    %218 = arith.truncf %217 : vector<64x128xf32> to vector<64x128xbf16>
    %c0_175 = arith.constant 0 : index
    %c2688 = arith.constant 2688 : index
    %219 = vector.load %arg7[%c0_175, %c2688] : memref<64x3200xbf16, #tpu.memory_space<vmem>>, vector<64x128xbf16>
    tpu.vector_store %arg7[%c0_175, %c2688], %218 {strides = array<i32>} : memref<64x3200xbf16, #tpu.memory_space<vmem>>, vector<64x128xbf16>,
    %c0_176 = arith.constant 0 : index
    %c22 = arith.constant 22 : index
    %c0_177 = arith.constant 0 : index
    %c0_178 = arith.constant 0 : index
    %220 = vector.load %arg1[%c0_176, %c22, %c0_177, %c0_178] : memref<2x25x32x128xbf16, #tpu.memory_space<vmem>>, vector<2x1x32x128xbf16>
    %221 = vector.shape_cast %220 : vector<2x1x32x128xbf16> to vector<2x32x128xbf16>
    %222 = vector.shape_cast %221 : vector<2x32x128xbf16> to vector<64x128xbf16>
    %c0_179 = arith.constant 0 : index
    %c0_180 = arith.constant 0 : index
    %223 = vector.load %arg2[%c0_179, %c0_180] : memref<128x128xbf16, #tpu.memory_space<vmem>>, vector<128x128xbf16>
    %cst_181 = arith.constant dense<0.000000e+00> : vector<64x128xf32>
    %224 = tpu.matmul %222, %223, %cst_181 {dimension_numbers = #tpu.dot_dimension_numbers<[1], [0], [0], [1], [0, 0, 1, 1], [], []>} : vector<64x128xbf16>, vector<128x128xbf16>, vector<64x128xf32> -> vector<64x128xf32>
    %cst_182 = arith.constant 2.000000e-01 : f32
    %225 = vector.broadcast %cst_182 : f32 to vector<64x128xf32>
    %226 = arith.mulf %225, %224 : vector<64x128xf32>
    %227 = arith.maximumf %224, %226 : vector<64x128xf32>
    %228 = arith.truncf %227 : vector<64x128xf32> to vector<64x128xbf16>
    %c0_183 = arith.constant 0 : index
    %c2816 = arith.constant 2816 : index
    %229 = vector.load %arg7[%c0_183, %c2816] : memref<64x3200xbf16, #tpu.memory_space<vmem>>, vector<64x128xbf16>
    tpu.vector_store %arg7[%c0_183, %c2816], %228 {strides = array<i32>} : memref<64x3200xbf16, #tpu.memory_space<vmem>>, vector<64x128xbf16>,
    %c0_184 = arith.constant 0 : index
    %c23 = arith.constant 23 : index
    %c0_185 = arith.constant 0 : index
    %c0_186 = arith.constant 0 : index
    %230 = vector.load %arg1[%c0_184, %c23, %c0_185, %c0_186] : memref<2x25x32x128xbf16, #tpu.memory_space<vmem>>, vector<2x1x32x128xbf16>
    %231 = vector.shape_cast %230 : vector<2x1x32x128xbf16> to vector<2x32x128xbf16>
    %232 = vector.shape_cast %231 : vector<2x32x128xbf16> to vector<64x128xbf16>
    %c0_187 = arith.constant 0 : index
    %c0_188 = arith.constant 0 : index
    %233 = vector.load %arg2[%c0_187, %c0_188] : memref<128x128xbf16, #tpu.memory_space<vmem>>, vector<128x128xbf16>
    %cst_189 = arith.constant dense<0.000000e+00> : vector<64x128xf32>
    %234 = tpu.matmul %232, %233, %cst_189 {dimension_numbers = #tpu.dot_dimension_numbers<[1], [0], [0], [1], [0, 0, 1, 1], [], []>} : vector<64x128xbf16>, vector<128x128xbf16>, vector<64x128xf32> -> vector<64x128xf32>
    %cst_190 = arith.constant 2.000000e-01 : f32
    %235 = vector.broadcast %cst_190 : f32 to vector<64x128xf32>
    %236 = arith.mulf %235, %234 : vector<64x128xf32>
    %237 = arith.maximumf %234, %236 : vector<64x128xf32>
    %238 = arith.truncf %237 : vector<64x128xf32> to vector<64x128xbf16>
    %c0_191 = arith.constant 0 : index
    %c2944 = arith.constant 2944 : index
    %239 = vector.load %arg7[%c0_191, %c2944] : memref<64x3200xbf16, #tpu.memory_space<vmem>>, vector<64x128xbf16>
    tpu.vector_store %arg7[%c0_191, %c2944], %238 {strides = array<i32>} : memref<64x3200xbf16, #tpu.memory_space<vmem>>, vector<64x128xbf16>,
    %c0_192 = arith.constant 0 : index
    %c24 = arith.constant 24 : index
    %c0_193 = arith.constant 0 : index
    %c0_194 = arith.constant 0 : index
    %240 = vector.load %arg1[%c0_192, %c24, %c0_193, %c0_194] : memref<2x25x32x128xbf16, #tpu.memory_space<vmem>>, vector<2x1x32x128xbf16>
    %241 = vector.shape_cast %240 : vector<2x1x32x128xbf16> to vector<2x32x128xbf16>
    %242 = vector.shape_cast %241 : vector<2x32x128xbf16> to vector<64x128xbf16>
    %c0_195 = arith.constant 0 : index
    %c0_196 = arith.constant 0 : index
    %243 = vector.load %arg2[%c0_195, %c0_196] : memref<128x128xbf16, #tpu.memory_space<vmem>>, vector<128x128xbf16>
    %cst_197 = arith.constant dense<0.000000e+00> : vector<64x128xf32>
    %244 = tpu.matmul %242, %243, %cst_197 {dimension_numbers = #tpu.dot_dimension_numbers<[1], [0], [0], [1], [0, 0, 1, 1], [], []>} : vector<64x128xbf16>, vector<128x128xbf16>, vector<64x128xf32> -> vector<64x128xf32>
    %cst_198 = arith.constant 2.000000e-01 : f32
    %245 = vector.broadcast %cst_198 : f32 to vector<64x128xf32>
    %246 = arith.mulf %245, %244 : vector<64x128xf32>
    %247 = arith.maximumf %244, %246 : vector<64x128xf32>
    %248 = arith.truncf %247 : vector<64x128xf32> to vector<64x128xbf16>
    %c0_199 = arith.constant 0 : index
    %c3072 = arith.constant 3072 : index
    %249 = vector.load %arg7[%c0_199, %c3072] : memref<64x3200xbf16, #tpu.memory_space<vmem>>, vector<64x128xbf16>
    tpu.vector_store %arg7[%c0_199, %c3072], %248 {strides = array<i32>} : memref<64x3200xbf16, #tpu.memory_space<vmem>>, vector<64x128xbf16>,
    %c0_200 = arith.constant 0 : index
    %c0_201 = arith.constant 0 : index
    %250 = vector.load %arg7[%c0_200, %c0_201] : memref<64x3200xbf16, #tpu.memory_space<vmem>>, vector<64x3200xbf16>
    %c0_202 = arith.constant 0 : index
    %c0_203 = arith.constant 0 : index
    %251 = vector.load %arg3[%c0_202, %c0_203] : memref<3200x128xbf16, #tpu.memory_space<vmem>>, vector<3200x128xbf16>
    %cst_204 = arith.constant dense<0.000000e+00> : vector<64x128xf32>
    %252 = tpu.matmul %250, %251, %cst_204 {dimension_numbers = #tpu.dot_dimension_numbers<[1], [0], [0], [1], [0, 0, 1, 1], [], []>} : vector<64x3200xbf16>, vector<3200x128xbf16>, vector<64x128xf32> -> vector<64x128xf32>
    %cst_205 = arith.constant 2.000000e-01 : f32
    %253 = vector.broadcast %cst_205 : f32 to vector<64x128xf32>
    %254 = arith.mulf %253, %252 : vector<64x128xf32>
    %255 = arith.maximumf %252, %254 : vector<64x128xf32>
    %256 = vector.shape_cast %255 : vector<64x128xf32> to vector<2x32x128xf32>
    %c0_206 = arith.constant 0 : index
    %c0_207 = arith.constant 0 : index
    %c0_208 = arith.constant 0 : index
    %257 = vector.load %arg5[%c0_206, %c0_207, %c0_208] : memref<2x32x128xf32, #tpu.memory_space<vmem>>, vector<2x32x128xf32>
    tpu.vector_store %arg5[%c0_206, %c0_207, %c0_208], %256 {strides = array<i32>} : memref<2x32x128xf32, #tpu.memory_space<vmem>>, vector<2x32x128xf32>,
    %c0_209 = arith.constant 0 : index
    %c0_210 = arith.constant 0 : index
    %258 = vector.load %arg4[%c0_209, %c0_210] : memref<32x128xf32, #tpu.memory_space<vmem>>, vector<32x128xf32>
    %259 = vector.shape_cast %258 : vector<32x128xf32> to vector<1x32x128xf32>
    %260 = vector.broadcast %259 : vector<1x32x128xf32> to vector<2x32x128xf32>
    %261 = arith.mulf %256, %260 : vector<2x32x128xf32>
    %cst_211 = arith.constant dense<0.000000e+00> : vector<2x128xf32>
    %262 = vector.multi_reduction <add>, %261, %cst_211 [1] : vector<2x32x128xf32> to vector<2x128xf32>
    %263 = vector.shape_cast %262 : vector<2x128xf32> to vector<2x1x128xf32>
    %c0_212 = arith.constant 0 : index
    %c0_213 = arith.constant 0 : index
    %c0_214 = arith.constant 0 : index
    %264 = vector.load %arg6[%c0_212, %c0_213, %c0_214] : memref<2x1x128xf32, #tpu.memory_space<vmem>>, vector<2x1x128xf32>
    tpu.vector_store %arg6[%c0_212, %c0_213, %c0_214], %263 {strides = array<i32>} : memref<2x1x128xf32, #tpu.memory_space<vmem>>, vector<2x1x128xf32>,
    return
  }
  func.func @transform_0(%arg0: i32) -> (i32, i32, i32, i32) {
    %c0_i32 = arith.constant 0 : i32
    %c0_i32_0 = arith.constant 0 : i32
    %c0_i32_1 = arith.constant 0 : i32
    %c0_i32_2 = arith.constant 0 : i32
    return %arg0, %c0_i32, %c0_i32_0, %c0_i32_1 : i32, i32, i32, i32
  }
  func.func @transform_1(%arg0: i32) -> (i32, i32) {
    %c0_i32 = arith.constant 0 : i32
    %c0_i32_0 = arith.constant 0 : i32
    %c0_i32_1 = arith.constant 0 : i32
    return %c0_i32, %c0_i32_0 : i32, i32
  }
  func.func @transform_2(%arg0: i32) -> (i32, i32) {
    %c0_i32 = arith.constant 0 : i32
    %c0_i32_0 = arith.constant 0 : i32
    %c0_i32_1 = arith.constant 0 : i32
    return %c0_i32, %c0_i32_0 : i32, i32
  }
  func.func @transform_3(%arg0: i32) -> (i32, i32) {
    %c0_i32 = arith.constant 0 : i32
    %c0_i32_0 = arith.constant 0 : i32
    %c0_i32_1 = arith.constant 0 : i32
    return %c0_i32, %c0_i32_0 : i32, i32
  }
  func.func @transform_4(%arg0: i32) -> (i32, i32, i32) {
    %c0_i32 = arith.constant 0 : i32
    %c0_i32_0 = arith.constant 0 : i32
    %c0_i32_1 = arith.constant 0 : i32
    return %arg0, %c0_i32, %c0_i32_0 : i32, i32, i32
  }
  func.func @transform_5(%arg0: i32) -> (i32, i32, i32) {
    %c0_i32 = arith.constant 0 : i32
    %c0_i32_0 = arith.constant 0 : i32
    %c0_i32_1 = arith.constant 0 : i32
    return %arg0, %c0_i32, %c0_i32_0 : i32, i32, i32
  }
}

</mosaic_0001>

<llo_original>
// kernel: discriminator_xx_forward.1
$region0: #{discriminator_xx_forward.1}
  #allocation0 [shape = 'u32[]', space=smem, size = 0x4, offset = 0x4, fixed_abs, tag = 'smem constant byte address 0x4 - core index']
  #allocation1 [shape = 'u32[72,128]{1,0:T(1,128)}', space=vmem, size = 0x9000, scoped, tag = 'internal scratch']
  #allocation2 [shape = 'bf16[64,3200]{1,0:T(8,128)(2,1)}', space=vmem, size = 0x64000, scoped, tag = 'scratch operand']
  %s0 = inlined_call_operand.vmem [shape: bf16[4,25,32,128], index: 0, kind: input, shape index: {}]
  %s1 = inlined_call_operand.vmem [shape: bf16[128,128], index: 1, kind: input, shape index: {}]
  %s2 = inlined_call_operand.vmem [shape: bf16[3200,128], index: 2, kind: input, shape index: {}]
  %s3 = inlined_call_operand.vmem [shape: f32[32,128], index: 3, kind: input, shape index: {}]
  %s4 = inlined_call_operand.vmem [shape: f32[4,32,128], index: 4, kind: output, shape index: {0}]
  %s5 = inlined_call_operand.vmem [shape: f32[4,1,128], index: 5, kind: output, shape index: {1}]
  %6 = xla_tuple %s4, %s5
  %s7 = sld [smem:[#allocation0]]
  $region57: #{discriminator_xx_forward.1} parent=0
    _
  %s9 = ssub.s32 1, %s7
  %s10 = scalar_select 0, %s9, %s7
  loop: start=0, step=1, limit=4
  $region2: #{discriminator_xx_forward.1} parent=0 // loop_pre_header
    _
  $region3: #{discriminator_xx_forward.1} parent=0 // loop_header
    %s12 = sphi 0, %s16
    %p13 = scmp.ge.s32.totalorder %s12, 4
    %s22 = sphi 0, %s24
    %s25 = sphi 0, %s22
    %s26 = sphi 0, %s25
    %s42 = sphi 0, %s26
    %s46 = sphi 0, %s46
    %s48 = sphi 0, %s46
    %s49 = sphi 0, %s48
    %s63 = sphi 0, %s49
    %s67 = sphi 0, %s67
    %s69 = sphi 0, %s67
    %s70 = sphi 0, %s69
    %s84 = sphi 0, %s70
    %s88 = sphi 0, %s88
    %s90 = sphi 0, %s88
    %s91 = sphi 0, %s90
    %s105 = sphi 0, %s91
    %s111 = sphi 0, %s113
    %s114 = sphi 0, %s111
    %s115 = sphi 0, %s114
    %s131 = sphi 0, %s115
    %s137 = sphi 0, %s139
    %s140 = sphi 0, %s137
    %s141 = sphi 0, %s140
    %s157 = sphi 0, %s141
  $region4: #{discriminator_xx_forward.1} parent=0 // loop_header_branch
    %15 = sbr.rel (%p13) target = $region8
  $region5: #{discriminator_xx_forward.1} parent=0 // loop_body
    %s17 = ssub.s32 %s12, 1
    %s18 = ssub.s32 %s12, 2
    %s19 = sadd.s32 %s12, 1
    %s20 = ssub.s32 %s12, %s19
    %p21 = scmp.eq.s32.totalorder %s20, 0
    %s23 = sadd.s32 %s22, 1
    %s24 = scalar_select %p21, %s22, %s23
    %p27 = pneg %p21
    %p28 = scmp.eq.s32.totalorder %s12, 1
    %p29 = por %p27, %p28
    %p30 = scmp.ne.s32.totalorder %s22, %s25
    %p31 = scmp.eq.s32.totalorder %s12, 0
    %p32 = por %p30, %p31
    %p33 = scmp.ne.s32.totalorder %s22, %s25
    %p34 = scmp.eq.s32.totalorder %s17, 1
    %p35 = por %p33, %p34
    %p36 = scmp.ne.s32.totalorder %s25, %s26
    %p37 = scmp.eq.s32.totalorder %s17, 0
    %p38 = por %p36, %p37
    %p39 = scmp.ne.s32.totalorder %s25, %s26
    %p40 = scmp.eq.s32.totalorder %s18, 1
    %p41 = por %p39, %p40
    %p43 = scmp.ne.s32.totalorder %s26, %s42
    %p44 = scmp.eq.s32.totalorder %s18, 0
    %p45 = por %p43, %p44
    %s47 = sadd.s32 %s46, 1
    %p50 = scmp.eq.s32.totalorder %s12, 1
    %p51 = scmp.ne.s32.totalorder %s46, %s48
    %p52 = scmp.eq.s32.totalorder %s12, 0
    %p53 = por %p51, %p52
    %p54 = scmp.ne.s32.totalorder %s46, %s48
    %p55 = scmp.eq.s32.totalorder %s17, 1
    %p56 = por %p54, %p55
    %p57 = scmp.ne.s32.totalorder %s48, %s49
    %p58 = scmp.eq.s32.totalorder %s17, 0
    %p59 = por %p57, %p58
    %p60 = scmp.ne.s32.totalorder %s48, %s49
    %p61 = scmp.eq.s32.totalorder %s18, 1
    %p62 = por %p60, %p61
    %p64 = scmp.ne.s32.totalorder %s49, %s63
    %p65 = scmp.eq.s32.totalorder %s18, 0
    %p66 = por %p64, %p65
    %s68 = sadd.s32 %s67, 1
    %p71 = scmp.eq.s32.totalorder %s12, 1
    %p72 = scmp.ne.s32.totalorder %s67, %s69
    %p73 = scmp.eq.s32.totalorder %s12, 0
    %p74 = por %p72, %p73
    %p75 = scmp.ne.s32.totalorder %s67, %s69
    %p76 = scmp.eq.s32.totalorder %s17, 1
    %p77 = por %p75, %p76
    %p78 = scmp.ne.s32.totalorder %s69, %s70
    %p79 = scmp.eq.s32.totalorder %s17, 0
    %p80 = por %p78, %p79
    %p81 = scmp.ne.s32.totalorder %s69, %s70
    %p82 = scmp.eq.s32.totalorder %s18, 1
    %p83 = por %p81, %p82
    %p85 = scmp.ne.s32.totalorder %s70, %s84
    %p86 = scmp.eq.s32.totalorder %s18, 0
    %p87 = por %p85, %p86
    %s89 = sadd.s32 %s88, 1
    %p92 = scmp.eq.s32.totalorder %s12, 1
    %p93 = scmp.ne.s32.totalorder %s88, %s90
    %p94 = scmp.eq.s32.totalorder %s12, 0
    %p95 = por %p93, %p94
    %p96 = scmp.ne.s32.totalorder %s88, %s90
    %p97 = scmp.eq.s32.totalorder %s17, 1
    %p98 = por %p96, %p97
    %p99 = scmp.ne.s32.totalorder %s90, %s91
    %p100 = scmp.eq.s32.totalorder %s17, 0
    %p101 = por %p99, %p100
    %p102 = scmp.ne.s32.totalorder %s90, %s91
    %p103 = scmp.eq.s32.totalorder %s18, 1
    %p104 = por %p102, %p103
    %p106 = scmp.ne.s32.totalorder %s91, %s105
    %p107 = scmp.eq.s32.totalorder %s18, 0
    %p108 = por %p106, %p107
    %s109 = ssub.s32 %s12, %s19
    %p110 = scmp.eq.s32.totalorder %s109, 0
    %s112 = sadd.s32 %s111, 1
    %s113 = scalar_select %p110, %s111, %s112
    %p116 = pneg %p110
    %p117 = scmp.eq.s32.totalorder %s12, 1
    %p118 = por %p116, %p117
    %p119 = scmp.ne.s32.totalorder %s111, %s114
    %p120 = scmp.eq.s32.totalorder %s12, 0
    %p121 = por %p119, %p120
    %p122 = scmp.ne.s32.totalorder %s111, %s114
    %p123 = scmp.eq.s32.totalorder %s17, 1
    %p124 = por %p122, %p123
    %p125 = scmp.ne.s32.totalorder %s114, %s115
    %p126 = scmp.eq.s32.totalorder %s17, 0
    %p127 = por %p125, %p126
    %p128 = scmp.ne.s32.totalorder %s114, %s115
    %p129 = scmp.eq.s32.totalorder %s18, 1
    %p130 = por %p128, %p129
    %p132 = scmp.ne.s32.totalorder %s115, %s131
    %p133 = scmp.eq.s32.totalorder %s18, 0
    %p134 = por %p132, %p133
    %s135 = ssub.s32 %s12, %s19
    %p136 = scmp.eq.s32.totalorder %s135, 0
    %s138 = sadd.s32 %s137, 1
    %s139 = scalar_select %p136, %s137, %s138
    %p142 = pneg %p136
    %p143 = scmp.eq.s32.totalorder %s12, 1
    %p144 = por %p142, %p143
    %p145 = scmp.ne.s32.totalorder %s137, %s140
    %p146 = scmp.eq.s32.totalorder %s12, 0
    %p147 = por %p145, %p146
    %p148 = scmp.ne.s32.totalorder %s137, %s140
    %p149 = scmp.eq.s32.totalorder %s17, 1
    %p150 = por %p148, %p149
    %p151 = scmp.ne.s32.totalorder %s140, %s141
    %p152 = scmp.eq.s32.totalorder %s17, 0
    %p153 = por %p151, %p152
    %p154 = scmp.ne.s32.totalorder %s140, %s141
    %p155 = scmp.eq.s32.totalorder %s18, 1
    %p156 = por %p154, %p155
    %p158 = scmp.ne.s32.totalorder %s141, %s157
    %p159 = scmp.eq.s32.totalorder %s18, 0
    %p160 = por %p158, %p159
    %p161 = scmp.le.s32.totalorder 1, %s12
    %p162 = scmp.lt.s32.totalorder %s12, 3
    %p163 = pnand %p161, %p162
    %p164 = pneg %p163
    // Predicated region
    $region9: #{discriminator_xx_forward.1} parent=5 // pred_check
      _
    $region10: #{discriminator_xx_forward.1} parent=5 // pred_check_branch
      %166 = sbr.rel (%p163) target = $region12
    $region11: #{discriminator_xx_forward.1} parent=5 // pred_region
      %s167 = ssub.s32 %s12, 1
      // Predicated region
      $region13: #{discriminator_xx_forward.1} parent=11 // pred_check
        %p168 = pneg %p59
      $region14: #{discriminator_xx_forward.1} parent=11 // pred_check_branch
        %170 = sbr.rel (%p168) target = $region16
      $region15: #{discriminator_xx_forward.1} parent=11 // pred_region
        _
      $region16: #{discriminator_xx_forward.1} parent=11 // pred_fallthru
        _
      // Predicated region
      $region17: #{discriminator_xx_forward.1} parent=11 // pred_check
        %p171 = pneg %p80
      $region18: #{discriminator_xx_forward.1} parent=11 // pred_check_branch
        %173 = sbr.rel (%p171) target = $region20
      $region19: #{discriminator_xx_forward.1} parent=11 // pred_region
        _
      $region20: #{discriminator_xx_forward.1} parent=11 // pred_fallthru
        _
      // Predicated region
      $region21: #{discriminator_xx_forward.1} parent=11 // pred_check
        %p174 = pneg %p101
      $region22: #{discriminator_xx_forward.1} parent=11 // pred_check_branch
        %176 = sbr.rel (%p174) target = $region24
      $region23: #{discriminator_xx_forward.1} parent=11 // pred_region
        _
      $region24: #{discriminator_xx_forward.1} parent=11 // pred_fallthru
        _
    $region12: #{discriminator_xx_forward.1} parent=5 // pred_fallthru
      _
    %p177 = scmp.lt.s32.totalorder %s12, 2
    // Predicated region
    $region25: #{discriminator_xx_forward.1} parent=5 // pred_check
      %p178 = pneg %p177
    $region26: #{discriminator_xx_forward.1} parent=5 // pred_check_branch
      %180 = sbr.rel (%p178) target = $region28
    $region27: #{discriminator_xx_forward.1} parent=5 // pred_region
      // Predicated region
      $region29: #{discriminator_xx_forward.1} parent=27 // pred_check
        %p181 = pneg %p32
      $region30: #{discriminator_xx_forward.1} parent=27 // pred_check_branch
        %183 = sbr.rel (%p181) target = $region32
      $region31: #{discriminator_xx_forward.1} parent=27 // pred_region
        %s184 = smul.u32 2, %s12
        %p185 = scmp.lt.s32.totalorder %s184, 3
        %s186 = scalar_select %p185, %s184, 3
        %s187 = smul.addr %s186, 100
        %s188 = smul.addr %s187, 4
        %s189 = scalar_lea.vmem %s0, %s188
        %s190 = smul.u32 2, %s12
      $region32: #{discriminator_xx_forward.1} parent=27 // pred_fallthru
        _
    $region28: #{discriminator_xx_forward.1} parent=5 // pred_fallthru
      _
    %p191 = scmp.le.s32.totalorder 1, %s12
    %p192 = scmp.lt.s32.totalorder %s12, 3
    %p193 = pnand %p191, %p192
    %p194 = pneg %p193
    // Predicated region
    $region33: #{discriminator_xx_forward.1} parent=5 // pred_check
      _
    $region34: #{discriminator_xx_forward.1} parent=5 // pred_check_branch
      %196 = sbr.rel (%p193) target = $region36
    $region35: #{discriminator_xx_forward.1} parent=5 // pred_region
      %s197 = ssub.s32 %s12, 1
      %s198 = smul.u32 2, %s17
      %p199 = scmp.lt.s32.totalorder %s198, 3
      %s200 = scalar_select %p199, %s198, 3
      %s201 = smul.addr %s200, 100
      %s202 = smul.addr %s201, 4
      %s203 = scalar_lea.vmem %s0, %s202
      %p204 = pneg %p38
      %p205 = pneg %p35
      %p206 = pneg %p59
      %p207 = pneg %p56
      %p208 = pneg %p80
      %p209 = pneg %p77
      %p210 = pneg %p101
      %p211 = pneg %p98
      %p212 = pneg %p127
      %p213 = pneg %p124
      %s214 = smul.u32 2, %s17
      %p215 = scmp.lt.s32.totalorder %s214, 3
      %s216 = scalar_select %p215, %s214, 3
      %s217 = smul.addr %s216, 4
      %s218 = smul.addr %s217, 8
      %s219 = scalar_lea.vmem %s4, %s218
      %p220 = pneg %p153
      %p221 = pneg %p150
      %s222 = smul.u32 2, %s17
      %p223 = scmp.lt.s32.totalorder %s222, 3
      %s224 = scalar_select %p223, %s222, 3
      %s225 = scalar_lea.vmem %s5, %s224
      %s226 = smul.u32 2, %s17
      %p227 = scmp.lt.s32.totalorder %s226, 3
      %s228 = scalar_select %p227, %s226, 3
      %s229 = smul.addr %s228, 100
      %s230 = smul.addr %s229, 4
      %s231 = scalar_lea.vmem %s0, %s230
      %s232 = smul.u32 2, %s17
      %s233 = smul.u32 2, %s17
      %p234 = scmp.lt.s32.totalorder %s233, 3
      %s235 = scalar_select %p234, %s233, 3
      %s236 = smul.addr %s235, 4
      %s237 = smul.addr %s236, 8
      %s238 = scalar_lea.vmem %s4, %s237
      %s239 = smul.u32 2, %s17
      %s240 = smul.u32 2, %s17
      %p241 = scmp.lt.s32.totalorder %s240, 3
      %s242 = scalar_select %p241, %s240, 3
      %s243 = scalar_lea.vmem %s5, %s242
      %s244 = smul.u32 2, %s17
      %v245 = vld [vmem:[%s231] sm:$0xf]
      %v246 = vld [vmem:[%s231 + $0x4] sm:$0xf]
      %v247 = vld [vmem:[%s231 + $0x8] sm:$0xf]
      %v248 = vld [vmem:[%s231 + $0xc] sm:$0xf]
      %v249 = vld [vmem:[%s231 + $0x190] sm:$0xf]
      %v250 = vld [vmem:[%s231 + $0x194] sm:$0xf]
      %v251 = vld [vmem:[%s231 + $0x198] sm:$0xf]
      %v252 = vld [vmem:[%s231 + $0x19c] sm:$0xf]
      %v253 = vld [vmem:[%s1] sm:$0xf]
      %v254 = vld [vmem:[%s1 + $0x4] sm:$0xf]
      %v255 = vld [vmem:[%s1 + $0x8] sm:$0xf]
      %v256 = vld [vmem:[%s1 + $0xc] sm:$0xf]
      %v257 = vld [vmem:[%s1 + $0x10] sm:$0xf]
      %v258 = vld [vmem:[%s1 + $0x14] sm:$0xf]
      %v259 = vld [vmem:[%s1 + $0x18] sm:$0xf]
      %v260 = vld [vmem:[%s1 + $0x1c] sm:$0xf]
      %v261 = vld [vmem:[%s1 + $0x20] sm:$0xf]
      %v262 = vld [vmem:[%s1 + $0x24] sm:$0xf]
      %v263 = vld [vmem:[%s1 + $0x28] sm:$0xf]
      %v264 = vld [vmem:[%s1 + $0x2c] sm:$0xf]
      %v265 = vld [vmem:[%s1 + $0x30] sm:$0xf]
      %v266 = vld [vmem:[%s1 + $0x34] sm:$0xf]
      %v267 = vld [vmem:[%s1 + $0x38] sm:$0xf]
      %v268 = vld [vmem:[%s1 + $0x3c] sm:$0xf]
      %v277 = vunpack.c.l.b16 %v245
      %v278 = vunpack.c.l.b16 %v246
      %v279 = vunpack.c.l.b16 %v247
      %v280 = vunpack.c.l.b16 %v248
      %v281 = vunpack.c.l.b16 %v249
      %v282 = vunpack.c.l.b16 %v250
      %v283 = vunpack.c.l.b16 %v251
      %v284 = vunpack.c.l.b16 %v252
      %v285 = vpack.c.b16 %v278, %v277
      %v286 = vpack.c.b16 %v280, %v279
      %v287 = vpack.c.b16 %v282, %v281
      %v288 = vpack.c.b16 %v284, %v283
      %v309 = vunpack.c.l.b16 %v253
      %v310 = vunpack.c.l.b16 %v254
      %v311 = vunpack.c.l.b16 %v255
      %v312 = vunpack.c.l.b16 %v256
      %v313 = vunpack.c.l.b16 %v257
      %v314 = vunpack.c.l.b16 %v258
      %v315 = vunpack.c.l.b16 %v259
      %v316 = vunpack.c.l.b16 %v260
      %v317 = vunpack.c.l.b16 %v261
      %v318 = vunpack.c.l.b16 %v262
      %v319 = vunpack.c.l.b16 %v263
      %v320 = vunpack.c.l.b16 %v264
      %v321 = vunpack.c.l.b16 %v265
      %v322 = vunpack.c.l.b16 %v266
      %v323 = vunpack.c.l.b16 %v267
      %v324 = vunpack.c.l.b16 %v268
      %v325 = vpack.c.b16 %v310, %v309
      %v326 = vpack.c.b16 %v312, %v311
      %v327 = vpack.c.b16 %v314, %v313
      %v328 = vpack.c.b16 %v316, %v315
      %v329 = vpack.c.b16 %v318, %v317
      %v330 = vpack.c.b16 %v320, %v319
      %v331 = vpack.c.b16 %v322, %v321
      %v332 = vpack.c.b16 %v324, %v323
      %341 = vmatpush.bf16.msra.mxu0 %v332
      %342 = vmatpush.bf16.msra.mxu0 %v331
      %343 = vmatpush.bf16.msra.mxu0 %v330
      %344 = vmatpush.bf16.msra.mxu0 %v329
      %345 = vmatpush.bf16.msra.mxu0 %v328
      %346 = vmatpush.bf16.msra.mxu0 %v327
      %347 = vmatpush.bf16.msra.mxu0 %v326
      %348 = vmatpush.bf16.msra.mxu0 %v325
      %349 = vmatmul.bf16.gmra.mxu0 %v285
      %v350 = vpop.f32.mrf.mxu0
      %v351 = vadd.f32 0.0, %v350
      %v352 = vpop.f32.mrf.mxu0
      %v353 = vadd.f32 0.0, %v352
      %354 = vmatmul.bf16.gmra.mxu0 %v286
      %v355 = vpop.f32.mrf.mxu0
      %v356 = vadd.f32 0.0, %v355
      %v357 = vpop.f32.mrf.mxu0
      %v358 = vadd.f32 0.0, %v357
      %359 = vmatmul.bf16.gmra.mxu0 %v287
      %v360 = vpop.f32.mrf.mxu0
      %v361 = vadd.f32 0.0, %v360
      %v362 = vpop.f32.mrf.mxu0
      %v363 = vadd.f32 0.0, %v362
      %364 = vmatmul.bf16.gmra.mxu0 %v288
      %v365 = vpop.f32.mrf.mxu0
      %v366 = vadd.f32 0.0, %v365
      %v367 = vpop.f32.mrf.mxu0
      %v368 = vadd.f32 0.0, %v367
      %369 = vdwg.mxu0
      %v370 = vmul.f32 %v351, 0.2
      %v371 = vmul.f32 %v353, 0.2
      %v372 = vmul.f32 %v356, 0.2
      %v373 = vmul.f32 %v358, 0.2
      %v374 = vmul.f32 %v361, 0.2
      %v375 = vmul.f32 %v363, 0.2
      %v376 = vmul.f32 %v366, 0.2
      %v377 = vmul.f32 %v368, 0.2
      %v378 = vmax.f32 %v351, %v370
      %v379 = vmax.f32 %v353, %v371
      %v380 = vmax.f32 %v356, %v372
      %v381 = vmax.f32 %v358, %v373
      %v382 = vmax.f32 %v361, %v374
      %v383 = vmax.f32 %v363, %v375
      %v384 = vmax.f32 %v366, %v376
      %v385 = vmax.f32 %v368, %v377
      %v386 = vpack.c.bf16 %v378, %v378
      %v387 = vpack.c.bf16 %v379, %v379
      %v388 = vpack.c.bf16 %v380, %v380
      %v389 = vpack.c.bf16 %v381, %v381
      %v390 = vpack.c.bf16 %v382, %v382
      %v391 = vpack.c.bf16 %v383, %v383
      %v392 = vpack.c.bf16 %v384, %v384
      %v393 = vpack.c.bf16 %v385, %v385
      %394 = vst [vmem:[#allocation2] sm:$0xf] %v386
      %395 = vst [vmem:[#allocation2 + $0x64] sm:$0xf] %v387
      %396 = vst [vmem:[#allocation2 + $0xc8] sm:$0xf] %v388
      %397 = vst [vmem:[#allocation2 + $0x12c] sm:$0xf] %v389
      %398 = vst [vmem:[#allocation2 + $0x190] sm:$0xf] %v390
      %399 = vst [vmem:[#allocation2 + $0x1f4] sm:$0xf] %v391
      %400 = vst [vmem:[#allocation2 + $0x258] sm:$0xf] %v392
      %401 = vst [vmem:[#allocation2 + $0x2bc] sm:$0xf] %v393
      %s402 = scalar_lea.vmem %s231, 16
      %v403 = vld [vmem:[%s402] sm:$0xf]
      %v404 = vld [vmem:[%s402 + $0x4] sm:$0xf]
      %v405 = vld [vmem:[%s402 + $0x8] sm:$0xf]
      %v406 = vld [vmem:[%s402 + $0xc] sm:$0xf]
      %v407 = vld [vmem:[%s402 + $0x190] sm:$0xf]
      %v408 = vld [vmem:[%s402 + $0x194] sm:$0xf]
      %v409 = vld [vmem:[%s402 + $0x198] sm:$0xf]
      %v410 = vld [vmem:[%s402 + $0x19c] sm:$0xf]
      %v411 = vld [vmem:[%s1] sm:$0xf]
      %v412 = vld [vmem:[%s1 + $0x4] sm:$0xf]
      %v413 = vld [vmem:[%s1 + $0x8] sm:$0xf]
      %v414 = vld [vmem:[%s1 + $0xc] sm:$0xf]
      %v415 = vld [vmem:[%s1 + $0x10] sm:$0xf]
      %v416 = vld [vmem:[%s1 + $0x14] sm:$0xf]
      %v417 = vld [vmem:[%s1 + $0x18] sm:$0xf]
      %v418 = vld [vmem:[%s1 + $0x1c] sm:$0xf]
      %v419 = vld [vmem:[%s1 + $0x20] sm:$0xf]
      %v420 = vld [vmem:[%s1 + $0x24] sm:$0xf]
      %v421 = vld [vmem:[%s1 + $0x28] sm:$0xf]
      %v422 = vld [vmem:[%s1 + $0x2c] sm:$0xf]
      %v423 = vld [vmem:[%s1 + $0x30] sm:$0xf]
      %v424 = vld [vmem:[%s1 + $0x34] sm:$0xf]
      %v425 = vld [vmem:[%s1 + $0x38] sm:$0xf]
      %v426 = vld [vmem:[%s1 + $0x3c] sm:$0xf]
      %v435 = vunpack.c.l.b16 %v403
      %v436 = vunpack.c.l.b16 %v404
      %v437 = vunpack.c.l.b16 %v405
      %v438 = vunpack.c.l.b16 %v406
      %v439 = vunpack.c.l.b16 %v407
      %v440 = vunpack.c.l.b16 %v408
      %v441 = vunpack.c.l.b16 %v409
      %v442 = vunpack.c.l.b16 %v410
      %v443 = vpack.c.b16 %v436, %v435
      %v444 = vpack.c.b16 %v438, %v437
      %v445 = vpack.c.b16 %v440, %v439
      %v446 = vpack.c.b16 %v442, %v441
      %v467 = vunpack.c.l.b16 %v411
      %v468 = vunpack.c.l.b16 %v412
      %v469 = vunpack.c.l.b16 %v413
      %v470 = vunpack.c.l.b16 %v414
      %v471 = vunpack.c.l.b16 %v415
      %v472 = vunpack.c.l.b16 %v416
      %v473 = vunpack.c.l.b16 %v417
      %v474 = vunpack.c.l.b16 %v418
      %v475 = vunpack.c.l.b16 %v419
      %v476 = vunpack.c.l.b16 %v420
      %v477 = vunpack.c.l.b16 %v421
      %v478 = vunpack.c.l.b16 %v422
      %v479 = vunpack.c.l.b16 %v423
      %v480 = vunpack.c.l.b16 %v424
      %v481 = vunpack.c.l.b16 %v425
      %v482 = vunpack.c.l.b16 %v426
      %v483 = vpack.c.b16 %v468, %v467
      %v484 = vpack.c.b16 %v470, %v469
      %v485 = vpack.c.b16 %v472, %v471
      %v486 = vpack.c.b16 %v474, %v473
      %v487 = vpack.c.b16 %v476, %v475
      %v488 = vpack.c.b16 %v478, %v477
      %v489 = vpack.c.b16 %v480, %v479
      %v490 = vpack.c.b16 %v482, %v481
      %499 = vmatpush.bf16.msra.mxu0 %v490
      %500 = vmatpush.bf16.msra.mxu0 %v489
      %501 = vmatpush.bf16.msra.mxu0 %v488
      %502 = vmatpush.bf16.msra.mxu0 %v487
      %503 = vmatpush.bf16.msra.mxu0 %v486
      %504 = vmatpush.bf16.msra.mxu0 %v485
      %505 = vmatpush.bf16.msra.mxu0 %v484
      %506 = vmatpush.bf16.msra.mxu0 %v483
      %507 = vmatmul.bf16.gmra.mxu0 %v443
      %v508 = vpop.f32.mrf.mxu0
      %v509 = vadd.f32 0.0, %v508
      %v510 = vpop.f32.mrf.mxu0
      %v511 = vadd.f32 0.0, %v510
      %512 = vmatmul.bf16.gmra.mxu0 %v444
      %v513 = vpop.f32.mrf.mxu0
      %v514 = vadd.f32 0.0, %v513
      %v515 = vpop.f32.mrf.mxu0
      %v516 = vadd.f32 0.0, %v515
      %517 = vmatmul.bf16.gmra.mxu0 %v445
      %v518 = vpop.f32.mrf.mxu0
      %v519 = vadd.f32 0.0, %v518
      %v520 = vpop.f32.mrf.mxu0
      %v521 = vadd.f32 0.0, %v520
      %522 = vmatmul.bf16.gmra.mxu0 %v446
      %v523 = vpop.f32.mrf.mxu0
      %v524 = vadd.f32 0.0, %v523
      %v525 = vpop.f32.mrf.mxu0
      %v526 = vadd.f32 0.0, %v525
      %527 = vdwg.mxu0
      %v528 = vmul.f32 %v509, 0.2
      %v529 = vmul.f32 %v511, 0.2
      %v530 = vmul.f32 %v514, 0.2
      %v531 = vmul.f32 %v516, 0.2
      %v532 = vmul.f32 %v519, 0.2
      %v533 = vmul.f32 %v521, 0.2
      %v534 = vmul.f32 %v524, 0.2
      %v535 = vmul.f32 %v526, 0.2
      %v536 = vmax.f32 %v509, %v528
      %v537 = vmax.f32 %v511, %v529
      %v538 = vmax.f32 %v514, %v530
      %v539 = vmax.f32 %v516, %v531
      %v540 = vmax.f32 %v519, %v532
      %v541 = vmax.f32 %v521, %v533
      %v542 = vmax.f32 %v524, %v534
      %v543 = vmax.f32 %v526, %v535
      %v544 = vpack.c.bf16 %v536, %v536
      %v545 = vpack.c.bf16 %v537, %v537
      %v546 = vpack.c.bf16 %v538, %v538
      %v547 = vpack.c.bf16 %v539, %v539
      %v548 = vpack.c.bf16 %v540, %v540
      %v549 = vpack.c.bf16 %v541, %v541
      %v550 = vpack.c.bf16 %v542, %v542
      %v551 = vpack.c.bf16 %v543, %v543
      %552 = vst [vmem:[#allocation2 + $0x4] sm:$0xf] %v544
      %553 = vst [vmem:[#allocation2 + $0x68] sm:$0xf] %v545
      %554 = vst [vmem:[#allocation2 + $0xcc] sm:$0xf] %v546
      %555 = vst [vmem:[#allocation2 + $0x130] sm:$0xf] %v547
      %556 = vst [vmem:[#allocation2 + $0x194] sm:$0xf] %v548
      %557 = vst [vmem:[#allocation2 + $0x1f8] sm:$0xf] %v549
      %558 = vst [vmem:[#allocation2 + $0x25c] sm:$0xf] %v550
      %559 = vst [vmem:[#allocation2 + $0x2c0] sm:$0xf] %v551
      %s560 = scalar_lea.vmem %s231, 32
      %v561 = vld [vmem:[%s560] sm:$0xf]
      %v562 = vld [vmem:[%s560 + $0x4] sm:$0xf]
      %v563 = vld [vmem:[%s560 + $0x8] sm:$0xf]
      %v564 = vld [vmem:[%s560 + $0xc] sm:$0xf]
      %v565 = vld [vmem:[%s560 + $0x190] sm:$0xf]
      %v566 = vld [vmem:[%s560 + $0x194] sm:$0xf]
      %v567 = vld [vmem:[%s560 + $0x198] sm:$0xf]
      %v568 = vld [vmem:[%s560 + $0x19c] sm:$0xf]
      %v569 = vld [vmem:[%s1] sm:$0xf]
      %v570 = vld [vmem:[%s1 + $0x4] sm:$0xf]
      %v571 = vld [vmem:[%s1 + $0x8] sm:$0xf]
      %v572 = vld [vmem:[%s1 + $0xc] sm:$0xf]
      %v573 = vld [vmem:[%s1 + $0x10] sm:$0xf]
      %v574 = vld [vmem:[%s1 + $0x14] sm:$0xf]
      %v575 = vld [vmem:[%s1 + $0x18] sm:$0xf]
      %v576 = vld [vmem:[%s1 + $0x1c] sm:$0xf]
      %v577 = vld [vmem:[%s1 + $0x20] sm:$0xf]
      %v578 = vld [vmem:[%s1 + $0x24] sm:$0xf]
      %v579 = vld [vmem:[%s1 + $0x28] sm:$0xf]
      %v580 = vld [vmem:[%s1 + $0x2c] sm:$0xf]
      %v581 = vld [vmem:[%s1 + $0x30] sm:$0xf]
      %v582 = vld [vmem:[%s1 + $0x34] sm:$0xf]
      %v583 = vld [vmem:[%s1 + $0x38] sm:$0xf]
      %v584 = vld [vmem:[%s1 + $0x3c] sm:$0xf]
      %v593 = vunpack.c.l.b16 %v561
      %v594 = vunpack.c.l.b16 %v562
      %v595 = vunpack.c.l.b16 %v563
      %v596 = vunpack.c.l.b16 %v564
      %v597 = vunpack.c.l.b16 %v565
      %v598 = vunpack.c.l.b16 %v566
      %v599 = vunpack.c.l.b16 %v567
      %v600 = vunpack.c.l.b16 %v568
      %v601 = vpack.c.b16 %v594, %v593
      %v602 = vpack.c.b16 %v596, %v595
      %v603 = vpack.c.b16 %v598, %v597
      %v604 = vpack.c.b16 %v600, %v599
      %v625 = vunpack.c.l.b16 %v569
      %v626 = vunpack.c.l.b16 %v570
      %v627 = vunpack.c.l.b16 %v571
      %v628 = vunpack.c.l.b16 %v572
      %v629 = vunpack.c.l.b16 %v573
      %v630 = vunpack.c.l.b16 %v574
      %v631 = vunpack.c.l.b16 %v575
      %v632 = vunpack.c.l.b16 %v576
      %v633 = vunpack.c.l.b16 %v577
      %v634 = vunpack.c.l.b16 %v578
      %v635 = vunpack.c.l.b16 %v579
      %v636 = vunpack.c.l.b16 %v580
      %v637 = vunpack.c.l.b16 %v581
      %v638 = vunpack.c.l.b16 %v582
      %v639 = vunpack.c.l.b16 %v583
      %v640 = vunpack.c.l.b16 %v584
      %v641 = vpack.c.b16 %v626, %v625
      %v642 = vpack.c.b16 %v628, %v627
      %v643 = vpack.c.b16 %v630, %v629
      %v644 = vpack.c.b16 %v632, %v631
      %v645 = vpack.c.b16 %v634, %v633
      %v646 = vpack.c.b16 %v636, %v635
      %v647 = vpack.c.b16 %v638, %v637
      %v648 = vpack.c.b16 %v640, %v639
      %657 = vmatpush.bf16.msra.mxu0 %v648
      %658 = vmatpush.bf16.msra.mxu0 %v647
      %659 = vmatpush.bf16.msra.mxu0 %v646
      %660 = vmatpush.bf16.msra.mxu0 %v645
      %661 = vmatpush.bf16.msra.mxu0 %v644
      %662 = vmatpush.bf16.msra.mxu0 %v643
      %663 = vmatpush.bf16.msra.mxu0 %v642
      %664 = vmatpush.bf16.msra.mxu0 %v641
      %665 = vmatmul.bf16.gmra.mxu0 %v601
      %v666 = vpop.f32.mrf.mxu0
      %v667 = vadd.f32 0.0, %v666
      %v668 = vpop.f32.mrf.mxu0
      %v669 = vadd.f32 0.0, %v668
      %670 = vmatmul.bf16.gmra.mxu0 %v602
      %v671 = vpop.f32.mrf.mxu0
      %v672 = vadd.f32 0.0, %v671
      %v673 = vpop.f32.mrf.mxu0
      %v674 = vadd.f32 0.0, %v673
      %675 = vmatmul.bf16.gmra.mxu0 %v603
      %v676 = vpop.f32.mrf.mxu0
      %v677 = vadd.f32 0.0, %v676
      %v678 = vpop.f32.mrf.mxu0
      %v679 = vadd.f32 0.0, %v678
      %680 = vmatmul.bf16.gmra.mxu0 %v604
      %v681 = vpop.f32.mrf.mxu0
      %v682 = vadd.f32 0.0, %v681
      %v683 = vpop.f32.mrf.mxu0
      %v684 = vadd.f32 0.0, %v683
      %685 = vdwg.mxu0
      %v686 = vmul.f32 %v667, 0.2
      %v687 = vmul.f32 %v669, 0.2
      %v688 = vmul.f32 %v672, 0.2
      %v689 = vmul.f32 %v674, 0.2
      %v690 = vmul.f32 %v677, 0.2
      %v691 = vmul.f32 %v679, 0.2
      %v692 = vmul.f32 %v682, 0.2
      %v693 = vmul.f32 %v684, 0.2
      %v694 = vmax.f32 %v667, %v686
      %v695 = vmax.f32 %v669, %v687
      %v696 = vmax.f32 %v672, %v688
      %v697 = vmax.f32 %v674, %v689
      %v698 = vmax.f32 %v677, %v690
      %v699 = vmax.f32 %v679, %v691
      %v700 = vmax.f32 %v682, %v692
      %v701 = vmax.f32 %v684, %v693
      %v702 = vpack.c.bf16 %v694, %v694
      %v703 = vpack.c.bf16 %v695, %v695
      %v704 = vpack.c.bf16 %v696, %v696
      %v705 = vpack.c.bf16 %v697, %v697
      %v706 = vpack.c.bf16 %v698, %v698
      %v707 = vpack.c.bf16 %v699, %v699
      %v708 = vpack.c.bf16 %v700, %v700
      %v709 = vpack.c.bf16 %v701, %v701
      %710 = vst [vmem:[#allocation2 + $0x8] sm:$0xf] %v702
      %711 = vst [vmem:[#allocation2 + $0x6c] sm:$0xf] %v703
      %712 = vst [vmem:[#allocation2 + $0xd0] sm:$0xf] %v704
      %713 = vst [vmem:[#allocation2 + $0x134] sm:$0xf] %v705
      %714 = vst [vmem:[#allocation2 + $0x198] sm:$0xf] %v706
      %715 = vst [vmem:[#allocation2 + $0x1fc] sm:$0xf] %v707
      %716 = vst [vmem:[#allocation2 + $0x260] sm:$0xf] %v708
      %717 = vst [vmem:[#allocation2 + $0x2c4] sm:$0xf] %v709
      %s718 = scalar_lea.vmem %s231, 48
      %v719 = vld [vmem:[%s718] sm:$0xf]
      %v720 = vld [vmem:[%s718 + $0x4] sm:$0xf]
      %v721 = vld [vmem:[%s718 + $0x8] sm:$0xf]
      %v722 = vld [vmem:[%s718 + $0xc] sm:$0xf]
      %v723 = vld [vmem:[%s718 + $0x190] sm:$0xf]
      %v724 = vld [vmem:[%s718 + $0x194] sm:$0xf]
      %v725 = vld [vmem:[%s718 + $0x198] sm:$0xf]
      %v726 = vld [vmem:[%s718 + $0x19c] sm:$0xf]
      %v727 = vld [vmem:[%s1] sm:$0xf]
      %v728 = vld [vmem:[%s1 + $0x4] sm:$0xf]
      %v729 = vld [vmem:[%s1 + $0x8] sm:$0xf]
      %v730 = vld [vmem:[%s1 + $0xc] sm:$0xf]
      %v731 = vld [vmem:[%s1 + $0x10] sm:$0xf]
      %v732 = vld [vmem:[%s1 + $0x14] sm:$0xf]
      %v733 = vld [vmem:[%s1 + $0x18] sm:$0xf]
      %v734 = vld [vmem:[%s1 + $0x1c] sm:$0xf]
      %v735 = vld [vmem:[%s1 + $0x20] sm:$0xf]
      %v736 = vld [vmem:[%s1 + $0x24] sm:$0xf]
      %v737 = vld [vmem:[%s1 + $0x28] sm:$0xf]
      %v738 = vld [vmem:[%s1 + $0x2c] sm:$0xf]
      %v739 = vld [vmem:[%s1 + $0x30] sm:$0xf]
      %v740 = vld [vmem:[%s1 + $0x34] sm:$0xf]
      %v741 = vld [vmem:[%s1 + $0x38] sm:$0xf]
      %v742 = vld [vmem:[%s1 + $0x3c] sm:$0xf]
      %v751 = vunpack.c.l.b16 %v719
      %v752 = vunpack.c.l.b16 %v720
      %v753 = vunpack.c.l.b16 %v721
      %v754 = vunpack.c.l.b16 %v722
      %v755 = vunpack.c.l.b16 %v723
      %v756 = vunpack.c.l.b16 %v724
      %v757 = vunpack.c.l.b16 %v725
      %v758 = vunpack.c.l.b16 %v726
      %v759 = vpack.c.b16 %v752, %v751
      %v760 = vpack.c.b16 %v754, %v753
      %v761 = vpack.c.b16 %v756, %v755
      %v762 = vpack.c.b16 %v758, %v757
      %v783 = vunpack.c.l.b16 %v727
      %v784 = vunpack.c.l.b16 %v728
      %v785 = vunpack.c.l.b16 %v729
      %v786 = vunpack.c.l.b16 %v730
      %v787 = vunpack.c.l.b16 %v731
      %v788 = vunpack.c.l.b16 %v732
      %v789 = vunpack.c.l.b16 %v733
      %v790 = vunpack.c.l.b16 %v734
      %v791 = vunpack.c.l.b16 %v735
      %v792 = vunpack.c.l.b16 %v736
      %v793 = vunpack.c.l.b16 %v737
      %v794 = vunpack.c.l.b16 %v738
      %v795 = vunpack.c.l.b16 %v739
      %v796 = vunpack.c.l.b16 %v740
      %v797 = vunpack.c.l.b16 %v741
      %v798 = vunpack.c.l.b16 %v742
      %v799 = vpack.c.b16 %v784, %v783
      %v800 = vpack.c.b16 %v786, %v785
      %v801 = vpack.c.b16 %v788, %v787
      %v802 = vpack.c.b16 %v790, %v789
      %v803 = vpack.c.b16 %v792, %v791
      %v804 = vpack.c.b16 %v794, %v793
      %v805 = vpack.c.b16 %v796, %v795
      %v806 = vpack.c.b16 %v798, %v797
      %815 = vmatpush.bf16.msra.mxu0 %v806
      %816 = vmatpush.bf16.msra.mxu0 %v805
      %817 = vmatpush.bf16.msra.mxu0 %v804
      %818 = vmatpush.bf16.msra.mxu0 %v803
      %819 = vmatpush.bf16.msra.mxu0 %v802
      %820 = vmatpush.bf16.msra.mxu0 %v801
      %821 = vmatpush.bf16.msra.mxu0 %v800
      %822 = vmatpush.bf16.msra.mxu0 %v799
      %823 = vmatmul.bf16.gmra.mxu0 %v759
      %v824 = vpop.f32.mrf.mxu0
      %v825 = vadd.f32 0.0, %v824
      %v826 = vpop.f32.mrf.mxu0
      %v827 = vadd.f32 0.0, %v826
      %828 = vmatmul.bf16.gmra.mxu0 %v760
      %v829 = vpop.f32.mrf.mxu0
      %v830 = vadd.f32 0.0, %v829
      %v831 = vpop.f32.mrf.mxu0
      %v832 = vadd.f32 0.0, %v831
      %833 = vmatmul.bf16.gmra.mxu0 %v761
      %v834 = vpop.f32.mrf.mxu0
      %v835 = vadd.f32 0.0, %v834
      %v836 = vpop.f32.mrf.mxu0
      %v837 = vadd.f32 0.0, %v836
      %838 = vmatmul.bf16.gmra.mxu0 %v762
      %v839 = vpop.f32.mrf.mxu0
      %v840 = vadd.f32 0.0, %v839
      %v841 = vpop.f32.mrf.mxu0
      %v842 = vadd.f32 0.0, %v841
      %843 = vdwg.mxu0
      %v844 = vmul.f32 %v825, 0.2
      %v845 = vmul.f32 %v827, 0.2
      %v846 = vmul.f32 %v830, 0.2
      %v847 = vmul.f32 %v832, 0.2
      %v848 = vmul.f32 %v835, 0.2
      %v849 = vmul.f32 %v837, 0.2
      %v850 = vmul.f32 %v840, 0.2
      %v851 = vmul.f32 %v842, 0.2
      %v852 = vmax.f32 %v825, %v844
      %v853 = vmax.f32 %v827, %v845
      %v854 = vmax.f32 %v830, %v846
      %v855 = vmax.f32 %v832, %v847
      %v856 = vmax.f32 %v835, %v848
      %v857 = vmax.f32 %v837, %v849
      %v858 = vmax.f32 %v840, %v850
      %v859 = vmax.f32 %v842, %v851
      %v860 = vpack.c.bf16 %v852, %v852
      %v861 = vpack.c.bf16 %v853, %v853
      %v862 = vpack.c.bf16 %v854, %v854
      %v863 = vpack.c.bf16 %v855, %v855
      %v864 = vpack.c.bf16 %v856, %v856
      %v865 = vpack.c.bf16 %v857, %v857
      %v866 = vpack.c.bf16 %v858, %v858
      %v867 = vpack.c.bf16 %v859, %v859
      %868 = vst [vmem:[#allocation2 + $0xc] sm:$0xf] %v860
      %869 = vst [vmem:[#allocation2 + $0x70] sm:$0xf] %v861
      %870 = vst [vmem:[#allocation2 + $0xd4] sm:$0xf] %v862
      %871 = vst [vmem:[#allocation2 + $0x138] sm:$0xf] %v863
      %872 = vst [vmem:[#allocation2 + $0x19c] sm:$0xf] %v864
      %873 = vst [vmem:[#allocation2 + $0x200] sm:$0xf] %v865
      %874 = vst [vmem:[#allocation2 + $0x264] sm:$0xf] %v866
      %875 = vst [vmem:[#allocation2 + $0x2c8] sm:$0xf] %v867
      %s876 = scalar_lea.vmem %s231, 64
      %v877 = vld [vmem:[%s876] sm:$0xf]
      %v878 = vld [vmem:[%s876 + $0x4] sm:$0xf]
      %v879 = vld [vmem:[%s876 + $0x8] sm:$0xf]
      %v880 = vld [vmem:[%s876 + $0xc] sm:$0xf]
      %v881 = vld [vmem:[%s876 + $0x190] sm:$0xf]
      %v882 = vld [vmem:[%s876 + $0x194] sm:$0xf]
      %v883 = vld [vmem:[%s876 + $0x198] sm:$0xf]
      %v884 = vld [vmem:[%s876 + $0x19c] sm:$0xf]
      %v885 = vld [vmem:[%s1] sm:$0xf]
      %v886 = vld [vmem:[%s1 + $0x4] sm:$0xf]
      %v887 = vld [vmem:[%s1 + $0x8] sm:$0xf]
      %v888 = vld [vmem:[%s1 + $0xc] sm:$0xf]
      %v889 = vld [vmem:[%s1 + $0x10] sm:$0xf]
      %v890 = vld [vmem:[%s1 + $0x14] sm:$0xf]
      %v891 = vld [vmem:[%s1 + $0x18] sm:$0xf]
      %v892 = vld [vmem:[%s1 + $0x1c] sm:$0xf]
      %v893 = vld [vmem:[%s1 + $0x20] sm:$0xf]
      %v894 = vld [vmem:[%s1 + $0x24] sm:$0xf]
      %v895 = vld [vmem:[%s1 + $0x28] sm:$0xf]
      %v896 = vld [vmem:[%s1 + $0x2c] sm:$0xf]
      %v897 = vld [vmem:[%s1 + $0x30] sm:$0xf]
      %v898 = vld [vmem:[%s1 + $0x34] sm:$0xf]
      %v899 = vld [vmem:[%s1 + $0x38] sm:$0xf]
      %v900 = vld [vmem:[%s1 + $0x3c] sm:$0xf]
      %v909 = vunpack.c.l.b16 %v877
      %v910 = vunpack.c.l.b16 %v878
      %v911 = vunpack.c.l.b16 %v879
      %v912 = vunpack.c.l.b16 %v880
      %v913 = vunpack.c.l.b16 %v881
      %v914 = vunpack.c.l.b16 %v882
      %v915 = vunpack.c.l.b16 %v883
      %v916 = vunpack.c.l.b16 %v884
      %v917 = vpack.c.b16 %v910, %v909
      %v918 = vpack.c.b16 %v912, %v911
      %v919 = vpack.c.b16 %v914, %v913
      %v920 = vpack.c.b16 %v916, %v915
      %v941 = vunpack.c.l.b16 %v885
      %v942 = vunpack.c.l.b16 %v886
      %v943 = vunpack.c.l.b16 %v887
      %v944 = vunpack.c.l.b16 %v888
      %v945 = vunpack.c.l.b16 %v889
      %v946 = vunpack.c.l.b16 %v890
      %v947 = vunpack.c.l.b16 %v891
      %v948 = vunpack.c.l.b16 %v892
      %v949 = vunpack.c.l.b16 %v893
      %v950 = vunpack.c.l.b16 %v894
      %v951 = vunpack.c.l.b16 %v895
      %v952 = vunpack.c.l.b16 %v896
      %v953 = vunpack.c.l.b16 %v897
      %v954 = vunpack.c.l.b16 %v898
      %v955 = vunpack.c.l.b16 %v899
      %v956 = vunpack.c.l.b16 %v900
      %v957 = vpack.c.b16 %v942, %v941
      %v958 = vpack.c.b16 %v944, %v943
      %v959 = vpack.c.b16 %v946, %v945
      %v960 = vpack.c.b16 %v948, %v947
      %v961 = vpack.c.b16 %v950, %v949
      %v962 = vpack.c.b16 %v952, %v951
      %v963 = vpack.c.b16 %v954, %v953
      %v964 = vpack.c.b16 %v956, %v955
      %973 = vmatpush.bf16.msra.mxu0 %v964
      %974 = vmatpush.bf16.msra.mxu0 %v963
      %975 = vmatpush.bf16.msra.mxu0 %v962
      %976 = vmatpush.bf16.msra.mxu0 %v961
      %977 = vmatpush.bf16.msra.mxu0 %v960
      %978 = vmatpush.bf16.msra.mxu0 %v959
      %979 = vmatpush.bf16.msra.mxu0 %v958
      %980 = vmatpush.bf16.msra.mxu0 %v957
      %981 = vmatmul.bf16.gmra.mxu0 %v917
      %v982 = vpop.f32.mrf.mxu0
      %v983 = vadd.f32 0.0, %v982
      %v984 = vpop.f32.mrf.mxu0
      %v985 = vadd.f32 0.0, %v984
      %986 = vmatmul.bf16.gmra.mxu0 %v918
      %v987 = vpop.f32.mrf.mxu0
      %v988 = vadd.f32 0.0, %v987
      %v989 = vpop.f32.mrf.mxu0
      %v990 = vadd.f32 0.0, %v989
      %991 = vmatmul.bf16.gmra.mxu0 %v919
      %v992 = vpop.f32.mrf.mxu0
      %v993 = vadd.f32 0.0, %v992
      %v994 = vpop.f32.mrf.mxu0
      %v995 = vadd.f32 0.0, %v994
      %996 = vmatmul.bf16.gmra.mxu0 %v920
      %v997 = vpop.f32.mrf.mxu0
      %v998 = vadd.f32 0.0, %v997
      %v999 = vpop.f32.mrf.mxu0
      %v1000 = vadd.f32 0.0, %v999
      %1001 = vdwg.mxu0
      %v1002 = vmul.f32 %v983, 0.2
      %v1003 = vmul.f32 %v985, 0.2
      %v1004 = vmul.f32 %v988, 0.2
      %v1005 = vmul.f32 %v990, 0.2
      %v1006 = vmul.f32 %v993, 0.2
      %v1007 = vmul.f32 %v995, 0.2
      %v1008 = vmul.f32 %v998, 0.2
      %v1009 = vmul.f32 %v1000, 0.2
      %v1010 = vmax.f32 %v983, %v1002
      %v1011 = vmax.f32 %v985, %v1003
      %v1012 = vmax.f32 %v988, %v1004
      %v1013 = vmax.f32 %v990, %v1005
      %v1014 = vmax.f32 %v993, %v1006
      %v1015 = vmax.f32 %v995, %v1007
      %v1016 = vmax.f32 %v998, %v1008
      %v1017 = vmax.f32 %v1000, %v1009
      %v1018 = vpack.c.bf16 %v1010, %v1010
      %v1019 = vpack.c.bf16 %v1011, %v1011
      %v1020 = vpack.c.bf16 %v1012, %v1012
      %v1021 = vpack.c.bf16 %v1013, %v1013
      %v1022 = vpack.c.bf16 %v1014, %v1014
      %v1023 = vpack.c.bf16 %v1015, %v1015
      %v1024 = vpack.c.bf16 %v1016, %v1016
      %v1025 = vpack.c.bf16 %v1017, %v1017
      %1026 = vst [vmem:[#allocation2 + $0x10] sm:$0xf] %v1018
      %1027 = vst [vmem:[#allocation2 + $0x74] sm:$0xf] %v1019
      %1028 = vst [vmem:[#allocation2 + $0xd8] sm:$0xf] %v1020
      %1029 = vst [vmem:[#allocation2 + $0x13c] sm:$0xf] %v1021
      %1030 = vst [vmem:[#allocation2 + $0x1a0] sm:$0xf] %v1022
      %1031 = vst [vmem:[#allocation2 + $0x204] sm:$0xf] %v1023
      %1032 = vst [vmem:[#allocation2 + $0x268] sm:$0xf] %v1024
      %1033 = vst [vmem:[#allocation2 + $0x2cc] sm:$0xf] %v1025
      %s1034 = scalar_lea.vmem %s231, 80
      %v1035 = vld [vmem:[%s1034] sm:$0xf]
      %v1036 = vld [vmem:[%s1034 + $0x4] sm:$0xf]
      %v1037 = vld [vmem:[%s1034 + $0x8] sm:$0xf]
      %v1038 = vld [vmem:[%s1034 + $0xc] sm:$0xf]
      %v1039 = vld [vmem:[%s1034 + $0x190] sm:$0xf]
      %v1040 = vld [vmem:[%s1034 + $0x194] sm:$0xf]
      %v1041 = vld [vmem:[%s1034 + $0x198] sm:$0xf]
      %v1042 = vld [vmem:[%s1034 + $0x19c] sm:$0xf]
      %v1043 = vld [vmem:[%s1] sm:$0xf]
      %v1044 = vld [vmem:[%s1 + $0x4] sm:$0xf]
      %v1045 = vld [vmem:[%s1 + $0x8] sm:$0xf]
      %v1046 = vld [vmem:[%s1 + $0xc] sm:$0xf]
      %v1047 = vld [vmem:[%s1 + $0x10] sm:$0xf]
      %v1048 = vld [vmem:[%s1 + $0x14] sm:$0xf]
      %v1049 = vld [vmem:[%s1 + $0x18] sm:$0xf]
      %v1050 = vld [vmem:[%s1 + $0x1c] sm:$0xf]
      %v1051 = vld [vmem:[%s1 + $0x20] sm:$0xf]
      %v1052 = vld [vmem:[%s1 + $0x24] sm:$0xf]
      %v1053 = vld [vmem:[%s1 + $0x28] sm:$0xf]
      %v1054 = vld [vmem:[%s1 + $0x2c] sm:$0xf]
      %v1055 = vld [vmem:[%s1 + $0x30] sm:$0xf]
      %v1056 = vld [vmem:[%s1 + $0x34] sm:$0xf]
      %v1057 = vld [vmem:[%s1 + $0x38] sm:$0xf]
      %v1058 = vld [vmem:[%s1 + $0x3c] sm:$0xf]
      %v1067 = vunpack.c.l.b16 %v1035
      %v1068 = vunpack.c.l.b16 %v1036
      %v1069 = vunpack.c.l.b16 %v1037
      %v1070 = vunpack.c.l.b16 %v1038
      %v1071 = vunpack.c.l.b16 %v1039
      %v1072 = vunpack.c.l.b16 %v1040
      %v1073 = vunpack.c.l.b16 %v1041
      %v1074 = vunpack.c.l.b16 %v1042
      %v1075 = vpack.c.b16 %v1068, %v1067
      %v1076 = vpack.c.b16 %v1070, %v1069
      %v1077 = vpack.c.b16 %v1072, %v1071
      %v1078 = vpack.c.b16 %v1074, %v1073
      %v1099 = vunpack.c.l.b16 %v1043
      %v1100 = vunpack.c.l.b16 %v1044
      %v1101 = vunpack.c.l.b16 %v1045
      %v1102 = vunpack.c.l.b16 %v1046
      %v1103 = vunpack.c.l.b16 %v1047
      %v1104 = vunpack.c.l.b16 %v1048
      %v1105 = vunpack.c.l.b16 %v1049
      %v1106 = vunpack.c.l.b16 %v1050
      %v1107 = vunpack.c.l.b16 %v1051
      %v1108 = vunpack.c.l.b16 %v1052
      %v1109 = vunpack.c.l.b16 %v1053
      %v1110 = vunpack.c.l.b16 %v1054
      %v1111 = vunpack.c.l.b16 %v1055
      %v1112 = vunpack.c.l.b16 %v1056
      %v1113 = vunpack.c.l.b16 %v1057
      %v1114 = vunpack.c.l.b16 %v1058
      %v1115 = vpack.c.b16 %v1100, %v1099
      %v1116 = vpack.c.b16 %v1102, %v1101
      %v1117 = vpack.c.b16 %v1104, %v1103
      %v1118 = vpack.c.b16 %v1106, %v1105
      %v1119 = vpack.c.b16 %v1108, %v1107
      %v1120 = vpack.c.b16 %v1110, %v1109
      %v1121 = vpack.c.b16 %v1112, %v1111
      %v1122 = vpack.c.b16 %v1114, %v1113
      %1131 = vmatpush.bf16.msra.mxu0 %v1122
      %1132 = vmatpush.bf16.msra.mxu0 %v1121
      %1133 = vmatpush.bf16.msra.mxu0 %v1120
      %1134 = vmatpush.bf16.msra.mxu0 %v1119
      %1135 = vmatpush.bf16.msra.mxu0 %v1118
      %1136 = vmatpush.bf16.msra.mxu0 %v1117
      %1137 = vmatpush.bf16.msra.mxu0 %v1116
      %1138 = vmatpush.bf16.msra.mxu0 %v1115
      %1139 = vmatmul.bf16.gmra.mxu0 %v1075
      %v1140 = vpop.f32.mrf.mxu0
      %v1141 = vadd.f32 0.0, %v1140
      %v1142 = vpop.f32.mrf.mxu0
      %v1143 = vadd.f32 0.0, %v1142
      %1144 = vmatmul.bf16.gmra.mxu0 %v1076
      %v1145 = vpop.f32.mrf.mxu0
      %v1146 = vadd.f32 0.0, %v1145
      %v1147 = vpop.f32.mrf.mxu0
      %v1148 = vadd.f32 0.0, %v1147
      %1149 = vmatmul.bf16.gmra.mxu0 %v1077
      %v1150 = vpop.f32.mrf.mxu0
      %v1151 = vadd.f32 0.0, %v1150
      %v1152 = vpop.f32.mrf.mxu0
      %v1153 = vadd.f32 0.0, %v1152
      %1154 = vmatmul.bf16.gmra.mxu0 %v1078
      %v1155 = vpop.f32.mrf.mxu0
      %v1156 = vadd.f32 0.0, %v1155
      %v1157 = vpop.f32.mrf.mxu0
      %v1158 = vadd.f32 0.0, %v1157
      %1159 = vdwg.mxu0
      %v1160 = vmul.f32 %v1141, 0.2
      %v1161 = vmul.f32 %v1143, 0.2
      %v1162 = vmul.f32 %v1146, 0.2
      %v1163 = vmul.f32 %v1148, 0.2
      %v1164 = vmul.f32 %v1151, 0.2
      %v1165 = vmul.f32 %v1153, 0.2
      %v1166 = vmul.f32 %v1156, 0.2
      %v1167 = vmul.f32 %v1158, 0.2
      %v1168 = vmax.f32 %v1141, %v1160
      %v1169 = vmax.f32 %v1143, %v1161
      %v1170 = vmax.f32 %v1146, %v1162
      %v1171 = vmax.f32 %v1148, %v1163
      %v1172 = vmax.f32 %v1151, %v1164
      %v1173 = vmax.f32 %v1153, %v1165
      %v1174 = vmax.f32 %v1156, %v1166
      %v1175 = vmax.f32 %v1158, %v1167
      %v1176 = vpack.c.bf16 %v1168, %v1168
      %v1177 = vpack.c.bf16 %v1169, %v1169
      %v1178 = vpack.c.bf16 %v1170, %v1170
      %v1179 = vpack.c.bf16 %v1171, %v1171
      %v1180 = vpack.c.bf16 %v1172, %v1172
      %v1181 = vpack.c.bf16 %v1173, %v1173
      %v1182 = vpack.c.bf16 %v1174, %v1174
      %v1183 = vpack.c.bf16 %v1175, %v1175
      %1184 = vst [vmem:[#allocation2 + $0x14] sm:$0xf] %v1176
      %1185 = vst [vmem:[#allocation2 + $0x78] sm:$0xf] %v1177
      %1186 = vst [vmem:[#allocation2 + $0xdc] sm:$0xf] %v1178
      %1187 = vst [vmem:[#allocation2 + $0x140] sm:$0xf] %v1179
      %1188 = vst [vmem:[#allocation2 + $0x1a4] sm:$0xf] %v1180
      %1189 = vst [vmem:[#allocation2 + $0x208] sm:$0xf] %v1181
      %1190 = vst [vmem:[#allocation2 + $0x26c] sm:$0xf] %v1182
      %1191 = vst [vmem:[#allocation2 + $0x2d0] sm:$0xf] %v1183
      %s1192 = scalar_lea.vmem %s231, 96
      %v1193 = vld [vmem:[%s1192] sm:$0xf]
      %v1194 = vld [vmem:[%s1192 + $0x4] sm:$0xf]
      %v1195 = vld [vmem:[%s1192 + $0x8] sm:$0xf]
      %v1196 = vld [vmem:[%s1192 + $0xc] sm:$0xf]
      %v1197 = vld [vmem:[%s1192 + $0x190] sm:$0xf]
      %v1198 = vld [vmem:[%s1192 + $0x194] sm:$0xf]
      %v1199 = vld [vmem:[%s1192 + $0x198] sm:$0xf]
      %v1200 = vld [vmem:[%s1192 + $0x19c] sm:$0xf]
      %v1201 = vld [vmem:[%s1] sm:$0xf]
      %v1202 = vld [vmem:[%s1 + $0x4] sm:$0xf]
      %v1203 = vld [vmem:[%s1 + $0x8] sm:$0xf]
      %v1204 = vld [vmem:[%s1 + $0xc] sm:$0xf]
      %v1205 = vld [vmem:[%s1 + $0x10] sm:$0xf]
      %v1206 = vld [vmem:[%s1 + $0x14] sm:$0xf]
      %v1207 = vld [vmem:[%s1 + $0x18] sm:$0xf]
      %v1208 = vld [vmem:[%s1 + $0x1c] sm:$0xf]
      %v1209 = vld [vmem:[%s1 + $0x20] sm:$0xf]
      %v1210 = vld [vmem:[%s1 + $0x24] sm:$0xf]
      %v1211 = vld [vmem:[%s1 + $0x28] sm:$0xf]
      %v1212 = vld [vmem:[%s1 + $0x2c] sm:$0xf]
      %v1213 = vld [vmem:[%s1 + $0x30] sm:$0xf]
      %v1214 = vld [vmem:[%s1 + $0x34] sm:$0xf]
      %v1215 = vld [vmem:[%s1 + $0x38] sm:$0xf]
      %v1216 = vld [vmem:[%s1 + $0x3c] sm:$0xf]
      %v1225 = vunpack.c.l.b16 %v1193
      %v1226 = vunpack.c.l.b16 %v1194
      %v1227 = vunpack.c.l.b16 %v1195
      %v1228 = vunpack.c.l.b16 %v1196
      %v1229 = vunpack.c.l.b16 %v1197
      %v1230 = vunpack.c.l.b16 %v1198
      %v1231 = vunpack.c.l.b16 %v1199
      %v1232 = vunpack.c.l.b16 %v1200
      %v1233 = vpack.c.b16 %v1226, %v1225
      %v1234 = vpack.c.b16 %v1228, %v1227
      %v1235 = vpack.c.b16 %v1230, %v1229
      %v1236 = vpack.c.b16 %v1232, %v1231
      %v1257 = vunpack.c.l.b16 %v1201
      %v1258 = vunpack.c.l.b16 %v1202
      %v1259 = vunpack.c.l.b16 %v1203
      %v1260 = vunpack.c.l.b16 %v1204
      %v1261 = vunpack.c.l.b16 %v1205
      %v1262 = vunpack.c.l.b16 %v1206
      %v1263 = vunpack.c.l.b16 %v1207
      %v1264 = vunpack.c.l.b16 %v1208
      %v1265 = vunpack.c.l.b16 %v1209
      %v1266 = vunpack.c.l.b16 %v1210
      %v1267 = vunpack.c.l.b16 %v1211
      %v1268 = vunpack.c.l.b16 %v1212
      %v1269 = vunpack.c.l.b16 %v1213
      %v1270 = vunpack.c.l.b16 %v1214
      %v1271 = vunpack.c.l.b16 %v1215
      %v1272 = vunpack.c.l.b16 %v1216
      %v1273 = vpack.c.b16 %v1258, %v1257
      %v1274 = vpack.c.b16 %v1260, %v1259
      %v1275 = vpack.c.b16 %v1262, %v1261
      %v1276 = vpack.c.b16 %v1264, %v1263
      %v1277 = vpack.c.b16 %v1266, %v1265
      %v1278 = vpack.c.b16 %v1268, %v1267
      %v1279 = vpack.c.b16 %v1270, %v1269
      %v1280 = vpack.c.b16 %v1272, %v1271
      %1289 = vmatpush.bf16.msra.mxu0 %v1280
      %1290 = vmatpush.bf16.msra.mxu0 %v1279
      %1291 = vmatpush.bf16.msra.mxu0 %v1278
      %1292 = vmatpush.bf16.msra.mxu0 %v1277
      %1293 = vmatpush.bf16.msra.mxu0 %v1276
      %1294 = vmatpush.bf16.msra.mxu0 %v1275
      %1295 = vmatpush.bf16.msra.mxu0 %v1274
      %1296 = vmatpush.bf16.msra.mxu0 %v1273
      %1297 = vmatmul.bf16.gmra.mxu0 %v1233
      %v1298 = vpop.f32.mrf.mxu0
      %v1299 = vadd.f32 0.0, %v1298
      %v1300 = vpop.f32.mrf.mxu0
      %v1301 = vadd.f32 0.0, %v1300
      %1302 = vmatmul.bf16.gmra.mxu0 %v1234
      %v1303 = vpop.f32.mrf.mxu0
      %v1304 = vadd.f32 0.0, %v1303
      %v1305 = vpop.f32.mrf.mxu0
      %v1306 = vadd.f32 0.0, %v1305
      %1307 = vmatmul.bf16.gmra.mxu0 %v1235
      %v1308 = vpop.f32.mrf.mxu0
      %v1309 = vadd.f32 0.0, %v1308
      %v1310 = vpop.f32.mrf.mxu0
      %v1311 = vadd.f32 0.0, %v1310
      %1312 = vmatmul.bf16.gmra.mxu0 %v1236
      %v1313 = vpop.f32.mrf.mxu0
      %v1314 = vadd.f32 0.0, %v1313
      %v1315 = vpop.f32.mrf.mxu0
      %v1316 = vadd.f32 0.0, %v1315
      %1317 = vdwg.mxu0
      %v1318 = vmul.f32 %v1299, 0.2
      %v1319 = vmul.f32 %v1301, 0.2
      %v1320 = vmul.f32 %v1304, 0.2
      %v1321 = vmul.f32 %v1306, 0.2
      %v1322 = vmul.f32 %v1309, 0.2
      %v1323 = vmul.f32 %v1311, 0.2
      %v1324 = vmul.f32 %v1314, 0.2
      %v1325 = vmul.f32 %v1316, 0.2
      %v1326 = vmax.f32 %v1299, %v1318
      %v1327 = vmax.f32 %v1301, %v1319
      %v1328 = vmax.f32 %v1304, %v1320
      %v1329 = vmax.f32 %v1306, %v1321
      %v1330 = vmax.f32 %v1309, %v1322
      %v1331 = vmax.f32 %v1311, %v1323
      %v1332 = vmax.f32 %v1314, %v1324
      %v1333 = vmax.f32 %v1316, %v1325
      %v1334 = vpack.c.bf16 %v1326, %v1326
      %v1335 = vpack.c.bf16 %v1327, %v1327
      %v1336 = vpack.c.bf16 %v1328, %v1328
      %v1337 = vpack.c.bf16 %v1329, %v1329
      %v1338 = vpack.c.bf16 %v1330, %v1330
      %v1339 = vpack.c.bf16 %v1331, %v1331
      %v1340 = vpack.c.bf16 %v1332, %v1332
      %v1341 = vpack.c.bf16 %v1333, %v1333
      %1342 = vst [vmem:[#allocation2 + $0x18] sm:$0xf] %v1334
      %1343 = vst [vmem:[#allocation2 + $0x7c] sm:$0xf] %v1335
      %1344 = vst [vmem:[#allocation2 + $0xe0] sm:$0xf] %v1336
      %1345 = vst [vmem:[#allocation2 + $0x144] sm:$0xf] %v1337
      %1346 = vst [vmem:[#allocation2 + $0x1a8] sm:$0xf] %v1338
      %1347 = vst [vmem:[#allocation2 + $0x20c] sm:$0xf] %v1339
      %1348 = vst [vmem:[#allocation2 + $0x270] sm:$0xf] %v1340
      %1349 = vst [vmem:[#allocation2 + $0x2d4] sm:$0xf] %v1341
      %s1350 = scalar_lea.vmem %s231, 112
      %v1351 = vld [vmem:[%s1350] sm:$0xf]
      %v1352 = vld [vmem:[%s1350 + $0x4] sm:$0xf]
      %v1353 = vld [vmem:[%s1350 + $0x8] sm:$0xf]
      %v1354 = vld [vmem:[%s1350 + $0xc] sm:$0xf]
      %v1355 = vld [vmem:[%s1350 + $0x190] sm:$0xf]
      %v1356 = vld [vmem:[%s1350 + $0x194] sm:$0xf]
      %v1357 = vld [vmem:[%s1350 + $0x198] sm:$0xf]
      %v1358 = vld [vmem:[%s1350 + $0x19c] sm:$0xf]
      %v1359 = vld [vmem:[%s1] sm:$0xf]
      %v1360 = vld [vmem:[%s1 + $0x4] sm:$0xf]
      %v1361 = vld [vmem:[%s1 + $0x8] sm:$0xf]
      %v1362 = vld [vmem:[%s1 + $0xc] sm:$0xf]
      %v1363 = vld [vmem:[%s1 + $0x10] sm:$0xf]
      %v1364 = vld [vmem:[%s1 + $0x14] sm:$0xf]
      %v1365 = vld [vmem:[%s1 + $0x18] sm:$0xf]
      %v1366 = vld [vmem:[%s1 + $0x1c] sm:$0xf]
      %v1367 = vld [vmem:[%s1 + $0x20] sm:$0xf]
      %v1368 = vld [vmem:[%s1 + $0x24] sm:$0xf]
      %v1369 = vld [vmem:[%s1 + $0x28] sm:$0xf]
      %v1370 = vld [vmem:[%s1 + $0x2c] sm:$0xf]
      %v1371 = vld [vmem:[%s1 + $0x30] sm:$0xf]
      %v1372 = vld [vmem:[%s1 + $0x34] sm:$0xf]
      %v1373 = vld [vmem:[%s1 + $0x38] sm:$0xf]
      %v1374 = vld [vmem:[%s1 + $0x3c] sm:$0xf]
      %v1383 = vunpack.c.l.b16 %v1351
      %v1384 = vunpack.c.l.b16 %v1352
      %v1385 = vunpack.c.l.b16 %v1353
      %v1386 = vunpack.c.l.b16 %v1354
      %v1387 = vunpack.c.l.b16 %v1355
      %v1388 = vunpack.c.l.b16 %v1356
      %v1389 = vunpack.c.l.b16 %v1357
      %v1390 = vunpack.c.l.b16 %v1358
      %v1391 = vpack.c.b16 %v1384, %v1383
      %v1392 = vpack.c.b16 %v1386, %v1385
      %v1393 = vpack.c.b16 %v1388, %v1387
      %v1394 = vpack.c.b16 %v1390, %v1389
      %v1415 = vunpack.c.l.b16 %v1359
      %v1416 = vunpack.c.l.b16 %v1360
      %v1417 = vunpack.c.l.b16 %v1361
      %v1418 = vunpack.c.l.b16 %v1362
      %v1419 = vunpack.c.l.b16 %v1363
      %v1420 = vunpack.c.l.b16 %v1364
      %v1421 = vunpack.c.l.b16 %v1365
      %v1422 = vunpack.c.l.b16 %v1366
      %v1423 = vunpack.c.l.b16 %v1367
      %v1424 = vunpack.c.l.b16 %v1368
      %v1425 = vunpack.c.l.b16 %v1369
      %v1426 = vunpack.c.l.b16 %v1370
      %v1427 = vunpack.c.l.b16 %v1371
      %v1428 = vunpack.c.l.b16 %v1372
      %v1429 = vunpack.c.l.b16 %v1373
      %v1430 = vunpack.c.l.b16 %v1374
      %v1431 = vpack.c.b16 %v1416, %v1415
      %v1432 = vpack.c.b16 %v1418, %v1417
      %v1433 = vpack.c.b16 %v1420, %v1419
      %v1434 = vpack.c.b16 %v1422, %v1421
      %v1435 = vpack.c.b16 %v1424, %v1423
      %v1436 = vpack.c.b16 %v1426, %v1425
      %v1437 = vpack.c.b16 %v1428, %v1427
      %v1438 = vpack.c.b16 %v1430, %v1429
      %1447 = vmatpush.bf16.msra.mxu0 %v1438
      %1448 = vmatpush.bf16.msra.mxu0 %v1437
      %1449 = vmatpush.bf16.msra.mxu0 %v1436
      %1450 = vmatpush.bf16.msra.mxu0 %v1435
      %1451 = vmatpush.bf16.msra.mxu0 %v1434
      %1452 = vmatpush.bf16.msra.mxu0 %v1433
      %1453 = vmatpush.bf16.msra.mxu0 %v1432
      %1454 = vmatpush.bf16.msra.mxu0 %v1431
      %1455 = vmatmul.bf16.gmra.mxu0 %v1391
      %v1456 = vpop.f32.mrf.mxu0
      %v1457 = vadd.f32 0.0, %v1456
      %v1458 = vpop.f32.mrf.mxu0
      %v1459 = vadd.f32 0.0, %v1458
      %1460 = vmatmul.bf16.gmra.mxu0 %v1392
      %v1461 = vpop.f32.mrf.mxu0
      %v1462 = vadd.f32 0.0, %v1461
      %v1463 = vpop.f32.mrf.mxu0
      %v1464 = vadd.f32 0.0, %v1463
      %1465 = vmatmul.bf16.gmra.mxu0 %v1393
      %v1466 = vpop.f32.mrf.mxu0
      %v1467 = vadd.f32 0.0, %v1466
      %v1468 = vpop.f32.mrf.mxu0
      %v1469 = vadd.f32 0.0, %v1468
      %1470 = vmatmul.bf16.gmra.mxu0 %v1394
      %v1471 = vpop.f32.mrf.mxu0
      %v1472 = vadd.f32 0.0, %v1471
      %v1473 = vpop.f32.mrf.mxu0
      %v1474 = vadd.f32 0.0, %v1473
      %1475 = vdwg.mxu0
      %v1476 = vmul.f32 %v1457, 0.2
      %v1477 = vmul.f32 %v1459, 0.2
      %v1478 = vmul.f32 %v1462, 0.2
      %v1479 = vmul.f32 %v1464, 0.2
      %v1480 = vmul.f32 %v1467, 0.2
      %v1481 = vmul.f32 %v1469, 0.2
      %v1482 = vmul.f32 %v1472, 0.2
      %v1483 = vmul.f32 %v1474, 0.2
      %v1484 = vmax.f32 %v1457, %v1476
      %v1485 = vmax.f32 %v1459, %v1477
      %v1486 = vmax.f32 %v1462, %v1478
      %v1487 = vmax.f32 %v1464, %v1479
      %v1488 = vmax.f32 %v1467, %v1480
      %v1489 = vmax.f32 %v1469, %v1481
      %v1490 = vmax.f32 %v1472, %v1482
      %v1491 = vmax.f32 %v1474, %v1483
      %v1492 = vpack.c.bf16 %v1484, %v1484
      %v1493 = vpack.c.bf16 %v1485, %v1485
      %v1494 = vpack.c.bf16 %v1486, %v1486
      %v1495 = vpack.c.bf16 %v1487, %v1487
      %v1496 = vpack.c.bf16 %v1488, %v1488
      %v1497 = vpack.c.bf16 %v1489, %v1489
      %v1498 = vpack.c.bf16 %v1490, %v1490
      %v1499 = vpack.c.bf16 %v1491, %v1491
      %1500 = vst [vmem:[#allocation2 + $0x1c] sm:$0xf] %v1492
      %1501 = vst [vmem:[#allocation2 + $0x80] sm:$0xf] %v1493
      %1502 = vst [vmem:[#allocation2 + $0xe4] sm:$0xf] %v1494
      %1503 = vst [vmem:[#allocation2 + $0x148] sm:$0xf] %v1495
      %1504 = vst [vmem:[#allocation2 + $0x1ac] sm:$0xf] %v1496
      %1505 = vst [vmem:[#allocation2 + $0x210] sm:$0xf] %v1497
      %1506 = vst [vmem:[#allocation2 + $0x274] sm:$0xf] %v1498
      %1507 = vst [vmem:[#allocation2 + $0x2d8] sm:$0xf] %v1499
      %s1508 = scalar_lea.vmem %s231, 128
      %v1509 = vld [vmem:[%s1508] sm:$0xf]
      %v1510 = vld [vmem:[%s1508 + $0x4] sm:$0xf]
      %v1511 = vld [vmem:[%s1508 + $0x8] sm:$0xf]
      %v1512 = vld [vmem:[%s1508 + $0xc] sm:$0xf]
      %v1513 = vld [vmem:[%s1508 + $0x190] sm:$0xf]
      %v1514 = vld [vmem:[%s1508 + $0x194] sm:$0xf]
      %v1515 = vld [vmem:[%s1508 + $0x198] sm:$0xf]
      %v1516 = vld [vmem:[%s1508 + $0x19c] sm:$0xf]
      %v1517 = vld [vmem:[%s1] sm:$0xf]
      %v1518 = vld [vmem:[%s1 + $0x4] sm:$0xf]
      %v1519 = vld [vmem:[%s1 + $0x8] sm:$0xf]
      %v1520 = vld [vmem:[%s1 + $0xc] sm:$0xf]
      %v1521 = vld [vmem:[%s1 + $0x10] sm:$0xf]
      %v1522 = vld [vmem:[%s1 + $0x14] sm:$0xf]
      %v1523 = vld [vmem:[%s1 + $0x18] sm:$0xf]
      %v1524 = vld [vmem:[%s1 + $0x1c] sm:$0xf]
      %v1525 = vld [vmem:[%s1 + $0x20] sm:$0xf]
      %v1526 = vld [vmem:[%s1 + $0x24] sm:$0xf]
      %v1527 = vld [vmem:[%s1 + $0x28] sm:$0xf]
      %v1528 = vld [vmem:[%s1 + $0x2c] sm:$0xf]
      %v1529 = vld [vmem:[%s1 + $0x30] sm:$0xf]
      %v1530 = vld [vmem:[%s1 + $0x34] sm:$0xf]
      %v1531 = vld [vmem:[%s1 + $0x38] sm:$0xf]
      %v1532 = vld [vmem:[%s1 + $0x3c] sm:$0xf]
      %v1541 = vunpack.c.l.b16 %v1509
      %v1542 = vunpack.c.l.b16 %v1510
      %v1543 = vunpack.c.l.b16 %v1511
      %v1544 = vunpack.c.l.b16 %v1512
      %v1545 = vunpack.c.l.b16 %v1513
      %v1546 = vunpack.c.l.b16 %v1514
      %v1547 = vunpack.c.l.b16 %v1515
      %v1548 = vunpack.c.l.b16 %v1516
      %v1549 = vpack.c.b16 %v1542, %v1541
      %v1550 = vpack.c.b16 %v1544, %v1543
      %v1551 = vpack.c.b16 %v1546, %v1545
      %v1552 = vpack.c.b16 %v1548, %v1547
      %v1573 = vunpack.c.l.b16 %v1517
      %v1574 = vunpack.c.l.b16 %v1518
      %v1575 = vunpack.c.l.b16 %v1519
      %v1576 = vunpack.c.l.b16 %v1520
      %v1577 = vunpack.c.l.b16 %v1521
      %v1578 = vunpack.c.l.b16 %v1522
      %v1579 = vunpack.c.l.b16 %v1523
      %v1580 = vunpack.c.l.b16 %v1524
      %v1581 = vunpack.c.l.b16 %v1525
      %v1582 = vunpack.c.l.b16 %v1526
      %v1583 = vunpack.c.l.b16 %v1527
      %v1584 = vunpack.c.l.b16 %v1528
      %v1585 = vunpack.c.l.b16 %v1529
      %v1586 = vunpack.c.l.b16 %v1530
      %v1587 = vunpack.c.l.b16 %v1531
      %v1588 = vunpack.c.l.b16 %v1532
      %v1589 = vpack.c.b16 %v1574, %v1573
      %v1590 = vpack.c.b16 %v1576, %v1575
      %v1591 = vpack.c.b16 %v1578, %v1577
      %v1592 = vpack.c.b16 %v1580, %v1579
      %v1593 = vpack.c.b16 %v1582, %v1581
      %v1594 = vpack.c.b16 %v1584, %v1583
      %v1595 = vpack.c.b16 %v1586, %v1585
      %v1596 = vpack.c.b16 %v1588, %v1587
      %1605 = vmatpush.bf16.msra.mxu0 %v1596
      %1606 = vmatpush.bf16.msra.mxu0 %v1595
      %1607 = vmatpush.bf16.msra.mxu0 %v1594
      %1608 = vmatpush.bf16.msra.mxu0 %v1593
      %1609 = vmatpush.bf16.msra.mxu0 %v1592
      %1610 = vmatpush.bf16.msra.mxu0 %v1591
      %1611 = vmatpush.bf16.msra.mxu0 %v1590
      %1612 = vmatpush.bf16.msra.mxu0 %v1589
      %1613 = vmatmul.bf16.gmra.mxu0 %v1549
      %v1614 = vpop.f32.mrf.mxu0
      %v1615 = vadd.f32 0.0, %v1614
      %v1616 = vpop.f32.mrf.mxu0
      %v1617 = vadd.f32 0.0, %v1616
      %1618 = vmatmul.bf16.gmra.mxu0 %v1550
      %v1619 = vpop.f32.mrf.mxu0
      %v1620 = vadd.f32 0.0, %v1619
      %v1621 = vpop.f32.mrf.mxu0
      %v1622 = vadd.f32 0.0, %v1621
      %1623 = vmatmul.bf16.gmra.mxu0 %v1551
      %v1624 = vpop.f32.mrf.mxu0
      %v1625 = vadd.f32 0.0, %v1624
      %v1626 = vpop.f32.mrf.mxu0
      %v1627 = vadd.f32 0.0, %v1626
      %1628 = vmatmul.bf16.gmra.mxu0 %v1552
      %v1629 = vpop.f32.mrf.mxu0
      %v1630 = vadd.f32 0.0, %v1629
      %v1631 = vpop.f32.mrf.mxu0
      %v1632 = vadd.f32 0.0, %v1631
      %1633 = vdwg.mxu0
      %v1634 = vmul.f32 %v1615, 0.2
      %v1635 = vmul.f32 %v1617, 0.2
      %v1636 = vmul.f32 %v1620, 0.2
      %v1637 = vmul.f32 %v1622, 0.2
      %v1638 = vmul.f32 %v1625, 0.2
      %v1639 = vmul.f32 %v1627, 0.2
      %v1640 = vmul.f32 %v1630, 0.2
      %v1641 = vmul.f32 %v1632, 0.2
      %v1642 = vmax.f32 %v1615, %v1634
      %v1643 = vmax.f32 %v1617, %v1635
      %v1644 = vmax.f32 %v1620, %v1636
      %v1645 = vmax.f32 %v1622, %v1637
      %v1646 = vmax.f32 %v1625, %v1638
      %v1647 = vmax.f32 %v1627, %v1639
      %v1648 = vmax.f32 %v1630, %v1640
      %v1649 = vmax.f32 %v1632, %v1641
      %v1650 = vpack.c.bf16 %v1642, %v1642
      %v1651 = vpack.c.bf16 %v1643, %v1643
      %v1652 = vpack.c.bf16 %v1644, %v1644
      %v1653 = vpack.c.bf16 %v1645, %v1645
      %v1654 = vpack.c.bf16 %v1646, %v1646
      %v1655 = vpack.c.bf16 %v1647, %v1647
      %v1656 = vpack.c.bf16 %v1648, %v1648
      %v1657 = vpack.c.bf16 %v1649, %v1649
      %1658 = vst [vmem:[#allocation2 + $0x20] sm:$0xf] %v1650
      %1659 = vst [vmem:[#allocation2 + $0x84] sm:$0xf] %v1651
      %1660 = vst [vmem:[#allocation2 + $0xe8] sm:$0xf] %v1652
      %1661 = vst [vmem:[#allocation2 + $0x14c] sm:$0xf] %v1653
      %1662 = vst [vmem:[#allocation2 + $0x1b0] sm:$0xf] %v1654
      %1663 = vst [vmem:[#allocation2 + $0x214] sm:$0xf] %v1655
      %1664 = vst [vmem:[#allocation2 + $0x278] sm:$0xf] %v1656
      %1665 = vst [vmem:[#allocation2 + $0x2dc] sm:$0xf] %v1657
      %s1666 = scalar_lea.vmem %s231, 144
      %v1667 = vld [vmem:[%s1666] sm:$0xf]
      %v1668 = vld [vmem:[%s1666 + $0x4] sm:$0xf]
      %v1669 = vld [vmem:[%s1666 + $0x8] sm:$0xf]
      %v1670 = vld [vmem:[%s1666 + $0xc] sm:$0xf]
      %v1671 = vld [vmem:[%s1666 + $0x190] sm:$0xf]
      %v1672 = vld [vmem:[%s1666 + $0x194] sm:$0xf]
      %v1673 = vld [vmem:[%s1666 + $0x198] sm:$0xf]
      %v1674 = vld [vmem:[%s1666 + $0x19c] sm:$0xf]
      %v1675 = vld [vmem:[%s1] sm:$0xf]
      %v1676 = vld [vmem:[%s1 + $0x4] sm:$0xf]
      %v1677 = vld [vmem:[%s1 + $0x8] sm:$0xf]
      %v1678 = vld [vmem:[%s1 + $0xc] sm:$0xf]
      %v1679 = vld [vmem:[%s1 + $0x10] sm:$0xf]
      %v1680 = vld [vmem:[%s1 + $0x14] sm:$0xf]
      %v1681 = vld [vmem:[%s1 + $0x18] sm:$0xf]
      %v1682 = vld [vmem:[%s1 + $0x1c] sm:$0xf]
      %v1683 = vld [vmem:[%s1 + $0x20] sm:$0xf]
      %v1684 = vld [vmem:[%s1 + $0x24] sm:$0xf]
      %v1685 = vld [vmem:[%s1 + $0x28] sm:$0xf]
      %v1686 = vld [vmem:[%s1 + $0x2c] sm:$0xf]
      %v1687 = vld [vmem:[%s1 + $0x30] sm:$0xf]
      %v1688 = vld [vmem:[%s1 + $0x34] sm:$0xf]
      %v1689 = vld [vmem:[%s1 + $0x38] sm:$0xf]
      %v1690 = vld [vmem:[%s1 + $0x3c] sm:$0xf]
      %v1699 = vunpack.c.l.b16 %v1667
      %v1700 = vunpack.c.l.b16 %v1668
      %v1701 = vunpack.c.l.b16 %v1669
      %v1702 = vunpack.c.l.b16 %v1670
      %v1703 = vunpack.c.l.b16 %v1671
      %v1704 = vunpack.c.l.b16 %v1672
      %v1705 = vunpack.c.l.b16 %v1673
      %v1706 = vunpack.c.l.b16 %v1674
      %v1707 = vpack.c.b16 %v1700, %v1699
      %v1708 = vpack.c.b16 %v1702, %v1701
      %v1709 = vpack.c.b16 %v1704, %v1703
      %v1710 = vpack.c.b16 %v1706, %v1705
      %v1731 = vunpack.c.l.b16 %v1675
      %v1732 = vunpack.c.l.b16 %v1676
      %v1733 = vunpack.c.l.b16 %v1677
      %v1734 = vunpack.c.l.b16 %v1678
      %v1735 = vunpack.c.l.b16 %v1679
      %v1736 = vunpack.c.l.b16 %v1680
      %v1737 = vunpack.c.l.b16 %v1681
      %v1738 = vunpack.c.l.b16 %v1682
      %v1739 = vunpack.c.l.b16 %v1683
      %v1740 = vunpack.c.l.b16 %v1684
      %v1741 = vunpack.c.l.b16 %v1685
      %v1742 = vunpack.c.l.b16 %v1686
      %v1743 = vunpack.c.l.b16 %v1687
      %v1744 = vunpack.c.l.b16 %v1688
      %v1745 = vunpack.c.l.b16 %v1689
      %v1746 = vunpack.c.l.b16 %v1690
      %v1747 = vpack.c.b16 %v1732, %v1731
      %v1748 = vpack.c.b16 %v1734, %v1733
      %v1749 = vpack.c.b16 %v1736, %v1735
      %v1750 = vpack.c.b16 %v1738, %v1737
      %v1751 = vpack.c.b16 %v1740, %v1739
      %v1752 = vpack.c.b16 %v1742, %v1741
      %v1753 = vpack.c.b16 %v1744, %v1743
      %v1754 = vpack.c.b16 %v1746, %v1745
      %1763 = vmatpush.bf16.msra.mxu0 %v1754
      %1764 = vmatpush.bf16.msra.mxu0 %v1753
      %1765 = vmatpush.bf16.msra.mxu0 %v1752
      %1766 = vmatpush.bf16.msra.mxu0 %v1751
      %1767 = vmatpush.bf16.msra.mxu0 %v1750
      %1768 = vmatpush.bf16.msra.mxu0 %v1749
      %1769 = vmatpush.bf16.msra.mxu0 %v1748
      %1770 = vmatpush.bf16.msra.mxu0 %v1747
      %1771 = vmatmul.bf16.gmra.mxu0 %v1707
      %v1772 = vpop.f32.mrf.mxu0
      %v1773 = vadd.f32 0.0, %v1772
      %v1774 = vpop.f32.mrf.mxu0
      %v1775 = vadd.f32 0.0, %v1774
      %1776 = vmatmul.bf16.gmra.mxu0 %v1708
      %v1777 = vpop.f32.mrf.mxu0
      %v1778 = vadd.f32 0.0, %v1777
      %v1779 = vpop.f32.mrf.mxu0
      %v1780 = vadd.f32 0.0, %v1779
      %1781 = vmatmul.bf16.gmra.mxu0 %v1709
      %v1782 = vpop.f32.mrf.mxu0
      %v1783 = vadd.f32 0.0, %v1782
      %v1784 = vpop.f32.mrf.mxu0
      %v1785 = vadd.f32 0.0, %v1784
      %1786 = vmatmul.bf16.gmra.mxu0 %v1710
      %v1787 = vpop.f32.mrf.mxu0
      %v1788 = vadd.f32 0.0, %v1787
      %v1789 = vpop.f32.mrf.mxu0
      %v1790 = vadd.f32 0.0, %v1789
      %1791 = vdwg.mxu0
      %v1792 = vmul.f32 %v1773, 0.2
      %v1793 = vmul.f32 %v1775, 0.2
      %v1794 = vmul.f32 %v1778, 0.2
      %v1795 = vmul.f32 %v1780, 0.2
      %v1796 = vmul.f32 %v1783, 0.2
      %v1797 = vmul.f32 %v1785, 0.2
      %v1798 = vmul.f32 %v1788, 0.2
      %v1799 = vmul.f32 %v1790, 0.2
      %v1800 = vmax.f32 %v1773, %v1792
      %v1801 = vmax.f32 %v1775, %v1793
      %v1802 = vmax.f32 %v1778, %v1794
      %v1803 = vmax.f32 %v1780, %v1795
      %v1804 = vmax.f32 %v1783, %v1796
      %v1805 = vmax.f32 %v1785, %v1797
      %v1806 = vmax.f32 %v1788, %v1798
      %v1807 = vmax.f32 %v1790, %v1799
      %v1808 = vpack.c.bf16 %v1800, %v1800
      %v1809 = vpack.c.bf16 %v1801, %v1801
      %v1810 = vpack.c.bf16 %v1802, %v1802
      %v1811 = vpack.c.bf16 %v1803, %v1803
      %v1812 = vpack.c.bf16 %v1804, %v1804
      %v1813 = vpack.c.bf16 %v1805, %v1805
      %v1814 = vpack.c.bf16 %v1806, %v1806
      %v1815 = vpack.c.bf16 %v1807, %v1807
      %1816 = vst [vmem:[#allocation2 + $0x24] sm:$0xf] %v1808
      %1817 = vst [vmem:[#allocation2 + $0x88] sm:$0xf] %v1809
      %1818 = vst [vmem:[#allocation2 + $0xec] sm:$0xf] %v1810
      %1819 = vst [vmem:[#allocation2 + $0x150] sm:$0xf] %v1811
      %1820 = vst [vmem:[#allocation2 + $0x1b4] sm:$0xf] %v1812
      %1821 = vst [vmem:[#allocation2 + $0x218] sm:$0xf] %v1813
      %1822 = vst [vmem:[#allocation2 + $0x27c] sm:$0xf] %v1814
      %1823 = vst [vmem:[#allocation2 + $0x2e0] sm:$0xf] %v1815
      %s1824 = scalar_lea.vmem %s231, 160
      %v1825 = vld [vmem:[%s1824] sm:$0xf]
      %v1826 = vld [vmem:[%s1824 + $0x4] sm:$0xf]
      %v1827 = vld [vmem:[%s1824 + $0x8] sm:$0xf]
      %v1828 = vld [vmem:[%s1824 + $0xc] sm:$0xf]
      %v1829 = vld [vmem:[%s1824 + $0x190] sm:$0xf]
      %v1830 = vld [vmem:[%s1824 + $0x194] sm:$0xf]
      %v1831 = vld [vmem:[%s1824 + $0x198] sm:$0xf]
      %v1832 = vld [vmem:[%s1824 + $0x19c] sm:$0xf]
      %v1833 = vld [vmem:[%s1] sm:$0xf]
      %v1834 = vld [vmem:[%s1 + $0x4] sm:$0xf]
      %v1835 = vld [vmem:[%s1 + $0x8] sm:$0xf]
      %v1836 = vld [vmem:[%s1 + $0xc] sm:$0xf]
      %v1837 = vld [vmem:[%s1 + $0x10] sm:$0xf]
      %v1838 = vld [vmem:[%s1 + $0x14] sm:$0xf]
      %v1839 = vld [vmem:[%s1 + $0x18] sm:$0xf]
      %v1840 = vld [vmem:[%s1 + $0x1c] sm:$0xf]
      %v1841 = vld [vmem:[%s1 + $0x20] sm:$0xf]
      %v1842 = vld [vmem:[%s1 + $0x24] sm:$0xf]
      %v1843 = vld [vmem:[%s1 + $0x28] sm:$0xf]
      %v1844 = vld [vmem:[%s1 + $0x2c] sm:$0xf]
      %v1845 = vld [vmem:[%s1 + $0x30] sm:$0xf]
      %v1846 = vld [vmem:[%s1 + $0x34] sm:$0xf]
      %v1847 = vld [vmem:[%s1 + $0x38] sm:$0xf]
      %v1848 = vld [vmem:[%s1 + $0x3c] sm:$0xf]
      %v1857 = vunpack.c.l.b16 %v1825
      %v1858 = vunpack.c.l.b16 %v1826
      %v1859 = vunpack.c.l.b16 %v1827
      %v1860 = vunpack.c.l.b16 %v1828
      %v1861 = vunpack.c.l.b16 %v1829
      %v1862 = vunpack.c.l.b16 %v1830
      %v1863 = vunpack.c.l.b16 %v1831
      %v1864 = vunpack.c.l.b16 %v1832
      %v1865 = vpack.c.b16 %v1858, %v1857
      %v1866 = vpack.c.b16 %v1860, %v1859
      %v1867 = vpack.c.b16 %v1862, %v1861
      %v1868 = vpack.c.b16 %v1864, %v1863
      %v1889 = vunpack.c.l.b16 %v1833
      %v1890 = vunpack.c.l.b16 %v1834
      %v1891 = vunpack.c.l.b16 %v1835
      %v1892 = vunpack.c.l.b16 %v1836
      %v1893 = vunpack.c.l.b16 %v1837
      %v1894 = vunpack.c.l.b16 %v1838
      %v1895 = vunpack.c.l.b16 %v1839
      %v1896 = vunpack.c.l.b16 %v1840
      %v1897 = vunpack.c.l.b16 %v1841
      %v1898 = vunpack.c.l.b16 %v1842
      %v1899 = vunpack.c.l.b16 %v1843
      %v1900 = vunpack.c.l.b16 %v1844
      %v1901 = vunpack.c.l.b16 %v1845
      %v1902 = vunpack.c.l.b16 %v1846
      %v1903 = vunpack.c.l.b16 %v1847
      %v1904 = vunpack.c.l.b16 %v1848
      %v1905 = vpack.c.b16 %v1890, %v1889
      %v1906 = vpack.c.b16 %v1892, %v1891
      %v1907 = vpack.c.b16 %v1894, %v1893
      %v1908 = vpack.c.b16 %v1896, %v1895
      %v1909 = vpack.c.b16 %v1898, %v1897
      %v1910 = vpack.c.b16 %v1900, %v1899
      %v1911 = vpack.c.b16 %v1902, %v1901
      %v1912 = vpack.c.b16 %v1904, %v1903
      %1921 = vmatpush.bf16.msra.mxu0 %v1912
      %1922 = vmatpush.bf16.msra.mxu0 %v1911
      %1923 = vmatpush.bf16.msra.mxu0 %v1910
      %1924 = vmatpush.bf16.msra.mxu0 %v1909
      %1925 = vmatpush.bf16.msra.mxu0 %v1908
      %1926 = vmatpush.bf16.msra.mxu0 %v1907
      %1927 = vmatpush.bf16.msra.mxu0 %v1906
      %1928 = vmatpush.bf16.msra.mxu0 %v1905
      %1929 = vmatmul.bf16.gmra.mxu0 %v1865
      %v1930 = vpop.f32.mrf.mxu0
      %v1931 = vadd.f32 0.0, %v1930
      %v1932 = vpop.f32.mrf.mxu0
      %v1933 = vadd.f32 0.0, %v1932
      %1934 = vmatmul.bf16.gmra.mxu0 %v1866
      %v1935 = vpop.f32.mrf.mxu0
      %v1936 = vadd.f32 0.0, %v1935
      %v1937 = vpop.f32.mrf.mxu0
      %v1938 = vadd.f32 0.0, %v1937
      %1939 = vmatmul.bf16.gmra.mxu0 %v1867
      %v1940 = vpop.f32.mrf.mxu0
      %v1941 = vadd.f32 0.0, %v1940
      %v1942 = vpop.f32.mrf.mxu0
      %v1943 = vadd.f32 0.0, %v1942
      %1944 = vmatmul.bf16.gmra.mxu0 %v1868
      %v1945 = vpop.f32.mrf.mxu0
      %v1946 = vadd.f32 0.0, %v1945
      %v1947 = vpop.f32.mrf.mxu0
      %v1948 = vadd.f32 0.0, %v1947
      %1949 = vdwg.mxu0
      %v1950 = vmul.f32 %v1931, 0.2
      %v1951 = vmul.f32 %v1933, 0.2
      %v1952 = vmul.f32 %v1936, 0.2
      %v1953 = vmul.f32 %v1938, 0.2
      %v1954 = vmul.f32 %v1941, 0.2
      %v1955 = vmul.f32 %v1943, 0.2
      %v1956 = vmul.f32 %v1946, 0.2
      %v1957 = vmul.f32 %v1948, 0.2
      %v1958 = vmax.f32 %v1931, %v1950
      %v1959 = vmax.f32 %v1933, %v1951
      %v1960 = vmax.f32 %v1936, %v1952
      %v1961 = vmax.f32 %v1938, %v1953
      %v1962 = vmax.f32 %v1941, %v1954
      %v1963 = vmax.f32 %v1943, %v1955
      %v1964 = vmax.f32 %v1946, %v1956
      %v1965 = vmax.f32 %v1948, %v1957
      %v1966 = vpack.c.bf16 %v1958, %v1958
      %v1967 = vpack.c.bf16 %v1959, %v1959
      %v1968 = vpack.c.bf16 %v1960, %v1960
      %v1969 = vpack.c.bf16 %v1961, %v1961
      %v1970 = vpack.c.bf16 %v1962, %v1962
      %v1971 = vpack.c.bf16 %v1963, %v1963
      %v1972 = vpack.c.bf16 %v1964, %v1964
      %v1973 = vpack.c.bf16 %v1965, %v1965
      %1974 = vst [vmem:[#allocation2 + $0x28] sm:$0xf] %v1966
      %1975 = vst [vmem:[#allocation2 + $0x8c] sm:$0xf] %v1967
      %1976 = vst [vmem:[#allocation2 + $0xf0] sm:$0xf] %v1968
      %1977 = vst [vmem:[#allocation2 + $0x154] sm:$0xf] %v1969
      %1978 = vst [vmem:[#allocation2 + $0x1b8] sm:$0xf] %v1970
      %1979 = vst [vmem:[#allocation2 + $0x21c] sm:$0xf] %v1971
      %1980 = vst [vmem:[#allocation2 + $0x280] sm:$0xf] %v1972
      %1981 = vst [vmem:[#allocation2 + $0x2e4] sm:$0xf] %v1973
      %s1982 = scalar_lea.vmem %s231, 176
      %v1983 = vld [vmem:[%s1982] sm:$0xf]
      %v1984 = vld [vmem:[%s1982 + $0x4] sm:$0xf]
      %v1985 = vld [vmem:[%s1982 + $0x8] sm:$0xf]
      %v1986 = vld [vmem:[%s1982 + $0xc] sm:$0xf]
      %v1987 = vld [vmem:[%s1982 + $0x190] sm:$0xf]
      %v1988 = vld [vmem:[%s1982 + $0x194] sm:$0xf]
      %v1989 = vld [vmem:[%s1982 + $0x198] sm:$0xf]
      %v1990 = vld [vmem:[%s1982 + $0x19c] sm:$0xf]
      %v1991 = vld [vmem:[%s1] sm:$0xf]
      %v1992 = vld [vmem:[%s1 + $0x4] sm:$0xf]
      %v1993 = vld [vmem:[%s1 + $0x8] sm:$0xf]
      %v1994 = vld [vmem:[%s1 + $0xc] sm:$0xf]
      %v1995 = vld [vmem:[%s1 + $0x10] sm:$0xf]
      %v1996 = vld [vmem:[%s1 + $0x14] sm:$0xf]
      %v1997 = vld [vmem:[%s1 + $0x18] sm:$0xf]
      %v1998 = vld [vmem:[%s1 + $0x1c] sm:$0xf]
      %v1999 = vld [vmem:[%s1 + $0x20] sm:$0xf]
      %v2000 = vld [vmem:[%s1 + $0x24] sm:$0xf]
      %v2001 = vld [vmem:[%s1 + $0x28] sm:$0xf]
      %v2002 = vld [vmem:[%s1 + $0x2c] sm:$0xf]
      %v2003 = vld [vmem:[%s1 + $0x30] sm:$0xf]
      %v2004 = vld [vmem:[%s1 + $0x34] sm:$0xf]
      %v2005 = vld [vmem:[%s1 + $0x38] sm:$0xf]
      %v2006 = vld [vmem:[%s1 + $0x3c] sm:$0xf]
      %v2015 = vunpack.c.l.b16 %v1983
      %v2016 = vunpack.c.l.b16 %v1984
      %v2017 = vunpack.c.l.b16 %v1985
      %v2018 = vunpack.c.l.b16 %v1986
      %v2019 = vunpack.c.l.b16 %v1987
      %v2020 = vunpack.c.l.b16 %v1988
      %v2021 = vunpack.c.l.b16 %v1989
      %v2022 = vunpack.c.l.b16 %v1990
      %v2023 = vpack.c.b16 %v2016, %v2015
      %v2024 = vpack.c.b16 %v2018, %v2017
      %v2025 = vpack.c.b16 %v2020, %v2019
      %v2026 = vpack.c.b16 %v2022, %v2021
      %v2047 = vunpack.c.l.b16 %v1991
      %v2048 = vunpack.c.l.b16 %v1992
      %v2049 = vunpack.c.l.b16 %v1993
      %v2050 = vunpack.c.l.b16 %v1994
      %v2051 = vunpack.c.l.b16 %v1995
      %v2052 = vunpack.c.l.b16 %v1996
      %v2053 = vunpack.c.l.b16 %v1997
      %v2054 = vunpack.c.l.b16 %v1998
      %v2055 = vunpack.c.l.b16 %v1999
      %v2056 = vunpack.c.l.b16 %v2000
      %v2057 = vunpack.c.l.b16 %v2001
      %v2058 = vunpack.c.l.b16 %v2002
      %v2059 = vunpack.c.l.b16 %v2003
      %v2060 = vunpack.c.l.b16 %v2004
      %v2061 = vunpack.c.l.b16 %v2005
      %v2062 = vunpack.c.l.b16 %v2006
      %v2063 = vpack.c.b16 %v2048, %v2047
      %v2064 = vpack.c.b16 %v2050, %v2049
      %v2065 = vpack.c.b16 %v2052, %v2051
      %v2066 = vpack.c.b16 %v2054, %v2053
      %v2067 = vpack.c.b16 %v2056, %v2055
      %v2068 = vpack.c.b16 %v2058, %v2057
      %v2069 = vpack.c.b16 %v2060, %v2059
      %v2070 = vpack.c.b16 %v2062, %v2061
      %2079 = vmatpush.bf16.msra.mxu0 %v2070
      %2080 = vmatpush.bf16.msra.mxu0 %v2069
      %2081 = vmatpush.bf16.msra.mxu0 %v2068
      %2082 = vmatpush.bf16.msra.mxu0 %v2067
      %2083 = vmatpush.bf16.msra.mxu0 %v2066
      %2084 = vmatpush.bf16.msra.mxu0 %v2065
      %2085 = vmatpush.bf16.msra.mxu0 %v2064
      %2086 = vmatpush.bf16.msra.mxu0 %v2063
      %2087 = vmatmul.bf16.gmra.mxu0 %v2023
      %v2088 = vpop.f32.mrf.mxu0
      %v2089 = vadd.f32 0.0, %v2088
      %v2090 = vpop.f32.mrf.mxu0
      %v2091 = vadd.f32 0.0, %v2090
      %2092 = vmatmul.bf16.gmra.mxu0 %v2024
      %v2093 = vpop.f32.mrf.mxu0
      %v2094 = vadd.f32 0.0, %v2093
      %v2095 = vpop.f32.mrf.mxu0
      %v2096 = vadd.f32 0.0, %v2095
      %2097 = vmatmul.bf16.gmra.mxu0 %v2025
      %v2098 = vpop.f32.mrf.mxu0
      %v2099 = vadd.f32 0.0, %v2098
      %v2100 = vpop.f32.mrf.mxu0
      %v2101 = vadd.f32 0.0, %v2100
      %2102 = vmatmul.bf16.gmra.mxu0 %v2026
      %v2103 = vpop.f32.mrf.mxu0
      %v2104 = vadd.f32 0.0, %v2103
      %v2105 = vpop.f32.mrf.mxu0
      %v2106 = vadd.f32 0.0, %v2105
      %2107 = vdwg.mxu0
      %v2108 = vmul.f32 %v2089, 0.2
      %v2109 = vmul.f32 %v2091, 0.2
      %v2110 = vmul.f32 %v2094, 0.2
      %v2111 = vmul.f32 %v2096, 0.2
      %v2112 = vmul.f32 %v2099, 0.2
      %v2113 = vmul.f32 %v2101, 0.2
      %v2114 = vmul.f32 %v2104, 0.2
      %v2115 = vmul.f32 %v2106, 0.2
      %v2116 = vmax.f32 %v2089, %v2108
      %v2117 = vmax.f32 %v2091, %v2109
      %v2118 = vmax.f32 %v2094, %v2110
      %v2119 = vmax.f32 %v2096, %v2111
      %v2120 = vmax.f32 %v2099, %v2112
      %v2121 = vmax.f32 %v2101, %v2113
      %v2122 = vmax.f32 %v2104, %v2114
      %v2123 = vmax.f32 %v2106, %v2115
      %v2124 = vpack.c.bf16 %v2116, %v2116
      %v2125 = vpack.c.bf16 %v2117, %v2117
      %v2126 = vpack.c.bf16 %v2118, %v2118
      %v2127 = vpack.c.bf16 %v2119, %v2119
      %v2128 = vpack.c.bf16 %v2120, %v2120
      %v2129 = vpack.c.bf16 %v2121, %v2121
      %v2130 = vpack.c.bf16 %v2122, %v2122
      %v2131 = vpack.c.bf16 %v2123, %v2123
      %2132 = vst [vmem:[#allocation2 + $0x2c] sm:$0xf] %v2124
      %2133 = vst [vmem:[#allocation2 + $0x90] sm:$0xf] %v2125
      %2134 = vst [vmem:[#allocation2 + $0xf4] sm:$0xf] %v2126
      %2135 = vst [vmem:[#allocation2 + $0x158] sm:$0xf] %v2127
      %2136 = vst [vmem:[#allocation2 + $0x1bc] sm:$0xf] %v2128
      %2137 = vst [vmem:[#allocation2 + $0x220] sm:$0xf] %v2129
      %2138 = vst [vmem:[#allocation2 + $0x284] sm:$0xf] %v2130
      %2139 = vst [vmem:[#allocation2 + $0x2e8] sm:$0xf] %v2131
      %s2140 = scalar_lea.vmem %s231, 192
      %v2141 = vld [vmem:[%s2140] sm:$0xf]
      %v2142 = vld [vmem:[%s2140 + $0x4] sm:$0xf]
      %v2143 = vld [vmem:[%s2140 + $0x8] sm:$0xf]
      %v2144 = vld [vmem:[%s2140 + $0xc] sm:$0xf]
      %v2145 = vld [vmem:[%s2140 + $0x190] sm:$0xf]
      %v2146 = vld [vmem:[%s2140 + $0x194] sm:$0xf]
      %v2147 = vld [vmem:[%s2140 + $0x198] sm:$0xf]
      %v2148 = vld [vmem:[%s2140 + $0x19c] sm:$0xf]
      %v2149 = vld [vmem:[%s1] sm:$0xf]
      %v2150 = vld [vmem:[%s1 + $0x4] sm:$0xf]
      %v2151 = vld [vmem:[%s1 + $0x8] sm:$0xf]
      %v2152 = vld [vmem:[%s1 + $0xc] sm:$0xf]
      %v2153 = vld [vmem:[%s1 + $0x10] sm:$0xf]
      %v2154 = vld [vmem:[%s1 + $0x14] sm:$0xf]
      %v2155 = vld [vmem:[%s1 + $0x18] sm:$0xf]
      %v2156 = vld [vmem:[%s1 + $0x1c] sm:$0xf]
      %v2157 = vld [vmem:[%s1 + $0x20] sm:$0xf]
      %v2158 = vld [vmem:[%s1 + $0x24] sm:$0xf]
      %v2159 = vld [vmem:[%s1 + $0x28] sm:$0xf]
      %v2160 = vld [vmem:[%s1 + $0x2c] sm:$0xf]
      %v2161 = vld [vmem:[%s1 + $0x30] sm:$0xf]
      %v2162 = vld [vmem:[%s1 + $0x34] sm:$0xf]
      %v2163 = vld [vmem:[%s1 + $0x38] sm:$0xf]
      %v2164 = vld [vmem:[%s1 + $0x3c] sm:$0xf]
      %v2173 = vunpack.c.l.b16 %v2141
      %v2174 = vunpack.c.l.b16 %v2142
      %v2175 = vunpack.c.l.b16 %v2143
      %v2176 = vunpack.c.l.b16 %v2144
      %v2177 = vunpack.c.l.b16 %v2145
      %v2178 = vunpack.c.l.b16 %v2146
      %v2179 = vunpack.c.l.b16 %v2147
      %v2180 = vunpack.c.l.b16 %v2148
      %v2181 = vpack.c.b16 %v2174, %v2173
      %v2182 = vpack.c.b16 %v2176, %v2175
      %v2183 = vpack.c.b16 %v2178, %v2177
      %v2184 = vpack.c.b16 %v2180, %v2179
      %v2205 = vunpack.c.l.b16 %v2149
      %v2206 = vunpack.c.l.b16 %v2150
      %v2207 = vunpack.c.l.b16 %v2151
      %v2208 = vunpack.c.l.b16 %v2152
      %v2209 = vunpack.c.l.b16 %v2153
      %v2210 = vunpack.c.l.b16 %v2154
      %v2211 = vunpack.c.l.b16 %v2155
      %v2212 = vunpack.c.l.b16 %v2156
      %v2213 = vunpack.c.l.b16 %v2157
      %v2214 = vunpack.c.l.b16 %v2158
      %v2215 = vunpack.c.l.b16 %v2159
      %v2216 = vunpack.c.l.b16 %v2160
      %v2217 = vunpack.c.l.b16 %v2161
      %v2218 = vunpack.c.l.b16 %v2162
      %v2219 = vunpack.c.l.b16 %v2163
      %v2220 = vunpack.c.l.b16 %v2164
      %v2221 = vpack.c.b16 %v2206, %v2205
      %v2222 = vpack.c.b16 %v2208, %v2207
      %v2223 = vpack.c.b16 %v2210, %v2209
      %v2224 = vpack.c.b16 %v2212, %v2211
      %v2225 = vpack.c.b16 %v2214, %v2213
      %v2226 = vpack.c.b16 %v2216, %v2215
      %v2227 = vpack.c.b16 %v2218, %v2217
      %v2228 = vpack.c.b16 %v2220, %v2219
      %2237 = vmatpush.bf16.msra.mxu0 %v2228
      %2238 = vmatpush.bf16.msra.mxu0 %v2227
      %2239 = vmatpush.bf16.msra.mxu0 %v2226
      %2240 = vmatpush.bf16.msra.mxu0 %v2225
      %2241 = vmatpush.bf16.msra.mxu0 %v2224
      %2242 = vmatpush.bf16.msra.mxu0 %v2223
      %2243 = vmatpush.bf16.msra.mxu0 %v2222
      %2244 = vmatpush.bf16.msra.mxu0 %v2221
      %2245 = vmatmul.bf16.gmra.mxu0 %v2181
      %v2246 = vpop.f32.mrf.mxu0
      %v2247 = vadd.f32 0.0, %v2246
      %v2248 = vpop.f32.mrf.mxu0
      %v2249 = vadd.f32 0.0, %v2248
      %2250 = vmatmul.bf16.gmra.mxu0 %v2182
      %v2251 = vpop.f32.mrf.mxu0
      %v2252 = vadd.f32 0.0, %v2251
      %v2253 = vpop.f32.mrf.mxu0
      %v2254 = vadd.f32 0.0, %v2253
      %2255 = vmatmul.bf16.gmra.mxu0 %v2183
      %v2256 = vpop.f32.mrf.mxu0
      %v2257 = vadd.f32 0.0, %v2256
      %v2258 = vpop.f32.mrf.mxu0
      %v2259 = vadd.f32 0.0, %v2258
      %2260 = vmatmul.bf16.gmra.mxu0 %v2184
      %v2261 = vpop.f32.mrf.mxu0
      %v2262 = vadd.f32 0.0, %v2261
      %v2263 = vpop.f32.mrf.mxu0
      %v2264 = vadd.f32 0.0, %v2263
      %2265 = vdwg.mxu0
      %v2266 = vmul.f32 %v2247, 0.2
      %v2267 = vmul.f32 %v2249, 0.2
      %v2268 = vmul.f32 %v2252, 0.2
      %v2269 = vmul.f32 %v2254, 0.2
      %v2270 = vmul.f32 %v2257, 0.2
      %v2271 = vmul.f32 %v2259, 0.2
      %v2272 = vmul.f32 %v2262, 0.2
      %v2273 = vmul.f32 %v2264, 0.2
      %v2274 = vmax.f32 %v2247, %v2266
      %v2275 = vmax.f32 %v2249, %v2267
      %v2276 = vmax.f32 %v2252, %v2268
      %v2277 = vmax.f32 %v2254, %v2269
      %v2278 = vmax.f32 %v2257, %v2270
      %v2279 = vmax.f32 %v2259, %v2271
      %v2280 = vmax.f32 %v2262, %v2272
      %v2281 = vmax.f32 %v2264, %v2273
      %v2282 = vpack.c.bf16 %v2274, %v2274
      %v2283 = vpack.c.bf16 %v2275, %v2275
      %v2284 = vpack.c.bf16 %v2276, %v2276
      %v2285 = vpack.c.bf16 %v2277, %v2277
      %v2286 = vpack.c.bf16 %v2278, %v2278
      %v2287 = vpack.c.bf16 %v2279, %v2279
      %v2288 = vpack.c.bf16 %v2280, %v2280
      %v2289 = vpack.c.bf16 %v2281, %v2281
      %2290 = vst [vmem:[#allocation2 + $0x30] sm:$0xf] %v2282
      %2291 = vst [vmem:[#allocation2 + $0x94] sm:$0xf] %v2283
      %2292 = vst [vmem:[#allocation2 + $0xf8] sm:$0xf] %v2284
      %2293 = vst [vmem:[#allocation2 + $0x15c] sm:$0xf] %v2285
      %2294 = vst [vmem:[#allocation2 + $0x1c0] sm:$0xf] %v2286
      %2295 = vst [vmem:[#allocation2 + $0x224] sm:$0xf] %v2287
      %2296 = vst [vmem:[#allocation2 + $0x288] sm:$0xf] %v2288
      %2297 = vst [vmem:[#allocation2 + $0x2ec] sm:$0xf] %v2289
      %s2298 = scalar_lea.vmem %s231, 208
      %v2299 = vld [vmem:[%s2298] sm:$0xf]
      %v2300 = vld [vmem:[%s2298 + $0x4] sm:$0xf]
      %v2301 = vld [vmem:[%s2298 + $0x8] sm:$0xf]
      %v2302 = vld [vmem:[%s2298 + $0xc] sm:$0xf]
      %v2303 = vld [vmem:[%s2298 + $0x190] sm:$0xf]
      %v2304 = vld [vmem:[%s2298 + $0x194] sm:$0xf]
      %v2305 = vld [vmem:[%s2298 + $0x198] sm:$0xf]
      %v2306 = vld [vmem:[%s2298 + $0x19c] sm:$0xf]
      %v2307 = vld [vmem:[%s1] sm:$0xf]
      %v2308 = vld [vmem:[%s1 + $0x4] sm:$0xf]
      %v2309 = vld [vmem:[%s1 + $0x8] sm:$0xf]
      %v2310 = vld [vmem:[%s1 + $0xc] sm:$0xf]
      %v2311 = vld [vmem:[%s1 + $0x10] sm:$0xf]
      %v2312 = vld [vmem:[%s1 + $0x14] sm:$0xf]
      %v2313 = vld [vmem:[%s1 + $0x18] sm:$0xf]
      %v2314 = vld [vmem:[%s1 + $0x1c] sm:$0xf]
      %v2315 = vld [vmem:[%s1 + $0x20] sm:$0xf]
      %v2316 = vld [vmem:[%s1 + $0x24] sm:$0xf]
      %v2317 = vld [vmem:[%s1 + $0x28] sm:$0xf]
      %v2318 = vld [vmem:[%s1 + $0x2c] sm:$0xf]
      %v2319 = vld [vmem:[%s1 + $0x30] sm:$0xf]
      %v2320 = vld [vmem:[%s1 + $0x34] sm:$0xf]
      %v2321 = vld [vmem:[%s1 + $0x38] sm:$0xf]
      %v2322 = vld [vmem:[%s1 + $0x3c] sm:$0xf]
      %v2331 = vunpack.c.l.b16 %v2299
      %v2332 = vunpack.c.l.b16 %v2300
      %v2333 = vunpack.c.l.b16 %v2301
      %v2334 = vunpack.c.l.b16 %v2302
      %v2335 = vunpack.c.l.b16 %v2303
      %v2336 = vunpack.c.l.b16 %v2304
      %v2337 = vunpack.c.l.b16 %v2305
      %v2338 = vunpack.c.l.b16 %v2306
      %v2339 = vpack.c.b16 %v2332, %v2331
      %v2340 = vpack.c.b16 %v2334, %v2333
      %v2341 = vpack.c.b16 %v2336, %v2335
      %v2342 = vpack.c.b16 %v2338, %v2337
      %v2363 = vunpack.c.l.b16 %v2307
      %v2364 = vunpack.c.l.b16 %v2308
      %v2365 = vunpack.c.l.b16 %v2309
      %v2366 = vunpack.c.l.b16 %v2310
      %v2367 = vunpack.c.l.b16 %v2311
      %v2368 = vunpack.c.l.b16 %v2312
      %v2369 = vunpack.c.l.b16 %v2313
      %v2370 = vunpack.c.l.b16 %v2314
      %v2371 = vunpack.c.l.b16 %v2315
      %v2372 = vunpack.c.l.b16 %v2316
      %v2373 = vunpack.c.l.b16 %v2317
      %v2374 = vunpack.c.l.b16 %v2318
      %v2375 = vunpack.c.l.b16 %v2319
      %v2376 = vunpack.c.l.b16 %v2320
      %v2377 = vunpack.c.l.b16 %v2321
      %v2378 = vunpack.c.l.b16 %v2322
      %v2379 = vpack.c.b16 %v2364, %v2363
      %v2380 = vpack.c.b16 %v2366, %v2365
      %v2381 = vpack.c.b16 %v2368, %v2367
      %v2382 = vpack.c.b16 %v2370, %v2369
      %v2383 = vpack.c.b16 %v2372, %v2371
      %v2384 = vpack.c.b16 %v2374, %v2373
      %v2385 = vpack.c.b16 %v2376, %v2375
      %v2386 = vpack.c.b16 %v2378, %v2377
      %2395 = vmatpush.bf16.msra.mxu0 %v2386
      %2396 = vmatpush.bf16.msra.mxu0 %v2385
      %2397 = vmatpush.bf16.msra.mxu0 %v2384
      %2398 = vmatpush.bf16.msra.mxu0 %v2383
      %2399 = vmatpush.bf16.msra.mxu0 %v2382
      %2400 = vmatpush.bf16.msra.mxu0 %v2381
      %2401 = vmatpush.bf16.msra.mxu0 %v2380
      %2402 = vmatpush.bf16.msra.mxu0 %v2379
      %2403 = vmatmul.bf16.gmra.mxu0 %v2339
      %v2404 = vpop.f32.mrf.mxu0
      %v2405 = vadd.f32 0.0, %v2404
      %v2406 = vpop.f32.mrf.mxu0
      %v2407 = vadd.f32 0.0, %v2406
      %2408 = vmatmul.bf16.gmra.mxu0 %v2340
      %v2409 = vpop.f32.mrf.mxu0
      %v2410 = vadd.f32 0.0, %v2409
      %v2411 = vpop.f32.mrf.mxu0
      %v2412 = vadd.f32 0.0, %v2411
      %2413 = vmatmul.bf16.gmra.mxu0 %v2341
      %v2414 = vpop.f32.mrf.mxu0
      %v2415 = vadd.f32 0.0, %v2414
      %v2416 = vpop.f32.mrf.mxu0
      %v2417 = vadd.f32 0.0, %v2416
      %2418 = vmatmul.bf16.gmra.mxu0 %v2342
      %v2419 = vpop.f32.mrf.mxu0
      %v2420 = vadd.f32 0.0, %v2419
      %v2421 = vpop.f32.mrf.mxu0
      %v2422 = vadd.f32 0.0, %v2421
      %2423 = vdwg.mxu0
      %v2424 = vmul.f32 %v2405, 0.2
      %v2425 = vmul.f32 %v2407, 0.2
      %v2426 = vmul.f32 %v2410, 0.2
      %v2427 = vmul.f32 %v2412, 0.2
      %v2428 = vmul.f32 %v2415, 0.2
      %v2429 = vmul.f32 %v2417, 0.2
      %v2430 = vmul.f32 %v2420, 0.2
      %v2431 = vmul.f32 %v2422, 0.2
      %v2432 = vmax.f32 %v2405, %v2424
      %v2433 = vmax.f32 %v2407, %v2425
      %v2434 = vmax.f32 %v2410, %v2426
      %v2435 = vmax.f32 %v2412, %v2427
      %v2436 = vmax.f32 %v2415, %v2428
      %v2437 = vmax.f32 %v2417, %v2429
      %v2438 = vmax.f32 %v2420, %v2430
      %v2439 = vmax.f32 %v2422, %v2431
      %v2440 = vpack.c.bf16 %v2432, %v2432
      %v2441 = vpack.c.bf16 %v2433, %v2433
      %v2442 = vpack.c.bf16 %v2434, %v2434
      %v2443 = vpack.c.bf16 %v2435, %v2435
      %v2444 = vpack.c.bf16 %v2436, %v2436
      %v2445 = vpack.c.bf16 %v2437, %v2437
      %v2446 = vpack.c.bf16 %v2438, %v2438
      %v2447 = vpack.c.bf16 %v2439, %v2439
      %2448 = vst [vmem:[#allocation2 + $0x34] sm:$0xf] %v2440
      %2449 = vst [vmem:[#allocation2 + $0x98] sm:$0xf] %v2441
      %2450 = vst [vmem:[#allocation2 + $0xfc] sm:$0xf] %v2442
      %2451 = vst [vmem:[#allocation2 + $0x160] sm:$0xf] %v2443
      %2452 = vst [vmem:[#allocation2 + $0x1c4] sm:$0xf] %v2444
      %2453 = vst [vmem:[#allocation2 + $0x228] sm:$0xf] %v2445
      %2454 = vst [vmem:[#allocation2 + $0x28c] sm:$0xf] %v2446
      %2455 = vst [vmem:[#allocation2 + $0x2f0] sm:$0xf] %v2447
      %s2456 = scalar_lea.vmem %s231, 224
      %v2457 = vld [vmem:[%s2456] sm:$0xf]
      %v2458 = vld [vmem:[%s2456 + $0x4] sm:$0xf]
      %v2459 = vld [vmem:[%s2456 + $0x8] sm:$0xf]
      %v2460 = vld [vmem:[%s2456 + $0xc] sm:$0xf]
      %v2461 = vld [vmem:[%s2456 + $0x190] sm:$0xf]
      %v2462 = vld [vmem:[%s2456 + $0x194] sm:$0xf]
      %v2463 = vld [vmem:[%s2456 + $0x198] sm:$0xf]
      %v2464 = vld [vmem:[%s2456 + $0x19c] sm:$0xf]
      %v2465 = vld [vmem:[%s1] sm:$0xf]
      %v2466 = vld [vmem:[%s1 + $0x4] sm:$0xf]
      %v2467 = vld [vmem:[%s1 + $0x8] sm:$0xf]
      %v2468 = vld [vmem:[%s1 + $0xc] sm:$0xf]
      %v2469 = vld [vmem:[%s1 + $0x10] sm:$0xf]
      %v2470 = vld [vmem:[%s1 + $0x14] sm:$0xf]
      %v2471 = vld [vmem:[%s1 + $0x18] sm:$0xf]
      %v2472 = vld [vmem:[%s1 + $0x1c] sm:$0xf]
      %v2473 = vld [vmem:[%s1 + $0x20] sm:$0xf]
      %v2474 = vld [vmem:[%s1 + $0x24] sm:$0xf]
      %v2475 = vld [vmem:[%s1 + $0x28] sm:$0xf]
      %v2476 = vld [vmem:[%s1 + $0x2c] sm:$0xf]
      %v2477 = vld [vmem:[%s1 + $0x30] sm:$0xf]
      %v2478 = vld [vmem:[%s1 + $0x34] sm:$0xf]
      %v2479 = vld [vmem:[%s1 + $0x38] sm:$0xf]
      %v2480 = vld [vmem:[%s1 + $0x3c] sm:$0xf]
      %v2489 = vunpack.c.l.b16 %v2457
      %v2490 = vunpack.c.l.b16 %v2458
      %v2491 = vunpack.c.l.b16 %v2459
      %v2492 = vunpack.c.l.b16 %v2460
      %v2493 = vunpack.c.l.b16 %v2461
      %v2494 = vunpack.c.l.b16 %v2462
      %v2495 = vunpack.c.l.b16 %v2463
      %v2496 = vunpack.c.l.b16 %v2464
      %v2497 = vpack.c.b16 %v2490, %v2489
      %v2498 = vpack.c.b16 %v2492, %v2491
      %v2499 = vpack.c.b16 %v2494, %v2493
      %v2500 = vpack.c.b16 %v2496, %v2495
      %v2521 = vunpack.c.l.b16 %v2465
      %v2522 = vunpack.c.l.b16 %v2466
      %v2523 = vunpack.c.l.b16 %v2467
      %v2524 = vunpack.c.l.b16 %v2468
      %v2525 = vunpack.c.l.b16 %v2469
      %v2526 = vunpack.c.l.b16 %v2470
      %v2527 = vunpack.c.l.b16 %v2471
      %v2528 = vunpack.c.l.b16 %v2472
      %v2529 = vunpack.c.l.b16 %v2473
      %v2530 = vunpack.c.l.b16 %v2474
      %v2531 = vunpack.c.l.b16 %v2475
      %v2532 = vunpack.c.l.b16 %v2476
      %v2533 = vunpack.c.l.b16 %v2477
      %v2534 = vunpack.c.l.b16 %v2478
      %v2535 = vunpack.c.l.b16 %v2479
      %v2536 = vunpack.c.l.b16 %v2480
      %v2537 = vpack.c.b16 %v2522, %v2521
      %v2538 = vpack.c.b16 %v2524, %v2523
      %v2539 = vpack.c.b16 %v2526, %v2525
      %v2540 = vpack.c.b16 %v2528, %v2527
      %v2541 = vpack.c.b16 %v2530, %v2529
      %v2542 = vpack.c.b16 %v2532, %v2531
      %v2543 = vpack.c.b16 %v2534, %v2533
      %v2544 = vpack.c.b16 %v2536, %v2535
      %2553 = vmatpush.bf16.msra.mxu0 %v2544
      %2554 = vmatpush.bf16.msra.mxu0 %v2543
      %2555 = vmatpush.bf16.msra.mxu0 %v2542
      %2556 = vmatpush.bf16.msra.mxu0 %v2541
      %2557 = vmatpush.bf16.msra.mxu0 %v2540
      %2558 = vmatpush.bf16.msra.mxu0 %v2539
      %2559 = vmatpush.bf16.msra.mxu0 %v2538
      %2560 = vmatpush.bf16.msra.mxu0 %v2537
      %2561 = vmatmul.bf16.gmra.mxu0 %v2497
      %v2562 = vpop.f32.mrf.mxu0
      %v2563 = vadd.f32 0.0, %v2562
      %v2564 = vpop.f32.mrf.mxu0
      %v2565 = vadd.f32 0.0, %v2564
      %2566 = vmatmul.bf16.gmra.mxu0 %v2498
      %v2567 = vpop.f32.mrf.mxu0
      %v2568 = vadd.f32 0.0, %v2567
      %v2569 = vpop.f32.mrf.mxu0
      %v2570 = vadd.f32 0.0, %v2569
      %2571 = vmatmul.bf16.gmra.mxu0 %v2499
      %v2572 = vpop.f32.mrf.mxu0
      %v2573 = vadd.f32 0.0, %v2572
      %v2574 = vpop.f32.mrf.mxu0
      %v2575 = vadd.f32 0.0, %v2574
      %2576 = vmatmul.bf16.gmra.mxu0 %v2500
      %v2577 = vpop.f32.mrf.mxu0
      %v2578 = vadd.f32 0.0, %v2577
      %v2579 = vpop.f32.mrf.mxu0
      %v2580 = vadd.f32 0.0, %v2579
      %2581 = vdwg.mxu0
      %v2582 = vmul.f32 %v2563, 0.2
      %v2583 = vmul.f32 %v2565, 0.2
      %v2584 = vmul.f32 %v2568, 0.2
      %v2585 = vmul.f32 %v2570, 0.2
      %v2586 = vmul.f32 %v2573, 0.2
      %v2587 = vmul.f32 %v2575, 0.2
      %v2588 = vmul.f32 %v2578, 0.2
      %v2589 = vmul.f32 %v2580, 0.2
      %v2590 = vmax.f32 %v2563, %v2582
      %v2591 = vmax.f32 %v2565, %v2583
      %v2592 = vmax.f32 %v2568, %v2584
      %v2593 = vmax.f32 %v2570, %v2585
      %v2594 = vmax.f32 %v2573, %v2586
      %v2595 = vmax.f32 %v2575, %v2587
      %v2596 = vmax.f32 %v2578, %v2588
      %v2597 = vmax.f32 %v2580, %v2589
      %v2598 = vpack.c.bf16 %v2590, %v2590
      %v2599 = vpack.c.bf16 %v2591, %v2591
      %v2600 = vpack.c.bf16 %v2592, %v2592
      %v2601 = vpack.c.bf16 %v2593, %v2593
      %v2602 = vpack.c.bf16 %v2594, %v2594
      %v2603 = vpack.c.bf16 %v2595, %v2595
      %v2604 = vpack.c.bf16 %v2596, %v2596
      %v2605 = vpack.c.bf16 %v2597, %v2597
      %2606 = vst [vmem:[#allocation2 + $0x38] sm:$0xf] %v2598
      %2607 = vst [vmem:[#allocation2 + $0x9c] sm:$0xf] %v2599
      %2608 = vst [vmem:[#allocation2 + $0x100] sm:$0xf] %v2600
      %2609 = vst [vmem:[#allocation2 + $0x164] sm:$0xf] %v2601
      %2610 = vst [vmem:[#allocation2 + $0x1c8] sm:$0xf] %v2602
      %2611 = vst [vmem:[#allocation2 + $0x22c] sm:$0xf] %v2603
      %2612 = vst [vmem:[#allocation2 + $0x290] sm:$0xf] %v2604
      %2613 = vst [vmem:[#allocation2 + $0x2f4] sm:$0xf] %v2605
      %s2614 = scalar_lea.vmem %s231, 240
      %v2615 = vld [vmem:[%s2614] sm:$0xf]
      %v2616 = vld [vmem:[%s2614 + $0x4] sm:$0xf]
      %v2617 = vld [vmem:[%s2614 + $0x8] sm:$0xf]
      %v2618 = vld [vmem:[%s2614 + $0xc] sm:$0xf]
      %v2619 = vld [vmem:[%s2614 + $0x190] sm:$0xf]
      %v2620 = vld [vmem:[%s2614 + $0x194] sm:$0xf]
      %v2621 = vld [vmem:[%s2614 + $0x198] sm:$0xf]
      %v2622 = vld [vmem:[%s2614 + $0x19c] sm:$0xf]
      %v2623 = vld [vmem:[%s1] sm:$0xf]
      %v2624 = vld [vmem:[%s1 + $0x4] sm:$0xf]
      %v2625 = vld [vmem:[%s1 + $0x8] sm:$0xf]
      %v2626 = vld [vmem:[%s1 + $0xc] sm:$0xf]
      %v2627 = vld [vmem:[%s1 + $0x10] sm:$0xf]
      %v2628 = vld [vmem:[%s1 + $0x14] sm:$0xf]
      %v2629 = vld [vmem:[%s1 + $0x18] sm:$0xf]
      %v2630 = vld [vmem:[%s1 + $0x1c] sm:$0xf]
      %v2631 = vld [vmem:[%s1 + $0x20] sm:$0xf]
      %v2632 = vld [vmem:[%s1 + $0x24] sm:$0xf]
      %v2633 = vld [vmem:[%s1 + $0x28] sm:$0xf]
      %v2634 = vld [vmem:[%s1 + $0x2c] sm:$0xf]
      %v2635 = vld [vmem:[%s1 + $0x30] sm:$0xf]
      %v2636 = vld [vmem:[%s1 + $0x34] sm:$0xf]
      %v2637 = vld [vmem:[%s1 + $0x38] sm:$0xf]
      %v2638 = vld [vmem:[%s1 + $0x3c] sm:$0xf]
      %v2647 = vunpack.c.l.b16 %v2615
      %v2648 = vunpack.c.l.b16 %v2616
      %v2649 = vunpack.c.l.b16 %v2617
      %v2650 = vunpack.c.l.b16 %v2618
      %v2651 = vunpack.c.l.b16 %v2619
      %v2652 = vunpack.c.l.b16 %v2620
      %v2653 = vunpack.c.l.b16 %v2621
      %v2654 = vunpack.c.l.b16 %v2622
      %v2655 = vpack.c.b16 %v2648, %v2647
      %v2656 = vpack.c.b16 %v2650, %v2649
      %v2657 = vpack.c.b16 %v2652, %v2651
      %v2658 = vpack.c.b16 %v2654, %v2653
      %v2679 = vunpack.c.l.b16 %v2623
      %v2680 = vunpack.c.l.b16 %v2624
      %v2681 = vunpack.c.l.b16 %v2625
      %v2682 = vunpack.c.l.b16 %v2626
      %v2683 = vunpack.c.l.b16 %v2627
      %v2684 = vunpack.c.l.b16 %v2628
      %v2685 = vunpack.c.l.b16 %v2629
      %v2686 = vunpack.c.l.b16 %v2630
      %v2687 = vunpack.c.l.b16 %v2631
      %v2688 = vunpack.c.l.b16 %v2632
      %v2689 = vunpack.c.l.b16 %v2633
      %v2690 = vunpack.c.l.b16 %v2634
      %v2691 = vunpack.c.l.b16 %v2635
      %v2692 = vunpack.c.l.b16 %v2636
      %v2693 = vunpack.c.l.b16 %v2637
      %v2694 = vunpack.c.l.b16 %v2638
      %v2695 = vpack.c.b16 %v2680, %v2679
      %v2696 = vpack.c.b16 %v2682, %v2681
      %v2697 = vpack.c.b16 %v2684, %v2683
      %v2698 = vpack.c.b16 %v2686, %v2685
      %v2699 = vpack.c.b16 %v2688, %v2687
      %v2700 = vpack.c.b16 %v2690, %v2689
      %v2701 = vpack.c.b16 %v2692, %v2691
      %v2702 = vpack.c.b16 %v2694, %v2693
      %2711 = vmatpush.bf16.msra.mxu0 %v2702
      %2712 = vmatpush.bf16.msra.mxu0 %v2701
      %2713 = vmatpush.bf16.msra.mxu0 %v2700
      %2714 = vmatpush.bf16.msra.mxu0 %v2699
      %2715 = vmatpush.bf16.msra.mxu0 %v2698
      %2716 = vmatpush.bf16.msra.mxu0 %v2697
      %2717 = vmatpush.bf16.msra.mxu0 %v2696
      %2718 = vmatpush.bf16.msra.mxu0 %v2695
      %2719 = vmatmul.bf16.gmra.mxu0 %v2655
      %v2720 = vpop.f32.mrf.mxu0
      %v2721 = vadd.f32 0.0, %v2720
      %v2722 = vpop.f32.mrf.mxu0
      %v2723 = vadd.f32 0.0, %v2722
      %2724 = vmatmul.bf16.gmra.mxu0 %v2656
      %v2725 = vpop.f32.mrf.mxu0
      %v2726 = vadd.f32 0.0, %v2725
      %v2727 = vpop.f32.mrf.mxu0
      %v2728 = vadd.f32 0.0, %v2727
      %2729 = vmatmul.bf16.gmra.mxu0 %v2657
      %v2730 = vpop.f32.mrf.mxu0
      %v2731 = vadd.f32 0.0, %v2730
      %v2732 = vpop.f32.mrf.mxu0
      %v2733 = vadd.f32 0.0, %v2732
      %2734 = vmatmul.bf16.gmra.mxu0 %v2658
      %v2735 = vpop.f32.mrf.mxu0
      %v2736 = vadd.f32 0.0, %v2735
      %v2737 = vpop.f32.mrf.mxu0
      %v2738 = vadd.f32 0.0, %v2737
      %2739 = vdwg.mxu0
      %v2740 = vmul.f32 %v2721, 0.2
      %v2741 = vmul.f32 %v2723, 0.2
      %v2742 = vmul.f32 %v2726, 0.2
      %v2743 = vmul.f32 %v2728, 0.2
      %v2744 = vmul.f32 %v2731, 0.2
      %v2745 = vmul.f32 %v2733, 0.2
      %v2746 = vmul.f32 %v2736, 0.2
      %v2747 = vmul.f32 %v2738, 0.2
      %v2748 = vmax.f32 %v2721, %v2740
      %v2749 = vmax.f32 %v2723, %v2741
      %v2750 = vmax.f32 %v2726, %v2742
      %v2751 = vmax.f32 %v2728, %v2743
      %v2752 = vmax.f32 %v2731, %v2744
      %v2753 = vmax.f32 %v2733, %v2745
      %v2754 = vmax.f32 %v2736, %v2746
      %v2755 = vmax.f32 %v2738, %v2747
      %v2756 = vpack.c.bf16 %v2748, %v2748
      %v2757 = vpack.c.bf16 %v2749, %v2749
      %v2758 = vpack.c.bf16 %v2750, %v2750
      %v2759 = vpack.c.bf16 %v2751, %v2751
      %v2760 = vpack.c.bf16 %v2752, %v2752
      %v2761 = vpack.c.bf16 %v2753, %v2753
      %v2762 = vpack.c.bf16 %v2754, %v2754
      %v2763 = vpack.c.bf16 %v2755, %v2755
      %2764 = vst [vmem:[#allocation2 + $0x3c] sm:$0xf] %v2756
      %2765 = vst [vmem:[#allocation2 + $0xa0] sm:$0xf] %v2757
      %2766 = vst [vmem:[#allocation2 + $0x104] sm:$0xf] %v2758
      %2767 = vst [vmem:[#allocation2 + $0x168] sm:$0xf] %v2759
      %2768 = vst [vmem:[#allocation2 + $0x1cc] sm:$0xf] %v2760
      %2769 = vst [vmem:[#allocation2 + $0x230] sm:$0xf] %v2761
      %2770 = vst [vmem:[#allocation2 + $0x294] sm:$0xf] %v2762
      %2771 = vst [vmem:[#allocation2 + $0x2f8] sm:$0xf] %v2763
      %s2772 = scalar_lea.vmem %s231, 256
      %v2773 = vld [vmem:[%s2772] sm:$0xf]
      %v2774 = vld [vmem:[%s2772 + $0x4] sm:$0xf]
      %v2775 = vld [vmem:[%s2772 + $0x8] sm:$0xf]
      %v2776 = vld [vmem:[%s2772 + $0xc] sm:$0xf]
      %v2777 = vld [vmem:[%s2772 + $0x190] sm:$0xf]
      %v2778 = vld [vmem:[%s2772 + $0x194] sm:$0xf]
      %v2779 = vld [vmem:[%s2772 + $0x198] sm:$0xf]
      %v2780 = vld [vmem:[%s2772 + $0x19c] sm:$0xf]
      %v2781 = vld [vmem:[%s1] sm:$0xf]
      %v2782 = vld [vmem:[%s1 + $0x4] sm:$0xf]
      %v2783 = vld [vmem:[%s1 + $0x8] sm:$0xf]
      %v2784 = vld [vmem:[%s1 + $0xc] sm:$0xf]
      %v2785 = vld [vmem:[%s1 + $0x10] sm:$0xf]
      %v2786 = vld [vmem:[%s1 + $0x14] sm:$0xf]
      %v2787 = vld [vmem:[%s1 + $0x18] sm:$0xf]
      %v2788 = vld [vmem:[%s1 + $0x1c] sm:$0xf]
      %v2789 = vld [vmem:[%s1 + $0x20] sm:$0xf]
      %v2790 = vld [vmem:[%s1 + $0x24] sm:$0xf]
      %v2791 = vld [vmem:[%s1 + $0x28] sm:$0xf]
      %v2792 = vld [vmem:[%s1 + $0x2c] sm:$0xf]
      %v2793 = vld [vmem:[%s1 + $0x30] sm:$0xf]
      %v2794 = vld [vmem:[%s1 + $0x34] sm:$0xf]
      %v2795 = vld [vmem:[%s1 + $0x38] sm:$0xf]
      %v2796 = vld [vmem:[%s1 + $0x3c] sm:$0xf]
      %v2805 = vunpack.c.l.b16 %v2773
      %v2806 = vunpack.c.l.b16 %v2774
      %v2807 = vunpack.c.l.b16 %v2775
      %v2808 = vunpack.c.l.b16 %v2776
      %v2809 = vunpack.c.l.b16 %v2777
      %v2810 = vunpack.c.l.b16 %v2778
      %v2811 = vunpack.c.l.b16 %v2779
      %v2812 = vunpack.c.l.b16 %v2780
      %v2813 = vpack.c.b16 %v2806, %v2805
      %v2814 = vpack.c.b16 %v2808, %v2807
      %v2815 = vpack.c.b16 %v2810, %v2809
      %v2816 = vpack.c.b16 %v2812, %v2811
      %v2837 = vunpack.c.l.b16 %v2781
      %v2838 = vunpack.c.l.b16 %v2782
      %v2839 = vunpack.c.l.b16 %v2783
      %v2840 = vunpack.c.l.b16 %v2784
      %v2841 = vunpack.c.l.b16 %v2785
      %v2842 = vunpack.c.l.b16 %v2786
      %v2843 = vunpack.c.l.b16 %v2787
      %v2844 = vunpack.c.l.b16 %v2788
      %v2845 = vunpack.c.l.b16 %v2789
      %v2846 = vunpack.c.l.b16 %v2790
      %v2847 = vunpack.c.l.b16 %v2791
      %v2848 = vunpack.c.l.b16 %v2792
      %v2849 = vunpack.c.l.b16 %v2793
      %v2850 = vunpack.c.l.b16 %v2794
      %v2851 = vunpack.c.l.b16 %v2795
      %v2852 = vunpack.c.l.b16 %v2796
      %v2853 = vpack.c.b16 %v2838, %v2837
      %v2854 = vpack.c.b16 %v2840, %v2839
      %v2855 = vpack.c.b16 %v2842, %v2841
      %v2856 = vpack.c.b16 %v2844, %v2843
      %v2857 = vpack.c.b16 %v2846, %v2845
      %v2858 = vpack.c.b16 %v2848, %v2847
      %v2859 = vpack.c.b16 %v2850, %v2849
      %v2860 = vpack.c.b16 %v2852, %v2851
      %2869 = vmatpush.bf16.msra.mxu0 %v2860
      %2870 = vmatpush.bf16.msra.mxu0 %v2859
      %2871 = vmatpush.bf16.msra.mxu0 %v2858
      %2872 = vmatpush.bf16.msra.mxu0 %v2857
      %2873 = vmatpush.bf16.msra.mxu0 %v2856
      %2874 = vmatpush.bf16.msra.mxu0 %v2855
      %2875 = vmatpush.bf16.msra.mxu0 %v2854
      %2876 = vmatpush.bf16.msra.mxu0 %v2853
      %2877 = vmatmul.bf16.gmra.mxu0 %v2813
      %v2878 = vpop.f32.mrf.mxu0
      %v2879 = vadd.f32 0.0, %v2878
      %v2880 = vpop.f32.mrf.mxu0
      %v2881 = vadd.f32 0.0, %v2880
      %2882 = vmatmul.bf16.gmra.mxu0 %v2814
      %v2883 = vpop.f32.mrf.mxu0
      %v2884 = vadd.f32 0.0, %v2883
      %v2885 = vpop.f32.mrf.mxu0
      %v2886 = vadd.f32 0.0, %v2885
      %2887 = vmatmul.bf16.gmra.mxu0 %v2815
      %v2888 = vpop.f32.mrf.mxu0
      %v2889 = vadd.f32 0.0, %v2888
      %v2890 = vpop.f32.mrf.mxu0
      %v2891 = vadd.f32 0.0, %v2890
      %2892 = vmatmul.bf16.gmra.mxu0 %v2816
      %v2893 = vpop.f32.mrf.mxu0
      %v2894 = vadd.f32 0.0, %v2893
      %v2895 = vpop.f32.mrf.mxu0
      %v2896 = vadd.f32 0.0, %v2895
      %2897 = vdwg.mxu0
      %v2898 = vmul.f32 %v2879, 0.2
      %v2899 = vmul.f32 %v2881, 0.2
      %v2900 = vmul.f32 %v2884, 0.2
      %v2901 = vmul.f32 %v2886, 0.2
      %v2902 = vmul.f32 %v2889, 0.2
      %v2903 = vmul.f32 %v2891, 0.2
      %v2904 = vmul.f32 %v2894, 0.2
      %v2905 = vmul.f32 %v2896, 0.2
      %v2906 = vmax.f32 %v2879, %v2898
      %v2907 = vmax.f32 %v2881, %v2899
      %v2908 = vmax.f32 %v2884, %v2900
      %v2909 = vmax.f32 %v2886, %v2901
      %v2910 = vmax.f32 %v2889, %v2902
      %v2911 = vmax.f32 %v2891, %v2903
      %v2912 = vmax.f32 %v2894, %v2904
      %v2913 = vmax.f32 %v2896, %v2905
      %v2914 = vpack.c.bf16 %v2906, %v2906
      %v2915 = vpack.c.bf16 %v2907, %v2907
      %v2916 = vpack.c.bf16 %v2908, %v2908
      %v2917 = vpack.c.bf16 %v2909, %v2909
      %v2918 = vpack.c.bf16 %v2910, %v2910
      %v2919 = vpack.c.bf16 %v2911, %v2911
      %v2920 = vpack.c.bf16 %v2912, %v2912
      %v2921 = vpack.c.bf16 %v2913, %v2913
      %2922 = vst [vmem:[#allocation2 + $0x40] sm:$0xf] %v2914
      %2923 = vst [vmem:[#allocation2 + $0xa4] sm:$0xf] %v2915
      %2924 = vst [vmem:[#allocation2 + $0x108] sm:$0xf] %v2916
      %2925 = vst [vmem:[#allocation2 + $0x16c] sm:$0xf] %v2917
      %2926 = vst [vmem:[#allocation2 + $0x1d0] sm:$0xf] %v2918
      %2927 = vst [vmem:[#allocation2 + $0x234] sm:$0xf] %v2919
      %2928 = vst [vmem:[#allocation2 + $0x298] sm:$0xf] %v2920
      %2929 = vst [vmem:[#allocation2 + $0x2fc] sm:$0xf] %v2921
      %s2930 = scalar_lea.vmem %s231, 272
      %v2931 = vld [vmem:[%s2930] sm:$0xf]
      %v2932 = vld [vmem:[%s2930 + $0x4] sm:$0xf]
      %v2933 = vld [vmem:[%s2930 + $0x8] sm:$0xf]
      %v2934 = vld [vmem:[%s2930 + $0xc] sm:$0xf]
      %v2935 = vld [vmem:[%s2930 + $0x190] sm:$0xf]
      %v2936 = vld [vmem:[%s2930 + $0x194] sm:$0xf]
      %v2937 = vld [vmem:[%s2930 + $0x198] sm:$0xf]
      %v2938 = vld [vmem:[%s2930 + $0x19c] sm:$0xf]
      %v2939 = vld [vmem:[%s1] sm:$0xf]
      %v2940 = vld [vmem:[%s1 + $0x4] sm:$0xf]
      %v2941 = vld [vmem:[%s1 + $0x8] sm:$0xf]
      %v2942 = vld [vmem:[%s1 + $0xc] sm:$0xf]
      %v2943 = vld [vmem:[%s1 + $0x10] sm:$0xf]
      %v2944 = vld [vmem:[%s1 + $0x14] sm:$0xf]
      %v2945 = vld [vmem:[%s1 + $0x18] sm:$0xf]
      %v2946 = vld [vmem:[%s1 + $0x1c] sm:$0xf]
      %v2947 = vld [vmem:[%s1 + $0x20] sm:$0xf]
      %v2948 = vld [vmem:[%s1 + $0x24] sm:$0xf]
      %v2949 = vld [vmem:[%s1 + $0x28] sm:$0xf]
      %v2950 = vld [vmem:[%s1 + $0x2c] sm:$0xf]
      %v2951 = vld [vmem:[%s1 + $0x30] sm:$0xf]
      %v2952 = vld [vmem:[%s1 + $0x34] sm:$0xf]
      %v2953 = vld [vmem:[%s1 + $0x38] sm:$0xf]
      %v2954 = vld [vmem:[%s1 + $0x3c] sm:$0xf]
      %v2963 = vunpack.c.l.b16 %v2931
      %v2964 = vunpack.c.l.b16 %v2932
      %v2965 = vunpack.c.l.b16 %v2933
      %v2966 = vunpack.c.l.b16 %v2934
      %v2967 = vunpack.c.l.b16 %v2935
      %v2968 = vunpack.c.l.b16 %v2936
      %v2969 = vunpack.c.l.b16 %v2937
      %v2970 = vunpack.c.l.b16 %v2938
      %v2971 = vpack.c.b16 %v2964, %v2963
      %v2972 = vpack.c.b16 %v2966, %v2965
      %v2973 = vpack.c.b16 %v2968, %v2967
      %v2974 = vpack.c.b16 %v2970, %v2969
      %v2995 = vunpack.c.l.b16 %v2939
      %v2996 = vunpack.c.l.b16 %v2940
      %v2997 = vunpack.c.l.b16 %v2941
      %v2998 = vunpack.c.l.b16 %v2942
      %v2999 = vunpack.c.l.b16 %v2943
      %v3000 = vunpack.c.l.b16 %v2944
      %v3001 = vunpack.c.l.b16 %v2945
      %v3002 = vunpack.c.l.b16 %v2946
      %v3003 = vunpack.c.l.b16 %v2947
      %v3004 = vunpack.c.l.b16 %v2948
      %v3005 = vunpack.c.l.b16 %v2949
      %v3006 = vunpack.c.l.b16 %v2950
      %v3007 = vunpack.c.l.b16 %v2951
      %v3008 = vunpack.c.l.b16 %v2952
      %v3009 = vunpack.c.l.b16 %v2953
      %v3010 = vunpack.c.l.b16 %v2954
      %v3011 = vpack.c.b16 %v2996, %v2995
      %v3012 = vpack.c.b16 %v2998, %v2997
      %v3013 = vpack.c.b16 %v3000, %v2999
      %v3014 = vpack.c.b16 %v3002, %v3001
      %v3015 = vpack.c.b16 %v3004, %v3003
      %v3016 = vpack.c.b16 %v3006, %v3005
      %v3017 = vpack.c.b16 %v3008, %v3007
      %v3018 = vpack.c.b16 %v3010, %v3009
      %3027 = vmatpush.bf16.msra.mxu0 %v3018
      %3028 = vmatpush.bf16.msra.mxu0 %v3017
      %3029 = vmatpush.bf16.msra.mxu0 %v3016
      %3030 = vmatpush.bf16.msra.mxu0 %v3015
      %3031 = vmatpush.bf16.msra.mxu0 %v3014
      %3032 = vmatpush.bf16.msra.mxu0 %v3013
      %3033 = vmatpush.bf16.msra.mxu0 %v3012
      %3034 = vmatpush.bf16.msra.mxu0 %v3011
      %3035 = vmatmul.bf16.gmra.mxu0 %v2971
      %v3036 = vpop.f32.mrf.mxu0
      %v3037 = vadd.f32 0.0, %v3036
      %v3038 = vpop.f32.mrf.mxu0
      %v3039 = vadd.f32 0.0, %v3038
      %3040 = vmatmul.bf16.gmra.mxu0 %v2972
      %v3041 = vpop.f32.mrf.mxu0
      %v3042 = vadd.f32 0.0, %v3041
      %v3043 = vpop.f32.mrf.mxu0
      %v3044 = vadd.f32 0.0, %v3043
      %3045 = vmatmul.bf16.gmra.mxu0 %v2973
      %v3046 = vpop.f32.mrf.mxu0
      %v3047 = vadd.f32 0.0, %v3046
      %v3048 = vpop.f32.mrf.mxu0
      %v3049 = vadd.f32 0.0, %v3048
      %3050 = vmatmul.bf16.gmra.mxu0 %v2974
      %v3051 = vpop.f32.mrf.mxu0
      %v3052 = vadd.f32 0.0, %v3051
      %v3053 = vpop.f32.mrf.mxu0
      %v3054 = vadd.f32 0.0, %v3053
      %3055 = vdwg.mxu0
      %v3056 = vmul.f32 %v3037, 0.2
      %v3057 = vmul.f32 %v3039, 0.2
      %v3058 = vmul.f32 %v3042, 0.2
      %v3059 = vmul.f32 %v3044, 0.2
      %v3060 = vmul.f32 %v3047, 0.2
      %v3061 = vmul.f32 %v3049, 0.2
      %v3062 = vmul.f32 %v3052, 0.2
      %v3063 = vmul.f32 %v3054, 0.2
      %v3064 = vmax.f32 %v3037, %v3056
      %v3065 = vmax.f32 %v3039, %v3057
      %v3066 = vmax.f32 %v3042, %v3058
      %v3067 = vmax.f32 %v3044, %v3059
      %v3068 = vmax.f32 %v3047, %v3060
      %v3069 = vmax.f32 %v3049, %v3061
      %v3070 = vmax.f32 %v3052, %v3062
      %v3071 = vmax.f32 %v3054, %v3063
      %v3072 = vpack.c.bf16 %v3064, %v3064
      %v3073 = vpack.c.bf16 %v3065, %v3065
      %v3074 = vpack.c.bf16 %v3066, %v3066
      %v3075 = vpack.c.bf16 %v3067, %v3067
      %v3076 = vpack.c.bf16 %v3068, %v3068
      %v3077 = vpack.c.bf16 %v3069, %v3069
      %v3078 = vpack.c.bf16 %v3070, %v3070
      %v3079 = vpack.c.bf16 %v3071, %v3071
      %3080 = vst [vmem:[#allocation2 + $0x44] sm:$0xf] %v3072
      %3081 = vst [vmem:[#allocation2 + $0xa8] sm:$0xf] %v3073
      %3082 = vst [vmem:[#allocation2 + $0x10c] sm:$0xf] %v3074
      %3083 = vst [vmem:[#allocation2 + $0x170] sm:$0xf] %v3075
      %3084 = vst [vmem:[#allocation2 + $0x1d4] sm:$0xf] %v3076
      %3085 = vst [vmem:[#allocation2 + $0x238] sm:$0xf] %v3077
      %3086 = vst [vmem:[#allocation2 + $0x29c] sm:$0xf] %v3078
      %3087 = vst [vmem:[#allocation2 + $0x300] sm:$0xf] %v3079
      %s3088 = scalar_lea.vmem %s231, 288
      %v3089 = vld [vmem:[%s3088] sm:$0xf]
      %v3090 = vld [vmem:[%s3088 + $0x4] sm:$0xf]
      %v3091 = vld [vmem:[%s3088 + $0x8] sm:$0xf]
      %v3092 = vld [vmem:[%s3088 + $0xc] sm:$0xf]
      %v3093 = vld [vmem:[%s3088 + $0x190] sm:$0xf]
      %v3094 = vld [vmem:[%s3088 + $0x194] sm:$0xf]
      %v3095 = vld [vmem:[%s3088 + $0x198] sm:$0xf]
      %v3096 = vld [vmem:[%s3088 + $0x19c] sm:$0xf]
      %v3097 = vld [vmem:[%s1] sm:$0xf]
      %v3098 = vld [vmem:[%s1 + $0x4] sm:$0xf]
      %v3099 = vld [vmem:[%s1 + $0x8] sm:$0xf]
      %v3100 = vld [vmem:[%s1 + $0xc] sm:$0xf]
      %v3101 = vld [vmem:[%s1 + $0x10] sm:$0xf]
      %v3102 = vld [vmem:[%s1 + $0x14] sm:$0xf]
      %v3103 = vld [vmem:[%s1 + $0x18] sm:$0xf]
      %v3104 = vld [vmem:[%s1 + $0x1c] sm:$0xf]
      %v3105 = vld [vmem:[%s1 + $0x20] sm:$0xf]
      %v3106 = vld [vmem:[%s1 + $0x24] sm:$0xf]
      %v3107 = vld [vmem:[%s1 + $0x28] sm:$0xf]
      %v3108 = vld [vmem:[%s1 + $0x2c] sm:$0xf]
      %v3109 = vld [vmem:[%s1 + $0x30] sm:$0xf]
      %v3110 = vld [vmem:[%s1 + $0x34] sm:$0xf]
      %v3111 = vld [vmem:[%s1 + $0x38] sm:$0xf]
      %v3112 = vld [vmem:[%s1 + $0x3c] sm:$0xf]
      %v3121 = vunpack.c.l.b16 %v3089
      %v3122 = vunpack.c.l.b16 %v3090
      %v3123 = vunpack.c.l.b16 %v3091
      %v3124 = vunpack.c.l.b16 %v3092
      %v3125 = vunpack.c.l.b16 %v3093
      %v3126 = vunpack.c.l.b16 %v3094
      %v3127 = vunpack.c.l.b16 %v3095
      %v3128 = vunpack.c.l.b16 %v3096
      %v3129 = vpack.c.b16 %v3122, %v3121
      %v3130 = vpack.c.b16 %v3124, %v3123
      %v3131 = vpack.c.b16 %v3126, %v3125
      %v3132 = vpack.c.b16 %v3128, %v3127
      %v3153 = vunpack.c.l.b16 %v3097
      %v3154 = vunpack.c.l.b16 %v3098
      %v3155 = vunpack.c.l.b16 %v3099
      %v3156 = vunpack.c.l.b16 %v3100
      %v3157 = vunpack.c.l.b16 %v3101
      %v3158 = vunpack.c.l.b16 %v3102
      %v3159 = vunpack.c.l.b16 %v3103
      %v3160 = vunpack.c.l.b16 %v3104
      %v3161 = vunpack.c.l.b16 %v3105
      %v3162 = vunpack.c.l.b16 %v3106
      %v3163 = vunpack.c.l.b16 %v3107
      %v3164 = vunpack.c.l.b16 %v3108
      %v3165 = vunpack.c.l.b16 %v3109
      %v3166 = vunpack.c.l.b16 %v3110
      %v3167 = vunpack.c.l.b16 %v3111
      %v3168 = vunpack.c.l.b16 %v3112
      %v3169 = vpack.c.b16 %v3154, %v3153
      %v3170 = vpack.c.b16 %v3156, %v3155
      %v3171 = vpack.c.b16 %v3158, %v3157
      %v3172 = vpack.c.b16 %v3160, %v3159
      %v3173 = vpack.c.b16 %v3162, %v3161
      %v3174 = vpack.c.b16 %v3164, %v3163
      %v3175 = vpack.c.b16 %v3166, %v3165
      %v3176 = vpack.c.b16 %v3168, %v3167
      %3185 = vmatpush.bf16.msra.mxu0 %v3176
      %3186 = vmatpush.bf16.msra.mxu0 %v3175
      %3187 = vmatpush.bf16.msra.mxu0 %v3174
      %3188 = vmatpush.bf16.msra.mxu0 %v3173
      %3189 = vmatpush.bf16.msra.mxu0 %v3172
      %3190 = vmatpush.bf16.msra.mxu0 %v3171
      %3191 = vmatpush.bf16.msra.mxu0 %v3170
      %3192 = vmatpush.bf16.msra.mxu0 %v3169
      %3193 = vmatmul.bf16.gmra.mxu0 %v3129
      %v3194 = vpop.f32.mrf.mxu0
      %v3195 = vadd.f32 0.0, %v3194
      %v3196 = vpop.f32.mrf.mxu0
      %v3197 = vadd.f32 0.0, %v3196
      %3198 = vmatmul.bf16.gmra.mxu0 %v3130
      %v3199 = vpop.f32.mrf.mxu0
      %v3200 = vadd.f32 0.0, %v3199
      %v3201 = vpop.f32.mrf.mxu0
      %v3202 = vadd.f32 0.0, %v3201
      %3203 = vmatmul.bf16.gmra.mxu0 %v3131
      %v3204 = vpop.f32.mrf.mxu0
      %v3205 = vadd.f32 0.0, %v3204
      %v3206 = vpop.f32.mrf.mxu0
      %v3207 = vadd.f32 0.0, %v3206
      %3208 = vmatmul.bf16.gmra.mxu0 %v3132
      %v3209 = vpop.f32.mrf.mxu0
      %v3210 = vadd.f32 0.0, %v3209
      %v3211 = vpop.f32.mrf.mxu0
      %v3212 = vadd.f32 0.0, %v3211
      %3213 = vdwg.mxu0
      %v3214 = vmul.f32 %v3195, 0.2
      %v3215 = vmul.f32 %v3197, 0.2
      %v3216 = vmul.f32 %v3200, 0.2
      %v3217 = vmul.f32 %v3202, 0.2
      %v3218 = vmul.f32 %v3205, 0.2
      %v3219 = vmul.f32 %v3207, 0.2
      %v3220 = vmul.f32 %v3210, 0.2
      %v3221 = vmul.f32 %v3212, 0.2
      %v3222 = vmax.f32 %v3195, %v3214
      %v3223 = vmax.f32 %v3197, %v3215
      %v3224 = vmax.f32 %v3200, %v3216
      %v3225 = vmax.f32 %v3202, %v3217
      %v3226 = vmax.f32 %v3205, %v3218
      %v3227 = vmax.f32 %v3207, %v3219
      %v3228 = vmax.f32 %v3210, %v3220
      %v3229 = vmax.f32 %v3212, %v3221
      %v3230 = vpack.c.bf16 %v3222, %v3222
      %v3231 = vpack.c.bf16 %v3223, %v3223
      %v3232 = vpack.c.bf16 %v3224, %v3224
      %v3233 = vpack.c.bf16 %v3225, %v3225
      %v3234 = vpack.c.bf16 %v3226, %v3226
      %v3235 = vpack.c.bf16 %v3227, %v3227
      %v3236 = vpack.c.bf16 %v3228, %v3228
      %v3237 = vpack.c.bf16 %v3229, %v3229
      %3238 = vst [vmem:[#allocation2 + $0x48] sm:$0xf] %v3230
      %3239 = vst [vmem:[#allocation2 + $0xac] sm:$0xf] %v3231
      %3240 = vst [vmem:[#allocation2 + $0x110] sm:$0xf] %v3232
      %3241 = vst [vmem:[#allocation2 + $0x174] sm:$0xf] %v3233
      %3242 = vst [vmem:[#allocation2 + $0x1d8] sm:$0xf] %v3234
      %3243 = vst [vmem:[#allocation2 + $0x23c] sm:$0xf] %v3235
      %3244 = vst [vmem:[#allocation2 + $0x2a0] sm:$0xf] %v3236
      %3245 = vst [vmem:[#allocation2 + $0x304] sm:$0xf] %v3237
      %s3246 = scalar_lea.vmem %s231, 304
      %v3247 = vld [vmem:[%s3246] sm:$0xf]
      %v3248 = vld [vmem:[%s3246 + $0x4] sm:$0xf]
      %v3249 = vld [vmem:[%s3246 + $0x8] sm:$0xf]
      %v3250 = vld [vmem:[%s3246 + $0xc] sm:$0xf]
      %v3251 = vld [vmem:[%s3246 + $0x190] sm:$0xf]
      %v3252 = vld [vmem:[%s3246 + $0x194] sm:$0xf]
      %v3253 = vld [vmem:[%s3246 + $0x198] sm:$0xf]
      %v3254 = vld [vmem:[%s3246 + $0x19c] sm:$0xf]
      %v3255 = vld [vmem:[%s1] sm:$0xf]
      %v3256 = vld [vmem:[%s1 + $0x4] sm:$0xf]
      %v3257 = vld [vmem:[%s1 + $0x8] sm:$0xf]
      %v3258 = vld [vmem:[%s1 + $0xc] sm:$0xf]
      %v3259 = vld [vmem:[%s1 + $0x10] sm:$0xf]
      %v3260 = vld [vmem:[%s1 + $0x14] sm:$0xf]
      %v3261 = vld [vmem:[%s1 + $0x18] sm:$0xf]
      %v3262 = vld [vmem:[%s1 + $0x1c] sm:$0xf]
      %v3263 = vld [vmem:[%s1 + $0x20] sm:$0xf]
      %v3264 = vld [vmem:[%s1 + $0x24] sm:$0xf]
      %v3265 = vld [vmem:[%s1 + $0x28] sm:$0xf]
      %v3266 = vld [vmem:[%s1 + $0x2c] sm:$0xf]
      %v3267 = vld [vmem:[%s1 + $0x30] sm:$0xf]
      %v3268 = vld [vmem:[%s1 + $0x34] sm:$0xf]
      %v3269 = vld [vmem:[%s1 + $0x38] sm:$0xf]
      %v3270 = vld [vmem:[%s1 + $0x3c] sm:$0xf]
      %v3279 = vunpack.c.l.b16 %v3247
      %v3280 = vunpack.c.l.b16 %v3248
      %v3281 = vunpack.c.l.b16 %v3249
      %v3282 = vunpack.c.l.b16 %v3250
      %v3283 = vunpack.c.l.b16 %v3251
      %v3284 = vunpack.c.l.b16 %v3252
      %v3285 = vunpack.c.l.b16 %v3253
      %v3286 = vunpack.c.l.b16 %v3254
      %v3287 = vpack.c.b16 %v3280, %v3279
      %v3288 = vpack.c.b16 %v3282, %v3281
      %v3289 = vpack.c.b16 %v3284, %v3283
      %v3290 = vpack.c.b16 %v3286, %v3285
      %v3311 = vunpack.c.l.b16 %v3255
      %v3312 = vunpack.c.l.b16 %v3256
      %v3313 = vunpack.c.l.b16 %v3257
      %v3314 = vunpack.c.l.b16 %v3258
      %v3315 = vunpack.c.l.b16 %v3259
      %v3316 = vunpack.c.l.b16 %v3260
      %v3317 = vunpack.c.l.b16 %v3261
      %v3318 = vunpack.c.l.b16 %v3262
      %v3319 = vunpack.c.l.b16 %v3263
      %v3320 = vunpack.c.l.b16 %v3264
      %v3321 = vunpack.c.l.b16 %v3265
      %v3322 = vunpack.c.l.b16 %v3266
      %v3323 = vunpack.c.l.b16 %v3267
      %v3324 = vunpack.c.l.b16 %v3268
      %v3325 = vunpack.c.l.b16 %v3269
      %v3326 = vunpack.c.l.b16 %v3270
      %v3327 = vpack.c.b16 %v3312, %v3311
      %v3328 = vpack.c.b16 %v3314, %v3313
      %v3329 = vpack.c.b16 %v3316, %v3315
      %v3330 = vpack.c.b16 %v3318, %v3317
      %v3331 = vpack.c.b16 %v3320, %v3319
      %v3332 = vpack.c.b16 %v3322, %v3321
      %v3333 = vpack.c.b16 %v3324, %v3323
      %v3334 = vpack.c.b16 %v3326, %v3325
      %3343 = vmatpush.bf16.msra.mxu0 %v3334
      %3344 = vmatpush.bf16.msra.mxu0 %v3333
      %3345 = vmatpush.bf16.msra.mxu0 %v3332
      %3346 = vmatpush.bf16.msra.mxu0 %v3331
      %3347 = vmatpush.bf16.msra.mxu0 %v3330
      %3348 = vmatpush.bf16.msra.mxu0 %v3329
      %3349 = vmatpush.bf16.msra.mxu0 %v3328
      %3350 = vmatpush.bf16.msra.mxu0 %v3327
      %3351 = vmatmul.bf16.gmra.mxu0 %v3287
      %v3352 = vpop.f32.mrf.mxu0
      %v3353 = vadd.f32 0.0, %v3352
      %v3354 = vpop.f32.mrf.mxu0
      %v3355 = vadd.f32 0.0, %v3354
      %3356 = vmatmul.bf16.gmra.mxu0 %v3288
      %v3357 = vpop.f32.mrf.mxu0
      %v3358 = vadd.f32 0.0, %v3357
      %v3359 = vpop.f32.mrf.mxu0
      %v3360 = vadd.f32 0.0, %v3359
      %3361 = vmatmul.bf16.gmra.mxu0 %v3289
      %v3362 = vpop.f32.mrf.mxu0
      %v3363 = vadd.f32 0.0, %v3362
      %v3364 = vpop.f32.mrf.mxu0
      %v3365 = vadd.f32 0.0, %v3364
      %3366 = vmatmul.bf16.gmra.mxu0 %v3290
      %v3367 = vpop.f32.mrf.mxu0
      %v3368 = vadd.f32 0.0, %v3367
      %v3369 = vpop.f32.mrf.mxu0
      %v3370 = vadd.f32 0.0, %v3369
      %3371 = vdwg.mxu0
      %v3372 = vmul.f32 %v3353, 0.2
      %v3373 = vmul.f32 %v3355, 0.2
      %v3374 = vmul.f32 %v3358, 0.2
      %v3375 = vmul.f32 %v3360, 0.2
      %v3376 = vmul.f32 %v3363, 0.2
      %v3377 = vmul.f32 %v3365, 0.2
      %v3378 = vmul.f32 %v3368, 0.2
      %v3379 = vmul.f32 %v3370, 0.2
      %v3380 = vmax.f32 %v3353, %v3372
      %v3381 = vmax.f32 %v3355, %v3373
      %v3382 = vmax.f32 %v3358, %v3374
      %v3383 = vmax.f32 %v3360, %v3375
      %v3384 = vmax.f32 %v3363, %v3376
      %v3385 = vmax.f32 %v3365, %v3377
      %v3386 = vmax.f32 %v3368, %v3378
      %v3387 = vmax.f32 %v3370, %v3379
      %v3388 = vpack.c.bf16 %v3380, %v3380
      %v3389 = vpack.c.bf16 %v3381, %v3381
      %v3390 = vpack.c.bf16 %v3382, %v3382
      %v3391 = vpack.c.bf16 %v3383, %v3383
      %v3392 = vpack.c.bf16 %v3384, %v3384
      %v3393 = vpack.c.bf16 %v3385, %v3385
      %v3394 = vpack.c.bf16 %v3386, %v3386
      %v3395 = vpack.c.bf16 %v3387, %v3387
      %3396 = vst [vmem:[#allocation2 + $0x4c] sm:$0xf] %v3388
      %3397 = vst [vmem:[#allocation2 + $0xb0] sm:$0xf] %v3389
      %3398 = vst [vmem:[#allocation2 + $0x114] sm:$0xf] %v3390
      %3399 = vst [vmem:[#allocation2 + $0x178] sm:$0xf] %v3391
      %3400 = vst [vmem:[#allocation2 + $0x1dc] sm:$0xf] %v3392
      %3401 = vst [vmem:[#allocation2 + $0x240] sm:$0xf] %v3393
      %3402 = vst [vmem:[#allocation2 + $0x2a4] sm:$0xf] %v3394
      %3403 = vst [vmem:[#allocation2 + $0x308] sm:$0xf] %v3395
      %s3404 = scalar_lea.vmem %s231, 320
      %v3405 = vld [vmem:[%s3404] sm:$0xf]
      %v3406 = vld [vmem:[%s3404 + $0x4] sm:$0xf]
      %v3407 = vld [vmem:[%s3404 + $0x8] sm:$0xf]
      %v3408 = vld [vmem:[%s3404 + $0xc] sm:$0xf]
      %v3409 = vld [vmem:[%s3404 + $0x190] sm:$0xf]
      %v3410 = vld [vmem:[%s3404 + $0x194] sm:$0xf]
      %v3411 = vld [vmem:[%s3404 + $0x198] sm:$0xf]
      %v3412 = vld [vmem:[%s3404 + $0x19c] sm:$0xf]
      %v3413 = vld [vmem:[%s1] sm:$0xf]
      %v3414 = vld [vmem:[%s1 + $0x4] sm:$0xf]
      %v3415 = vld [vmem:[%s1 + $0x8] sm:$0xf]
      %v3416 = vld [vmem:[%s1 + $0xc] sm:$0xf]
      %v3417 = vld [vmem:[%s1 + $0x10] sm:$0xf]
      %v3418 = vld [vmem:[%s1 + $0x14] sm:$0xf]
      %v3419 = vld [vmem:[%s1 + $0x18] sm:$0xf]
      %v3420 = vld [vmem:[%s1 + $0x1c] sm:$0xf]
      %v3421 = vld [vmem:[%s1 + $0x20] sm:$0xf]
      %v3422 = vld [vmem:[%s1 + $0x24] sm:$0xf]
      %v3423 = vld [vmem:[%s1 + $0x28] sm:$0xf]
      %v3424 = vld [vmem:[%s1 + $0x2c] sm:$0xf]
      %v3425 = vld [vmem:[%s1 + $0x30] sm:$0xf]
      %v3426 = vld [vmem:[%s1 + $0x34] sm:$0xf]
      %v3427 = vld [vmem:[%s1 + $0x38] sm:$0xf]
      %v3428 = vld [vmem:[%s1 + $0x3c] sm:$0xf]
      %v3437 = vunpack.c.l.b16 %v3405
      %v3438 = vunpack.c.l.b16 %v3406
      %v3439 = vunpack.c.l.b16 %v3407
      %v3440 = vunpack.c.l.b16 %v3408
      %v3441 = vunpack.c.l.b16 %v3409
      %v3442 = vunpack.c.l.b16 %v3410
      %v3443 = vunpack.c.l.b16 %v3411
      %v3444 = vunpack.c.l.b16 %v3412
      %v3445 = vpack.c.b16 %v3438, %v3437
      %v3446 = vpack.c.b16 %v3440, %v3439
      %v3447 = vpack.c.b16 %v3442, %v3441
      %v3448 = vpack.c.b16 %v3444, %v3443
      %v3469 = vunpack.c.l.b16 %v3413
      %v3470 = vunpack.c.l.b16 %v3414
      %v3471 = vunpack.c.l.b16 %v3415
      %v3472 = vunpack.c.l.b16 %v3416
      %v3473 = vunpack.c.l.b16 %v3417
      %v3474 = vunpack.c.l.b16 %v3418
      %v3475 = vunpack.c.l.b16 %v3419
      %v3476 = vunpack.c.l.b16 %v3420
      %v3477 = vunpack.c.l.b16 %v3421
      %v3478 = vunpack.c.l.b16 %v3422
      %v3479 = vunpack.c.l.b16 %v3423
      %v3480 = vunpack.c.l.b16 %v3424
      %v3481 = vunpack.c.l.b16 %v3425
      %v3482 = vunpack.c.l.b16 %v3426
      %v3483 = vunpack.c.l.b16 %v3427
      %v3484 = vunpack.c.l.b16 %v3428
      %v3485 = vpack.c.b16 %v3470, %v3469
      %v3486 = vpack.c.b16 %v3472, %v3471
      %v3487 = vpack.c.b16 %v3474, %v3473
      %v3488 = vpack.c.b16 %v3476, %v3475
      %v3489 = vpack.c.b16 %v3478, %v3477
      %v3490 = vpack.c.b16 %v3480, %v3479
      %v3491 = vpack.c.b16 %v3482, %v3481
      %v3492 = vpack.c.b16 %v3484, %v3483
      %3501 = vmatpush.bf16.msra.mxu0 %v3492
      %3502 = vmatpush.bf16.msra.mxu0 %v3491
      %3503 = vmatpush.bf16.msra.mxu0 %v3490
      %3504 = vmatpush.bf16.msra.mxu0 %v3489
      %3505 = vmatpush.bf16.msra.mxu0 %v3488
      %3506 = vmatpush.bf16.msra.mxu0 %v3487
      %3507 = vmatpush.bf16.msra.mxu0 %v3486
      %3508 = vmatpush.bf16.msra.mxu0 %v3485
      %3509 = vmatmul.bf16.gmra.mxu0 %v3445
      %v3510 = vpop.f32.mrf.mxu0
      %v3511 = vadd.f32 0.0, %v3510
      %v3512 = vpop.f32.mrf.mxu0
      %v3513 = vadd.f32 0.0, %v3512
      %3514 = vmatmul.bf16.gmra.mxu0 %v3446
      %v3515 = vpop.f32.mrf.mxu0
      %v3516 = vadd.f32 0.0, %v3515
      %v3517 = vpop.f32.mrf.mxu0
      %v3518 = vadd.f32 0.0, %v3517
      %3519 = vmatmul.bf16.gmra.mxu0 %v3447
      %v3520 = vpop.f32.mrf.mxu0
      %v3521 = vadd.f32 0.0, %v3520
      %v3522 = vpop.f32.mrf.mxu0
      %v3523 = vadd.f32 0.0, %v3522
      %3524 = vmatmul.bf16.gmra.mxu0 %v3448
      %v3525 = vpop.f32.mrf.mxu0
      %v3526 = vadd.f32 0.0, %v3525
      %v3527 = vpop.f32.mrf.mxu0
      %v3528 = vadd.f32 0.0, %v3527
      %3529 = vdwg.mxu0
      %v3530 = vmul.f32 %v3511, 0.2
      %v3531 = vmul.f32 %v3513, 0.2
      %v3532 = vmul.f32 %v3516, 0.2
      %v3533 = vmul.f32 %v3518, 0.2
      %v3534 = vmul.f32 %v3521, 0.2
      %v3535 = vmul.f32 %v3523, 0.2
      %v3536 = vmul.f32 %v3526, 0.2
      %v3537 = vmul.f32 %v3528, 0.2
      %v3538 = vmax.f32 %v3511, %v3530
      %v3539 = vmax.f32 %v3513, %v3531
      %v3540 = vmax.f32 %v3516, %v3532
      %v3541 = vmax.f32 %v3518, %v3533
      %v3542 = vmax.f32 %v3521, %v3534
      %v3543 = vmax.f32 %v3523, %v3535
      %v3544 = vmax.f32 %v3526, %v3536
      %v3545 = vmax.f32 %v3528, %v3537
      %v3546 = vpack.c.bf16 %v3538, %v3538
      %v3547 = vpack.c.bf16 %v3539, %v3539
      %v3548 = vpack.c.bf16 %v3540, %v3540
      %v3549 = vpack.c.bf16 %v3541, %v3541
      %v3550 = vpack.c.bf16 %v3542, %v3542
      %v3551 = vpack.c.bf16 %v3543, %v3543
      %v3552 = vpack.c.bf16 %v3544, %v3544
      %v3553 = vpack.c.bf16 %v3545, %v3545
      %3554 = vst [vmem:[#allocation2 + $0x50] sm:$0xf] %v3546
      %3555 = vst [vmem:[#allocation2 + $0xb4] sm:$0xf] %v3547
      %3556 = vst [vmem:[#allocation2 + $0x118] sm:$0xf] %v3548
      %3557 = vst [vmem:[#allocation2 + $0x17c] sm:$0xf] %v3549
      %3558 = vst [vmem:[#allocation2 + $0x1e0] sm:$0xf] %v3550
      %3559 = vst [vmem:[#allocation2 + $0x244] sm:$0xf] %v3551
      %3560 = vst [vmem:[#allocation2 + $0x2a8] sm:$0xf] %v3552
      %3561 = vst [vmem:[#allocation2 + $0x30c] sm:$0xf] %v3553
      %s3562 = scalar_lea.vmem %s231, 336
      %v3563 = vld [vmem:[%s3562] sm:$0xf]
      %v3564 = vld [vmem:[%s3562 + $0x4] sm:$0xf]
      %v3565 = vld [vmem:[%s3562 + $0x8] sm:$0xf]
      %v3566 = vld [vmem:[%s3562 + $0xc] sm:$0xf]
      %v3567 = vld [vmem:[%s3562 + $0x190] sm:$0xf]
      %v3568 = vld [vmem:[%s3562 + $0x194] sm:$0xf]
      %v3569 = vld [vmem:[%s3562 + $0x198] sm:$0xf]
      %v3570 = vld [vmem:[%s3562 + $0x19c] sm:$0xf]
      %v3571 = vld [vmem:[%s1] sm:$0xf]
      %v3572 = vld [vmem:[%s1 + $0x4] sm:$0xf]
      %v3573 = vld [vmem:[%s1 + $0x8] sm:$0xf]
      %v3574 = vld [vmem:[%s1 + $0xc] sm:$0xf]
      %v3575 = vld [vmem:[%s1 + $0x10] sm:$0xf]
      %v3576 = vld [vmem:[%s1 + $0x14] sm:$0xf]
      %v3577 = vld [vmem:[%s1 + $0x18] sm:$0xf]
      %v3578 = vld [vmem:[%s1 + $0x1c] sm:$0xf]
      %v3579 = vld [vmem:[%s1 + $0x20] sm:$0xf]
      %v3580 = vld [vmem:[%s1 + $0x24] sm:$0xf]
      %v3581 = vld [vmem:[%s1 + $0x28] sm:$0xf]
      %v3582 = vld [vmem:[%s1 + $0x2c] sm:$0xf]
      %v3583 = vld [vmem:[%s1 + $0x30] sm:$0xf]
      %v3584 = vld [vmem:[%s1 + $0x34] sm:$0xf]
      %v3585 = vld [vmem:[%s1 + $0x38] sm:$0xf]
      %v3586 = vld [vmem:[%s1 + $0x3c] sm:$0xf]
      %v3595 = vunpack.c.l.b16 %v3563
      %v3596 = vunpack.c.l.b16 %v3564
      %v3597 = vunpack.c.l.b16 %v3565
      %v3598 = vunpack.c.l.b16 %v3566
      %v3599 = vunpack.c.l.b16 %v3567
      %v3600 = vunpack.c.l.b16 %v3568
      %v3601 = vunpack.c.l.b16 %v3569
      %v3602 = vunpack.c.l.b16 %v3570
      %v3603 = vpack.c.b16 %v3596, %v3595
      %v3604 = vpack.c.b16 %v3598, %v3597
      %v3605 = vpack.c.b16 %v3600, %v3599
      %v3606 = vpack.c.b16 %v3602, %v3601
      %v3627 = vunpack.c.l.b16 %v3571
      %v3628 = vunpack.c.l.b16 %v3572
      %v3629 = vunpack.c.l.b16 %v3573
      %v3630 = vunpack.c.l.b16 %v3574
      %v3631 = vunpack.c.l.b16 %v3575
      %v3632 = vunpack.c.l.b16 %v3576
      %v3633 = vunpack.c.l.b16 %v3577
      %v3634 = vunpack.c.l.b16 %v3578
      %v3635 = vunpack.c.l.b16 %v3579
      %v3636 = vunpack.c.l.b16 %v3580
      %v3637 = vunpack.c.l.b16 %v3581
      %v3638 = vunpack.c.l.b16 %v3582
      %v3639 = vunpack.c.l.b16 %v3583
      %v3640 = vunpack.c.l.b16 %v3584
      %v3641 = vunpack.c.l.b16 %v3585
      %v3642 = vunpack.c.l.b16 %v3586
      %v3643 = vpack.c.b16 %v3628, %v3627
      %v3644 = vpack.c.b16 %v3630, %v3629
      %v3645 = vpack.c.b16 %v3632, %v3631
      %v3646 = vpack.c.b16 %v3634, %v3633
      %v3647 = vpack.c.b16 %v3636, %v3635
      %v3648 = vpack.c.b16 %v3638, %v3637
      %v3649 = vpack.c.b16 %v3640, %v3639
      %v3650 = vpack.c.b16 %v3642, %v3641
      %3659 = vmatpush.bf16.msra.mxu0 %v3650
      %3660 = vmatpush.bf16.msra.mxu0 %v3649
      %3661 = vmatpush.bf16.msra.mxu0 %v3648
      %3662 = vmatpush.bf16.msra.mxu0 %v3647
      %3663 = vmatpush.bf16.msra.mxu0 %v3646
      %3664 = vmatpush.bf16.msra.mxu0 %v3645
      %3665 = vmatpush.bf16.msra.mxu0 %v3644
      %3666 = vmatpush.bf16.msra.mxu0 %v3643
      %3667 = vmatmul.bf16.gmra.mxu0 %v3603
      %v3668 = vpop.f32.mrf.mxu0
      %v3669 = vadd.f32 0.0, %v3668
      %v3670 = vpop.f32.mrf.mxu0
      %v3671 = vadd.f32 0.0, %v3670
      %3672 = vmatmul.bf16.gmra.mxu0 %v3604
      %v3673 = vpop.f32.mrf.mxu0
      %v3674 = vadd.f32 0.0, %v3673
      %v3675 = vpop.f32.mrf.mxu0
      %v3676 = vadd.f32 0.0, %v3675
      %3677 = vmatmul.bf16.gmra.mxu0 %v3605
      %v3678 = vpop.f32.mrf.mxu0
      %v3679 = vadd.f32 0.0, %v3678
      %v3680 = vpop.f32.mrf.mxu0
      %v3681 = vadd.f32 0.0, %v3680
      %3682 = vmatmul.bf16.gmra.mxu0 %v3606
      %v3683 = vpop.f32.mrf.mxu0
      %v3684 = vadd.f32 0.0, %v3683
      %v3685 = vpop.f32.mrf.mxu0
      %v3686 = vadd.f32 0.0, %v3685
      %3687 = vdwg.mxu0
      %v3688 = vmul.f32 %v3669, 0.2
      %v3689 = vmul.f32 %v3671, 0.2
      %v3690 = vmul.f32 %v3674, 0.2
      %v3691 = vmul.f32 %v3676, 0.2
      %v3692 = vmul.f32 %v3679, 0.2
      %v3693 = vmul.f32 %v3681, 0.2
      %v3694 = vmul.f32 %v3684, 0.2
      %v3695 = vmul.f32 %v3686, 0.2
      %v3696 = vmax.f32 %v3669, %v3688
      %v3697 = vmax.f32 %v3671, %v3689
      %v3698 = vmax.f32 %v3674, %v3690
      %v3699 = vmax.f32 %v3676, %v3691
      %v3700 = vmax.f32 %v3679, %v3692
      %v3701 = vmax.f32 %v3681, %v3693
      %v3702 = vmax.f32 %v3684, %v3694
      %v3703 = vmax.f32 %v3686, %v3695
      %v3704 = vpack.c.bf16 %v3696, %v3696
      %v3705 = vpack.c.bf16 %v3697, %v3697
      %v3706 = vpack.c.bf16 %v3698, %v3698
      %v3707 = vpack.c.bf16 %v3699, %v3699
      %v3708 = vpack.c.bf16 %v3700, %v3700
      %v3709 = vpack.c.bf16 %v3701, %v3701
      %v3710 = vpack.c.bf16 %v3702, %v3702
      %v3711 = vpack.c.bf16 %v3703, %v3703
      %3712 = vst [vmem:[#allocation2 + $0x54] sm:$0xf] %v3704
      %3713 = vst [vmem:[#allocation2 + $0xb8] sm:$0xf] %v3705
      %3714 = vst [vmem:[#allocation2 + $0x11c] sm:$0xf] %v3706
      %3715 = vst [vmem:[#allocation2 + $0x180] sm:$0xf] %v3707
      %3716 = vst [vmem:[#allocation2 + $0x1e4] sm:$0xf] %v3708
      %3717 = vst [vmem:[#allocation2 + $0x248] sm:$0xf] %v3709
      %3718 = vst [vmem:[#allocation2 + $0x2ac] sm:$0xf] %v3710
      %3719 = vst [vmem:[#allocation2 + $0x310] sm:$0xf] %v3711
      %s3720 = scalar_lea.vmem %s231, 352
      %v3721 = vld [vmem:[%s3720] sm:$0xf]
      %v3722 = vld [vmem:[%s3720 + $0x4] sm:$0xf]
      %v3723 = vld [vmem:[%s3720 + $0x8] sm:$0xf]
      %v3724 = vld [vmem:[%s3720 + $0xc] sm:$0xf]
      %v3725 = vld [vmem:[%s3720 + $0x190] sm:$0xf]
      %v3726 = vld [vmem:[%s3720 + $0x194] sm:$0xf]
      %v3727 = vld [vmem:[%s3720 + $0x198] sm:$0xf]
      %v3728 = vld [vmem:[%s3720 + $0x19c] sm:$0xf]
      %v3729 = vld [vmem:[%s1] sm:$0xf]
      %v3730 = vld [vmem:[%s1 + $0x4] sm:$0xf]
      %v3731 = vld [vmem:[%s1 + $0x8] sm:$0xf]
      %v3732 = vld [vmem:[%s1 + $0xc] sm:$0xf]
      %v3733 = vld [vmem:[%s1 + $0x10] sm:$0xf]
      %v3734 = vld [vmem:[%s1 + $0x14] sm:$0xf]
      %v3735 = vld [vmem:[%s1 + $0x18] sm:$0xf]
      %v3736 = vld [vmem:[%s1 + $0x1c] sm:$0xf]
      %v3737 = vld [vmem:[%s1 + $0x20] sm:$0xf]
      %v3738 = vld [vmem:[%s1 + $0x24] sm:$0xf]
      %v3739 = vld [vmem:[%s1 + $0x28] sm:$0xf]
      %v3740 = vld [vmem:[%s1 + $0x2c] sm:$0xf]
      %v3741 = vld [vmem:[%s1 + $0x30] sm:$0xf]
      %v3742 = vld [vmem:[%s1 + $0x34] sm:$0xf]
      %v3743 = vld [vmem:[%s1 + $0x38] sm:$0xf]
      %v3744 = vld [vmem:[%s1 + $0x3c] sm:$0xf]
      %v3753 = vunpack.c.l.b16 %v3721
      %v3754 = vunpack.c.l.b16 %v3722
      %v3755 = vunpack.c.l.b16 %v3723
      %v3756 = vunpack.c.l.b16 %v3724
      %v3757 = vunpack.c.l.b16 %v3725
      %v3758 = vunpack.c.l.b16 %v3726
      %v3759 = vunpack.c.l.b16 %v3727
      %v3760 = vunpack.c.l.b16 %v3728
      %v3761 = vpack.c.b16 %v3754, %v3753
      %v3762 = vpack.c.b16 %v3756, %v3755
      %v3763 = vpack.c.b16 %v3758, %v3757
      %v3764 = vpack.c.b16 %v3760, %v3759
      %v3785 = vunpack.c.l.b16 %v3729
      %v3786 = vunpack.c.l.b16 %v3730
      %v3787 = vunpack.c.l.b16 %v3731
      %v3788 = vunpack.c.l.b16 %v3732
      %v3789 = vunpack.c.l.b16 %v3733
      %v3790 = vunpack.c.l.b16 %v3734
      %v3791 = vunpack.c.l.b16 %v3735
      %v3792 = vunpack.c.l.b16 %v3736
      %v3793 = vunpack.c.l.b16 %v3737
      %v3794 = vunpack.c.l.b16 %v3738
      %v3795 = vunpack.c.l.b16 %v3739
      %v3796 = vunpack.c.l.b16 %v3740
      %v3797 = vunpack.c.l.b16 %v3741
      %v3798 = vunpack.c.l.b16 %v3742
      %v3799 = vunpack.c.l.b16 %v3743
      %v3800 = vunpack.c.l.b16 %v3744
      %v3801 = vpack.c.b16 %v3786, %v3785
      %v3802 = vpack.c.b16 %v3788, %v3787
      %v3803 = vpack.c.b16 %v3790, %v3789
      %v3804 = vpack.c.b16 %v3792, %v3791
      %v3805 = vpack.c.b16 %v3794, %v3793
      %v3806 = vpack.c.b16 %v3796, %v3795
      %v3807 = vpack.c.b16 %v3798, %v3797
      %v3808 = vpack.c.b16 %v3800, %v3799
      %3817 = vmatpush.bf16.msra.mxu0 %v3808
      %3818 = vmatpush.bf16.msra.mxu0 %v3807
      %3819 = vmatpush.bf16.msra.mxu0 %v3806
      %3820 = vmatpush.bf16.msra.mxu0 %v3805
      %3821 = vmatpush.bf16.msra.mxu0 %v3804
      %3822 = vmatpush.bf16.msra.mxu0 %v3803
      %3823 = vmatpush.bf16.msra.mxu0 %v3802
      %3824 = vmatpush.bf16.msra.mxu0 %v3801
      %3825 = vmatmul.bf16.gmra.mxu0 %v3761
      %v3826 = vpop.f32.mrf.mxu0
      %v3827 = vadd.f32 0.0, %v3826
      %v3828 = vpop.f32.mrf.mxu0
      %v3829 = vadd.f32 0.0, %v3828
      %3830 = vmatmul.bf16.gmra.mxu0 %v3762
      %v3831 = vpop.f32.mrf.mxu0
      %v3832 = vadd.f32 0.0, %v3831
      %v3833 = vpop.f32.mrf.mxu0
      %v3834 = vadd.f32 0.0, %v3833
      %3835 = vmatmul.bf16.gmra.mxu0 %v3763
      %v3836 = vpop.f32.mrf.mxu0
      %v3837 = vadd.f32 0.0, %v3836
      %v3838 = vpop.f32.mrf.mxu0
      %v3839 = vadd.f32 0.0, %v3838
      %3840 = vmatmul.bf16.gmra.mxu0 %v3764
      %v3841 = vpop.f32.mrf.mxu0
      %v3842 = vadd.f32 0.0, %v3841
      %v3843 = vpop.f32.mrf.mxu0
      %v3844 = vadd.f32 0.0, %v3843
      %3845 = vdwg.mxu0
      %v3846 = vmul.f32 %v3827, 0.2
      %v3847 = vmul.f32 %v3829, 0.2
      %v3848 = vmul.f32 %v3832, 0.2
      %v3849 = vmul.f32 %v3834, 0.2
      %v3850 = vmul.f32 %v3837, 0.2
      %v3851 = vmul.f32 %v3839, 0.2
      %v3852 = vmul.f32 %v3842, 0.2
      %v3853 = vmul.f32 %v3844, 0.2
      %v3854 = vmax.f32 %v3827, %v3846
      %v3855 = vmax.f32 %v3829, %v3847
      %v3856 = vmax.f32 %v3832, %v3848
      %v3857 = vmax.f32 %v3834, %v3849
      %v3858 = vmax.f32 %v3837, %v3850
      %v3859 = vmax.f32 %v3839, %v3851
      %v3860 = vmax.f32 %v3842, %v3852
      %v3861 = vmax.f32 %v3844, %v3853
      %v3862 = vpack.c.bf16 %v3854, %v3854
      %v3863 = vpack.c.bf16 %v3855, %v3855
      %v3864 = vpack.c.bf16 %v3856, %v3856
      %v3865 = vpack.c.bf16 %v3857, %v3857
      %v3866 = vpack.c.bf16 %v3858, %v3858
      %v3867 = vpack.c.bf16 %v3859, %v3859
      %v3868 = vpack.c.bf16 %v3860, %v3860
      %v3869 = vpack.c.bf16 %v3861, %v3861
      %3870 = vst [vmem:[#allocation2 + $0x58] sm:$0xf] %v3862
      %3871 = vst [vmem:[#allocation2 + $0xbc] sm:$0xf] %v3863
      %3872 = vst [vmem:[#allocation2 + $0x120] sm:$0xf] %v3864
      %3873 = vst [vmem:[#allocation2 + $0x184] sm:$0xf] %v3865
      %3874 = vst [vmem:[#allocation2 + $0x1e8] sm:$0xf] %v3866
      %3875 = vst [vmem:[#allocation2 + $0x24c] sm:$0xf] %v3867
      %3876 = vst [vmem:[#allocation2 + $0x2b0] sm:$0xf] %v3868
      %3877 = vst [vmem:[#allocation2 + $0x314] sm:$0xf] %v3869
      %s3878 = scalar_lea.vmem %s231, 368
      %v3879 = vld [vmem:[%s3878] sm:$0xf]
      %v3880 = vld [vmem:[%s3878 + $0x4] sm:$0xf]
      %v3881 = vld [vmem:[%s3878 + $0x8] sm:$0xf]
      %v3882 = vld [vmem:[%s3878 + $0xc] sm:$0xf]
      %v3883 = vld [vmem:[%s3878 + $0x190] sm:$0xf]
      %v3884 = vld [vmem:[%s3878 + $0x194] sm:$0xf]
      %v3885 = vld [vmem:[%s3878 + $0x198] sm:$0xf]
      %v3886 = vld [vmem:[%s3878 + $0x19c] sm:$0xf]
      %v3887 = vld [vmem:[%s1] sm:$0xf]
      %v3888 = vld [vmem:[%s1 + $0x4] sm:$0xf]
      %v3889 = vld [vmem:[%s1 + $0x8] sm:$0xf]
      %v3890 = vld [vmem:[%s1 + $0xc] sm:$0xf]
      %v3891 = vld [vmem:[%s1 + $0x10] sm:$0xf]
      %v3892 = vld [vmem:[%s1 + $0x14] sm:$0xf]
      %v3893 = vld [vmem:[%s1 + $0x18] sm:$0xf]
      %v3894 = vld [vmem:[%s1 + $0x1c] sm:$0xf]
      %v3895 = vld [vmem:[%s1 + $0x20] sm:$0xf]
      %v3896 = vld [vmem:[%s1 + $0x24] sm:$0xf]
      %v3897 = vld [vmem:[%s1 + $0x28] sm:$0xf]
      %v3898 = vld [vmem:[%s1 + $0x2c] sm:$0xf]
      %v3899 = vld [vmem:[%s1 + $0x30] sm:$0xf]
      %v3900 = vld [vmem:[%s1 + $0x34] sm:$0xf]
      %v3901 = vld [vmem:[%s1 + $0x38] sm:$0xf]
      %v3902 = vld [vmem:[%s1 + $0x3c] sm:$0xf]
      %v3911 = vunpack.c.l.b16 %v3879
      %v3912 = vunpack.c.l.b16 %v3880
      %v3913 = vunpack.c.l.b16 %v3881
      %v3914 = vunpack.c.l.b16 %v3882
      %v3915 = vunpack.c.l.b16 %v3883
      %v3916 = vunpack.c.l.b16 %v3884
      %v3917 = vunpack.c.l.b16 %v3885
      %v3918 = vunpack.c.l.b16 %v3886
      %v3919 = vpack.c.b16 %v3912, %v3911
      %v3920 = vpack.c.b16 %v3914, %v3913
      %v3921 = vpack.c.b16 %v3916, %v3915
      %v3922 = vpack.c.b16 %v3918, %v3917
      %v3943 = vunpack.c.l.b16 %v3887
      %v3944 = vunpack.c.l.b16 %v3888
      %v3945 = vunpack.c.l.b16 %v3889
      %v3946 = vunpack.c.l.b16 %v3890
      %v3947 = vunpack.c.l.b16 %v3891
      %v3948 = vunpack.c.l.b16 %v3892
      %v3949 = vunpack.c.l.b16 %v3893
      %v3950 = vunpack.c.l.b16 %v3894
      %v3951 = vunpack.c.l.b16 %v3895
      %v3952 = vunpack.c.l.b16 %v3896
      %v3953 = vunpack.c.l.b16 %v3897
      %v3954 = vunpack.c.l.b16 %v3898
      %v3955 = vunpack.c.l.b16 %v3899
      %v3956 = vunpack.c.l.b16 %v3900
      %v3957 = vunpack.c.l.b16 %v3901
      %v3958 = vunpack.c.l.b16 %v3902
      %v3959 = vpack.c.b16 %v3944, %v3943
      %v3960 = vpack.c.b16 %v3946, %v3945
      %v3961 = vpack.c.b16 %v3948, %v3947
      %v3962 = vpack.c.b16 %v3950, %v3949
      %v3963 = vpack.c.b16 %v3952, %v3951
      %v3964 = vpack.c.b16 %v3954, %v3953
      %v3965 = vpack.c.b16 %v3956, %v3955
      %v3966 = vpack.c.b16 %v3958, %v3957
      %3975 = vmatpush.bf16.msra.mxu0 %v3966
      %3976 = vmatpush.bf16.msra.mxu0 %v3965
      %3977 = vmatpush.bf16.msra.mxu0 %v3964
      %3978 = vmatpush.bf16.msra.mxu0 %v3963
      %3979 = vmatpush.bf16.msra.mxu0 %v3962
      %3980 = vmatpush.bf16.msra.mxu0 %v3961
      %3981 = vmatpush.bf16.msra.mxu0 %v3960
      %3982 = vmatpush.bf16.msra.mxu0 %v3959
      %3983 = vmatmul.bf16.gmra.mxu0 %v3919
      %v3984 = vpop.f32.mrf.mxu0
      %v3985 = vadd.f32 0.0, %v3984
      %v3986 = vpop.f32.mrf.mxu0
      %v3987 = vadd.f32 0.0, %v3986
      %3988 = vmatmul.bf16.gmra.mxu0 %v3920
      %v3989 = vpop.f32.mrf.mxu0
      %v3990 = vadd.f32 0.0, %v3989
      %v3991 = vpop.f32.mrf.mxu0
      %v3992 = vadd.f32 0.0, %v3991
      %3993 = vmatmul.bf16.gmra.mxu0 %v3921
      %v3994 = vpop.f32.mrf.mxu0
      %v3995 = vadd.f32 0.0, %v3994
      %v3996 = vpop.f32.mrf.mxu0
      %v3997 = vadd.f32 0.0, %v3996
      %3998 = vmatmul.bf16.gmra.mxu0 %v3922
      %v3999 = vpop.f32.mrf.mxu0
      %v4000 = vadd.f32 0.0, %v3999
      %v4001 = vpop.f32.mrf.mxu0
      %v4002 = vadd.f32 0.0, %v4001
      %4003 = vdwg.mxu0
      %v4004 = vmul.f32 %v3985, 0.2
      %v4005 = vmul.f32 %v3987, 0.2
      %v4006 = vmul.f32 %v3990, 0.2
      %v4007 = vmul.f32 %v3992, 0.2
      %v4008 = vmul.f32 %v3995, 0.2
      %v4009 = vmul.f32 %v3997, 0.2
      %v4010 = vmul.f32 %v4000, 0.2
      %v4011 = vmul.f32 %v4002, 0.2
      %v4012 = vmax.f32 %v3985, %v4004
      %v4013 = vmax.f32 %v3987, %v4005
      %v4014 = vmax.f32 %v3990, %v4006
      %v4015 = vmax.f32 %v3992, %v4007
      %v4016 = vmax.f32 %v3995, %v4008
      %v4017 = vmax.f32 %v3997, %v4009
      %v4018 = vmax.f32 %v4000, %v4010
      %v4019 = vmax.f32 %v4002, %v4011
      %v4020 = vpack.c.bf16 %v4012, %v4012
      %v4021 = vpack.c.bf16 %v4013, %v4013
      %v4022 = vpack.c.bf16 %v4014, %v4014
      %v4023 = vpack.c.bf16 %v4015, %v4015
      %v4024 = vpack.c.bf16 %v4016, %v4016
      %v4025 = vpack.c.bf16 %v4017, %v4017
      %v4026 = vpack.c.bf16 %v4018, %v4018
      %v4027 = vpack.c.bf16 %v4019, %v4019
      %4028 = vst [vmem:[#allocation2 + $0x5c] sm:$0xf] %v4020
      %4029 = vst [vmem:[#allocation2 + $0xc0] sm:$0xf] %v4021
      %4030 = vst [vmem:[#allocation2 + $0x124] sm:$0xf] %v4022
      %4031 = vst [vmem:[#allocation2 + $0x188] sm:$0xf] %v4023
      %4032 = vst [vmem:[#allocation2 + $0x1ec] sm:$0xf] %v4024
      %4033 = vst [vmem:[#allocation2 + $0x250] sm:$0xf] %v4025
      %4034 = vst [vmem:[#allocation2 + $0x2b4] sm:$0xf] %v4026
      %4035 = vst [vmem:[#allocation2 + $0x318] sm:$0xf] %v4027
      %s4036 = scalar_lea.vmem %s231, 384
      %v4037 = vld [vmem:[%s4036] sm:$0xf]
      %v4038 = vld [vmem:[%s4036 + $0x4] sm:$0xf]
      %v4039 = vld [vmem:[%s4036 + $0x8] sm:$0xf]
      %v4040 = vld [vmem:[%s4036 + $0xc] sm:$0xf]
      %v4041 = vld [vmem:[%s4036 + $0x190] sm:$0xf]
      %v4042 = vld [vmem:[%s4036 + $0x194] sm:$0xf]
      %v4043 = vld [vmem:[%s4036 + $0x198] sm:$0xf]
      %v4044 = vld [vmem:[%s4036 + $0x19c] sm:$0xf]
      %v4045 = vld [vmem:[%s1] sm:$0xf]
      %v4046 = vld [vmem:[%s1 + $0x4] sm:$0xf]
      %v4047 = vld [vmem:[%s1 + $0x8] sm:$0xf]
      %v4048 = vld [vmem:[%s1 + $0xc] sm:$0xf]
      %v4049 = vld [vmem:[%s1 + $0x10] sm:$0xf]
      %v4050 = vld [vmem:[%s1 + $0x14] sm:$0xf]
      %v4051 = vld [vmem:[%s1 + $0x18] sm:$0xf]
      %v4052 = vld [vmem:[%s1 + $0x1c] sm:$0xf]
      %v4053 = vld [vmem:[%s1 + $0x20] sm:$0xf]
      %v4054 = vld [vmem:[%s1 + $0x24] sm:$0xf]
      %v4055 = vld [vmem:[%s1 + $0x28] sm:$0xf]
      %v4056 = vld [vmem:[%s1 + $0x2c] sm:$0xf]
      %v4057 = vld [vmem:[%s1 + $0x30] sm:$0xf]
      %v4058 = vld [vmem:[%s1 + $0x34] sm:$0xf]
      %v4059 = vld [vmem:[%s1 + $0x38] sm:$0xf]
      %v4060 = vld [vmem:[%s1 + $0x3c] sm:$0xf]
      %v4069 = vunpack.c.l.b16 %v4037
      %v4070 = vunpack.c.l.b16 %v4038
      %v4071 = vunpack.c.l.b16 %v4039
      %v4072 = vunpack.c.l.b16 %v4040
      %v4073 = vunpack.c.l.b16 %v4041
      %v4074 = vunpack.c.l.b16 %v4042
      %v4075 = vunpack.c.l.b16 %v4043
      %v4076 = vunpack.c.l.b16 %v4044
      %v4077 = vpack.c.b16 %v4070, %v4069
      %v4078 = vpack.c.b16 %v4072, %v4071
      %v4079 = vpack.c.b16 %v4074, %v4073
      %v4080 = vpack.c.b16 %v4076, %v4075
      %v4101 = vunpack.c.l.b16 %v4045
      %v4102 = vunpack.c.l.b16 %v4046
      %v4103 = vunpack.c.l.b16 %v4047
      %v4104 = vunpack.c.l.b16 %v4048
      %v4105 = vunpack.c.l.b16 %v4049
      %v4106 = vunpack.c.l.b16 %v4050
      %v4107 = vunpack.c.l.b16 %v4051
      %v4108 = vunpack.c.l.b16 %v4052
      %v4109 = vunpack.c.l.b16 %v4053
      %v4110 = vunpack.c.l.b16 %v4054
      %v4111 = vunpack.c.l.b16 %v4055
      %v4112 = vunpack.c.l.b16 %v4056
      %v4113 = vunpack.c.l.b16 %v4057
      %v4114 = vunpack.c.l.b16 %v4058
      %v4115 = vunpack.c.l.b16 %v4059
      %v4116 = vunpack.c.l.b16 %v4060
      %v4117 = vpack.c.b16 %v4102, %v4101
      %v4118 = vpack.c.b16 %v4104, %v4103
      %v4119 = vpack.c.b16 %v4106, %v4105
      %v4120 = vpack.c.b16 %v4108, %v4107
      %v4121 = vpack.c.b16 %v4110, %v4109
      %v4122 = vpack.c.b16 %v4112, %v4111
      %v4123 = vpack.c.b16 %v4114, %v4113
      %v4124 = vpack.c.b16 %v4116, %v4115
      %4133 = vmatpush.bf16.msra.mxu0 %v4124
      %4134 = vmatpush.bf16.msra.mxu0 %v4123
      %4135 = vmatpush.bf16.msra.mxu0 %v4122
      %4136 = vmatpush.bf16.msra.mxu0 %v4121
      %4137 = vmatpush.bf16.msra.mxu0 %v4120
      %4138 = vmatpush.bf16.msra.mxu0 %v4119
      %4139 = vmatpush.bf16.msra.mxu0 %v4118
      %4140 = vmatpush.bf16.msra.mxu0 %v4117
      %4141 = vmatmul.bf16.gmra.mxu0 %v4077
      %v4142 = vpop.f32.mrf.mxu0
      %v4143 = vadd.f32 0.0, %v4142
      %v4144 = vpop.f32.mrf.mxu0
      %v4145 = vadd.f32 0.0, %v4144
      %4146 = vmatmul.bf16.gmra.mxu0 %v4078
      %v4147 = vpop.f32.mrf.mxu0
      %v4148 = vadd.f32 0.0, %v4147
      %v4149 = vpop.f32.mrf.mxu0
      %v4150 = vadd.f32 0.0, %v4149
      %4151 = vmatmul.bf16.gmra.mxu0 %v4079
      %v4152 = vpop.f32.mrf.mxu0
      %v4153 = vadd.f32 0.0, %v4152
      %v4154 = vpop.f32.mrf.mxu0
      %v4155 = vadd.f32 0.0, %v4154
      %4156 = vmatmul.bf16.gmra.mxu0 %v4080
      %v4157 = vpop.f32.mrf.mxu0
      %v4158 = vadd.f32 0.0, %v4157
      %v4159 = vpop.f32.mrf.mxu0
      %v4160 = vadd.f32 0.0, %v4159
      %4161 = vdwg.mxu0
      %v4162 = vmul.f32 %v4143, 0.2
      %v4163 = vmul.f32 %v4145, 0.2
      %v4164 = vmul.f32 %v4148, 0.2
      %v4165 = vmul.f32 %v4150, 0.2
      %v4166 = vmul.f32 %v4153, 0.2
      %v4167 = vmul.f32 %v4155, 0.2
      %v4168 = vmul.f32 %v4158, 0.2
      %v4169 = vmul.f32 %v4160, 0.2
      %v4170 = vmax.f32 %v4143, %v4162
      %v4171 = vmax.f32 %v4145, %v4163
      %v4172 = vmax.f32 %v4148, %v4164
      %v4173 = vmax.f32 %v4150, %v4165
      %v4174 = vmax.f32 %v4153, %v4166
      %v4175 = vmax.f32 %v4155, %v4167
      %v4176 = vmax.f32 %v4158, %v4168
      %v4177 = vmax.f32 %v4160, %v4169
      %v4178 = vpack.c.bf16 %v4170, %v4170
      %v4179 = vpack.c.bf16 %v4171, %v4171
      %v4180 = vpack.c.bf16 %v4172, %v4172
      %v4181 = vpack.c.bf16 %v4173, %v4173
      %v4182 = vpack.c.bf16 %v4174, %v4174
      %v4183 = vpack.c.bf16 %v4175, %v4175
      %v4184 = vpack.c.bf16 %v4176, %v4176
      %v4185 = vpack.c.bf16 %v4177, %v4177
      %4186 = vst [vmem:[#allocation2 + $0x60] sm:$0xf] %v4178
      %4187 = vst [vmem:[#allocation2 + $0xc4] sm:$0xf] %v4179
      %4188 = vst [vmem:[#allocation2 + $0x128] sm:$0xf] %v4180
      %4189 = vst [vmem:[#allocation2 + $0x18c] sm:$0xf] %v4181
      %4190 = vst [vmem:[#allocation2 + $0x1f0] sm:$0xf] %v4182
      %4191 = vst [vmem:[#allocation2 + $0x254] sm:$0xf] %v4183
      %4192 = vst [vmem:[#allocation2 + $0x2b8] sm:$0xf] %v4184
      %4193 = vst [vmem:[#allocation2 + $0x31c] sm:$0xf] %v4185
      %v4194 = vld [vmem:[#allocation2] sm:$0xff]
      %v4195 = vld [vmem:[#allocation2 + $0x8] sm:$0xff]
      %v4196 = vld [vmem:[#allocation2 + $0x10] sm:$0xff]
      %v4197 = vld [vmem:[#allocation2 + $0x18] sm:$0xff]
      %v4198 = vld [vmem:[#allocation2 + $0x20] sm:$0xff]
      %v4199 = vld [vmem:[#allocation2 + $0x28] sm:$0xff]
      %v4200 = vld [vmem:[#allocation2 + $0x30] sm:$0xff]
      %v4201 = vld [vmem:[#allocation2 + $0x38] sm:$0xff]
      %v4202 = vld [vmem:[#allocation2 + $0x40] sm:$0xff]
      %v4203 = vld [vmem:[#allocation2 + $0x48] sm:$0xff]
      %v4204 = vld [vmem:[#allocation2 + $0x50] sm:$0xff]
      %v4205 = vld [vmem:[#allocation2 + $0x58] sm:$0xff]
      %v4206 = vld [vmem:[#allocation2 + $0x60] sm:$0xf]
      %v4207 = vld [vmem:[#allocation2 + $0x64] sm:$0xff]
      %v4208 = vld [vmem:[#allocation2 + $0x6c] sm:$0xff]
      %v4209 = vld [vmem:[#allocation2 + $0x74] sm:$0xff]
      %v4210 = vld [vmem:[#allocation2 + $0x7c] sm:$0xff]
      %v4211 = vld [vmem:[#allocation2 + $0x84] sm:$0xff]
      %v4212 = vld [vmem:[#allocation2 + $0x8c] sm:$0xff]
      %v4213 = vld [vmem:[#allocation2 + $0x94] sm:$0xff]
      %v4214 = vld [vmem:[#allocation2 + $0x9c] sm:$0xff]
      %v4215 = vld [vmem:[#allocation2 + $0xa4] sm:$0xff]
      %v4216 = vld [vmem:[#allocation2 + $0xac] sm:$0xff]
      %v4217 = vld [vmem:[#allocation2 + $0xb4] sm:$0xff]
      %v4218 = vld [vmem:[#allocation2 + $0xbc] sm:$0xff]
      %v4219 = vld [vmem:[#allocation2 + $0xc4] sm:$0xf]
      %v4220 = vld [vmem:[#allocation2 + $0xc8] sm:$0xff]
      %v4221 = vld [vmem:[#allocation2 + $0xd0] sm:$0xff]
      %v4222 = vld [vmem:[#allocation2 + $0xd8] sm:$0xff]
      %v4223 = vld [vmem:[#allocation2 + $0xe0] sm:$0xff]
      %v4224 = vld [vmem:[#allocation2 + $0xe8] sm:$0xff]
      %v4225 = vld [vmem:[#allocation2 + $0xf0] sm:$0xff]
      %v4226 = vld [vmem:[#allocation2 + $0xf8] sm:$0xff]
      %v4227 = vld [vmem:[#allocation2 + $0x100] sm:$0xff]
      %v4228 = vld [vmem:[#allocation2 + $0x108] sm:$0xff]
      %v4229 = vld [vmem:[#allocation2 + $0x110] sm:$0xff]
      %v4230 = vld [vmem:[#allocation2 + $0x118] sm:$0xff]
      %v4231 = vld [vmem:[#allocation2 + $0x120] sm:$0xff]
      %v4232 = vld [vmem:[#allocation2 + $0x128] sm:$0xf]
      %v4233 = vld [vmem:[#allocation2 + $0x12c] sm:$0xff]
      %v4234 = vld [vmem:[#allocation2 + $0x134] sm:$0xff]
      %v4235 = vld [vmem:[#allocation2 + $0x13c] sm:$0xff]
      %v4236 = vld [vmem:[#allocation2 + $0x144] sm:$0xff]
      %v4237 = vld [vmem:[#allocation2 + $0x14c] sm:$0xff]
      %v4238 = vld [vmem:[#allocation2 + $0x154] sm:$0xff]
      %v4239 = vld [vmem:[#allocation2 + $0x15c] sm:$0xff]
      %v4240 = vld [vmem:[#allocation2 + $0x164] sm:$0xff]
      %v4241 = vld [vmem:[#allocation2 + $0x16c] sm:$0xff]
      %v4242 = vld [vmem:[#allocation2 + $0x174] sm:$0xff]
      %v4243 = vld [vmem:[#allocation2 + $0x17c] sm:$0xff]
      %v4244 = vld [vmem:[#allocation2 + $0x184] sm:$0xff]
      %v4245 = vld [vmem:[#allocation2 + $0x18c] sm:$0xf]
      %v4246 = vld [vmem:[#allocation2 + $0x190] sm:$0xff]
      %v4247 = vld [vmem:[#allocation2 + $0x198] sm:$0xff]
      %v4248 = vld [vmem:[#allocation2 + $0x1a0] sm:$0xff]
      %v4249 = vld [vmem:[#allocation2 + $0x1a8] sm:$0xff]
      %v4250 = vld [vmem:[#allocation2 + $0x1b0] sm:$0xff]
      %v4251 = vld [vmem:[#allocation2 + $0x1b8] sm:$0xff]
      %v4252 = vld [vmem:[#allocation2 + $0x1c0] sm:$0xff]
      %v4253 = vld [vmem:[#allocation2 + $0x1c8] sm:$0xff]
      %v4254 = vld [vmem:[#allocation2 + $0x1d0] sm:$0xff]
      %v4255 = vld [vmem:[#allocation2 + $0x1d8] sm:$0xff]
      %v4256 = vld [vmem:[#allocation2 + $0x1e0] sm:$0xff]
      %v4257 = vld [vmem:[#allocation2 + $0x1e8] sm:$0xff]
      %v4258 = vld [vmem:[#allocation2 + $0x1f0] sm:$0xf]
      %v4259 = vld [vmem:[#allocation2 + $0x1f4] sm:$0xff]
      %v4260 = vld [vmem:[#allocation2 + $0x1fc] sm:$0xff]
      %v4261 = vld [vmem:[#allocation2 + $0x204] sm:$0xff]
      %v4262 = vld [vmem:[#allocation2 + $0x20c] sm:$0xff]
      %v4263 = vld [vmem:[#allocation2 + $0x214] sm:$0xff]
      %v4264 = vld [vmem:[#allocation2 + $0x21c] sm:$0xff]
      %v4265 = vld [vmem:[#allocation2 + $0x224] sm:$0xff]
      %v4266 = vld [vmem:[#allocation2 + $0x22c] sm:$0xff]
      %v4267 = vld [vmem:[#allocation2 + $0x234] sm:$0xff]
      %v4268 = vld [vmem:[#allocation2 + $0x23c] sm:$0xff]
      %v4269 = vld [vmem:[#allocation2 + $0x244] sm:$0xff]
      %v4270 = vld [vmem:[#allocation2 + $0x24c] sm:$0xff]
      %v4271 = vld [vmem:[#allocation2 + $0x254] sm:$0xf]
      %v4272 = vld [vmem:[#allocation2 + $0x258] sm:$0xff]
      %v4273 = vld [vmem:[#allocation2 + $0x260] sm:$0xff]
      %v4274 = vld [vmem:[#allocation2 + $0x268] sm:$0xff]
      %v4275 = vld [vmem:[#allocation2 + $0x270] sm:$0xff]
      %v4276 = vld [vmem:[#allocation2 + $0x278] sm:$0xff]
      %v4277 = vld [vmem:[#allocation2 + $0x280] sm:$0xff]
      %v4278 = vld [vmem:[#allocation2 + $0x288] sm:$0xff]
      %v4279 = vld [vmem:[#allocation2 + $0x290] sm:$0xff]
      %v4280 = vld [vmem:[#allocation2 + $0x298] sm:$0xff]
      %v4281 = vld [vmem:[#allocation2 + $0x2a0] sm:$0xff]
      %v4282 = vld [vmem:[#allocation2 + $0x2a8] sm:$0xff]
      %v4283 = vld [vmem:[#allocation2 + $0x2b0] sm:$0xff]
      %v4284 = vld [vmem:[#allocation2 + $0x2b8] sm:$0xf]
      %v4285 = vld [vmem:[#allocation2 + $0x2bc] sm:$0xff]
      %v4286 = vld [vmem:[#allocation2 + $0x2c4] sm:$0xff]
      %v4287 = vld [vmem:[#allocation2 + $0x2cc] sm:$0xff]
      %v4288 = vld [vmem:[#allocation2 + $0x2d4] sm:$0xff]
      %v4289 = vld [vmem:[#allocation2 + $0x2dc] sm:$0xff]
      %v4290 = vld [vmem:[#allocation2 + $0x2e4] sm:$0xff]
      %v4291 = vld [vmem:[#allocation2 + $0x2ec] sm:$0xff]
      %v4292 = vld [vmem:[#allocation2 + $0x2f4] sm:$0xff]
      %v4293 = vld [vmem:[#allocation2 + $0x2fc] sm:$0xff]
      %v4294 = vld [vmem:[#allocation2 + $0x304] sm:$0xff]
      %v4295 = vld [vmem:[#allocation2 + $0x30c] sm:$0xff]
      %v4296 = vld [vmem:[#allocation2 + $0x314] sm:$0xff]
      %v4297 = vld [vmem:[#allocation2 + $0x31c] sm:$0xf]
      %v4298 = vld [vmem:[%s2] sm:$0xf]
      %v4299 = vld [vmem:[%s2 + $0x4] sm:$0xf]
      %v4300 = vld [vmem:[%s2 + $0x8] sm:$0xf]
      %v4301 = vld [vmem:[%s2 + $0xc] sm:$0xf]
      %v4302 = vld [vmem:[%s2 + $0x10] sm:$0xf]
      %v4303 = vld [vmem:[%s2 + $0x14] sm:$0xf]
      %v4304 = vld [vmem:[%s2 + $0x18] sm:$0xf]
      %v4305 = vld [vmem:[%s2 + $0x1c] sm:$0xf]
      %v4306 = vld [vmem:[%s2 + $0x20] sm:$0xf]
      %v4307 = vld [vmem:[%s2 + $0x24] sm:$0xf]
      %v4308 = vld [vmem:[%s2 + $0x28] sm:$0xf]
      %v4309 = vld [vmem:[%s2 + $0x2c] sm:$0xf]
      %v4310 = vld [vmem:[%s2 + $0x30] sm:$0xf]
      %v4311 = vld [vmem:[%s2 + $0x34] sm:$0xf]
      %v4312 = vld [vmem:[%s2 + $0x38] sm:$0xf]
      %v4313 = vld [vmem:[%s2 + $0x3c] sm:$0xf]
      %v4314 = vld [vmem:[%s2 + $0x40] sm:$0xf]
      %v4315 = vld [vmem:[%s2 + $0x44] sm:$0xf]
      %v4316 = vld [vmem:[%s2 + $0x48] sm:$0xf]
      %v4317 = vld [vmem:[%s2 + $0x4c] sm:$0xf]
      %v4318 = vld [vmem:[%s2 + $0x50] sm:$0xf]
      %v4319 = vld [vmem:[%s2 + $0x54] sm:$0xf]
      %v4320 = vld [vmem:[%s2 + $0x58] sm:$0xf]
      %v4321 = vld [vmem:[%s2 + $0x5c] sm:$0xf]
      %v4322 = vld [vmem:[%s2 + $0x60] sm:$0xf]
      %v4323 = vld [vmem:[%s2 + $0x64] sm:$0xf]
      %v4324 = vld [vmem:[%s2 + $0x68] sm:$0xf]
      %v4325 = vld [vmem:[%s2 + $0x6c] sm:$0xf]
      %v4326 = vld [vmem:[%s2 + $0x70] sm:$0xf]
      %v4327 = vld [vmem:[%s2 + $0x74] sm:$0xf]
      %v4328 = vld [vmem:[%s2 + $0x78] sm:$0xf]
      %v4329 = vld [vmem:[%s2 + $0x7c] sm:$0xf]
      %v4330 = vld [vmem:[%s2 + $0x80] sm:$0xf]
      %v4331 = vld [vmem:[%s2 + $0x84] sm:$0xf]
      %v4332 = vld [vmem:[%s2 + $0x88] sm:$0xf]
      %v4333 = vld [vmem:[%s2 + $0x8c] sm:$0xf]
      %v4334 = vld [vmem:[%s2 + $0x90] sm:$0xf]
      %v4335 = vld [vmem:[%s2 + $0x94] sm:$0xf]
      %v4336 = vld [vmem:[%s2 + $0x98] sm:$0xf]
      %v4337 = vld [vmem:[%s2 + $0x9c] sm:$0xf]
      %v4338 = vld [vmem:[%s2 + $0xa0] sm:$0xf]
      %v4339 = vld [vmem:[%s2 + $0xa4] sm:$0xf]
      %v4340 = vld [vmem:[%s2 + $0xa8] sm:$0xf]
      %v4341 = vld [vmem:[%s2 + $0xac] sm:$0xf]
      %v4342 = vld [vmem:[%s2 + $0xb0] sm:$0xf]
      %v4343 = vld [vmem:[%s2 + $0xb4] sm:$0xf]
      %v4344 = vld [vmem:[%s2 + $0xb8] sm:$0xf]
      %v4345 = vld [vmem:[%s2 + $0xbc] sm:$0xf]
      %v4346 = vld [vmem:[%s2 + $0xc0] sm:$0xf]
      %v4347 = vld [vmem:[%s2 + $0xc4] sm:$0xf]
      %v4348 = vld [vmem:[%s2 + $0xc8] sm:$0xf]
      %v4349 = vld [vmem:[%s2 + $0xcc] sm:$0xf]
      %v4350 = vld [vmem:[%s2 + $0xd0] sm:$0xf]
      %v4351 = vld [vmem:[%s2 + $0xd4] sm:$0xf]
      %v4352 = vld [vmem:[%s2 + $0xd8] sm:$0xf]
      %v4353 = vld [vmem:[%s2 + $0xdc] sm:$0xf]
      %v4354 = vld [vmem:[%s2 + $0xe0] sm:$0xf]
      %v4355 = vld [vmem:[%s2 + $0xe4] sm:$0xf]
      %v4356 = vld [vmem:[%s2 + $0xe8] sm:$0xf]
      %v4357 = vld [vmem:[%s2 + $0xec] sm:$0xf]
      %v4358 = vld [vmem:[%s2 + $0xf0] sm:$0xf]
      %v4359 = vld [vmem:[%s2 + $0xf4] sm:$0xf]
      %v4360 = vld [vmem:[%s2 + $0xf8] sm:$0xf]
      %v4361 = vld [vmem:[%s2 + $0xfc] sm:$0xf]
      %v4362 = vld [vmem:[%s2 + $0x100] sm:$0xf]
      %v4363 = vld [vmem:[%s2 + $0x104] sm:$0xf]
      %v4364 = vld [vmem:[%s2 + $0x108] sm:$0xf]
      %v4365 = vld [vmem:[%s2 + $0x10c] sm:$0xf]
      %v4366 = vld [vmem:[%s2 + $0x110] sm:$0xf]
      %v4367 = vld [vmem:[%s2 + $0x114] sm:$0xf]
      %v4368 = vld [vmem:[%s2 + $0x118] sm:$0xf]
      %v4369 = vld [vmem:[%s2 + $0x11c] sm:$0xf]
      %v4370 = vld [vmem:[%s2 + $0x120] sm:$0xf]
      %v4371 = vld [vmem:[%s2 + $0x124] sm:$0xf]
      %v4372 = vld [vmem:[%s2 + $0x128] sm:$0xf]
      %v4373 = vld [vmem:[%s2 + $0x12c] sm:$0xf]
      %v4374 = vld [vmem:[%s2 + $0x130] sm:$0xf]
      %v4375 = vld [vmem:[%s2 + $0x134] sm:$0xf]
      %v4376 = vld [vmem:[%s2 + $0x138] sm:$0xf]
      %v4377 = vld [vmem:[%s2 + $0x13c] sm:$0xf]
      %v4378 = vld [vmem:[%s2 + $0x140] sm:$0xf]
      %v4379 = vld [vmem:[%s2 + $0x144] sm:$0xf]
      %v4380 = vld [vmem:[%s2 + $0x148] sm:$0xf]
      %v4381 = vld [vmem:[%s2 + $0x14c] sm:$0xf]
      %v4382 = vld [vmem:[%s2 + $0x150] sm:$0xf]
      %v4383 = vld [vmem:[%s2 + $0x154] sm:$0xf]
      %v4384 = vld [vmem:[%s2 + $0x158] sm:$0xf]
      %v4385 = vld [vmem:[%s2 + $0x15c] sm:$0xf]
      %v4386 = vld [vmem:[%s2 + $0x160] sm:$0xf]
      %v4387 = vld [vmem:[%s2 + $0x164] sm:$0xf]
      %v4388 = vld [vmem:[%s2 + $0x168] sm:$0xf]
      %v4389 = vld [vmem:[%s2 + $0x16c] sm:$0xf]
      %v4390 = vld [vmem:[%s2 + $0x170] sm:$0xf]
      %v4391 = vld [vmem:[%s2 + $0x174] sm:$0xf]
      %v4392 = vld [vmem:[%s2 + $0x178] sm:$0xf]
      %v4393 = vld [vmem:[%s2 + $0x17c] sm:$0xf]
      %v4394 = vld [vmem:[%s2 + $0x180] sm:$0xf]
      %v4395 = vld [vmem:[%s2 + $0x184] sm:$0xf]
      %v4396 = vld [vmem:[%s2 + $0x188] sm:$0xf]
      %v4397 = vld [vmem:[%s2 + $0x18c] sm:$0xf]
      %v4398 = vld [vmem:[%s2 + $0x190] sm:$0xf]
      %v4399 = vld [vmem:[%s2 + $0x194] sm:$0xf]
      %v4400 = vld [vmem:[%s2 + $0x198] sm:$0xf]
      %v4401 = vld [vmem:[%s2 + $0x19c] sm:$0xf]
      %v4402 = vld [vmem:[%s2 + $0x1a0] sm:$0xf]
      %v4403 = vld [vmem:[%s2 + $0x1a4] sm:$0xf]
      %v4404 = vld [vmem:[%s2 + $0x1a8] sm:$0xf]
      %v4405 = vld [vmem:[%s2 + $0x1ac] sm:$0xf]
      %v4406 = vld [vmem:[%s2 + $0x1b0] sm:$0xf]
      %v4407 = vld [vmem:[%s2 + $0x1b4] sm:$0xf]
      %v4408 = vld [vmem:[%s2 + $0x1b8] sm:$0xf]
      %v4409 = vld [vmem:[%s2 + $0x1bc] sm:$0xf]
      %v4410 = vld [vmem:[%s2 + $0x1c0] sm:$0xf]
      %v4411 = vld [vmem:[%s2 + $0x1c4] sm:$0xf]
      %v4412 = vld [vmem:[%s2 + $0x1c8] sm:$0xf]
      %v4413 = vld [vmem:[%s2 + $0x1cc] sm:$0xf]
      %v4414 = vld [vmem:[%s2 + $0x1d0] sm:$0xf]
      %v4415 = vld [vmem:[%s2 + $0x1d4] sm:$0xf]
      %v4416 = vld [vmem:[%s2 + $0x1d8] sm:$0xf]
      %v4417 = vld [vmem:[%s2 + $0x1dc] sm:$0xf]
      %v4418 = vld [vmem:[%s2 + $0x1e0] sm:$0xf]
      %v4419 = vld [vmem:[%s2 + $0x1e4] sm:$0xf]
      %v4420 = vld [vmem:[%s2 + $0x1e8] sm:$0xf]
      %v4421 = vld [vmem:[%s2 + $0x1ec] sm:$0xf]
      %v4422 = vld [vmem:[%s2 + $0x1f0] sm:$0xf]
      %v4423 = vld [vmem:[%s2 + $0x1f4] sm:$0xf]
      %v4424 = vld [vmem:[%s2 + $0x1f8] sm:$0xf]
      %v4425 = vld [vmem:[%s2 + $0x1fc] sm:$0xf]
      %v4426 = vld [vmem:[%s2 + $0x200] sm:$0xf]
      %v4427 = vld [vmem:[%s2 + $0x204] sm:$0xf]
      %v4428 = vld [vmem:[%s2 + $0x208] sm:$0xf]
      %v4429 = vld [vmem:[%s2 + $0x20c] sm:$0xf]
      %v4430 = vld [vmem:[%s2 + $0x210] sm:$0xf]
      %v4431 = vld [vmem:[%s2 + $0x214] sm:$0xf]
      %v4432 = vld [vmem:[%s2 + $0x218] sm:$0xf]
      %v4433 = vld [vmem:[%s2 + $0x21c] sm:$0xf]
      %v4434 = vld [vmem:[%s2 + $0x220] sm:$0xf]
      %v4435 = vld [vmem:[%s2 + $0x224] sm:$0xf]
      %v4436 = vld [vmem:[%s2 + $0x228] sm:$0xf]
      %v4437 = vld [vmem:[%s2 + $0x22c] sm:$0xf]
      %v4438 = vld [vmem:[%s2 + $0x230] sm:$0xf]
      %v4439 = vld [vmem:[%s2 + $0x234] sm:$0xf]
      %v4440 = vld [vmem:[%s2 + $0x238] sm:$0xf]
      %v4441 = vld [vmem:[%s2 + $0x23c] sm:$0xf]
      %v4442 = vld [vmem:[%s2 + $0x240] sm:$0xf]
      %v4443 = vld [vmem:[%s2 + $0x244] sm:$0xf]
      %v4444 = vld [vmem:[%s2 + $0x248] sm:$0xf]
      %v4445 = vld [vmem:[%s2 + $0x24c] sm:$0xf]
      %v4446 = vld [vmem:[%s2 + $0x250] sm:$0xf]
      %v4447 = vld [vmem:[%s2 + $0x254] sm:$0xf]
      %v4448 = vld [vmem:[%s2 + $0x258] sm:$0xf]
      %v4449 = vld [vmem:[%s2 + $0x25c] sm:$0xf]
      %v4450 = vld [vmem:[%s2 + $0x260] sm:$0xf]
      %v4451 = vld [vmem:[%s2 + $0x264] sm:$0xf]
      %v4452 = vld [vmem:[%s2 + $0x268] sm:$0xf]
      %v4453 = vld [vmem:[%s2 + $0x26c] sm:$0xf]
      %v4454 = vld [vmem:[%s2 + $0x270] sm:$0xf]
      %v4455 = vld [vmem:[%s2 + $0x274] sm:$0xf]
      %v4456 = vld [vmem:[%s2 + $0x278] sm:$0xf]
      %v4457 = vld [vmem:[%s2 + $0x27c] sm:$0xf]
      %v4458 = vld [vmem:[%s2 + $0x280] sm:$0xf]
      %v4459 = vld [vmem:[%s2 + $0x284] sm:$0xf]
      %v4460 = vld [vmem:[%s2 + $0x288] sm:$0xf]
      %v4461 = vld [vmem:[%s2 + $0x28c] sm:$0xf]
      %v4462 = vld [vmem:[%s2 + $0x290] sm:$0xf]
      %v4463 = vld [vmem:[%s2 + $0x294] sm:$0xf]
      %v4464 = vld [vmem:[%s2 + $0x298] sm:$0xf]
      %v4465 = vld [vmem:[%s2 + $0x29c] sm:$0xf]
      %v4466 = vld [vmem:[%s2 + $0x2a0] sm:$0xf]
      %v4467 = vld [vmem:[%s2 + $0x2a4] sm:$0xf]
      %v4468 = vld [vmem:[%s2 + $0x2a8] sm:$0xf]
      %v4469 = vld [vmem:[%s2 + $0x2ac] sm:$0xf]
      %v4470 = vld [vmem:[%s2 + $0x2b0] sm:$0xf]
      %v4471 = vld [vmem:[%s2 + $0x2b4] sm:$0xf]
      %v4472 = vld [vmem:[%s2 + $0x2b8] sm:$0xf]
      %v4473 = vld [vmem:[%s2 + $0x2bc] sm:$0xf]
      %v4474 = vld [vmem:[%s2 + $0x2c0] sm:$0xf]
      %v4475 = vld [vmem:[%s2 + $0x2c4] sm:$0xf]
      %v4476 = vld [vmem:[%s2 + $0x2c8] sm:$0xf]
      %v4477 = vld [vmem:[%s2 + $0x2cc] sm:$0xf]
      %v4478 = vld [vmem:[%s2 + $0x2d0] sm:$0xf]
      %v4479 = vld [vmem:[%s2 + $0x2d4] sm:$0xf]
      %v4480 = vld [vmem:[%s2 + $0x2d8] sm:$0xf]
      %v4481 = vld [vmem:[%s2 + $0x2dc] sm:$0xf]
      %v4482 = vld [vmem:[%s2 + $0x2e0] sm:$0xf]
      %v4483 = vld [vmem:[%s2 + $0x2e4] sm:$0xf]
      %v4484 = vld [vmem:[%s2 + $0x2e8] sm:$0xf]
      %v4485 = vld [vmem:[%s2 + $0x2ec] sm:$0xf]
      %v4486 = vld [vmem:[%s2 + $0x2f0] sm:$0xf]
      %v4487 = vld [vmem:[%s2 + $0x2f4] sm:$0xf]
      %v4488 = vld [vmem:[%s2 + $0x2f8] sm:$0xf]
      %v4489 = vld [vmem:[%s2 + $0x2fc] sm:$0xf]
      %v4490 = vld [vmem:[%s2 + $0x300] sm:$0xf]
      %v4491 = vld [vmem:[%s2 + $0x304] sm:$0xf]
      %v4492 = vld [vmem:[%s2 + $0x308] sm:$0xf]
      %v4493 = vld [vmem:[%s2 + $0x30c] sm:$0xf]
      %v4494 = vld [vmem:[%s2 + $0x310] sm:$0xf]
      %v4495 = vld [vmem:[%s2 + $0x314] sm:$0xf]
      %v4496 = vld [vmem:[%s2 + $0x318] sm:$0xf]
      %v4497 = vld [vmem:[%s2 + $0x31c] sm:$0xf]
      %v4498 = vld [vmem:[%s2 + $0x320] sm:$0xf]
      %v4499 = vld [vmem:[%s2 + $0x324] sm:$0xf]
      %v4500 = vld [vmem:[%s2 + $0x328] sm:$0xf]
      %v4501 = vld [vmem:[%s2 + $0x32c] sm:$0xf]
      %v4502 = vld [vmem:[%s2 + $0x330] sm:$0xf]
      %v4503 = vld [vmem:[%s2 + $0x334] sm:$0xf]
      %v4504 = vld [vmem:[%s2 + $0x338] sm:$0xf]
      %v4505 = vld [vmem:[%s2 + $0x33c] sm:$0xf]
      %v4506 = vld [vmem:[%s2 + $0x340] sm:$0xf]
      %v4507 = vld [vmem:[%s2 + $0x344] sm:$0xf]
      %v4508 = vld [vmem:[%s2 + $0x348] sm:$0xf]
      %v4509 = vld [vmem:[%s2 + $0x34c] sm:$0xf]
      %v4510 = vld [vmem:[%s2 + $0x350] sm:$0xf]
      %v4511 = vld [vmem:[%s2 + $0x354] sm:$0xf]
      %v4512 = vld [vmem:[%s2 + $0x358] sm:$0xf]
      %v4513 = vld [vmem:[%s2 + $0x35c] sm:$0xf]
      %v4514 = vld [vmem:[%s2 + $0x360] sm:$0xf]
      %v4515 = vld [vmem:[%s2 + $0x364] sm:$0xf]
      %v4516 = vld [vmem:[%s2 + $0x368] sm:$0xf]
      %v4517 = vld [vmem:[%s2 + $0x36c] sm:$0xf]
      %v4518 = vld [vmem:[%s2 + $0x370] sm:$0xf]
      %v4519 = vld [vmem:[%s2 + $0x374] sm:$0xf]
      %v4520 = vld [vmem:[%s2 + $0x378] sm:$0xf]
      %v4521 = vld [vmem:[%s2 + $0x37c] sm:$0xf]
      %v4522 = vld [vmem:[%s2 + $0x380] sm:$0xf]
      %v4523 = vld [vmem:[%s2 + $0x384] sm:$0xf]
      %v4524 = vld [vmem:[%s2 + $0x388] sm:$0xf]
      %v4525 = vld [vmem:[%s2 + $0x38c] sm:$0xf]
      %v4526 = vld [vmem:[%s2 + $0x390] sm:$0xf]
      %v4527 = vld [vmem:[%s2 + $0x394] sm:$0xf]
      %v4528 = vld [vmem:[%s2 + $0x398] sm:$0xf]
      %v4529 = vld [vmem:[%s2 + $0x39c] sm:$0xf]
      %v4530 = vld [vmem:[%s2 + $0x3a0] sm:$0xf]
      %v4531 = vld [vmem:[%s2 + $0x3a4] sm:$0xf]
      %v4532 = vld [vmem:[%s2 + $0x3a8] sm:$0xf]
      %v4533 = vld [vmem:[%s2 + $0x3ac] sm:$0xf]
      %v4534 = vld [vmem:[%s2 + $0x3b0] sm:$0xf]
      %v4535 = vld [vmem:[%s2 + $0x3b4] sm:$0xf]
      %v4536 = vld [vmem:[%s2 + $0x3b8] sm:$0xf]
      %v4537 = vld [vmem:[%s2 + $0x3bc] sm:$0xf]
      %v4538 = vld [vmem:[%s2 + $0x3c0] sm:$0xf]
      %v4539 = vld [vmem:[%s2 + $0x3c4] sm:$0xf]
      %v4540 = vld [vmem:[%s2 + $0x3c8] sm:$0xf]
      %v4541 = vld [vmem:[%s2 + $0x3cc] sm:$0xf]
      %v4542 = vld [vmem:[%s2 + $0x3d0] sm:$0xf]
      %v4543 = vld [vmem:[%s2 + $0x3d4] sm:$0xf]
      %v4544 = vld [vmem:[%s2 + $0x3d8] sm:$0xf]
      %v4545 = vld [vmem:[%s2 + $0x3dc] sm:$0xf]
      %v4546 = vld [vmem:[%s2 + $0x3e0] sm:$0xf]
      %v4547 = vld [vmem:[%s2 + $0x3e4] sm:$0xf]
      %v4548 = vld [vmem:[%s2 + $0x3e8] sm:$0xf]
      %v4549 = vld [vmem:[%s2 + $0x3ec] sm:$0xf]
      %v4550 = vld [vmem:[%s2 + $0x3f0] sm:$0xf]
      %v4551 = vld [vmem:[%s2 + $0x3f4] sm:$0xf]
      %v4552 = vld [vmem:[%s2 + $0x3f8] sm:$0xf]
      %v4553 = vld [vmem:[%s2 + $0x3fc] sm:$0xf]
      %v4554 = vld [vmem:[%s2 + $0x400] sm:$0xf]
      %v4555 = vld [vmem:[%s2 + $0x404] sm:$0xf]
      %v4556 = vld [vmem:[%s2 + $0x408] sm:$0xf]
      %v4557 = vld [vmem:[%s2 + $0x40c] sm:$0xf]
      %v4558 = vld [vmem:[%s2 + $0x410] sm:$0xf]
      %v4559 = vld [vmem:[%s2 + $0x414] sm:$0xf]
      %v4560 = vld [vmem:[%s2 + $0x418] sm:$0xf]
      %v4561 = vld [vmem:[%s2 + $0x41c] sm:$0xf]
      %v4562 = vld [vmem:[%s2 + $0x420] sm:$0xf]
      %v4563 = vld [vmem:[%s2 + $0x424] sm:$0xf]
      %v4564 = vld [vmem:[%s2 + $0x428] sm:$0xf]
      %v4565 = vld [vmem:[%s2 + $0x42c] sm:$0xf]
      %v4566 = vld [vmem:[%s2 + $0x430] sm:$0xf]
      %v4567 = vld [vmem:[%s2 + $0x434] sm:$0xf]
      %v4568 = vld [vmem:[%s2 + $0x438] sm:$0xf]
      %v4569 = vld [vmem:[%s2 + $0x43c] sm:$0xf]
      %v4570 = vld [vmem:[%s2 + $0x440] sm:$0xf]
      %v4571 = vld [vmem:[%s2 + $0x444] sm:$0xf]
      %v4572 = vld [vmem:[%s2 + $0x448] sm:$0xf]
      %v4573 = vld [vmem:[%s2 + $0x44c] sm:$0xf]
      %v4574 = vld [vmem:[%s2 + $0x450] sm:$0xf]
      %v4575 = vld [vmem:[%s2 + $0x454] sm:$0xf]
      %v4576 = vld [vmem:[%s2 + $0x458] sm:$0xf]
      %v4577 = vld [vmem:[%s2 + $0x45c] sm:$0xf]
      %v4578 = vld [vmem:[%s2 + $0x460] sm:$0xf]
      %v4579 = vld [vmem:[%s2 + $0x464] sm:$0xf]
      %v4580 = vld [vmem:[%s2 + $0x468] sm:$0xf]
      %v4581 = vld [vmem:[%s2 + $0x46c] sm:$0xf]
      %v4582 = vld [vmem:[%s2 + $0x470] sm:$0xf]
      %v4583 = vld [vmem:[%s2 + $0x474] sm:$0xf]
      %v4584 = vld [vmem:[%s2 + $0x478] sm:$0xf]
      %v4585 = vld [vmem:[%s2 + $0x47c] sm:$0xf]
      %v4586 = vld [vmem:[%s2 + $0x480] sm:$0xf]
      %v4587 = vld [vmem:[%s2 + $0x484] sm:$0xf]
      %v4588 = vld [vmem:[%s2 + $0x488] sm:$0xf]
      %v4589 = vld [vmem:[%s2 + $0x48c] sm:$0xf]
      %v4590 = vld [vmem:[%s2 + $0x490] sm:$0xf]
      %v4591 = vld [vmem:[%s2 + $0x494] sm:$0xf]
      %v4592 = vld [vmem:[%s2 + $0x498] sm:$0xf]
      %v4593 = vld [vmem:[%s2 + $0x49c] sm:$0xf]
      %v4594 = vld [vmem:[%s2 + $0x4a0] sm:$0xf]
      %v4595 = vld [vmem:[%s2 + $0x4a4] sm:$0xf]
      %v4596 = vld [vmem:[%s2 + $0x4a8] sm:$0xf]
      %v4597 = vld [vmem:[%s2 + $0x4ac] sm:$0xf]
      %v4598 = vld [vmem:[%s2 + $0x4b0] sm:$0xf]
      %v4599 = vld [vmem:[%s2 + $0x4b4] sm:$0xf]
      %v4600 = vld [vmem:[%s2 + $0x4b8] sm:$0xf]
      %v4601 = vld [vmem:[%s2 + $0x4bc] sm:$0xf]
      %v4602 = vld [vmem:[%s2 + $0x4c0] sm:$0xf]
      %v4603 = vld [vmem:[%s2 + $0x4c4] sm:$0xf]
      %v4604 = vld [vmem:[%s2 + $0x4c8] sm:$0xf]
      %v4605 = vld [vmem:[%s2 + $0x4cc] sm:$0xf]
      %v4606 = vld [vmem:[%s2 + $0x4d0] sm:$0xf]
      %v4607 = vld [vmem:[%s2 + $0x4d4] sm:$0xf]
      %v4608 = vld [vmem:[%s2 + $0x4d8] sm:$0xf]
      %v4609 = vld [vmem:[%s2 + $0x4dc] sm:$0xf]
      %v4610 = vld [vmem:[%s2 + $0x4e0] sm:$0xf]
      %v4611 = vld [vmem:[%s2 + $0x4e4] sm:$0xf]
      %v4612 = vld [vmem:[%s2 + $0x4e8] sm:$0xf]
      %v4613 = vld [vmem:[%s2 + $0x4ec] sm:$0xf]
      %v4614 = vld [vmem:[%s2 + $0x4f0] sm:$0xf]
      %v4615 = vld [vmem:[%s2 + $0x4f4] sm:$0xf]
      %v4616 = vld [vmem:[%s2 + $0x4f8] sm:$0xf]
      %v4617 = vld [vmem:[%s2 + $0x4fc] sm:$0xf]
      %v4618 = vld [vmem:[%s2 + $0x500] sm:$0xf]
      %v4619 = vld [vmem:[%s2 + $0x504] sm:$0xf]
      %v4620 = vld [vmem:[%s2 + $0x508] sm:$0xf]
      %v4621 = vld [vmem:[%s2 + $0x50c] sm:$0xf]
      %v4622 = vld [vmem:[%s2 + $0x510] sm:$0xf]
      %v4623 = vld [vmem:[%s2 + $0x514] sm:$0xf]
      %v4624 = vld [vmem:[%s2 + $0x518] sm:$0xf]
      %v4625 = vld [vmem:[%s2 + $0x51c] sm:$0xf]
      %v4626 = vld [vmem:[%s2 + $0x520] sm:$0xf]
      %v4627 = vld [vmem:[%s2 + $0x524] sm:$0xf]
      %v4628 = vld [vmem:[%s2 + $0x528] sm:$0xf]
      %v4629 = vld [vmem:[%s2 + $0x52c] sm:$0xf]
      %v4630 = vld [vmem:[%s2 + $0x530] sm:$0xf]
      %v4631 = vld [vmem:[%s2 + $0x534] sm:$0xf]
      %v4632 = vld [vmem:[%s2 + $0x538] sm:$0xf]
      %v4633 = vld [vmem:[%s2 + $0x53c] sm:$0xf]
      %v4634 = vld [vmem:[%s2 + $0x540] sm:$0xf]
      %v4635 = vld [vmem:[%s2 + $0x544] sm:$0xf]
      %v4636 = vld [vmem:[%s2 + $0x548] sm:$0xf]
      %v4637 = vld [vmem:[%s2 + $0x54c] sm:$0xf]
      %v4638 = vld [vmem:[%s2 + $0x550] sm:$0xf]
      %v4639 = vld [vmem:[%s2 + $0x554] sm:$0xf]
      %v4640 = vld [vmem:[%s2 + $0x558] sm:$0xf]
      %v4641 = vld [vmem:[%s2 + $0x55c] sm:$0xf]
      %v4642 = vld [vmem:[%s2 + $0x560] sm:$0xf]
      %v4643 = vld [vmem:[%s2 + $0x564] sm:$0xf]
      %v4644 = vld [vmem:[%s2 + $0x568] sm:$0xf]
      %v4645 = vld [vmem:[%s2 + $0x56c] sm:$0xf]
      %v4646 = vld [vmem:[%s2 + $0x570] sm:$0xf]
      %v4647 = vld [vmem:[%s2 + $0x574] sm:$0xf]
      %v4648 = vld [vmem:[%s2 + $0x578] sm:$0xf]
      %v4649 = vld [vmem:[%s2 + $0x57c] sm:$0xf]
      %v4650 = vld [vmem:[%s2 + $0x580] sm:$0xf]
      %v4651 = vld [vmem:[%s2 + $0x584] sm:$0xf]
      %v4652 = vld [vmem:[%s2 + $0x588] sm:$0xf]
      %v4653 = vld [vmem:[%s2 + $0x58c] sm:$0xf]
      %v4654 = vld [vmem:[%s2 + $0x590] sm:$0xf]
      %v4655 = vld [vmem:[%s2 + $0x594] sm:$0xf]
      %v4656 = vld [vmem:[%s2 + $0x598] sm:$0xf]
      %v4657 = vld [vmem:[%s2 + $0x59c] sm:$0xf]
      %v4658 = vld [vmem:[%s2 + $0x5a0] sm:$0xf]
      %v4659 = vld [vmem:[%s2 + $0x5a4] sm:$0xf]
      %v4660 = vld [vmem:[%s2 + $0x5a8] sm:$0xf]
      %v4661 = vld [vmem:[%s2 + $0x5ac] sm:$0xf]
      %v4662 = vld [vmem:[%s2 + $0x5b0] sm:$0xf]
      %v4663 = vld [vmem:[%s2 + $0x5b4] sm:$0xf]
      %v4664 = vld [vmem:[%s2 + $0x5b8] sm:$0xf]
      %v4665 = vld [vmem:[%s2 + $0x5bc] sm:$0xf]
      %v4666 = vld [vmem:[%s2 + $0x5c0] sm:$0xf]
      %v4667 = vld [vmem:[%s2 + $0x5c4] sm:$0xf]
      %v4668 = vld [vmem:[%s2 + $0x5c8] sm:$0xf]
      %v4669 = vld [vmem:[%s2 + $0x5cc] sm:$0xf]
      %v4670 = vld [vmem:[%s2 + $0x5d0] sm:$0xf]
      %v4671 = vld [vmem:[%s2 + $0x5d4] sm:$0xf]
      %v4672 = vld [vmem:[%s2 + $0x5d8] sm:$0xf]
      %v4673 = vld [vmem:[%s2 + $0x5dc] sm:$0xf]
      %v4674 = vld [vmem:[%s2 + $0x5e0] sm:$0xf]
      %v4675 = vld [vmem:[%s2 + $0x5e4] sm:$0xf]
      %v4676 = vld [vmem:[%s2 + $0x5e8] sm:$0xf]
      %v4677 = vld [vmem:[%s2 + $0x5ec] sm:$0xf]
      %v4678 = vld [vmem:[%s2 + $0x5f0] sm:$0xf]
      %v4679 = vld [vmem:[%s2 + $0x5f4] sm:$0xf]
      %v4680 = vld [vmem:[%s2 + $0x5f8] sm:$0xf]
      %v4681 = vld [vmem:[%s2 + $0x5fc] sm:$0xf]
      %v4682 = vld [vmem:[%s2 + $0x600] sm:$0xf]
      %v4683 = vld [vmem:[%s2 + $0x604] sm:$0xf]
      %v4684 = vld [vmem:[%s2 + $0x608] sm:$0xf]
      %v4685 = vld [vmem:[%s2 + $0x60c] sm:$0xf]
      %v4686 = vld [vmem:[%s2 + $0x610] sm:$0xf]
      %v4687 = vld [vmem:[%s2 + $0x614] sm:$0xf]
      %v4688 = vld [vmem:[%s2 + $0x618] sm:$0xf]
      %v4689 = vld [vmem:[%s2 + $0x61c] sm:$0xf]
      %v4690 = vld [vmem:[%s2 + $0x620] sm:$0xf]
      %v4691 = vld [vmem:[%s2 + $0x624] sm:$0xf]
      %v4692 = vld [vmem:[%s2 + $0x628] sm:$0xf]
      %v4693 = vld [vmem:[%s2 + $0x62c] sm:$0xf]
      %v4694 = vld [vmem:[%s2 + $0x630] sm:$0xf]
      %v4695 = vld [vmem:[%s2 + $0x634] sm:$0xf]
      %v4696 = vld [vmem:[%s2 + $0x638] sm:$0xf]
      %v4697 = vld [vmem:[%s2 + $0x63c] sm:$0xf]
      %v4802 = vunpack.c.l.b16 %v4194
      %v4803 = vunpack.c.h.b16 %v4194
      %v4804 = vunpack.c.l.b16 %v4195
      %v4805 = vunpack.c.h.b16 %v4195
      %v4806 = vunpack.c.l.b16 %v4196
      %v4807 = vunpack.c.h.b16 %v4196
      %v4808 = vunpack.c.l.b16 %v4197
      %v4809 = vunpack.c.h.b16 %v4197
      %v4810 = vunpack.c.l.b16 %v4198
      %v4811 = vunpack.c.h.b16 %v4198
      %v4812 = vunpack.c.l.b16 %v4199
      %v4813 = vunpack.c.h.b16 %v4199
      %v4814 = vunpack.c.l.b16 %v4200
      %v4815 = vunpack.c.h.b16 %v4200
      %v4816 = vunpack.c.l.b16 %v4201
      %v4817 = vunpack.c.h.b16 %v4201
      %v4818 = vunpack.c.l.b16 %v4202
      %v4819 = vunpack.c.h.b16 %v4202
      %v4820 = vunpack.c.l.b16 %v4203
      %v4821 = vunpack.c.h.b16 %v4203
      %v4822 = vunpack.c.l.b16 %v4204
      %v4823 = vunpack.c.h.b16 %v4204
      %v4824 = vunpack.c.l.b16 %v4205
      %v4825 = vunpack.c.h.b16 %v4205
      %v4826 = vunpack.c.l.b16 %v4206
      %v4827 = vunpack.c.l.b16 %v4207
      %v4828 = vunpack.c.h.b16 %v4207
      %v4829 = vunpack.c.l.b16 %v4208
      %v4830 = vunpack.c.h.b16 %v4208
      %v4831 = vunpack.c.l.b16 %v4209
      %v4832 = vunpack.c.h.b16 %v4209
      %v4833 = vunpack.c.l.b16 %v4210
      %v4834 = vunpack.c.h.b16 %v4210
      %v4835 = vunpack.c.l.b16 %v4211
      %v4836 = vunpack.c.h.b16 %v4211
      %v4837 = vunpack.c.l.b16 %v4212
      %v4838 = vunpack.c.h.b16 %v4212
      %v4839 = vunpack.c.l.b16 %v4213
      %v4840 = vunpack.c.h.b16 %v4213
      %v4841 = vunpack.c.l.b16 %v4214
      %v4842 = vunpack.c.h.b16 %v4214
      %v4843 = vunpack.c.l.b16 %v4215
      %v4844 = vunpack.c.h.b16 %v4215
      %v4845 = vunpack.c.l.b16 %v4216
      %v4846 = vunpack.c.h.b16 %v4216
      %v4847 = vunpack.c.l.b16 %v4217
      %v4848 = vunpack.c.h.b16 %v4217
      %v4849 = vunpack.c.l.b16 %v4218
      %v4850 = vunpack.c.h.b16 %v4218
      %v4851 = vunpack.c.l.b16 %v4219
      %v4852 = vunpack.c.l.b16 %v4220
      %v4853 = vunpack.c.h.b16 %v4220
      %v4854 = vunpack.c.l.b16 %v4221
      %v4855 = vunpack.c.h.b16 %v4221
      %v4856 = vunpack.c.l.b16 %v4222
      %v4857 = vunpack.c.h.b16 %v4222
      %v4858 = vunpack.c.l.b16 %v4223
      %v4859 = vunpack.c.h.b16 %v4223
      %v4860 = vunpack.c.l.b16 %v4224
      %v4861 = vunpack.c.h.b16 %v4224
      %v4862 = vunpack.c.l.b16 %v4225
      %v4863 = vunpack.c.h.b16 %v4225
      %v4864 = vunpack.c.l.b16 %v4226
      %v4865 = vunpack.c.h.b16 %v4226
      %v4866 = vunpack.c.l.b16 %v4227
      %v4867 = vunpack.c.h.b16 %v4227
      %v4868 = vunpack.c.l.b16 %v4228
      %v4869 = vunpack.c.h.b16 %v4228
      %v4870 = vunpack.c.l.b16 %v4229
      %v4871 = vunpack.c.h.b16 %v4229
      %v4872 = vunpack.c.l.b16 %v4230
      %v4873 = vunpack.c.h.b16 %v4230
      %v4874 = vunpack.c.l.b16 %v4231
      %v4875 = vunpack.c.h.b16 %v4231
      %v4876 = vunpack.c.l.b16 %v4232
      %v4877 = vunpack.c.l.b16 %v4233
      %v4878 = vunpack.c.h.b16 %v4233
      %v4879 = vunpack.c.l.b16 %v4234
      %v4880 = vunpack.c.h.b16 %v4234
      %v4881 = vunpack.c.l.b16 %v4235
      %v4882 = vunpack.c.h.b16 %v4235
      %v4883 = vunpack.c.l.b16 %v4236
      %v4884 = vunpack.c.h.b16 %v4236
      %v4885 = vunpack.c.l.b16 %v4237
      %v4886 = vunpack.c.h.b16 %v4237
      %v4887 = vunpack.c.l.b16 %v4238
      %v4888 = vunpack.c.h.b16 %v4238
      %v4889 = vunpack.c.l.b16 %v4239
      %v4890 = vunpack.c.h.b16 %v4239
      %v4891 = vunpack.c.l.b16 %v4240
      %v4892 = vunpack.c.h.b16 %v4240
      %v4893 = vunpack.c.l.b16 %v4241
      %v4894 = vunpack.c.h.b16 %v4241
      %v4895 = vunpack.c.l.b16 %v4242
      %v4896 = vunpack.c.h.b16 %v4242
      %v4897 = vunpack.c.l.b16 %v4243
      %v4898 = vunpack.c.h.b16 %v4243
      %v4899 = vunpack.c.l.b16 %v4244
      %v4900 = vunpack.c.h.b16 %v4244
      %v4901 = vunpack.c.l.b16 %v4245
      %v4902 = vunpack.c.l.b16 %v4246
      %v4903 = vunpack.c.h.b16 %v4246
      %v4904 = vunpack.c.l.b16 %v4247
      %v4905 = vunpack.c.h.b16 %v4247
      %v4906 = vunpack.c.l.b16 %v4248
      %v4907 = vunpack.c.h.b16 %v4248
      %v4908 = vunpack.c.l.b16 %v4249
      %v4909 = vunpack.c.h.b16 %v4249
      %v4910 = vunpack.c.l.b16 %v4250
      %v4911 = vunpack.c.h.b16 %v4250
      %v4912 = vunpack.c.l.b16 %v4251
      %v4913 = vunpack.c.h.b16 %v4251
      %v4914 = vunpack.c.l.b16 %v4252
      %v4915 = vunpack.c.h.b16 %v4252
      %v4916 = vunpack.c.l.b16 %v4253
      %v4917 = vunpack.c.h.b16 %v4253
      %v4918 = vunpack.c.l.b16 %v4254
      %v4919 = vunpack.c.h.b16 %v4254
      %v4920 = vunpack.c.l.b16 %v4255
      %v4921 = vunpack.c.h.b16 %v4255
      %v4922 = vunpack.c.l.b16 %v4256
      %v4923 = vunpack.c.h.b16 %v4256
      %v4924 = vunpack.c.l.b16 %v4257
      %v4925 = vunpack.c.h.b16 %v4257
      %v4926 = vunpack.c.l.b16 %v4258
      %v4927 = vunpack.c.l.b16 %v4259
      %v4928 = vunpack.c.h.b16 %v4259
      %v4929 = vunpack.c.l.b16 %v4260
      %v4930 = vunpack.c.h.b16 %v4260
      %v4931 = vunpack.c.l.b16 %v4261
      %v4932 = vunpack.c.h.b16 %v4261
      %v4933 = vunpack.c.l.b16 %v4262
      %v4934 = vunpack.c.h.b16 %v4262
      %v4935 = vunpack.c.l.b16 %v4263
      %v4936 = vunpack.c.h.b16 %v4263
      %v4937 = vunpack.c.l.b16 %v4264
      %v4938 = vunpack.c.h.b16 %v4264
      %v4939 = vunpack.c.l.b16 %v4265
      %v4940 = vunpack.c.h.b16 %v4265
      %v4941 = vunpack.c.l.b16 %v4266
      %v4942 = vunpack.c.h.b16 %v4266
      %v4943 = vunpack.c.l.b16 %v4267
      %v4944 = vunpack.c.h.b16 %v4267
      %v4945 = vunpack.c.l.b16 %v4268
      %v4946 = vunpack.c.h.b16 %v4268
      %v4947 = vunpack.c.l.b16 %v4269
      %v4948 = vunpack.c.h.b16 %v4269
      %v4949 = vunpack.c.l.b16 %v4270
      %v4950 = vunpack.c.h.b16 %v4270
      %v4951 = vunpack.c.l.b16 %v4271
      %v4952 = vunpack.c.l.b16 %v4272
      %v4953 = vunpack.c.h.b16 %v4272
      %v4954 = vunpack.c.l.b16 %v4273
      %v4955 = vunpack.c.h.b16 %v4273
      %v4956 = vunpack.c.l.b16 %v4274
      %v4957 = vunpack.c.h.b16 %v4274
      %v4958 = vunpack.c.l.b16 %v4275
      %v4959 = vunpack.c.h.b16 %v4275
      %v4960 = vunpack.c.l.b16 %v4276
      %v4961 = vunpack.c.h.b16 %v4276
      %v4962 = vunpack.c.l.b16 %v4277
      %v4963 = vunpack.c.h.b16 %v4277
      %v4964 = vunpack.c.l.b16 %v4278
      %v4965 = vunpack.c.h.b16 %v4278
      %v4966 = vunpack.c.l.b16 %v4279
      %v4967 = vunpack.c.h.b16 %v4279
      %v4968 = vunpack.c.l.b16 %v4280
      %v4969 = vunpack.c.h.b16 %v4280
      %v4970 = vunpack.c.l.b16 %v4281
      %v4971 = vunpack.c.h.b16 %v4281
      %v4972 = vunpack.c.l.b16 %v4282
      %v4973 = vunpack.c.h.b16 %v4282
      %v4974 = vunpack.c.l.b16 %v4283
      %v4975 = vunpack.c.h.b16 %v4283
      %v4976 = vunpack.c.l.b16 %v4284
      %v4977 = vunpack.c.l.b16 %v4285
      %v4978 = vunpack.c.h.b16 %v4285
      %v4979 = vunpack.c.l.b16 %v4286
      %v4980 = vunpack.c.h.b16 %v4286
      %v4981 = vunpack.c.l.b16 %v4287
      %v4982 = vunpack.c.h.b16 %v4287
      %v4983 = vunpack.c.l.b16 %v4288
      %v4984 = vunpack.c.h.b16 %v4288
      %v4985 = vunpack.c.l.b16 %v4289
      %v4986 = vunpack.c.h.b16 %v4289
      %v4987 = vunpack.c.l.b16 %v4290
      %v4988 = vunpack.c.h.b16 %v4290
      %v4989 = vunpack.c.l.b16 %v4291
      %v4990 = vunpack.c.h.b16 %v4291
      %v4991 = vunpack.c.l.b16 %v4292
      %v4992 = vunpack.c.h.b16 %v4292
      %v4993 = vunpack.c.l.b16 %v4293
      %v4994 = vunpack.c.h.b16 %v4293
      %v4995 = vunpack.c.l.b16 %v4294
      %v4996 = vunpack.c.h.b16 %v4294
      %v4997 = vunpack.c.l.b16 %v4295
      %v4998 = vunpack.c.h.b16 %v4295
      %v4999 = vunpack.c.l.b16 %v4296
      %v5000 = vunpack.c.h.b16 %v4296
      %v5001 = vunpack.c.l.b16 %v4297
      %v5002 = vpack.c.b16 %v4827, %v4802
      %v5003 = vpack.c.b16 %v4828, %v4803
      %v5004 = vpack.c.b16 %v4829, %v4804
      %v5005 = vpack.c.b16 %v4830, %v4805
      %v5006 = vpack.c.b16 %v4831, %v4806
      %v5007 = vpack.c.b16 %v4832, %v4807
      %v5008 = vpack.c.b16 %v4833, %v4808
      %v5009 = vpack.c.b16 %v4834, %v4809
      %v5010 = vpack.c.b16 %v4835, %v4810
      %v5011 = vpack.c.b16 %v4836, %v4811
      %v5012 = vpack.c.b16 %v4837, %v4812
      %v5013 = vpack.c.b16 %v4838, %v4813
      %v5014 = vpack.c.b16 %v4839, %v4814
      %v5015 = vpack.c.b16 %v4840, %v4815
      %v5016 = vpack.c.b16 %v4841, %v4816
      %v5017 = vpack.c.b16 %v4842, %v4817
      %v5018 = vpack.c.b16 %v4843, %v4818
      %v5019 = vpack.c.b16 %v4844, %v4819
      %v5020 = vpack.c.b16 %v4845, %v4820
      %v5021 = vpack.c.b16 %v4846, %v4821
      %v5022 = vpack.c.b16 %v4847, %v4822
      %v5023 = vpack.c.b16 %v4848, %v4823
      %v5024 = vpack.c.b16 %v4849, %v4824
      %v5025 = vpack.c.b16 %v4850, %v4825
      %v5026 = vpack.c.b16 %v4851, %v4826
      %v5027 = vpack.c.b16 %v4877, %v4852
      %v5028 = vpack.c.b16 %v4878, %v4853
      %v5029 = vpack.c.b16 %v4879, %v4854
      %v5030 = vpack.c.b16 %v4880, %v4855
      %v5031 = vpack.c.b16 %v4881, %v4856
      %v5032 = vpack.c.b16 %v4882, %v4857
      %v5033 = vpack.c.b16 %v4883, %v4858
      %v5034 = vpack.c.b16 %v4884, %v4859
      %v5035 = vpack.c.b16 %v4885, %v4860
      %v5036 = vpack.c.b16 %v4886, %v4861
      %v5037 = vpack.c.b16 %v4887, %v4862
      %v5038 = vpack.c.b16 %v4888, %v4863
      %v5039 = vpack.c.b16 %v4889, %v4864
      %v5040 = vpack.c.b16 %v4890, %v4865
      %v5041 = vpack.c.b16 %v4891, %v4866
      %v5042 = vpack.c.b16 %v4892, %v4867
      %v5043 = vpack.c.b16 %v4893, %v4868
      %v5044 = vpack.c.b16 %v4894, %v4869
      %v5045 = vpack.c.b16 %v4895, %v4870
      %v5046 = vpack.c.b16 %v4896, %v4871
      %v5047 = vpack.c.b16 %v4897, %v4872
      %v5048 = vpack.c.b16 %v4898, %v4873
      %v5049 = vpack.c.b16 %v4899, %v4874
      %v5050 = vpack.c.b16 %v4900, %v4875
      %v5051 = vpack.c.b16 %v4901, %v4876
      %v5052 = vpack.c.b16 %v4927, %v4902
      %v5053 = vpack.c.b16 %v4928, %v4903
      %v5054 = vpack.c.b16 %v4929, %v4904
      %v5055 = vpack.c.b16 %v4930, %v4905
      %v5056 = vpack.c.b16 %v4931, %v4906
      %v5057 = vpack.c.b16 %v4932, %v4907
      %v5058 = vpack.c.b16 %v4933, %v4908
      %v5059 = vpack.c.b16 %v4934, %v4909
      %v5060 = vpack.c.b16 %v4935, %v4910
      %v5061 = vpack.c.b16 %v4936, %v4911
      %v5062 = vpack.c.b16 %v4937, %v4912
      %v5063 = vpack.c.b16 %v4938, %v4913
      %v5064 = vpack.c.b16 %v4939, %v4914
      %v5065 = vpack.c.b16 %v4940, %v4915
      %v5066 = vpack.c.b16 %v4941, %v4916
      %v5067 = vpack.c.b16 %v4942, %v4917
      %v5068 = vpack.c.b16 %v4943, %v4918
      %v5069 = vpack.c.b16 %v4944, %v4919
      %v5070 = vpack.c.b16 %v4945, %v4920
      %v5071 = vpack.c.b16 %v4946, %v4921
      %v5072 = vpack.c.b16 %v4947, %v4922
      %v5073 = vpack.c.b16 %v4948, %v4923
      %v5074 = vpack.c.b16 %v4949, %v4924
      %v5075 = vpack.c.b16 %v4950, %v4925
      %v5076 = vpack.c.b16 %v4951, %v4926
      %v5077 = vpack.c.b16 %v4977, %v4952
      %v5078 = vpack.c.b16 %v4978, %v4953
      %v5079 = vpack.c.b16 %v4979, %v4954
      %v5080 = vpack.c.b16 %v4980, %v4955
      %v5081 = vpack.c.b16 %v4981, %v4956
      %v5082 = vpack.c.b16 %v4982, %v4957
      %v5083 = vpack.c.b16 %v4983, %v4958
      %v5084 = vpack.c.b16 %v4984, %v4959
      %v5085 = vpack.c.b16 %v4985, %v4960
      %v5086 = vpack.c.b16 %v4986, %v4961
      %v5087 = vpack.c.b16 %v4987, %v4962
      %v5088 = vpack.c.b16 %v4988, %v4963
      %v5089 = vpack.c.b16 %v4989, %v4964
      %v5090 = vpack.c.b16 %v4990, %v4965
      %v5091 = vpack.c.b16 %v4991, %v4966
      %v5092 = vpack.c.b16 %v4992, %v4967
      %v5093 = vpack.c.b16 %v4993, %v4968
      %v5094 = vpack.c.b16 %v4994, %v4969
      %v5095 = vpack.c.b16 %v4995, %v4970
      %v5096 = vpack.c.b16 %v4996, %v4971
      %v5097 = vpack.c.b16 %v4997, %v4972
      %v5098 = vpack.c.b16 %v4998, %v4973
      %v5099 = vpack.c.b16 %v4999, %v4974
      %v5100 = vpack.c.b16 %v5000, %v4975
      %v5101 = vpack.c.b16 %v5001, %v4976
      %v5602 = vunpack.c.l.b16 %v4298
      %v5603 = vunpack.c.l.b16 %v4299
      %v5604 = vunpack.c.l.b16 %v4300
      %v5605 = vunpack.c.l.b16 %v4301
      %v5606 = vunpack.c.l.b16 %v4302
      %v5607 = vunpack.c.l.b16 %v4303
      %v5608 = vunpack.c.l.b16 %v4304
      %v5609 = vunpack.c.l.b16 %v4305
      %v5610 = vunpack.c.l.b16 %v4306
      %v5611 = vunpack.c.l.b16 %v4307
      %v5612 = vunpack.c.l.b16 %v4308
      %v5613 = vunpack.c.l.b16 %v4309
      %v5614 = vunpack.c.l.b16 %v4310
      %v5615 = vunpack.c.l.b16 %v4311
      %v5616 = vunpack.c.l.b16 %v4312
      %v5617 = vunpack.c.l.b16 %v4313
      %v5618 = vunpack.c.l.b16 %v4314
      %v5619 = vunpack.c.l.b16 %v4315
      %v5620 = vunpack.c.l.b16 %v4316
      %v5621 = vunpack.c.l.b16 %v4317
      %v5622 = vunpack.c.l.b16 %v4318
      %v5623 = vunpack.c.l.b16 %v4319
      %v5624 = vunpack.c.l.b16 %v4320
      %v5625 = vunpack.c.l.b16 %v4321
      %v5626 = vunpack.c.l.b16 %v4322
      %v5627 = vunpack.c.l.b16 %v4323
      %v5628 = vunpack.c.l.b16 %v4324
      %v5629 = vunpack.c.l.b16 %v4325
      %v5630 = vunpack.c.l.b16 %v4326
      %v5631 = vunpack.c.l.b16 %v4327
      %v5632 = vunpack.c.l.b16 %v4328
      %v5633 = vunpack.c.l.b16 %v4329
      %v5634 = vunpack.c.l.b16 %v4330
      %v5635 = vunpack.c.l.b16 %v4331
      %v5636 = vunpack.c.l.b16 %v4332
      %v5637 = vunpack.c.l.b16 %v4333
      %v5638 = vunpack.c.l.b16 %v4334
      %v5639 = vunpack.c.l.b16 %v4335
      %v5640 = vunpack.c.l.b16 %v4336
      %v5641 = vunpack.c.l.b16 %v4337
      %v5642 = vunpack.c.l.b16 %v4338
      %v5643 = vunpack.c.l.b16 %v4339
      %v5644 = vunpack.c.l.b16 %v4340
      %v5645 = vunpack.c.l.b16 %v4341
      %v5646 = vunpack.c.l.b16 %v4342
      %v5647 = vunpack.c.l.b16 %v4343
      %v5648 = vunpack.c.l.b16 %v4344
      %v5649 = vunpack.c.l.b16 %v4345
      %v5650 = vunpack.c.l.b16 %v4346
      %v5651 = vunpack.c.l.b16 %v4347
      %v5652 = vunpack.c.l.b16 %v4348
      %v5653 = vunpack.c.l.b16 %v4349
      %v5654 = vunpack.c.l.b16 %v4350
      %v5655 = vunpack.c.l.b16 %v4351
      %v5656 = vunpack.c.l.b16 %v4352
      %v5657 = vunpack.c.l.b16 %v4353
      %v5658 = vunpack.c.l.b16 %v4354
      %v5659 = vunpack.c.l.b16 %v4355
      %v5660 = vunpack.c.l.b16 %v4356
      %v5661 = vunpack.c.l.b16 %v4357
      %v5662 = vunpack.c.l.b16 %v4358
      %v5663 = vunpack.c.l.b16 %v4359
      %v5664 = vunpack.c.l.b16 %v4360
      %v5665 = vunpack.c.l.b16 %v4361
      %v5666 = vunpack.c.l.b16 %v4362
      %v5667 = vunpack.c.l.b16 %v4363
      %v5668 = vunpack.c.l.b16 %v4364
      %v5669 = vunpack.c.l.b16 %v4365
      %v5670 = vunpack.c.l.b16 %v4366
      %v5671 = vunpack.c.l.b16 %v4367
      %v5672 = vunpack.c.l.b16 %v4368
      %v5673 = vunpack.c.l.b16 %v4369
      %v5674 = vunpack.c.l.b16 %v4370
      %v5675 = vunpack.c.l.b16 %v4371
      %v5676 = vunpack.c.l.b16 %v4372
      %v5677 = vunpack.c.l.b16 %v4373
      %v5678 = vunpack.c.l.b16 %v4374
      %v5679 = vunpack.c.l.b16 %v4375
      %v5680 = vunpack.c.l.b16 %v4376
      %v5681 = vunpack.c.l.b16 %v4377
      %v5682 = vunpack.c.l.b16 %v4378
      %v5683 = vunpack.c.l.b16 %v4379
      %v5684 = vunpack.c.l.b16 %v4380
      %v5685 = vunpack.c.l.b16 %v4381
      %v5686 = vunpack.c.l.b16 %v4382
      %v5687 = vunpack.c.l.b16 %v4383
      %v5688 = vunpack.c.l.b16 %v4384
      %v5689 = vunpack.c.l.b16 %v4385
      %v5690 = vunpack.c.l.b16 %v4386
      %v5691 = vunpack.c.l.b16 %v4387
      %v5692 = vunpack.c.l.b16 %v4388
      %v5693 = vunpack.c.l.b16 %v4389
      %v5694 = vunpack.c.l.b16 %v4390
      %v5695 = vunpack.c.l.b16 %v4391
      %v5696 = vunpack.c.l.b16 %v4392
      %v5697 = vunpack.c.l.b16 %v4393
      %v5698 = vunpack.c.l.b16 %v4394
      %v5699 = vunpack.c.l.b16 %v4395
      %v5700 = vunpack.c.l.b16 %v4396
      %v5701 = vunpack.c.l.b16 %v4397
      %v5702 = vunpack.c.l.b16 %v4398
      %v5703 = vunpack.c.l.b16 %v4399
      %v5704 = vunpack.c.l.b16 %v4400
      %v5705 = vunpack.c.l.b16 %v4401
      %v5706 = vunpack.c.l.b16 %v4402
      %v5707 = vunpack.c.l.b16 %v4403
      %v5708 = vunpack.c.l.b16 %v4404
      %v5709 = vunpack.c.l.b16 %v4405
      %v5710 = vunpack.c.l.b16 %v4406
      %v5711 = vunpack.c.l.b16 %v4407
      %v5712 = vunpack.c.l.b16 %v4408
      %v5713 = vunpack.c.l.b16 %v4409
      %v5714 = vunpack.c.l.b16 %v4410
      %v5715 = vunpack.c.l.b16 %v4411
      %v5716 = vunpack.c.l.b16 %v4412
      %v5717 = vunpack.c.l.b16 %v4413
      %v5718 = vunpack.c.l.b16 %v4414
      %v5719 = vunpack.c.l.b16 %v4415
      %v5720 = vunpack.c.l.b16 %v4416
      %v5721 = vunpack.c.l.b16 %v4417
      %v5722 = vunpack.c.l.b16 %v4418
      %v5723 = vunpack.c.l.b16 %v4419
      %v5724 = vunpack.c.l.b16 %v4420
      %v5725 = vunpack.c.l.b16 %v4421
      %v5726 = vunpack.c.l.b16 %v4422
      %v5727 = vunpack.c.l.b16 %v4423
      %v5728 = vunpack.c.l.b16 %v4424
      %v5729 = vunpack.c.l.b16 %v4425
      %v5730 = vunpack.c.l.b16 %v4426
      %v5731 = vunpack.c.l.b16 %v4427
      %v5732 = vunpack.c.l.b16 %v4428
      %v5733 = vunpack.c.l.b16 %v4429
      %v5734 = vunpack.c.l.b16 %v4430
      %v5735 = vunpack.c.l.b16 %v4431
      %v5736 = vunpack.c.l.b16 %v4432
      %v5737 = vunpack.c.l.b16 %v4433
      %v5738 = vunpack.c.l.b16 %v4434
      %v5739 = vunpack.c.l.b16 %v4435
      %v5740 = vunpack.c.l.b16 %v4436
      %v5741 = vunpack.c.l.b16 %v4437
      %v5742 = vunpack.c.l.b16 %v4438
      %v5743 = vunpack.c.l.b16 %v4439
      %v5744 = vunpack.c.l.b16 %v4440
      %v5745 = vunpack.c.l.b16 %v4441
      %v5746 = vunpack.c.l.b16 %v4442
      %v5747 = vunpack.c.l.b16 %v4443
      %v5748 = vunpack.c.l.b16 %v4444
      %v5749 = vunpack.c.l.b16 %v4445
      %v5750 = vunpack.c.l.b16 %v4446
      %v5751 = vunpack.c.l.b16 %v4447
      %v5752 = vunpack.c.l.b16 %v4448
      %v5753 = vunpack.c.l.b16 %v4449
      %v5754 = vunpack.c.l.b16 %v4450
      %v5755 = vunpack.c.l.b16 %v4451
      %v5756 = vunpack.c.l.b16 %v4452
      %v5757 = vunpack.c.l.b16 %v4453
      %v5758 = vunpack.c.l.b16 %v4454
      %v5759 = vunpack.c.l.b16 %v4455
      %v5760 = vunpack.c.l.b16 %v4456
      %v5761 = vunpack.c.l.b16 %v4457
      %v5762 = vunpack.c.l.b16 %v4458
      %v5763 = vunpack.c.l.b16 %v4459
      %v5764 = vunpack.c.l.b16 %v4460
      %v5765 = vunpack.c.l.b16 %v4461
      %v5766 = vunpack.c.l.b16 %v4462
      %v5767 = vunpack.c.l.b16 %v4463
      %v5768 = vunpack.c.l.b16 %v4464
      %v5769 = vunpack.c.l.b16 %v4465
      %v5770 = vunpack.c.l.b16 %v4466
      %v5771 = vunpack.c.l.b16 %v4467
      %v5772 = vunpack.c.l.b16 %v4468
      %v5773 = vunpack.c.l.b16 %v4469
      %v5774 = vunpack.c.l.b16 %v4470
      %v5775 = vunpack.c.l.b16 %v4471
      %v5776 = vunpack.c.l.b16 %v4472
      %v5777 = vunpack.c.l.b16 %v4473
      %v5778 = vunpack.c.l.b16 %v4474
      %v5779 = vunpack.c.l.b16 %v4475
      %v5780 = vunpack.c.l.b16 %v4476
      %v5781 = vunpack.c.l.b16 %v4477
      %v5782 = vunpack.c.l.b16 %v4478
      %v5783 = vunpack.c.l.b16 %v4479
      %v5784 = vunpack.c.l.b16 %v4480
      %v5785 = vunpack.c.l.b16 %v4481
      %v5786 = vunpack.c.l.b16 %v4482
      %v5787 = vunpack.c.l.b16 %v4483
      %v5788 = vunpack.c.l.b16 %v4484
      %v5789 = vunpack.c.l.b16 %v4485
      %v5790 = vunpack.c.l.b16 %v4486
      %v5791 = vunpack.c.l.b16 %v4487
      %v5792 = vunpack.c.l.b16 %v4488
      %v5793 = vunpack.c.l.b16 %v4489
      %v5794 = vunpack.c.l.b16 %v4490
      %v5795 = vunpack.c.l.b16 %v4491
      %v5796 = vunpack.c.l.b16 %v4492
      %v5797 = vunpack.c.l.b16 %v4493
      %v5798 = vunpack.c.l.b16 %v4494
      %v5799 = vunpack.c.l.b16 %v4495
      %v5800 = vunpack.c.l.b16 %v4496
      %v5801 = vunpack.c.l.b16 %v4497
      %v5802 = vunpack.c.l.b16 %v4498
      %v5803 = vunpack.c.l.b16 %v4499
      %v5804 = vunpack.c.l.b16 %v4500
      %v5805 = vunpack.c.l.b16 %v4501
      %v5806 = vunpack.c.l.b16 %v4502
      %v5807 = vunpack.c.l.b16 %v4503
      %v5808 = vunpack.c.l.b16 %v4504
      %v5809 = vunpack.c.l.b16 %v4505
      %v5810 = vunpack.c.l.b16 %v4506
      %v5811 = vunpack.c.l.b16 %v4507
      %v5812 = vunpack.c.l.b16 %v4508
      %v5813 = vunpack.c.l.b16 %v4509
      %v5814 = vunpack.c.l.b16 %v4510
      %v5815 = vunpack.c.l.b16 %v4511
      %v5816 = vunpack.c.l.b16 %v4512
      %v5817 = vunpack.c.l.b16 %v4513
      %v5818 = vunpack.c.l.b16 %v4514
      %v5819 = vunpack.c.l.b16 %v4515
      %v5820 = vunpack.c.l.b16 %v4516
      %v5821 = vunpack.c.l.b16 %v4517
      %v5822 = vunpack.c.l.b16 %v4518
      %v5823 = vunpack.c.l.b16 %v4519
      %v5824 = vunpack.c.l.b16 %v4520
      %v5825 = vunpack.c.l.b16 %v4521
      %v5826 = vunpack.c.l.b16 %v4522
      %v5827 = vunpack.c.l.b16 %v4523
      %v5828 = vunpack.c.l.b16 %v4524
      %v5829 = vunpack.c.l.b16 %v4525
      %v5830 = vunpack.c.l.b16 %v4526
      %v5831 = vunpack.c.l.b16 %v4527
      %v5832 = vunpack.c.l.b16 %v4528
      %v5833 = vunpack.c.l.b16 %v4529
      %v5834 = vunpack.c.l.b16 %v4530
      %v5835 = vunpack.c.l.b16 %v4531
      %v5836 = vunpack.c.l.b16 %v4532
      %v5837 = vunpack.c.l.b16 %v4533
      %v5838 = vunpack.c.l.b16 %v4534
      %v5839 = vunpack.c.l.b16 %v4535
      %v5840 = vunpack.c.l.b16 %v4536
      %v5841 = vunpack.c.l.b16 %v4537
      %v5842 = vunpack.c.l.b16 %v4538
      %v5843 = vunpack.c.l.b16 %v4539
      %v5844 = vunpack.c.l.b16 %v4540
      %v5845 = vunpack.c.l.b16 %v4541
      %v5846 = vunpack.c.l.b16 %v4542
      %v5847 = vunpack.c.l.b16 %v4543
      %v5848 = vunpack.c.l.b16 %v4544
      %v5849 = vunpack.c.l.b16 %v4545
      %v5850 = vunpack.c.l.b16 %v4546
      %v5851 = vunpack.c.l.b16 %v4547
      %v5852 = vunpack.c.l.b16 %v4548
      %v5853 = vunpack.c.l.b16 %v4549
      %v5854 = vunpack.c.l.b16 %v4550
      %v5855 = vunpack.c.l.b16 %v4551
      %v5856 = vunpack.c.l.b16 %v4552
      %v5857 = vunpack.c.l.b16 %v4553
      %v5858 = vunpack.c.l.b16 %v4554
      %v5859 = vunpack.c.l.b16 %v4555
      %v5860 = vunpack.c.l.b16 %v4556
      %v5861 = vunpack.c.l.b16 %v4557
      %v5862 = vunpack.c.l.b16 %v4558
      %v5863 = vunpack.c.l.b16 %v4559
      %v5864 = vunpack.c.l.b16 %v4560
      %v5865 = vunpack.c.l.b16 %v4561
      %v5866 = vunpack.c.l.b16 %v4562
      %v5867 = vunpack.c.l.b16 %v4563
      %v5868 = vunpack.c.l.b16 %v4564
      %v5869 = vunpack.c.l.b16 %v4565
      %v5870 = vunpack.c.l.b16 %v4566
      %v5871 = vunpack.c.l.b16 %v4567
      %v5872 = vunpack.c.l.b16 %v4568
      %v5873 = vunpack.c.l.b16 %v4569
      %v5874 = vunpack.c.l.b16 %v4570
      %v5875 = vunpack.c.l.b16 %v4571
      %v5876 = vunpack.c.l.b16 %v4572
      %v5877 = vunpack.c.l.b16 %v4573
      %v5878 = vunpack.c.l.b16 %v4574
      %v5879 = vunpack.c.l.b16 %v4575
      %v5880 = vunpack.c.l.b16 %v4576
      %v5881 = vunpack.c.l.b16 %v4577
      %v5882 = vunpack.c.l.b16 %v4578
      %v5883 = vunpack.c.l.b16 %v4579
      %v5884 = vunpack.c.l.b16 %v4580
      %v5885 = vunpack.c.l.b16 %v4581
      %v5886 = vunpack.c.l.b16 %v4582
      %v5887 = vunpack.c.l.b16 %v4583
      %v5888 = vunpack.c.l.b16 %v4584
      %v5889 = vunpack.c.l.b16 %v4585
      %v5890 = vunpack.c.l.b16 %v4586
      %v5891 = vunpack.c.l.b16 %v4587
      %v5892 = vunpack.c.l.b16 %v4588
      %v5893 = vunpack.c.l.b16 %v4589
      %v5894 = vunpack.c.l.b16 %v4590
      %v5895 = vunpack.c.l.b16 %v4591
      %v5896 = vunpack.c.l.b16 %v4592
      %v5897 = vunpack.c.l.b16 %v4593
      %v5898 = vunpack.c.l.b16 %v4594
      %v5899 = vunpack.c.l.b16 %v4595
      %v5900 = vunpack.c.l.b16 %v4596
      %v5901 = vunpack.c.l.b16 %v4597
      %v5902 = vunpack.c.l.b16 %v4598
      %v5903 = vunpack.c.l.b16 %v4599
      %v5904 = vunpack.c.l.b16 %v4600
      %v5905 = vunpack.c.l.b16 %v4601
      %v5906 = vunpack.c.l.b16 %v4602
      %v5907 = vunpack.c.l.b16 %v4603
      %v5908 = vunpack.c.l.b16 %v4604
      %v5909 = vunpack.c.l.b16 %v4605
      %v5910 = vunpack.c.l.b16 %v4606
      %v5911 = vunpack.c.l.b16 %v4607
      %v5912 = vunpack.c.l.b16 %v4608
      %v5913 = vunpack.c.l.b16 %v4609
      %v5914 = vunpack.c.l.b16 %v4610
      %v5915 = vunpack.c.l.b16 %v4611
      %v5916 = vunpack.c.l.b16 %v4612
      %v5917 = vunpack.c.l.b16 %v4613
      %v5918 = vunpack.c.l.b16 %v4614
      %v5919 = vunpack.c.l.b16 %v4615
      %v5920 = vunpack.c.l.b16 %v4616
      %v5921 = vunpack.c.l.b16 %v4617
      %v5922 = vunpack.c.l.b16 %v4618
      %v5923 = vunpack.c.l.b16 %v4619
      %v5924 = vunpack.c.l.b16 %v4620
      %v5925 = vunpack.c.l.b16 %v4621
      %v5926 = vunpack.c.l.b16 %v4622
      %v5927 = vunpack.c.l.b16 %v4623
      %v5928 = vunpack.c.l.b16 %v4624
      %v5929 = vunpack.c.l.b16 %v4625
      %v5930 = vunpack.c.l.b16 %v4626
      %v5931 = vunpack.c.l.b16 %v4627
      %v5932 = vunpack.c.l.b16 %v4628
      %v5933 = vunpack.c.l.b16 %v4629
      %v5934 = vunpack.c.l.b16 %v4630
      %v5935 = vunpack.c.l.b16 %v4631
      %v5936 = vunpack.c.l.b16 %v4632
      %v5937 = vunpack.c.l.b16 %v4633
      %v5938 = vunpack.c.l.b16 %v4634
      %v5939 = vunpack.c.l.b16 %v4635
      %v5940 = vunpack.c.l.b16 %v4636
      %v5941 = vunpack.c.l.b16 %v4637
      %v5942 = vunpack.c.l.b16 %v4638
      %v5943 = vunpack.c.l.b16 %v4639
      %v5944 = vunpack.c.l.b16 %v4640
      %v5945 = vunpack.c.l.b16 %v4641
      %v5946 = vunpack.c.l.b16 %v4642
      %v5947 = vunpack.c.l.b16 %v4643
      %v5948 = vunpack.c.l.b16 %v4644
      %v5949 = vunpack.c.l.b16 %v4645
      %v5950 = vunpack.c.l.b16 %v4646
      %v5951 = vunpack.c.l.b16 %v4647
      %v5952 = vunpack.c.l.b16 %v4648
      %v5953 = vunpack.c.l.b16 %v4649
      %v5954 = vunpack.c.l.b16 %v4650
      %v5955 = vunpack.c.l.b16 %v4651
      %v5956 = vunpack.c.l.b16 %v4652
      %v5957 = vunpack.c.l.b16 %v4653
      %v5958 = vunpack.c.l.b16 %v4654
      %v5959 = vunpack.c.l.b16 %v4655
      %v5960 = vunpack.c.l.b16 %v4656
      %v5961 = vunpack.c.l.b16 %v4657
      %v5962 = vunpack.c.l.b16 %v4658
      %v5963 = vunpack.c.l.b16 %v4659
      %v5964 = vunpack.c.l.b16 %v4660
      %v5965 = vunpack.c.l.b16 %v4661
      %v5966 = vunpack.c.l.b16 %v4662
      %v5967 = vunpack.c.l.b16 %v4663
      %v5968 = vunpack.c.l.b16 %v4664
      %v5969 = vunpack.c.l.b16 %v4665
      %v5970 = vunpack.c.l.b16 %v4666
      %v5971 = vunpack.c.l.b16 %v4667
      %v5972 = vunpack.c.l.b16 %v4668
      %v5973 = vunpack.c.l.b16 %v4669
      %v5974 = vunpack.c.l.b16 %v4670
      %v5975 = vunpack.c.l.b16 %v4671
      %v5976 = vunpack.c.l.b16 %v4672
      %v5977 = vunpack.c.l.b16 %v4673
      %v5978 = vunpack.c.l.b16 %v4674
      %v5979 = vunpack.c.l.b16 %v4675
      %v5980 = vunpack.c.l.b16 %v4676
      %v5981 = vunpack.c.l.b16 %v4677
      %v5982 = vunpack.c.l.b16 %v4678
      %v5983 = vunpack.c.l.b16 %v4679
      %v5984 = vunpack.c.l.b16 %v4680
      %v5985 = vunpack.c.l.b16 %v4681
      %v5986 = vunpack.c.l.b16 %v4682
      %v5987 = vunpack.c.l.b16 %v4683
      %v5988 = vunpack.c.l.b16 %v4684
      %v5989 = vunpack.c.l.b16 %v4685
      %v5990 = vunpack.c.l.b16 %v4686
      %v5991 = vunpack.c.l.b16 %v4687
      %v5992 = vunpack.c.l.b16 %v4688
      %v5993 = vunpack.c.l.b16 %v4689
      %v5994 = vunpack.c.l.b16 %v4690
      %v5995 = vunpack.c.l.b16 %v4691
      %v5996 = vunpack.c.l.b16 %v4692
      %v5997 = vunpack.c.l.b16 %v4693
      %v5998 = vunpack.c.l.b16 %v4694
      %v5999 = vunpack.c.l.b16 %v4695
      %v6000 = vunpack.c.l.b16 %v4696
      %v6001 = vunpack.c.l.b16 %v4697
      %v6002 = vpack.c.b16 %v5603, %v5602
      %v6003 = vpack.c.b16 %v5605, %v5604
      %v6004 = vpack.c.b16 %v5607, %v5606
      %v6005 = vpack.c.b16 %v5609, %v5608
      %v6006 = vpack.c.b16 %v5611, %v5610
      %v6007 = vpack.c.b16 %v5613, %v5612
      %v6008 = vpack.c.b16 %v5615, %v5614
      %v6009 = vpack.c.b16 %v5617, %v5616
      %v6010 = vpack.c.b16 %v5619, %v5618
      %v6011 = vpack.c.b16 %v5621, %v5620
      %v6012 = vpack.c.b16 %v5623, %v5622
      %v6013 = vpack.c.b16 %v5625, %v5624
      %v6014 = vpack.c.b16 %v5627, %v5626
      %v6015 = vpack.c.b16 %v5629, %v5628
      %v6016 = vpack.c.b16 %v5631, %v5630
      %v6017 = vpack.c.b16 %v5633, %v5632
      %v6018 = vpack.c.b16 %v5635, %v5634
      %v6019 = vpack.c.b16 %v5637, %v5636
      %v6020 = vpack.c.b16 %v5639, %v5638
      %v6021 = vpack.c.b16 %v5641, %v5640
      %v6022 = vpack.c.b16 %v5643, %v5642
      %v6023 = vpack.c.b16 %v5645, %v5644
      %v6024 = vpack.c.b16 %v5647, %v5646
      %v6025 = vpack.c.b16 %v5649, %v5648
      %v6026 = vpack.c.b16 %v5651, %v5650
      %v6027 = vpack.c.b16 %v5653, %v5652
      %v6028 = vpack.c.b16 %v5655, %v5654
      %v6029 = vpack.c.b16 %v5657, %v5656
      %v6030 = vpack.c.b16 %v5659, %v5658
      %v6031 = vpack.c.b16 %v5661, %v5660
      %v6032 = vpack.c.b16 %v5663, %v5662
      %v6033 = vpack.c.b16 %v5665, %v5664
      %v6034 = vpack.c.b16 %v5667, %v5666
      %v6035 = vpack.c.b16 %v5669, %v5668
      %v6036 = vpack.c.b16 %v5671, %v5670
      %v6037 = vpack.c.b16 %v5673, %v5672
      %v6038 = vpack.c.b16 %v5675, %v5674
      %v6039 = vpack.c.b16 %v5677, %v5676
      %v6040 = vpack.c.b16 %v5679, %v5678
      %v6041 = vpack.c.b16 %v5681, %v5680
      %v6042 = vpack.c.b16 %v5683, %v5682
      %v6043 = vpack.c.b16 %v5685, %v5684
      %v6044 = vpack.c.b16 %v5687, %v5686
      %v6045 = vpack.c.b16 %v5689, %v5688
      %v6046 = vpack.c.b16 %v5691, %v5690
      %v6047 = vpack.c.b16 %v5693, %v5692
      %v6048 = vpack.c.b16 %v5695, %v5694
      %v6049 = vpack.c.b16 %v5697, %v5696
      %v6050 = vpack.c.b16 %v5699, %v5698
      %v6051 = vpack.c.b16 %v5701, %v5700
      %v6052 = vpack.c.b16 %v5703, %v5702
      %v6053 = vpack.c.b16 %v5705, %v5704
      %v6054 = vpack.c.b16 %v5707, %v5706
      %v6055 = vpack.c.b16 %v5709, %v5708
      %v6056 = vpack.c.b16 %v5711, %v5710
      %v6057 = vpack.c.b16 %v5713, %v5712
      %v6058 = vpack.c.b16 %v5715, %v5714
      %v6059 = vpack.c.b16 %v5717, %v5716
      %v6060 = vpack.c.b16 %v5719, %v5718
      %v6061 = vpack.c.b16 %v5721, %v5720
      %v6062 = vpack.c.b16 %v5723, %v5722
      %v6063 = vpack.c.b16 %v5725, %v5724
      %v6064 = vpack.c.b16 %v5727, %v5726
      %v6065 = vpack.c.b16 %v5729, %v5728
      %v6066 = vpack.c.b16 %v5731, %v5730
      %v6067 = vpack.c.b16 %v5733, %v5732
      %v6068 = vpack.c.b16 %v5735, %v5734
      %v6069 = vpack.c.b16 %v5737, %v5736
      %v6070 = vpack.c.b16 %v5739, %v5738
      %v6071 = vpack.c.b16 %v5741, %v5740
      %v6072 = vpack.c.b16 %v5743, %v5742
      %v6073 = vpack.c.b16 %v5745, %v5744
      %v6074 = vpack.c.b16 %v5747, %v5746
      %v6075 = vpack.c.b16 %v5749, %v5748
      %v6076 = vpack.c.b16 %v5751, %v5750
      %v6077 = vpack.c.b16 %v5753, %v5752
      %v6078 = vpack.c.b16 %v5755, %v5754
      %v6079 = vpack.c.b16 %v5757, %v5756
      %v6080 = vpack.c.b16 %v5759, %v5758
      %v6081 = vpack.c.b16 %v5761, %v5760
      %v6082 = vpack.c.b16 %v5763, %v5762
      %v6083 = vpack.c.b16 %v5765, %v5764
      %v6084 = vpack.c.b16 %v5767, %v5766
      %v6085 = vpack.c.b16 %v5769, %v5768
      %v6086 = vpack.c.b16 %v5771, %v5770
      %v6087 = vpack.c.b16 %v5773, %v5772
      %v6088 = vpack.c.b16 %v5775, %v5774
      %v6089 = vpack.c.b16 %v5777, %v5776
      %v6090 = vpack.c.b16 %v5779, %v5778
      %v6091 = vpack.c.b16 %v5781, %v5780
      %v6092 = vpack.c.b16 %v5783, %v5782
      %v6093 = vpack.c.b16 %v5785, %v5784
      %v6094 = vpack.c.b16 %v5787, %v5786
      %v6095 = vpack.c.b16 %v5789, %v5788
      %v6096 = vpack.c.b16 %v5791, %v5790
      %v6097 = vpack.c.b16 %v5793, %v5792
      %v6098 = vpack.c.b16 %v5795, %v5794
      %v6099 = vpack.c.b16 %v5797, %v5796
      %v6100 = vpack.c.b16 %v5799, %v5798
      %v6101 = vpack.c.b16 %v5801, %v5800
      %v6102 = vpack.c.b16 %v5803, %v5802
      %v6103 = vpack.c.b16 %v5805, %v5804
      %v6104 = vpack.c.b16 %v5807, %v5806
      %v6105 = vpack.c.b16 %v5809, %v5808
      %v6106 = vpack.c.b16 %v5811, %v5810
      %v6107 = vpack.c.b16 %v5813, %v5812
      %v6108 = vpack.c.b16 %v5815, %v5814
      %v6109 = vpack.c.b16 %v5817, %v5816
      %v6110 = vpack.c.b16 %v5819, %v5818
      %v6111 = vpack.c.b16 %v5821, %v5820
      %v6112 = vpack.c.b16 %v5823, %v5822
      %v6113 = vpack.c.b16 %v5825, %v5824
      %v6114 = vpack.c.b16 %v5827, %v5826
      %v6115 = vpack.c.b16 %v5829, %v5828
      %v6116 = vpack.c.b16 %v5831, %v5830
      %v6117 = vpack.c.b16 %v5833, %v5832
      %v6118 = vpack.c.b16 %v5835, %v5834
      %v6119 = vpack.c.b16 %v5837, %v5836
      %v6120 = vpack.c.b16 %v5839, %v5838
      %v6121 = vpack.c.b16 %v5841, %v5840
      %v6122 = vpack.c.b16 %v5843, %v5842
      %v6123 = vpack.c.b16 %v5845, %v5844
      %v6124 = vpack.c.b16 %v5847, %v5846
      %v6125 = vpack.c.b16 %v5849, %v5848
      %v6126 = vpack.c.b16 %v5851, %v5850
      %v6127 = vpack.c.b16 %v5853, %v5852
      %v6128 = vpack.c.b16 %v5855, %v5854
      %v6129 = vpack.c.b16 %v5857, %v5856
      %v6130 = vpack.c.b16 %v5859, %v5858
      %v6131 = vpack.c.b16 %v5861, %v5860
      %v6132 = vpack.c.b16 %v5863, %v5862
      %v6133 = vpack.c.b16 %v5865, %v5864
      %v6134 = vpack.c.b16 %v5867, %v5866
      %v6135 = vpack.c.b16 %v5869, %v5868
      %v6136 = vpack.c.b16 %v5871, %v5870
      %v6137 = vpack.c.b16 %v5873, %v5872
      %v6138 = vpack.c.b16 %v5875, %v5874
      %v6139 = vpack.c.b16 %v5877, %v5876
      %v6140 = vpack.c.b16 %v5879, %v5878
      %v6141 = vpack.c.b16 %v5881, %v5880
      %v6142 = vpack.c.b16 %v5883, %v5882
      %v6143 = vpack.c.b16 %v5885, %v5884
      %v6144 = vpack.c.b16 %v5887, %v5886
      %v6145 = vpack.c.b16 %v5889, %v5888
      %v6146 = vpack.c.b16 %v5891, %v5890
      %v6147 = vpack.c.b16 %v5893, %v5892
      %v6148 = vpack.c.b16 %v5895, %v5894
      %v6149 = vpack.c.b16 %v5897, %v5896
      %v6150 = vpack.c.b16 %v5899, %v5898
      %v6151 = vpack.c.b16 %v5901, %v5900
      %v6152 = vpack.c.b16 %v5903, %v5902
      %v6153 = vpack.c.b16 %v5905, %v5904
      %v6154 = vpack.c.b16 %v5907, %v5906
      %v6155 = vpack.c.b16 %v5909, %v5908
      %v6156 = vpack.c.b16 %v5911, %v5910
      %v6157 = vpack.c.b16 %v5913, %v5912
      %v6158 = vpack.c.b16 %v5915, %v5914
      %v6159 = vpack.c.b16 %v5917, %v5916
      %v6160 = vpack.c.b16 %v5919, %v5918
      %v6161 = vpack.c.b16 %v5921, %v5920
      %v6162 = vpack.c.b16 %v5923, %v5922
      %v6163 = vpack.c.b16 %v5925, %v5924
      %v6164 = vpack.c.b16 %v5927, %v5926
      %v6165 = vpack.c.b16 %v5929, %v5928
      %v6166 = vpack.c.b16 %v5931, %v5930
      %v6167 = vpack.c.b16 %v5933, %v5932
      %v6168 = vpack.c.b16 %v5935, %v5934
      %v6169 = vpack.c.b16 %v5937, %v5936
      %v6170 = vpack.c.b16 %v5939, %v5938
      %v6171 = vpack.c.b16 %v5941, %v5940
      %v6172 = vpack.c.b16 %v5943, %v5942
      %v6173 = vpack.c.b16 %v5945, %v5944
      %v6174 = vpack.c.b16 %v5947, %v5946
      %v6175 = vpack.c.b16 %v5949, %v5948
      %v6176 = vpack.c.b16 %v5951, %v5950
      %v6177 = vpack.c.b16 %v5953, %v5952
      %v6178 = vpack.c.b16 %v5955, %v5954
      %v6179 = vpack.c.b16 %v5957, %v5956
      %v6180 = vpack.c.b16 %v5959, %v5958
      %v6181 = vpack.c.b16 %v5961, %v5960
      %v6182 = vpack.c.b16 %v5963, %v5962
      %v6183 = vpack.c.b16 %v5965, %v5964
      %v6184 = vpack.c.b16 %v5967, %v5966
      %v6185 = vpack.c.b16 %v5969, %v5968
      %v6186 = vpack.c.b16 %v5971, %v5970
      %v6187 = vpack.c.b16 %v5973, %v5972
      %v6188 = vpack.c.b16 %v5975, %v5974
      %v6189 = vpack.c.b16 %v5977, %v5976
      %v6190 = vpack.c.b16 %v5979, %v5978
      %v6191 = vpack.c.b16 %v5981, %v5980
      %v6192 = vpack.c.b16 %v5983, %v5982
      %v6193 = vpack.c.b16 %v5985, %v5984
      %v6194 = vpack.c.b16 %v5987, %v5986
      %v6195 = vpack.c.b16 %v5989, %v5988
      %v6196 = vpack.c.b16 %v5991, %v5990
      %v6197 = vpack.c.b16 %v5993, %v5992
      %v6198 = vpack.c.b16 %v5995, %v5994
      %v6199 = vpack.c.b16 %v5997, %v5996
      %v6200 = vpack.c.b16 %v5999, %v5998
      %v6201 = vpack.c.b16 %v6001, %v6000
      %6402 = vmatpush.bf16.msra.mxu0 %v6009
      %6403 = vmatpush.bf16.msra.mxu0 %v6008
      %6404 = vmatpush.bf16.msra.mxu0 %v6007
      %6405 = vmatpush.bf16.msra.mxu0 %v6006
      %6406 = vmatpush.bf16.msra.mxu0 %v6005
      %6407 = vmatpush.bf16.msra.mxu0 %v6004
      %6408 = vmatpush.bf16.msra.mxu0 %v6003
      %6409 = vmatpush.bf16.msra.mxu0 %v6002
      %6410 = vmatmul.bf16.gmra.mxu0 %v5002
      %v6411 = vpop.f32.mrf.mxu0
      %v6412 = vadd.f32 0.0, %v6411
      %v6413 = vpop.f32.mrf.mxu0
      %v6414 = vadd.f32 0.0, %v6413
      %6415 = vmatmul.bf16.gmra.mxu0 %v5027
      %v6416 = vpop.f32.mrf.mxu0
      %v6417 = vadd.f32 0.0, %v6416
      %v6418 = vpop.f32.mrf.mxu0
      %v6419 = vadd.f32 0.0, %v6418
      %6420 = vmatmul.bf16.gmra.mxu0 %v5052
      %v6421 = vpop.f32.mrf.mxu0
      %v6422 = vadd.f32 0.0, %v6421
      %v6423 = vpop.f32.mrf.mxu0
      %v6424 = vadd.f32 0.0, %v6423
      %6425 = vmatmul.bf16.gmra.mxu0 %v5077
      %v6426 = vpop.f32.mrf.mxu0
      %v6427 = vadd.f32 0.0, %v6426
      %v6428 = vpop.f32.mrf.mxu0
      %v6429 = vadd.f32 0.0, %v6428
      %6430 = vdwg.mxu0
      %6431 = vmatpush.bf16.msra.mxu0 %v6017
      %6432 = vmatpush.bf16.msra.mxu0 %v6016
      %6433 = vmatpush.bf16.msra.mxu0 %v6015
      %6434 = vmatpush.bf16.msra.mxu0 %v6014
      %6435 = vmatpush.bf16.msra.mxu0 %v6013
      %6436 = vmatpush.bf16.msra.mxu0 %v6012
      %6437 = vmatpush.bf16.msra.mxu0 %v6011
      %6438 = vmatpush.bf16.msra.mxu0 %v6010
      %6439 = vmatmul.bf16.gmra.mxu0 %v5003
      %v6440 = vpop.f32.mrf.mxu0
      %v6441 = vadd.f32 %v6412, %v6440
      %v6442 = vpop.f32.mrf.mxu0
      %v6443 = vadd.f32 %v6414, %v6442
      %6444 = vmatmul.bf16.gmra.mxu0 %v5028
      %v6445 = vpop.f32.mrf.mxu0
      %v6446 = vadd.f32 %v6417, %v6445
      %v6447 = vpop.f32.mrf.mxu0
      %v6448 = vadd.f32 %v6419, %v6447
      %6449 = vmatmul.bf16.gmra.mxu0 %v5053
      %v6450 = vpop.f32.mrf.mxu0
      %v6451 = vadd.f32 %v6422, %v6450
      %v6452 = vpop.f32.mrf.mxu0
      %v6453 = vadd.f32 %v6424, %v6452
      %6454 = vmatmul.bf16.gmra.mxu0 %v5078
      %v6455 = vpop.f32.mrf.mxu0
      %v6456 = vadd.f32 %v6427, %v6455
      %v6457 = vpop.f32.mrf.mxu0
      %v6458 = vadd.f32 %v6429, %v6457
      %6459 = vdwg.mxu0
      %6460 = vmatpush.bf16.msra.mxu0 %v6025
      %6461 = vmatpush.bf16.msra.mxu0 %v6024
      %6462 = vmatpush.bf16.msra.mxu0 %v6023
      %6463 = vmatpush.bf16.msra.mxu0 %v6022
      %6464 = vmatpush.bf16.msra.mxu0 %v6021
      %6465 = vmatpush.bf16.msra.mxu0 %v6020
      %6466 = vmatpush.bf16.msra.mxu0 %v6019
      %6467 = vmatpush.bf16.msra.mxu0 %v6018
      %6468 = vmatmul.bf16.gmra.mxu0 %v5004
      %v6469 = vpop.f32.mrf.mxu0
      %v6470 = vadd.f32 %v6441, %v6469
      %v6471 = vpop.f32.mrf.mxu0
      %v6472 = vadd.f32 %v6443, %v6471
      %6473 = vmatmul.bf16.gmra.mxu0 %v5029
      %v6474 = vpop.f32.mrf.mxu0
      %v6475 = vadd.f32 %v6446, %v6474
      %v6476 = vpop.f32.mrf.mxu0
      %v6477 = vadd.f32 %v6448, %v6476
      %6478 = vmatmul.bf16.gmra.mxu0 %v5054
      %v6479 = vpop.f32.mrf.mxu0
      %v6480 = vadd.f32 %v6451, %v6479
      %v6481 = vpop.f32.mrf.mxu0
      %v6482 = vadd.f32 %v6453, %v6481
      %6483 = vmatmul.bf16.gmra.mxu0 %v5079
      %v6484 = vpop.f32.mrf.mxu0
      %v6485 = vadd.f32 %v6456, %v6484
      %v6486 = vpop.f32.mrf.mxu0
      %v6487 = vadd.f32 %v6458, %v6486
      %6488 = vdwg.mxu0
      %6489 = vmatpush.bf16.msra.mxu0 %v6033
      %6490 = vmatpush.bf16.msra.mxu0 %v6032
      %6491 = vmatpush.bf16.msra.mxu0 %v6031
      %6492 = vmatpush.bf16.msra.mxu0 %v6030
      %6493 = vmatpush.bf16.msra.mxu0 %v6029
      %6494 = vmatpush.bf16.msra.mxu0 %v6028
      %6495 = vmatpush.bf16.msra.mxu0 %v6027
      %6496 = vmatpush.bf16.msra.mxu0 %v6026
      %6497 = vmatmul.bf16.gmra.mxu0 %v5005
      %v6498 = vpop.f32.mrf.mxu0
      %v6499 = vadd.f32 %v6470, %v6498
      %v6500 = vpop.f32.mrf.mxu0
      %v6501 = vadd.f32 %v6472, %v6500
      %6502 = vmatmul.bf16.gmra.mxu0 %v5030
      %v6503 = vpop.f32.mrf.mxu0
      %v6504 = vadd.f32 %v6475, %v6503
      %v6505 = vpop.f32.mrf.mxu0
      %v6506 = vadd.f32 %v6477, %v6505
      %6507 = vmatmul.bf16.gmra.mxu0 %v5055
      %v6508 = vpop.f32.mrf.mxu0
      %v6509 = vadd.f32 %v6480, %v6508
      %v6510 = vpop.f32.mrf.mxu0
      %v6511 = vadd.f32 %v6482, %v6510
      %6512 = vmatmul.bf16.gmra.mxu0 %v5080
      %v6513 = vpop.f32.mrf.mxu0
      %v6514 = vadd.f32 %v6485, %v6513
      %v6515 = vpop.f32.mrf.mxu0
      %v6516 = vadd.f32 %v6487, %v6515
      %6517 = vdwg.mxu0
      %6518 = vmatpush.bf16.msra.mxu0 %v6041
      %6519 = vmatpush.bf16.msra.mxu0 %v6040
      %6520 = vmatpush.bf16.msra.mxu0 %v6039
      %6521 = vmatpush.bf16.msra.mxu0 %v6038
      %6522 = vmatpush.bf16.msra.mxu0 %v6037
      %6523 = vmatpush.bf16.msra.mxu0 %v6036
      %6524 = vmatpush.bf16.msra.mxu0 %v6035
      %6525 = vmatpush.bf16.msra.mxu0 %v6034
      %6526 = vmatmul.bf16.gmra.mxu0 %v5006
      %v6527 = vpop.f32.mrf.mxu0
      %v6528 = vadd.f32 %v6499, %v6527
      %v6529 = vpop.f32.mrf.mxu0
      %v6530 = vadd.f32 %v6501, %v6529
      %6531 = vmatmul.bf16.gmra.mxu0 %v5031
      %v6532 = vpop.f32.mrf.mxu0
      %v6533 = vadd.f32 %v6504, %v6532
      %v6534 = vpop.f32.mrf.mxu0
      %v6535 = vadd.f32 %v6506, %v6534
      %6536 = vmatmul.bf16.gmra.mxu0 %v5056
      %v6537 = vpop.f32.mrf.mxu0
      %v6538 = vadd.f32 %v6509, %v6537
      %v6539 = vpop.f32.mrf.mxu0
      %v6540 = vadd.f32 %v6511, %v6539
      %6541 = vmatmul.bf16.gmra.mxu0 %v5081
      %v6542 = vpop.f32.mrf.mxu0
      %v6543 = vadd.f32 %v6514, %v6542
      %v6544 = vpop.f32.mrf.mxu0
      %v6545 = vadd.f32 %v6516, %v6544
      %6546 = vdwg.mxu0
      %6547 = vmatpush.bf16.msra.mxu0 %v6049
      %6548 = vmatpush.bf16.msra.mxu0 %v6048
      %6549 = vmatpush.bf16.msra.mxu0 %v6047
      %6550 = vmatpush.bf16.msra.mxu0 %v6046
      %6551 = vmatpush.bf16.msra.mxu0 %v6045
      %6552 = vmatpush.bf16.msra.mxu0 %v6044
      %6553 = vmatpush.bf16.msra.mxu0 %v6043
      %6554 = vmatpush.bf16.msra.mxu0 %v6042
      %6555 = vmatmul.bf16.gmra.mxu0 %v5007
      %v6556 = vpop.f32.mrf.mxu0
      %v6557 = vadd.f32 %v6528, %v6556
      %v6558 = vpop.f32.mrf.mxu0
      %v6559 = vadd.f32 %v6530, %v6558
      %6560 = vmatmul.bf16.gmra.mxu0 %v5032
      %v6561 = vpop.f32.mrf.mxu0
      %v6562 = vadd.f32 %v6533, %v6561
      %v6563 = vpop.f32.mrf.mxu0
      %v6564 = vadd.f32 %v6535, %v6563
      %6565 = vmatmul.bf16.gmra.mxu0 %v5057
      %v6566 = vpop.f32.mrf.mxu0
      %v6567 = vadd.f32 %v6538, %v6566
      %v6568 = vpop.f32.mrf.mxu0
      %v6569 = vadd.f32 %v6540, %v6568
      %6570 = vmatmul.bf16.gmra.mxu0 %v5082
      %v6571 = vpop.f32.mrf.mxu0
      %v6572 = vadd.f32 %v6543, %v6571
      %v6573 = vpop.f32.mrf.mxu0
      %v6574 = vadd.f32 %v6545, %v6573
      %6575 = vdwg.mxu0
      %6576 = vmatpush.bf16.msra.mxu0 %v6057
      %6577 = vmatpush.bf16.msra.mxu0 %v6056
      %6578 = vmatpush.bf16.msra.mxu0 %v6055
      %6579 = vmatpush.bf16.msra.mxu0 %v6054
      %6580 = vmatpush.bf16.msra.mxu0 %v6053
      %6581 = vmatpush.bf16.msra.mxu0 %v6052
      %6582 = vmatpush.bf16.msra.mxu0 %v6051
      %6583 = vmatpush.bf16.msra.mxu0 %v6050
      %6584 = vmatmul.bf16.gmra.mxu0 %v5008
      %v6585 = vpop.f32.mrf.mxu0
      %v6586 = vadd.f32 %v6557, %v6585
      %v6587 = vpop.f32.mrf.mxu0
      %v6588 = vadd.f32 %v6559, %v6587
      %6589 = vmatmul.bf16.gmra.mxu0 %v5033
      %v6590 = vpop.f32.mrf.mxu0
      %v6591 = vadd.f32 %v6562, %v6590
      %v6592 = vpop.f32.mrf.mxu0
      %v6593 = vadd.f32 %v6564, %v6592
      %6594 = vmatmul.bf16.gmra.mxu0 %v5058
      %v6595 = vpop.f32.mrf.mxu0
      %v6596 = vadd.f32 %v6567, %v6595
      %v6597 = vpop.f32.mrf.mxu0
      %v6598 = vadd.f32 %v6569, %v6597
      %6599 = vmatmul.bf16.gmra.mxu0 %v5083
      %v6600 = vpop.f32.mrf.mxu0
      %v6601 = vadd.f32 %v6572, %v6600
      %v6602 = vpop.f32.mrf.mxu0
      %v6603 = vadd.f32 %v6574, %v6602
      %6604 = vdwg.mxu0
      %6605 = vmatpush.bf16.msra.mxu0 %v6065
      %6606 = vmatpush.bf16.msra.mxu0 %v6064
      %6607 = vmatpush.bf16.msra.mxu0 %v6063
      %6608 = vmatpush.bf16.msra.mxu0 %v6062
      %6609 = vmatpush.bf16.msra.mxu0 %v6061
      %6610 = vmatpush.bf16.msra.mxu0 %v6060
      %6611 = vmatpush.bf16.msra.mxu0 %v6059
      %6612 = vmatpush.bf16.msra.mxu0 %v6058
      %6613 = vmatmul.bf16.gmra.mxu0 %v5009
      %v6614 = vpop.f32.mrf.mxu0
      %v6615 = vadd.f32 %v6586, %v6614
      %v6616 = vpop.f32.mrf.mxu0
      %v6617 = vadd.f32 %v6588, %v6616
      %6618 = vmatmul.bf16.gmra.mxu0 %v5034
      %v6619 = vpop.f32.mrf.mxu0
      %v6620 = vadd.f32 %v6591, %v6619
      %v6621 = vpop.f32.mrf.mxu0
      %v6622 = vadd.f32 %v6593, %v6621
      %6623 = vmatmul.bf16.gmra.mxu0 %v5059
      %v6624 = vpop.f32.mrf.mxu0
      %v6625 = vadd.f32 %v6596, %v6624
      %v6626 = vpop.f32.mrf.mxu0
      %v6627 = vadd.f32 %v6598, %v6626
      %6628 = vmatmul.bf16.gmra.mxu0 %v5084
      %v6629 = vpop.f32.mrf.mxu0
      %v6630 = vadd.f32 %v6601, %v6629
      %v6631 = vpop.f32.mrf.mxu0
      %v6632 = vadd.f32 %v6603, %v6631
      %6633 = vdwg.mxu0
      %6634 = vmatpush.bf16.msra.mxu0 %v6073
      %6635 = vmatpush.bf16.msra.mxu0 %v6072
      %6636 = vmatpush.bf16.msra.mxu0 %v6071
      %6637 = vmatpush.bf16.msra.mxu0 %v6070
      %6638 = vmatpush.bf16.msra.mxu0 %v6069
      %6639 = vmatpush.bf16.msra.mxu0 %v6068
      %6640 = vmatpush.bf16.msra.mxu0 %v6067
      %6641 = vmatpush.bf16.msra.mxu0 %v6066
      %6642 = vmatmul.bf16.gmra.mxu0 %v5010
      %v6643 = vpop.f32.mrf.mxu0
      %v6644 = vadd.f32 %v6615, %v6643
      %v6645 = vpop.f32.mrf.mxu0
      %v6646 = vadd.f32 %v6617, %v6645
      %6647 = vmatmul.bf16.gmra.mxu0 %v5035
      %v6648 = vpop.f32.mrf.mxu0
      %v6649 = vadd.f32 %v6620, %v6648
      %v6650 = vpop.f32.mrf.mxu0
      %v6651 = vadd.f32 %v6622, %v6650
      %6652 = vmatmul.bf16.gmra.mxu0 %v5060
      %v6653 = vpop.f32.mrf.mxu0
      %v6654 = vadd.f32 %v6625, %v6653
      %v6655 = vpop.f32.mrf.mxu0
      %v6656 = vadd.f32 %v6627, %v6655
      %6657 = vmatmul.bf16.gmra.mxu0 %v5085
      %v6658 = vpop.f32.mrf.mxu0
      %v6659 = vadd.f32 %v6630, %v6658
      %v6660 = vpop.f32.mrf.mxu0
      %v6661 = vadd.f32 %v6632, %v6660
      %6662 = vdwg.mxu0
      %6663 = vmatpush.bf16.msra.mxu0 %v6081
      %6664 = vmatpush.bf16.msra.mxu0 %v6080
      %6665 = vmatpush.bf16.msra.mxu0 %v6079
      %6666 = vmatpush.bf16.msra.mxu0 %v6078
      %6667 = vmatpush.bf16.msra.mxu0 %v6077
      %6668 = vmatpush.bf16.msra.mxu0 %v6076
      %6669 = vmatpush.bf16.msra.mxu0 %v6075
      %6670 = vmatpush.bf16.msra.mxu0 %v6074
      %6671 = vmatmul.bf16.gmra.mxu0 %v5011
      %v6672 = vpop.f32.mrf.mxu0
      %v6673 = vadd.f32 %v6644, %v6672
      %v6674 = vpop.f32.mrf.mxu0
      %v6675 = vadd.f32 %v6646, %v6674
      %6676 = vmatmul.bf16.gmra.mxu0 %v5036
      %v6677 = vpop.f32.mrf.mxu0
      %v6678 = vadd.f32 %v6649, %v6677
      %v6679 = vpop.f32.mrf.mxu0
      %v6680 = vadd.f32 %v6651, %v6679
      %6681 = vmatmul.bf16.gmra.mxu0 %v5061
      %v6682 = vpop.f32.mrf.mxu0
      %v6683 = vadd.f32 %v6654, %v6682
      %v6684 = vpop.f32.mrf.mxu0
      %v6685 = vadd.f32 %v6656, %v6684
      %6686 = vmatmul.bf16.gmra.mxu0 %v5086
      %v6687 = vpop.f32.mrf.mxu0
      %v6688 = vadd.f32 %v6659, %v6687
      %v6689 = vpop.f32.mrf.mxu0
      %v6690 = vadd.f32 %v6661, %v6689
      %6691 = vdwg.mxu0
      %6692 = vmatpush.bf16.msra.mxu0 %v6089
      %6693 = vmatpush.bf16.msra.mxu0 %v6088
      %6694 = vmatpush.bf16.msra.mxu0 %v6087
      %6695 = vmatpush.bf16.msra.mxu0 %v6086
      %6696 = vmatpush.bf16.msra.mxu0 %v6085
      %6697 = vmatpush.bf16.msra.mxu0 %v6084
      %6698 = vmatpush.bf16.msra.mxu0 %v6083
      %6699 = vmatpush.bf16.msra.mxu0 %v6082
      %6700 = vmatmul.bf16.gmra.mxu0 %v5012
      %v6701 = vpop.f32.mrf.mxu0
      %v6702 = vadd.f32 %v6673, %v6701
      %v6703 = vpop.f32.mrf.mxu0
      %v6704 = vadd.f32 %v6675, %v6703
      %6705 = vmatmul.bf16.gmra.mxu0 %v5037
      %v6706 = vpop.f32.mrf.mxu0
      %v6707 = vadd.f32 %v6678, %v6706
      %v6708 = vpop.f32.mrf.mxu0
      %v6709 = vadd.f32 %v6680, %v6708
      %6710 = vmatmul.bf16.gmra.mxu0 %v5062
      %v6711 = vpop.f32.mrf.mxu0
      %v6712 = vadd.f32 %v6683, %v6711
      %v6713 = vpop.f32.mrf.mxu0
      %v6714 = vadd.f32 %v6685, %v6713
      %6715 = vmatmul.bf16.gmra.mxu0 %v5087
      %v6716 = vpop.f32.mrf.mxu0
      %v6717 = vadd.f32 %v6688, %v6716
      %v6718 = vpop.f32.mrf.mxu0
      %v6719 = vadd.f32 %v6690, %v6718
      %6720 = vdwg.mxu0
      %6721 = vmatpush.bf16.msra.mxu0 %v6097
      %6722 = vmatpush.bf16.msra.mxu0 %v6096
      %6723 = vmatpush.bf16.msra.mxu0 %v6095
      %6724 = vmatpush.bf16.msra.mxu0 %v6094
      %6725 = vmatpush.bf16.msra.mxu0 %v6093
      %6726 = vmatpush.bf16.msra.mxu0 %v6092
      %6727 = vmatpush.bf16.msra.mxu0 %v6091
      %6728 = vmatpush.bf16.msra.mxu0 %v6090
      %6729 = vmatmul.bf16.gmra.mxu0 %v5013
      %v6730 = vpop.f32.mrf.mxu0
      %v6731 = vadd.f32 %v6702, %v6730
      %v6732 = vpop.f32.mrf.mxu0
      %v6733 = vadd.f32 %v6704, %v6732
      %6734 = vmatmul.bf16.gmra.mxu0 %v5038
      %v6735 = vpop.f32.mrf.mxu0
      %v6736 = vadd.f32 %v6707, %v6735
      %v6737 = vpop.f32.mrf.mxu0
      %v6738 = vadd.f32 %v6709, %v6737
      %6739 = vmatmul.bf16.gmra.mxu0 %v5063
      %v6740 = vpop.f32.mrf.mxu0
      %v6741 = vadd.f32 %v6712, %v6740
      %v6742 = vpop.f32.mrf.mxu0
      %v6743 = vadd.f32 %v6714, %v6742
      %6744 = vmatmul.bf16.gmra.mxu0 %v5088
      %v6745 = vpop.f32.mrf.mxu0
      %v6746 = vadd.f32 %v6717, %v6745
      %v6747 = vpop.f32.mrf.mxu0
      %v6748 = vadd.f32 %v6719, %v6747
      %6749 = vdwg.mxu0
      %6750 = vmatpush.bf16.msra.mxu0 %v6105
      %6751 = vmatpush.bf16.msra.mxu0 %v6104
      %6752 = vmatpush.bf16.msra.mxu0 %v6103
      %6753 = vmatpush.bf16.msra.mxu0 %v6102
      %6754 = vmatpush.bf16.msra.mxu0 %v6101
      %6755 = vmatpush.bf16.msra.mxu0 %v6100
      %6756 = vmatpush.bf16.msra.mxu0 %v6099
      %6757 = vmatpush.bf16.msra.mxu0 %v6098
      %6758 = vmatmul.bf16.gmra.mxu0 %v5014
      %v6759 = vpop.f32.mrf.mxu0
      %v6760 = vadd.f32 %v6731, %v6759
      %v6761 = vpop.f32.mrf.mxu0
      %v6762 = vadd.f32 %v6733, %v6761
      %6763 = vmatmul.bf16.gmra.mxu0 %v5039
      %v6764 = vpop.f32.mrf.mxu0
      %v6765 = vadd.f32 %v6736, %v6764
      %v6766 = vpop.f32.mrf.mxu0
      %v6767 = vadd.f32 %v6738, %v6766
      %6768 = vmatmul.bf16.gmra.mxu0 %v5064
      %v6769 = vpop.f32.mrf.mxu0
      %v6770 = vadd.f32 %v6741, %v6769
      %v6771 = vpop.f32.mrf.mxu0
      %v6772 = vadd.f32 %v6743, %v6771
      %6773 = vmatmul.bf16.gmra.mxu0 %v5089
      %v6774 = vpop.f32.mrf.mxu0
      %v6775 = vadd.f32 %v6746, %v6774
      %v6776 = vpop.f32.mrf.mxu0
      %v6777 = vadd.f32 %v6748, %v6776
      %6778 = vdwg.mxu0
      %6779 = vmatpush.bf16.msra.mxu0 %v6113
      %6780 = vmatpush.bf16.msra.mxu0 %v6112
      %6781 = vmatpush.bf16.msra.mxu0 %v6111
      %6782 = vmatpush.bf16.msra.mxu0 %v6110
      %6783 = vmatpush.bf16.msra.mxu0 %v6109
      %6784 = vmatpush.bf16.msra.mxu0 %v6108
      %6785 = vmatpush.bf16.msra.mxu0 %v6107
      %6786 = vmatpush.bf16.msra.mxu0 %v6106
      %6787 = vmatmul.bf16.gmra.mxu0 %v5015
      %v6788 = vpop.f32.mrf.mxu0
      %v6789 = vadd.f32 %v6760, %v6788
      %v6790 = vpop.f32.mrf.mxu0
      %v6791 = vadd.f32 %v6762, %v6790
      %6792 = vmatmul.bf16.gmra.mxu0 %v5040
      %v6793 = vpop.f32.mrf.mxu0
      %v6794 = vadd.f32 %v6765, %v6793
      %v6795 = vpop.f32.mrf.mxu0
      %v6796 = vadd.f32 %v6767, %v6795
      %6797 = vmatmul.bf16.gmra.mxu0 %v5065
      %v6798 = vpop.f32.mrf.mxu0
      %v6799 = vadd.f32 %v6770, %v6798
      %v6800 = vpop.f32.mrf.mxu0
      %v6801 = vadd.f32 %v6772, %v6800
      %6802 = vmatmul.bf16.gmra.mxu0 %v5090
      %v6803 = vpop.f32.mrf.mxu0
      %v6804 = vadd.f32 %v6775, %v6803
      %v6805 = vpop.f32.mrf.mxu0
      %v6806 = vadd.f32 %v6777, %v6805
      %6807 = vdwg.mxu0
      %6808 = vmatpush.bf16.msra.mxu0 %v6121
      %6809 = vmatpush.bf16.msra.mxu0 %v6120
      %6810 = vmatpush.bf16.msra.mxu0 %v6119
      %6811 = vmatpush.bf16.msra.mxu0 %v6118
      %6812 = vmatpush.bf16.msra.mxu0 %v6117
      %6813 = vmatpush.bf16.msra.mxu0 %v6116
      %6814 = vmatpush.bf16.msra.mxu0 %v6115
      %6815 = vmatpush.bf16.msra.mxu0 %v6114
      %6816 = vmatmul.bf16.gmra.mxu0 %v5016
      %v6817 = vpop.f32.mrf.mxu0
      %v6818 = vadd.f32 %v6789, %v6817
      %v6819 = vpop.f32.mrf.mxu0
      %v6820 = vadd.f32 %v6791, %v6819
      %6821 = vmatmul.bf16.gmra.mxu0 %v5041
      %v6822 = vpop.f32.mrf.mxu0
      %v6823 = vadd.f32 %v6794, %v6822
      %v6824 = vpop.f32.mrf.mxu0
      %v6825 = vadd.f32 %v6796, %v6824
      %6826 = vmatmul.bf16.gmra.mxu0 %v5066
      %v6827 = vpop.f32.mrf.mxu0
      %v6828 = vadd.f32 %v6799, %v6827
      %v6829 = vpop.f32.mrf.mxu0
      %v6830 = vadd.f32 %v6801, %v6829
      %6831 = vmatmul.bf16.gmra.mxu0 %v5091
      %v6832 = vpop.f32.mrf.mxu0
      %v6833 = vadd.f32 %v6804, %v6832
      %v6834 = vpop.f32.mrf.mxu0
      %v6835 = vadd.f32 %v6806, %v6834
      %6836 = vdwg.mxu0
      %6837 = vmatpush.bf16.msra.mxu0 %v6129
      %6838 = vmatpush.bf16.msra.mxu0 %v6128
      %6839 = vmatpush.bf16.msra.mxu0 %v6127
      %6840 = vmatpush.bf16.msra.mxu0 %v6126
      %6841 = vmatpush.bf16.msra.mxu0 %v6125
      %6842 = vmatpush.bf16.msra.mxu0 %v6124
      %6843 = vmatpush.bf16.msra.mxu0 %v6123
      %6844 = vmatpush.bf16.msra.mxu0 %v6122
      %6845 = vmatmul.bf16.gmra.mxu0 %v5017
      %v6846 = vpop.f32.mrf.mxu0
      %v6847 = vadd.f32 %v6818, %v6846
      %v6848 = vpop.f32.mrf.mxu0
      %v6849 = vadd.f32 %v6820, %v6848
      %6850 = vmatmul.bf16.gmra.mxu0 %v5042
      %v6851 = vpop.f32.mrf.mxu0
      %v6852 = vadd.f32 %v6823, %v6851
      %v6853 = vpop.f32.mrf.mxu0
      %v6854 = vadd.f32 %v6825, %v6853
      %6855 = vmatmul.bf16.gmra.mxu0 %v5067
      %v6856 = vpop.f32.mrf.mxu0
      %v6857 = vadd.f32 %v6828, %v6856
      %v6858 = vpop.f32.mrf.mxu0
      %v6859 = vadd.f32 %v6830, %v6858
      %6860 = vmatmul.bf16.gmra.mxu0 %v5092
      %v6861 = vpop.f32.mrf.mxu0
      %v6862 = vadd.f32 %v6833, %v6861
      %v6863 = vpop.f32.mrf.mxu0
      %v6864 = vadd.f32 %v6835, %v6863
      %6865 = vdwg.mxu0
      %6866 = vmatpush.bf16.msra.mxu0 %v6137
      %6867 = vmatpush.bf16.msra.mxu0 %v6136
      %6868 = vmatpush.bf16.msra.mxu0 %v6135
      %6869 = vmatpush.bf16.msra.mxu0 %v6134
      %6870 = vmatpush.bf16.msra.mxu0 %v6133
      %6871 = vmatpush.bf16.msra.mxu0 %v6132
      %6872 = vmatpush.bf16.msra.mxu0 %v6131
      %6873 = vmatpush.bf16.msra.mxu0 %v6130
      %6874 = vmatmul.bf16.gmra.mxu0 %v5018
      %v6875 = vpop.f32.mrf.mxu0
      %v6876 = vadd.f32 %v6847, %v6875
      %v6877 = vpop.f32.mrf.mxu0
      %v6878 = vadd.f32 %v6849, %v6877
      %6879 = vmatmul.bf16.gmra.mxu0 %v5043
      %v6880 = vpop.f32.mrf.mxu0
      %v6881 = vadd.f32 %v6852, %v6880
      %v6882 = vpop.f32.mrf.mxu0
      %v6883 = vadd.f32 %v6854, %v6882
      %6884 = vmatmul.bf16.gmra.mxu0 %v5068
      %v6885 = vpop.f32.mrf.mxu0
      %v6886 = vadd.f32 %v6857, %v6885
      %v6887 = vpop.f32.mrf.mxu0
      %v6888 = vadd.f32 %v6859, %v6887
      %6889 = vmatmul.bf16.gmra.mxu0 %v5093
      %v6890 = vpop.f32.mrf.mxu0
      %v6891 = vadd.f32 %v6862, %v6890
      %v6892 = vpop.f32.mrf.mxu0
      %v6893 = vadd.f32 %v6864, %v6892
      %6894 = vdwg.mxu0
      %6895 = vmatpush.bf16.msra.mxu0 %v6145
      %6896 = vmatpush.bf16.msra.mxu0 %v6144
      %6897 = vmatpush.bf16.msra.mxu0 %v6143
      %6898 = vmatpush.bf16.msra.mxu0 %v6142
      %6899 = vmatpush.bf16.msra.mxu0 %v6141
      %6900 = vmatpush.bf16.msra.mxu0 %v6140
      %6901 = vmatpush.bf16.msra.mxu0 %v6139
      %6902 = vmatpush.bf16.msra.mxu0 %v6138
      %6903 = vmatmul.bf16.gmra.mxu0 %v5019
      %v6904 = vpop.f32.mrf.mxu0
      %v6905 = vadd.f32 %v6876, %v6904
      %v6906 = vpop.f32.mrf.mxu0
      %v6907 = vadd.f32 %v6878, %v6906
      %6908 = vmatmul.bf16.gmra.mxu0 %v5044
      %v6909 = vpop.f32.mrf.mxu0
      %v6910 = vadd.f32 %v6881, %v6909
      %v6911 = vpop.f32.mrf.mxu0
      %v6912 = vadd.f32 %v6883, %v6911
      %6913 = vmatmul.bf16.gmra.mxu0 %v5069
      %v6914 = vpop.f32.mrf.mxu0
      %v6915 = vadd.f32 %v6886, %v6914
      %v6916 = vpop.f32.mrf.mxu0
      %v6917 = vadd.f32 %v6888, %v6916
      %6918 = vmatmul.bf16.gmra.mxu0 %v5094
      %v6919 = vpop.f32.mrf.mxu0
      %v6920 = vadd.f32 %v6891, %v6919
      %v6921 = vpop.f32.mrf.mxu0
      %v6922 = vadd.f32 %v6893, %v6921
      %6923 = vdwg.mxu0
      %6924 = vmatpush.bf16.msra.mxu0 %v6153
      %6925 = vmatpush.bf16.msra.mxu0 %v6152
      %6926 = vmatpush.bf16.msra.mxu0 %v6151
      %6927 = vmatpush.bf16.msra.mxu0 %v6150
      %6928 = vmatpush.bf16.msra.mxu0 %v6149
      %6929 = vmatpush.bf16.msra.mxu0 %v6148
      %6930 = vmatpush.bf16.msra.mxu0 %v6147
      %6931 = vmatpush.bf16.msra.mxu0 %v6146
      %6932 = vmatmul.bf16.gmra.mxu0 %v5020
      %v6933 = vpop.f32.mrf.mxu0
      %v6934 = vadd.f32 %v6905, %v6933
      %v6935 = vpop.f32.mrf.mxu0
      %v6936 = vadd.f32 %v6907, %v6935
      %6937 = vmatmul.bf16.gmra.mxu0 %v5045
      %v6938 = vpop.f32.mrf.mxu0
      %v6939 = vadd.f32 %v6910, %v6938
      %v6940 = vpop.f32.mrf.mxu0
      %v6941 = vadd.f32 %v6912, %v6940
      %6942 = vmatmul.bf16.gmra.mxu0 %v5070
      %v6943 = vpop.f32.mrf.mxu0
      %v6944 = vadd.f32 %v6915, %v6943
      %v6945 = vpop.f32.mrf.mxu0
      %v6946 = vadd.f32 %v6917, %v6945
      %6947 = vmatmul.bf16.gmra.mxu0 %v5095
      %v6948 = vpop.f32.mrf.mxu0
      %v6949 = vadd.f32 %v6920, %v6948
      %v6950 = vpop.f32.mrf.mxu0
      %v6951 = vadd.f32 %v6922, %v6950
      %6952 = vdwg.mxu0
      %6953 = vmatpush.bf16.msra.mxu0 %v6161
      %6954 = vmatpush.bf16.msra.mxu0 %v6160
      %6955 = vmatpush.bf16.msra.mxu0 %v6159
      %6956 = vmatpush.bf16.msra.mxu0 %v6158
      %6957 = vmatpush.bf16.msra.mxu0 %v6157
      %6958 = vmatpush.bf16.msra.mxu0 %v6156
      %6959 = vmatpush.bf16.msra.mxu0 %v6155
      %6960 = vmatpush.bf16.msra.mxu0 %v6154
      %6961 = vmatmul.bf16.gmra.mxu0 %v5021
      %v6962 = vpop.f32.mrf.mxu0
      %v6963 = vadd.f32 %v6934, %v6962
      %v6964 = vpop.f32.mrf.mxu0
      %v6965 = vadd.f32 %v6936, %v6964
      %6966 = vmatmul.bf16.gmra.mxu0 %v5046
      %v6967 = vpop.f32.mrf.mxu0
      %v6968 = vadd.f32 %v6939, %v6967
      %v6969 = vpop.f32.mrf.mxu0
      %v6970 = vadd.f32 %v6941, %v6969
      %6971 = vmatmul.bf16.gmra.mxu0 %v5071
      %v6972 = vpop.f32.mrf.mxu0
      %v6973 = vadd.f32 %v6944, %v6972
      %v6974 = vpop.f32.mrf.mxu0
      %v6975 = vadd.f32 %v6946, %v6974
      %6976 = vmatmul.bf16.gmra.mxu0 %v5096
      %v6977 = vpop.f32.mrf.mxu0
      %v6978 = vadd.f32 %v6949, %v6977
      %v6979 = vpop.f32.mrf.mxu0
      %v6980 = vadd.f32 %v6951, %v6979
      %6981 = vdwg.mxu0
      %6982 = vmatpush.bf16.msra.mxu0 %v6169
      %6983 = vmatpush.bf16.msra.mxu0 %v6168
      %6984 = vmatpush.bf16.msra.mxu0 %v6167
      %6985 = vmatpush.bf16.msra.mxu0 %v6166
      %6986 = vmatpush.bf16.msra.mxu0 %v6165
      %6987 = vmatpush.bf16.msra.mxu0 %v6164
      %6988 = vmatpush.bf16.msra.mxu0 %v6163
      %6989 = vmatpush.bf16.msra.mxu0 %v6162
      %6990 = vmatmul.bf16.gmra.mxu0 %v5022
      %v6991 = vpop.f32.mrf.mxu0
      %v6992 = vadd.f32 %v6963, %v6991
      %v6993 = vpop.f32.mrf.mxu0
      %v6994 = vadd.f32 %v6965, %v6993
      %6995 = vmatmul.bf16.gmra.mxu0 %v5047
      %v6996 = vpop.f32.mrf.mxu0
      %v6997 = vadd.f32 %v6968, %v6996
      %v6998 = vpop.f32.mrf.mxu0
      %v6999 = vadd.f32 %v6970, %v6998
      %7000 = vmatmul.bf16.gmra.mxu0 %v5072
      %v7001 = vpop.f32.mrf.mxu0
      %v7002 = vadd.f32 %v6973, %v7001
      %v7003 = vpop.f32.mrf.mxu0
      %v7004 = vadd.f32 %v6975, %v7003
      %7005 = vmatmul.bf16.gmra.mxu0 %v5097
      %v7006 = vpop.f32.mrf.mxu0
      %v7007 = vadd.f32 %v6978, %v7006
      %v7008 = vpop.f32.mrf.mxu0
      %v7009 = vadd.f32 %v6980, %v7008
      %7010 = vdwg.mxu0
      %7011 = vmatpush.bf16.msra.mxu0 %v6177
      %7012 = vmatpush.bf16.msra.mxu0 %v6176
      %7013 = vmatpush.bf16.msra.mxu0 %v6175
      %7014 = vmatpush.bf16.msra.mxu0 %v6174
      %7015 = vmatpush.bf16.msra.mxu0 %v6173
      %7016 = vmatpush.bf16.msra.mxu0 %v6172
      %7017 = vmatpush.bf16.msra.mxu0 %v6171
      %7018 = vmatpush.bf16.msra.mxu0 %v6170
      %7019 = vmatmul.bf16.gmra.mxu0 %v5023
      %v7020 = vpop.f32.mrf.mxu0
      %v7021 = vadd.f32 %v6992, %v7020
      %v7022 = vpop.f32.mrf.mxu0
      %v7023 = vadd.f32 %v6994, %v7022
      %7024 = vmatmul.bf16.gmra.mxu0 %v5048
      %v7025 = vpop.f32.mrf.mxu0
      %v7026 = vadd.f32 %v6997, %v7025
      %v7027 = vpop.f32.mrf.mxu0
      %v7028 = vadd.f32 %v6999, %v7027
      %7029 = vmatmul.bf16.gmra.mxu0 %v5073
      %v7030 = vpop.f32.mrf.mxu0
      %v7031 = vadd.f32 %v7002, %v7030
      %v7032 = vpop.f32.mrf.mxu0
      %v7033 = vadd.f32 %v7004, %v7032
      %7034 = vmatmul.bf16.gmra.mxu0 %v5098
      %v7035 = vpop.f32.mrf.mxu0
      %v7036 = vadd.f32 %v7007, %v7035
      %v7037 = vpop.f32.mrf.mxu0
      %v7038 = vadd.f32 %v7009, %v7037
      %7039 = vdwg.mxu0
      %7040 = vmatpush.bf16.msra.mxu0 %v6185
      %7041 = vmatpush.bf16.msra.mxu0 %v6184
      %7042 = vmatpush.bf16.msra.mxu0 %v6183
      %7043 = vmatpush.bf16.msra.mxu0 %v6182
      %7044 = vmatpush.bf16.msra.mxu0 %v6181
      %7045 = vmatpush.bf16.msra.mxu0 %v6180
      %7046 = vmatpush.bf16.msra.mxu0 %v6179
      %7047 = vmatpush.bf16.msra.mxu0 %v6178
      %7048 = vmatmul.bf16.gmra.mxu0 %v5024
      %v7049 = vpop.f32.mrf.mxu0
      %v7050 = vadd.f32 %v7021, %v7049
      %v7051 = vpop.f32.mrf.mxu0
      %v7052 = vadd.f32 %v7023, %v7051
      %7053 = vmatmul.bf16.gmra.mxu0 %v5049
      %v7054 = vpop.f32.mrf.mxu0
      %v7055 = vadd.f32 %v7026, %v7054
      %v7056 = vpop.f32.mrf.mxu0
      %v7057 = vadd.f32 %v7028, %v7056
      %7058 = vmatmul.bf16.gmra.mxu0 %v5074
      %v7059 = vpop.f32.mrf.mxu0
      %v7060 = vadd.f32 %v7031, %v7059
      %v7061 = vpop.f32.mrf.mxu0
      %v7062 = vadd.f32 %v7033, %v7061
      %7063 = vmatmul.bf16.gmra.mxu0 %v5099
      %v7064 = vpop.f32.mrf.mxu0
      %v7065 = vadd.f32 %v7036, %v7064
      %v7066 = vpop.f32.mrf.mxu0
      %v7067 = vadd.f32 %v7038, %v7066
      %7068 = vdwg.mxu0
      %7069 = vmatpush.bf16.msra.mxu0 %v6193
      %7070 = vmatpush.bf16.msra.mxu0 %v6192
      %7071 = vmatpush.bf16.msra.mxu0 %v6191
      %7072 = vmatpush.bf16.msra.mxu0 %v6190
      %7073 = vmatpush.bf16.msra.mxu0 %v6189
      %7074 = vmatpush.bf16.msra.mxu0 %v6188
      %7075 = vmatpush.bf16.msra.mxu0 %v6187
      %7076 = vmatpush.bf16.msra.mxu0 %v6186
      %7077 = vmatmul.bf16.gmra.mxu0 %v5025
      %v7078 = vpop.f32.mrf.mxu0
      %v7079 = vadd.f32 %v7050, %v7078
      %v7080 = vpop.f32.mrf.mxu0
      %v7081 = vadd.f32 %v7052, %v7080
      %7082 = vmatmul.bf16.gmra.mxu0 %v5050
      %v7083 = vpop.f32.mrf.mxu0
      %v7084 = vadd.f32 %v7055, %v7083
      %v7085 = vpop.f32.mrf.mxu0
      %v7086 = vadd.f32 %v7057, %v7085
      %7087 = vmatmul.bf16.gmra.mxu0 %v5075
      %v7088 = vpop.f32.mrf.mxu0
      %v7089 = vadd.f32 %v7060, %v7088
      %v7090 = vpop.f32.mrf.mxu0
      %v7091 = vadd.f32 %v7062, %v7090
      %7092 = vmatmul.bf16.gmra.mxu0 %v5100
      %v7093 = vpop.f32.mrf.mxu0
      %v7094 = vadd.f32 %v7065, %v7093
      %v7095 = vpop.f32.mrf.mxu0
      %v7096 = vadd.f32 %v7067, %v7095
      %7097 = vdwg.mxu0
      %7098 = vmatpush.bf16.msra.mxu0 %v6201
      %7099 = vmatpush.bf16.msra.mxu0 %v6200
      %7100 = vmatpush.bf16.msra.mxu0 %v6199
      %7101 = vmatpush.bf16.msra.mxu0 %v6198
      %7102 = vmatpush.bf16.msra.mxu0 %v6197
      %7103 = vmatpush.bf16.msra.mxu0 %v6196
      %7104 = vmatpush.bf16.msra.mxu0 %v6195
      %7105 = vmatpush.bf16.msra.mxu0 %v6194
      %7106 = vmatmul.bf16.gmra.mxu0 %v5026
      %v7107 = vpop.f32.mrf.mxu0
      %v7108 = vadd.f32 %v7079, %v7107
      %v7109 = vpop.f32.mrf.mxu0
      %v7110 = vadd.f32 %v7081, %v7109
      %7111 = vmatmul.bf16.gmra.mxu0 %v5051
      %v7112 = vpop.f32.mrf.mxu0
      %v7113 = vadd.f32 %v7084, %v7112
      %v7114 = vpop.f32.mrf.mxu0
      %v7115 = vadd.f32 %v7086, %v7114
      %7116 = vmatmul.bf16.gmra.mxu0 %v5076
      %v7117 = vpop.f32.mrf.mxu0
      %v7118 = vadd.f32 %v7089, %v7117
      %v7119 = vpop.f32.mrf.mxu0
      %v7120 = vadd.f32 %v7091, %v7119
      %7121 = vmatmul.bf16.gmra.mxu0 %v5101
      %v7122 = vpop.f32.mrf.mxu0
      %v7123 = vadd.f32 %v7094, %v7122
      %v7124 = vpop.f32.mrf.mxu0
      %v7125 = vadd.f32 %v7096, %v7124
      %7126 = vdwg.mxu0
      %v7127 = vmul.f32 %v7108, 0.2
      %v7128 = vmul.f32 %v7110, 0.2
      %v7129 = vmul.f32 %v7113, 0.2
      %v7130 = vmul.f32 %v7115, 0.2
      %v7131 = vmul.f32 %v7118, 0.2
      %v7132 = vmul.f32 %v7120, 0.2
      %v7133 = vmul.f32 %v7123, 0.2
      %v7134 = vmul.f32 %v7125, 0.2
      %v7135 = vmax.f32 %v7108, %v7127
      %v7136 = vmax.f32 %v7110, %v7128
      %v7137 = vmax.f32 %v7113, %v7129
      %v7138 = vmax.f32 %v7115, %v7130
      %v7139 = vmax.f32 %v7118, %v7131
      %v7140 = vmax.f32 %v7120, %v7132
      %v7141 = vmax.f32 %v7123, %v7133
      %v7142 = vmax.f32 %v7125, %v7134
      %7143 = vst [vmem:[%s238] sm:$0xff] %v7135
      %7144 = vst [vmem:[%s238 + $0x8] sm:$0xff] %v7136
      %7145 = vst [vmem:[%s238 + $0x10] sm:$0xff] %v7137
      %7146 = vst [vmem:[%s238 + $0x18] sm:$0xff] %v7138
      %7147 = vst [vmem:[%s238 + $0x20] sm:$0xff] %v7139
      %7148 = vst [vmem:[%s238 + $0x28] sm:$0xff] %v7140
      %7149 = vst [vmem:[%s238 + $0x30] sm:$0xff] %v7141
      %7150 = vst [vmem:[%s238 + $0x38] sm:$0xff] %v7142
      %v7151 = vld [vmem:[%s3] sm:$0xff]
      %v7152 = vld [vmem:[%s3 + $0x8] sm:$0xff]
      %v7153 = vld [vmem:[%s3 + $0x10] sm:$0xff]
      %v7154 = vld [vmem:[%s3 + $0x18] sm:$0xff]
      %v7155 = vmul.f32 %v7135, %v7151
      %v7156 = vmul.f32 %v7136, %v7152
      %v7157 = vmul.f32 %v7137, %v7153
      %v7158 = vmul.f32 %v7138, %v7154
      %v7159 = vmul.f32 %v7139, %v7151
      %v7160 = vmul.f32 %v7140, %v7152
      %v7161 = vmul.f32 %v7141, %v7153
      %v7162 = vmul.f32 %v7142, %v7154
      %v7163 = vadd.f32 %v7155, %v7156
      %v7164 = vadd.f32 %v7163, %v7157
      %v7165 = vadd.f32 %v7164, %v7158
      %v7166 = vrot.slane %v7165, 4
      %v7167 = vadd.f32 %v7165, %v7166
      %v7168 = vrot.slane %v7167, 2
      %v7169 = vadd.f32 %v7167, %v7168
      %v7170 = vrot.slane %v7169, 1
      %v7171 = vadd.f32 %v7169, %v7170
      %v7172 = vadd.f32 %v7159, %v7160
      %v7173 = vadd.f32 %v7172, %v7161
      %v7174 = vadd.f32 %v7173, %v7162
      %v7175 = vrot.slane %v7174, 4
      %v7176 = vadd.f32 %v7174, %v7175
      %v7177 = vrot.slane %v7176, 2
      %v7178 = vadd.f32 %v7176, %v7177
      %v7179 = vrot.slane %v7178, 1
      %v7180 = vadd.f32 %v7178, %v7179
      %7181 = vst [vmem:[%s243] sm:$0x1] %v7171
      %7182 = vst [vmem:[%s243 + $0x1] sm:$0x1] %v7180
      %s7183 = smul.u32 2, %s17
      %p7184 = scmp.lt.s32.totalorder %s7183, 3
      %s7185 = scalar_select %p7184, %s7183, 3
      %s7186 = smul.addr %s7185, 4
      %s7187 = smul.addr %s7186, 8
      %s7188 = scalar_lea.vmem %s4, %s7187
      %s7189 = smul.u32 2, %s17
      %p7190 = scmp.lt.s32.totalorder %s7189, 3
      %s7191 = scalar_select %p7190, %s7189, 3
      %s7192 = scalar_lea.vmem %s5, %s7191
      // Predicated region
      $region37: #{discriminator_xx_forward.1} parent=35 // pred_check
        %p7193 = pneg %p124
      $region38: #{discriminator_xx_forward.1} parent=35 // pred_check_branch
        %7195 = sbr.rel (%p7193) target = $region40
      $region39: #{discriminator_xx_forward.1} parent=35 // pred_region
        %s7196 = smul.u32 2, %s17
      $region40: #{discriminator_xx_forward.1} parent=35 // pred_fallthru
        _
      // Predicated region
      $region41: #{discriminator_xx_forward.1} parent=35 // pred_check
        %p7197 = pneg %p150
      $region42: #{discriminator_xx_forward.1} parent=35 // pred_check_branch
        %7199 = sbr.rel (%p7197) target = $region44
      $region43: #{discriminator_xx_forward.1} parent=35 // pred_region
        %s7200 = smul.u32 2, %s17
      $region44: #{discriminator_xx_forward.1} parent=35 // pred_fallthru
        _
    $region36: #{discriminator_xx_forward.1} parent=5 // pred_fallthru
      _
    %p7201 = scmp.le.s32.totalorder 2, %s12
    // Predicated region
    $region45: #{discriminator_xx_forward.1} parent=5 // pred_check
      %p7202 = pneg %p7201
    $region46: #{discriminator_xx_forward.1} parent=5 // pred_check_branch
      %7204 = sbr.rel (%p7202) target = $region48
    $region47: #{discriminator_xx_forward.1} parent=5 // pred_region
      %s7205 = ssub.s32 %s12, 2
      // Predicated region
      $region49: #{discriminator_xx_forward.1} parent=47 // pred_check
        %p7206 = pneg %p130
      $region50: #{discriminator_xx_forward.1} parent=47 // pred_check_branch
        %7208 = sbr.rel (%p7206) target = $region52
      $region51: #{discriminator_xx_forward.1} parent=47 // pred_region
        %s7209 = smul.u32 2, %s18
        %p7210 = scmp.lt.s32.totalorder %s7209, 3
        %s7211 = scalar_select %p7210, %s7209, 3
        %s7212 = smul.addr %s7211, 4
        %s7213 = smul.addr %s7212, 8
        %s7214 = scalar_lea.vmem %s4, %s7213
      $region52: #{discriminator_xx_forward.1} parent=47 // pred_fallthru
        _
      // Predicated region
      $region53: #{discriminator_xx_forward.1} parent=47 // pred_check
        %p7215 = pneg %p156
      $region54: #{discriminator_xx_forward.1} parent=47 // pred_check_branch
        %7217 = sbr.rel (%p7215) target = $region56
      $region55: #{discriminator_xx_forward.1} parent=47 // pred_region
        %s7218 = smul.u32 2, %s18
        %p7219 = scmp.lt.s32.totalorder %s7218, 3
        %s7220 = scalar_select %p7219, %s7218, 3
        %s7221 = scalar_lea.vmem %s5, %s7220
      $region56: #{discriminator_xx_forward.1} parent=47 // pred_fallthru
        _
    $region48: #{discriminator_xx_forward.1} parent=5 // pred_fallthru
      _
  $region6: #{discriminator_xx_forward.1} parent=0 // loop_footer
    %s16 = sadd.s32 1, %s12
  $region7: #{discriminator_xx_forward.1} parent=0 // loop_footer_branch
    %11 = sbr.rel target = $region3
  $region8: #{discriminator_xx_forward.1} parent=0 // loop_exit
    _

</llo_original>
